<compile_context>
chip_gen: v6e
topology: v6e:2x2x1
jax: 0.10.0
libtpu: 0.0.40
codegen_flags: <defaults>
</compile_context>

<pallas_src>
import numpy as np
import jax
import jax.numpy as jnp
from jax.experimental import pallas as pl
from jax.experimental.pallas import tpu as pltpu

C = 256          # channels
K1 = 80          # conv1 kernel size
S1 = 4           # conv1 stride
POOL = 4         # MaxPool1d kernel size (used twice)
K2 = 3           # conv2 kernel size
AVG = 154        # AvgPool1d kernel size
NOUT = 2         # Linear output features
NOUT_PAD = 128   # lane-pad the tiny Linear(256, 2) output to a full lane width


# ------------------------------ fused kernel ------------------------------
def fused_net_kernel(frames_ref, w1_ref, b1_ref, w2_ref, b2_ref,
                     wout_ref, bout_ref, out_ref):
    bb = frames_ref.shape[0]                 # samples per grid step (static)
    l2p = frames_ref.shape[1] // POOL        # padded MaxPool1 output length
    k1 = frames_ref.shape[2]

    # ---- stage 1: conv1 as ONE tall im2col matmul (all phases, all samples) ----
    if bb == 1:
        fr = frames_ref[0]                                   # (POOL*l2p, K1) bf16
    else:
        fr = frames_ref[...].reshape(bb * POOL * l2p, k1)
    a = jnp.dot(fr, w1_ref[...], preferred_element_type=jnp.float32)
    h = jnp.maximum(a + b1_ref[...], 0.0)                    # BN scale folded into w1

    # Hoisted constants / weights (loaded once per grid step).
    b2 = b2_ref[...]
    wout = wout_ref[...]
    bout = bout_ref[...]
    w2_taps = [w2_ref[j * C:(j + 1) * C, :] for j in range(K2)]
    # AvgPool selector: rows t = POOL*g, g < AVG (the 1/AVG factor lives in wout).
    lanes = jax.lax.broadcasted_iota(jnp.int32, (1, l2p), 1)
    sel = jnp.where((lanes % POOL == 0) & (lanes < POOL * AVG),
                    1.0, 0.0).astype(jnp.float32)            # (1, l2p)

    for s in range(bb):                                      # static unroll
        base = s * POOL * l2p
        # MaxPool1d(4) over conv1 == elementwise max of the 4 phase slabs
        # (slab boundaries are multiples of l2p -> sublane-aligned slices).
        p1 = jnp.maximum(
            jnp.maximum(h[base:base + l2p], h[base + l2p:base + 2 * l2p]),
            jnp.maximum(h[base + 2 * l2p:base + 3 * l2p],
                        h[base + 3 * l2p:base + 4 * l2p])).astype(jnp.bfloat16)

        # conv2 (k=3): three accumulating MXU dots on the *unshifted* bf16 p1;
        # the k-tap row shift is applied to the f32 outputs with pltpu.roll
        # (roll by l2p - j  ==  shift rows up by j, i.e. yj[t] <- dot[t + j]).
        c2 = None
        for j in range(K2):
            yj = jnp.dot(p1, w2_taps[j], preferred_element_type=jnp.float32)
            if j:
                yj = pltpu.roll(yj, l2p - j, axis=0)
            c2 = yj if c2 is None else c2 + yj
        h2 = jnp.maximum(c2 + b2, 0.0)                       # (l2p, C) f32

        # MaxPool1d(4): max of h2 with itself shifted up by 1..3 rows.
        m = h2
        for j in range(1, POOL):
            m = jnp.maximum(m, pltpu.roll(h2, l2p - j, axis=0))

        # AvgPool1d(AVG) as an MXU reduction fused into Linear(256, 2)
        # (1/AVG is folded into the lane-padded bf16 wout).
        pooled = jnp.dot(sel, m, preferred_element_type=jnp.float32)   # (1, C)
        y = jnp.dot(pooled.astype(jnp.bfloat16), wout,
                    preferred_element_type=jnp.float32) + bout
        out_ref[s] = y


# ------------------------------ forward wrapper ------------------------------
def net_forward(x_ncw, params, *, samples_per_step=1):
    B, cin, L = x_ncw.shape
    assert cin == 1
    bb = samples_per_step
    assert B % bb == 0
    L1 = (L - K1) // S1 + 1          # conv1 output length
    L2 = L1 // POOL                  # after first MaxPool1d(4)
    L3 = L2 - (K2 - 1)               # conv2 output length
    L4 = L3 // POOL                  # after second MaxPool1d(4)
    # AvgPool1d(154) -> view(B, -1) -> Linear(256, 2) needs exactly one window.
    assert AVG <= L4 <= 2 * AVG - 1, "Net's head needs exactly one AvgPool1d(154) window"
    # Guard the in-kernel roll/selector tricks: conv2 taps and the pooled
    # maxpool windows must only touch valid (non-padded) rows.
    assert L3 + (K2 - 1) <= L2
    assert POOL * AVG <= L3

    # Phase-split im2col in bf16 glue (pure strided slices/concat, no gather):
    # frames[b, r*L2P + g, :] = x[b, 4*(4g+r) : 4*(4g+r)+80].
    x2d = x_ncw[:, 0, :].astype(jnp.bfloat16)
    Q = L // S1
    xq = x2d[:, : Q * S1].reshape(B, Q, S1)
    phases = []
    for r in range(POOL):
        taps = [xq[:, r + j: r + j + POOL * L2: POOL, :] for j in range(K1 // S1)]
        ph = jnp.concatenate(taps, axis=-1)
        assert ph.shape == (B, L2, K1)
        phases.append(ph)
    frames = jnp.stack(phases, axis=1)                          # (B, POOL, L2, K1) bf16
    # Pad rows to a multiple of 16 (bf16 sublane tile); padded rows become
    # relu(bias1) in p1 but are never consumed (asserts above).
    L2P = ((L2 + 15) // 16) * 16
    frames = jnp.pad(frames, ((0, 0), (0, 0), (0, L2P - L2), (0, 0)))
    frames = frames.reshape(B, POOL * L2P, K1)

    out = pl.pallas_call(
        fused_net_kernel,
        out_shape=jax.ShapeDtypeStruct((B, 1, NOUT_PAD), jnp.float32),
        grid=(B // bb,),
        in_specs=[
            pl.BlockSpec((bb, POOL * L2P, K1), lambda i: (i, 0, 0)),
            pl.BlockSpec((K1, C), lambda i: (0, 0)),
            pl.BlockSpec((1, C), lambda i: (0, 0)),
            pl.BlockSpec((K2 * C, C), lambda i: (0, 0)),
            pl.BlockSpec((1, C), lambda i: (0, 0)),
            pl.BlockSpec((C, NOUT_PAD), lambda i: (0, 0)),
            pl.BlockSpec((1, NOUT_PAD), lambda i: (0, 0)),
        ],
        out_specs=pl.BlockSpec((bb, 1, NOUT_PAD), lambda i: (i, 0, 0)),
        compiler_params=pltpu.CompilerParams(
            dimension_semantics=("parallel",),
            vmem_limit_bytes=32 * 1024 * 1024),
    )(frames, params["w1"], params["bias1"],
      params["w2"], params["bias2"],
      params["wout_pad"], params["bout_pad"])
    return out[:, 0, :NOUT]


# ------------------------------ parameters ------------------------------
def init_params(key):
    f32 = jnp.float32
    ks = jax.random.split(key, 12)
    w1 = jax.random.normal(ks[0], (C, 1, K1), f32) / np.sqrt(float(K1))
    b1 = 0.1 * jax.random.normal(ks[1], (C,), f32)
    g1 = 1.0 + 0.1 * jax.random.normal(ks[2], (C,), f32)
    be1 = 0.1 * jax.random.normal(ks[3], (C,), f32)
    m1 = 0.1 * jax.random.normal(ks[4], (C,), f32)
    v1 = jax.random.uniform(ks[5], (C,), f32, 0.5, 1.5)

    w2 = jax.random.normal(ks[6], (C, C, K2), f32) / np.sqrt(float(C * K2))
    b2 = 0.1 * jax.random.normal(ks[7], (C,), f32)
    g2 = 1.0 + 0.1 * jax.random.normal(ks[8], (C,), f32)
    be2 = 0.1 * jax.random.normal(ks[9], (C,), f32)
    m2 = 0.1 * jax.random.normal(ks[10], (C,), f32)
    v2 = jax.random.uniform(ks[11], (C,), f32, 0.5, 1.5)

    kw, kb = jax.random.split(jax.random.fold_in(key, 99))
    wout = jax.random.normal(kw, (NOUT, C), f32) / np.sqrt(float(C))
    bout = 0.1 * jax.random.normal(kb, (NOUT,), f32)

    eps = 1e-5
    # Eval-mode BatchNorm + conv bias folded to per-channel scale/bias; the
    # scales are folded into the weights IN F32, before the bf16 cast.
    scale1 = g1 / jnp.sqrt(v1 + eps)
    bias1 = be1 + (b1 - m1) * scale1
    scale2 = g2 / jnp.sqrt(v2 + eps)
    bias2 = be2 + (b2 - m2) * scale2

    w1_folded = (w1[:, 0, :].T * scale1[None, :]).astype(jnp.bfloat16)       # (K1, C)
    w2_folded = jnp.concatenate(
        [w2[:, :, j].T * scale2[None, :] for j in range(K2)],
        axis=0).astype(jnp.bfloat16)                                         # (K2*C, C)
    wout_pad = jnp.zeros((C, NOUT_PAD), f32).at[:, :NOUT].set(wout.T / AVG)  # 1/AVG folded
    bout_pad = jnp.zeros((1, NOUT_PAD), f32).at[:, :NOUT].set(bout)

    params = dict(
        w1=w1_folded, bias1=bias1.reshape(1, C),
        w2=w2_folded, bias2=bias2.reshape(1, C),
        wout_pad=wout_pad.astype(jnp.bfloat16), bout_pad=bout_pad,
    )
    raw = dict(w1=w1, b1=b1, g1=g1, be1=be1, m1=m1, v1=v1,
               w2=w2, b2=b2, g2=g2, be2=be2, m2=m2, v2=v2,
               wout=wout, bout=bout)
    return params, raw


# ------------------------------ pure-JAX f32 reference ------------------------------
def reference_forward(x_ncw, raw):
    eps = 1e-5
    B, _, L = x_ncw.shape
    x2d = x_ncw[:, 0, :]
    L1 = (L - K1) // S1 + 1
    idx = (jnp.arange(L1) * S1)[:, None] + jnp.arange(K1)[None, :]
    frames = x2d[:, idx]
    c1 = jnp.einsum("blk,ck->blc", frames, raw["w1"][:, 0, :]) + raw["b1"]
    h1 = jnp.maximum((c1 - raw["m1"]) / jnp.sqrt(raw["v1"] + eps) * raw["g1"] + raw["be1"], 0.0)
    L2 = L1 // POOL
    p1 = jnp.max(h1[:, : L2 * POOL].reshape(B, L2, POOL, C), axis=2)
    L3 = L2 - (K2 - 1)
    c2 = (p1[:, 0:L3] @ raw["w2"][:, :, 0].T
          + p1[:, 1:L3 + 1] @ raw["w2"][:, :, 1].T
          + p1[:, 2:L3 + 2] @ raw["w2"][:, :, 2].T) + raw["b2"]
    h2 = jnp.maximum((c2 - raw["m2"]) / jnp.sqrt(raw["v2"] + eps) * raw["g2"] + raw["be2"], 0.0)
    L4 = L3 // POOL
    p2 = jnp.max(h2[:, : L4 * POOL].reshape(B, L4, POOL, C), axis=2)
    pooled = jnp.mean(p2[:, :AVG], axis=1)
    return pooled @ raw["wout"].T + raw["bout"]


if __name__ == "__main__":
    key = jax.random.PRNGKey(0)
    B = 2
    # Smallest length making the module's shape chain exact:
    # 9964 -> conv1: 2472 -> pool: 618 -> conv2: 616 -> pool: 154
    # -> AvgPool1d(154): 1 -> Linear(256, 2).
    L = 9964
    params, raw = init_params(key)
    x = jax.random.normal(jax.random.fold_in(key, 7), (B, 1, L), jnp.float32)

    fwd = jax.jit(net_forward)
    out = jax.block_until_ready(fwd(x, params))

    ref = reference_forward(x, raw)
    err = float(jnp.max(jnp.abs(out - ref)))
    # Matmul operands run in bf16 (f32 accumulation), so the comparison against
    # the pure-f32 reference uses a correspondingly looser bound.
    if not (err < 5e-2):
        raise AssertionError(f"Pallas output mismatch vs reference, max abs err = {err}")
    print("KERNEL_OK")
</pallas_src>

<mosaic_0001>
module attributes {stable_mosaic.version = 11 : i64} {
  func.func @fused_net_kernel(%arg0: i32, %arg1: memref<1x2496x80xbf16, #tpu.memory_space<vmem>>, %arg2: memref<80x256xbf16, #tpu.memory_space<vmem>>, %arg3: memref<1x256xf32, #tpu.memory_space<vmem>>, %arg4: memref<768x256xbf16, #tpu.memory_space<vmem>>, %arg5: memref<1x256xf32, #tpu.memory_space<vmem>>, %arg6: memref<256x128xbf16, #tpu.memory_space<vmem>>, %arg7: memref<1x128xf32, #tpu.memory_space<vmem>>, %arg8: memref<1x1x128xf32, #tpu.memory_space<vmem>>) attributes {dimension_semantics = [#tpu.dimension_semantics<parallel>], iteration_bounds = array<i64: 2>, scalar_prefetch = 0 : i64, scratch_operands = 0 : i64, tpu.core_type = #tpu.core_type<tc>, window_params = [{transform_indices = @transform_0, window_bounds = array<i64: 1, 2496, 80>}, {pipeline_mode = #tpu.pipeline_mode<synchronous>, transform_indices = @transform_1, window_bounds = array<i64: 80, 256>}, {pipeline_mode = #tpu.pipeline_mode<synchronous>, transform_indices = @transform_2, window_bounds = array<i64: 1, 256>}, {pipeline_mode = #tpu.pipeline_mode<synchronous>, transform_indices = @transform_3, window_bounds = array<i64: 768, 256>}, {pipeline_mode = #tpu.pipeline_mode<synchronous>, transform_indices = @transform_4, window_bounds = array<i64: 1, 256>}, {pipeline_mode = #tpu.pipeline_mode<synchronous>, transform_indices = @transform_5, window_bounds = array<i64: 256, 128>}, {pipeline_mode = #tpu.pipeline_mode<synchronous>, transform_indices = @transform_6, window_bounds = array<i64: 1, 128>}, {transform_indices = @transform_7, window_bounds = array<i64: 1, 1, 128>}]} {
    %c0 = arith.constant 0 : index
    %c0_0 = arith.constant 0 : index
    %c0_1 = arith.constant 0 : index
    %0 = vector.load %arg1[%c0, %c0_0, %c0_1] : memref<1x2496x80xbf16, #tpu.memory_space<vmem>>, vector<1x2496x80xbf16>
    %1 = vector.shape_cast %0 : vector<1x2496x80xbf16> to vector<2496x80xbf16>
    %c0_2 = arith.constant 0 : index
    %c0_3 = arith.constant 0 : index
    %2 = vector.load %arg2[%c0_2, %c0_3] : memref<80x256xbf16, #tpu.memory_space<vmem>>, vector<80x256xbf16>
    %cst = arith.constant dense<0.000000e+00> : vector<2496x256xf32>
    %3 = tpu.matmul %1, %2, %cst {dimension_numbers = #tpu.dot_dimension_numbers<[1], [0], [0], [1], [0, 0, 1, 1], [], []>} : vector<2496x80xbf16>, vector<80x256xbf16>, vector<2496x256xf32> -> vector<2496x256xf32>
    %c0_4 = arith.constant 0 : index
    %c0_5 = arith.constant 0 : index
    %4 = vector.load %arg3[%c0_4, %c0_5] : memref<1x256xf32, #tpu.memory_space<vmem>>, vector<1x256xf32>
    %5 = vector.broadcast %4 : vector<1x256xf32> to vector<2496x256xf32>
    %6 = arith.addf %3, %5 : vector<2496x256xf32>
    %cst_6 = arith.constant 0.000000e+00 : f32
    %7 = vector.broadcast %cst_6 : f32 to vector<2496x256xf32>
    %8 = arith.maximumf %6, %7 : vector<2496x256xf32>
    %c0_7 = arith.constant 0 : index
    %c0_8 = arith.constant 0 : index
    %9 = vector.load %arg5[%c0_7, %c0_8] : memref<1x256xf32, #tpu.memory_space<vmem>>, vector<1x256xf32>
    %c0_9 = arith.constant 0 : index
    %c0_10 = arith.constant 0 : index
    %10 = vector.load %arg6[%c0_9, %c0_10] : memref<256x128xbf16, #tpu.memory_space<vmem>>, vector<256x128xbf16>
    %c0_11 = arith.constant 0 : index
    %c0_12 = arith.constant 0 : index
    %11 = vector.load %arg7[%c0_11, %c0_12] : memref<1x128xf32, #tpu.memory_space<vmem>>, vector<1x128xf32>
    %c0_13 = arith.constant 0 : index
    %c0_14 = arith.constant 0 : index
    %12 = vector.load %arg4[%c0_13, %c0_14] : memref<768x256xbf16, #tpu.memory_space<vmem>>, vector<256x256xbf16>
    %c256 = arith.constant 256 : index
    %c0_15 = arith.constant 0 : index
    %13 = vector.load %arg4[%c256, %c0_15] : memref<768x256xbf16, #tpu.memory_space<vmem>>, vector<256x256xbf16>
    %c512 = arith.constant 512 : index
    %c0_16 = arith.constant 0 : index
    %14 = vector.load %arg4[%c512, %c0_16] : memref<768x256xbf16, #tpu.memory_space<vmem>>, vector<256x256xbf16>
    %15 = tpu.iota {dimensions = array<i32: 1>} : vector<1x624xi32>
    %c4_i32 = arith.constant 4 : i32
    %c0_i32 = arith.constant 0 : i32
    %16 = arith.cmpi eq, %c4_i32, %c0_i32 : i32
    %c1_i32 = arith.constant 1 : i32
    %17 = arith.select %16, %c1_i32, %c4_i32 : i32
    %18 = vector.broadcast %17 : i32 to vector<1x624xi32>
    %19 = arith.remsi %15, %18 : vector<1x624xi32>
    %c0_i32_17 = arith.constant 0 : i32
    %20 = vector.broadcast %c0_i32_17 : i32 to vector<1x624xi32>
    %21 = arith.cmpi ne, %19, %20 : vector<1x624xi32>
    %c0_i32_18 = arith.constant 0 : i32
    %22 = vector.broadcast %c0_i32_18 : i32 to vector<1x624xi32>
    %23 = arith.cmpi slt, %19, %22 : vector<1x624xi32>
    %c0_i32_19 = arith.constant 0 : i32
    %24 = arith.cmpi slt, %17, %c0_i32_19 : i32
    %25 = vector.broadcast %24 : i1 to vector<1x624xi1>
    %26 = vector.broadcast %25 : vector<1x624xi1> to vector<1x624xi1>
    %27 = arith.xori %23, %26 : vector<1x624xi1>
    %28 = arith.andi %27, %21 : vector<1x624xi1>
    %29 = vector.broadcast %17 : i32 to vector<1x624xi32>
    %30 = arith.addi %19, %29 : vector<1x624xi32>
    %31 = arith.select %28, %30, %19 : vector<1x624xi1>, vector<1x624xi32>
    %c0_i32_20 = arith.constant 0 : i32
    %32 = vector.broadcast %c0_i32_20 : i32 to vector<1x624xi32>
    %33 = arith.cmpi eq, %31, %32 : vector<1x624xi32>
    %c616_i32 = arith.constant 616 : i32
    %34 = vector.broadcast %c616_i32 : i32 to vector<1x624xi32>
    %35 = arith.cmpi slt, %15, %34 : vector<1x624xi32>
    %36 = arith.andi %33, %35 : vector<1x624xi1>
    %cst_21 = arith.constant 1.000000e+00 : f32
    %cst_22 = arith.constant 0.000000e+00 : f32
    %37 = vector.broadcast %cst_21 : f32 to vector<1x624xf32>
    %38 = vector.broadcast %cst_22 : f32 to vector<1x624xf32>
    %39 = arith.select %36, %37, %38 : vector<1x624xi1>, vector<1x624xf32>
    %40 = vector.extract_strided_slice %8 {offsets = [0, 0], sizes = [624, 256], strides = [1, 1]} : vector<2496x256xf32> to vector<624x256xf32>
    %41 = vector.extract_strided_slice %8 {offsets = [624, 0], sizes = [624, 256], strides = [1, 1]} : vector<2496x256xf32> to vector<624x256xf32>
    %42 = arith.maximumf %40, %41 : vector<624x256xf32>
    %43 = vector.extract_strided_slice %8 {offsets = [1248, 0], sizes = [624, 256], strides = [1, 1]} : vector<2496x256xf32> to vector<624x256xf32>
    %44 = vector.extract_strided_slice %8 {offsets = [1872, 0], sizes = [624, 256], strides = [1, 1]} : vector<2496x256xf32> to vector<624x256xf32>
    %45 = arith.maximumf %43, %44 : vector<624x256xf32>
    %46 = arith.maximumf %42, %45 : vector<624x256xf32>
    %47 = arith.truncf %46 : vector<624x256xf32> to vector<624x256xbf16>
    %cst_23 = arith.constant dense<0.000000e+00> : vector<624x256xf32>
    %48 = tpu.matmul %47, %12, %cst_23 {dimension_numbers = #tpu.dot_dimension_numbers<[1], [0], [0], [1], [0, 0, 1, 1], [], []>} : vector<624x256xbf16>, vector<256x256xbf16>, vector<624x256xf32> -> vector<624x256xf32>
    %cst_24 = arith.constant dense<0.000000e+00> : vector<624x256xf32>
    %49 = tpu.matmul %47, %13, %cst_24 {dimension_numbers = #tpu.dot_dimension_numbers<[1], [0], [0], [1], [0, 0, 1, 1], [], []>} : vector<624x256xbf16>, vector<256x256xbf16>, vector<624x256xf32> -> vector<624x256xf32>
    %c623_i32 = arith.constant 623 : i32
    %50 = tpu.dynamic_rotate %49 by %c623_i32 dim 0 : vector<624x256xf32>, i32 -> vector<624x256xf32>
    %51 = arith.addf %48, %50 : vector<624x256xf32>
    %cst_25 = arith.constant dense<0.000000e+00> : vector<624x256xf32>
    %52 = tpu.matmul %47, %14, %cst_25 {dimension_numbers = #tpu.dot_dimension_numbers<[1], [0], [0], [1], [0, 0, 1, 1], [], []>} : vector<624x256xbf16>, vector<256x256xbf16>, vector<624x256xf32> -> vector<624x256xf32>
    %c622_i32 = arith.constant 622 : i32
    %53 = tpu.dynamic_rotate %52 by %c622_i32 dim 0 : vector<624x256xf32>, i32 -> vector<624x256xf32>
    %54 = arith.addf %51, %53 : vector<624x256xf32>
    %55 = vector.broadcast %9 : vector<1x256xf32> to vector<624x256xf32>
    %56 = arith.addf %54, %55 : vector<624x256xf32>
    %cst_26 = arith.constant 0.000000e+00 : f32
    %57 = vector.broadcast %cst_26 : f32 to vector<624x256xf32>
    %58 = arith.maximumf %56, %57 : vector<624x256xf32>
    %c623_i32_27 = arith.constant 623 : i32
    %59 = tpu.dynamic_rotate %58 by %c623_i32_27 dim 0 : vector<624x256xf32>, i32 -> vector<624x256xf32>
    %60 = arith.maximumf %58, %59 : vector<624x256xf32>
    %c622_i32_28 = arith.constant 622 : i32
    %61 = tpu.dynamic_rotate %58 by %c622_i32_28 dim 0 : vector<624x256xf32>, i32 -> vector<624x256xf32>
    %62 = arith.maximumf %60, %61 : vector<624x256xf32>
    %c621_i32 = arith.constant 621 : i32
    %63 = tpu.dynamic_rotate %58 by %c621_i32 dim 0 : vector<624x256xf32>, i32 -> vector<624x256xf32>
    %64 = arith.maximumf %62, %63 : vector<624x256xf32>
    %cst_29 = arith.constant dense<0.000000e+00> : vector<1x256xf32>
    %65 = tpu.matmul %39, %64, %cst_29 {dimension_numbers = #tpu.dot_dimension_numbers<[1], [0], [0], [1], [0, 0, 1, 1], [], []>} : vector<1x624xf32>, vector<624x256xf32>, vector<1x256xf32> -> vector<1x256xf32>
    %66 = arith.truncf %65 : vector<1x256xf32> to vector<1x256xbf16>
    %cst_30 = arith.constant dense<0.000000e+00> : vector<1x128xf32>
    %67 = tpu.matmul %66, %10, %cst_30 {dimension_numbers = #tpu.dot_dimension_numbers<[1], [0], [0], [1], [0, 0, 1, 1], [], []>} : vector<1x256xbf16>, vector<256x128xbf16>, vector<1x128xf32> -> vector<1x128xf32>
    %68 = arith.addf %67, %11 : vector<1x128xf32>
    %c0_31 = arith.constant 0 : index
    %c0_32 = arith.constant 0 : index
    %c0_33 = arith.constant 0 : index
    %69 = vector.load %arg8[%c0_31, %c0_32, %c0_33] : memref<1x1x128xf32, #tpu.memory_space<vmem>>, vector<1x1x128xf32>
    %70 = vector.shape_cast %69 : vector<1x1x128xf32> to vector<1x128xf32>
    %71 = vector.shape_cast %68 : vector<1x128xf32> to vector<1x1x128xf32>
    tpu.vector_store %arg8[%c0_31, %c0_32, %c0_33], %71 {strides = array<i32>} : memref<1x1x128xf32, #tpu.memory_space<vmem>>, vector<1x1x128xf32>,
    return
  }
  func.func @transform_0(%arg0: i32) -> (i32, i32, i32) {
    %c0_i32 = arith.constant 0 : i32
    %c0_i32_0 = arith.constant 0 : i32
    %c0_i32_1 = arith.constant 0 : i32
    return %arg0, %c0_i32, %c0_i32_0 : i32, i32, i32
  }
  func.func @transform_1(%arg0: i32) -> (i32, i32) {
    %c0_i32 = arith.constant 0 : i32
    %c0_i32_0 = arith.constant 0 : i32
    %c0_i32_1 = arith.constant 0 : i32
    return %c0_i32, %c0_i32_0 : i32, i32
  }
  func.func @transform_2(%arg0: i32) -> (i32, i32) {
    %c0_i32 = arith.constant 0 : i32
    %c0_i32_0 = arith.constant 0 : i32
    %c0_i32_1 = arith.constant 0 : i32
    return %c0_i32, %c0_i32_0 : i32, i32
  }
  func.func @transform_3(%arg0: i32) -> (i32, i32) {
    %c0_i32 = arith.constant 0 : i32
    %c0_i32_0 = arith.constant 0 : i32
    %c0_i32_1 = arith.constant 0 : i32
    return %c0_i32, %c0_i32_0 : i32, i32
  }
  func.func @transform_4(%arg0: i32) -> (i32, i32) {
    %c0_i32 = arith.constant 0 : i32
    %c0_i32_0 = arith.constant 0 : i32
    %c0_i32_1 = arith.constant 0 : i32
    return %c0_i32, %c0_i32_0 : i32, i32
  }
  func.func @transform_5(%arg0: i32) -> (i32, i32) {
    %c0_i32 = arith.constant 0 : i32
    %c0_i32_0 = arith.constant 0 : i32
    %c0_i32_1 = arith.constant 0 : i32
    return %c0_i32, %c0_i32_0 : i32, i32
  }
  func.func @transform_6(%arg0: i32) -> (i32, i32) {
    %c0_i32 = arith.constant 0 : i32
    %c0_i32_0 = arith.constant 0 : i32
    %c0_i32_1 = arith.constant 0 : i32
    return %c0_i32, %c0_i32_0 : i32, i32
  }
  func.func @transform_7(%arg0: i32) -> (i32, i32, i32) {
    %c0_i32 = arith.constant 0 : i32
    %c0_i32_0 = arith.constant 0 : i32
    %c0_i32_1 = arith.constant 0 : i32
    return %arg0, %c0_i32, %c0_i32_0 : i32, i32, i32
  }
}

</mosaic_0001>

<llo_original>
// kernel: net_forward.1
$region0: #{net_forward.1}
  #allocation0 [shape = 'u32[]', space=smem, size = 0x4, offset = 0x4, fixed_abs, tag = 'smem constant byte address 0x4 - core index']
  #allocation1 [shape = 'u32[144,128]{1,0:T(1,128)}', space=vmem, size = 0x12000, scoped, tag = 'internal scratch']
  %s0 = inlined_call_operand.vmem [shape: bf16[2,2496,80], index: 0, kind: input, shape index: {}]
  %s1 = inlined_call_operand.vmem [shape: bf16[80,256], index: 1, kind: input, shape index: {}]
  %s2 = inlined_call_operand.vmem [shape: f32[1,256], index: 2, kind: input, shape index: {}]
  %s3 = inlined_call_operand.vmem [shape: bf16[768,256], index: 3, kind: input, shape index: {}]
  %s4 = inlined_call_operand.vmem [shape: f32[1,256], index: 4, kind: input, shape index: {}]
  %s5 = inlined_call_operand.vmem [shape: bf16[256,128], index: 5, kind: input, shape index: {}]
  %s6 = inlined_call_operand.vmem [shape: f32[1,128], index: 6, kind: input, shape index: {}]
  %s7 = inlined_call_operand.hbm [shape: f32[2,1,128], index: 7, kind: output, shape index: {}]
  %s8 = sld [smem:[#allocation0]]
  $region61: #{net_forward.1} parent=0
    _
  %s10 = ssub.s32 1, %s8
  %s11 = scalar_select 0, %s10, %s8
  $region1: #{net_forward.1} parent=0
    #allocation2 [shape = 'u8[1024]{0}', space=vmem, size = 0x400, scoped, tag = 'output window, operand 0']
    #allocation3 [shape = 's32[2]{0}', space=sflag, size = 0x8, scoped, tag = 'scoped memory for net_forward.1']
    %12 = vsyncpa [#allocation3], 0
    %s13 = scalar_lea.sflag [#allocation3], 1
    %14 = vsyncpa %s13, 0
    loop: start=0, step=1, limit=4
    $region2: #{net_forward.1} parent=1 // loop_pre_header
      _
    $region3: #{net_forward.1} parent=1 // loop_header
      %s16 = sphi 0, %s20
      %p17 = scmp.ge.s32.totalorder %s16, 4
      %s26 = sphi 0, %s28
      %s29 = sphi 0, %s26
      %s30 = sphi 0, %s29
      %s46 = sphi 0, %s30
      %s50 = sphi 0, %s50
      %s52 = sphi 0, %s50
      %s53 = sphi 0, %s52
      %s67 = sphi 0, %s53
      %s71 = sphi 0, %s71
      %s73 = sphi 0, %s71
      %s74 = sphi 0, %s73
      %s88 = sphi 0, %s74
      %s92 = sphi 0, %s92
      %s94 = sphi 0, %s92
      %s95 = sphi 0, %s94
      %s109 = sphi 0, %s95
      %s113 = sphi 0, %s113
      %s115 = sphi 0, %s113
      %s116 = sphi 0, %s115
      %s130 = sphi 0, %s116
      %s134 = sphi 0, %s134
      %s136 = sphi 0, %s134
      %s137 = sphi 0, %s136
      %s151 = sphi 0, %s137
      %s155 = sphi 0, %s155
      %s157 = sphi 0, %s155
      %s158 = sphi 0, %s157
      %s172 = sphi 0, %s158
      %s178 = sphi 0, %s180
      %s181 = sphi 0, %s178
      %s182 = sphi 0, %s181
      %s198 = sphi 0, %s182
    $region4: #{net_forward.1} parent=1 // loop_header_branch
      %19 = sbr.rel (%p17) target = $region8
    $region5: #{net_forward.1} parent=1 // loop_body
      %s21 = ssub.s32 %s16, 1
      %s22 = ssub.s32 %s16, 2
      %s23 = sadd.s32 %s16, 1
      %s24 = ssub.s32 %s16, %s23
      %p25 = scmp.eq.s32.totalorder %s24, 0
      %s27 = sadd.s32 %s26, 1
      %s28 = scalar_select %p25, %s26, %s27
      %p31 = pneg %p25
      %p32 = scmp.eq.s32.totalorder %s16, 1
      %p33 = por %p31, %p32
      %p34 = scmp.ne.s32.totalorder %s26, %s29
      %p35 = scmp.eq.s32.totalorder %s16, 0
      %p36 = por %p34, %p35
      %p37 = scmp.ne.s32.totalorder %s26, %s29
      %p38 = scmp.eq.s32.totalorder %s21, 1
      %p39 = por %p37, %p38
      %p40 = scmp.ne.s32.totalorder %s29, %s30
      %p41 = scmp.eq.s32.totalorder %s21, 0
      %p42 = por %p40, %p41
      %p43 = scmp.ne.s32.totalorder %s29, %s30
      %p44 = scmp.eq.s32.totalorder %s22, 1
      %p45 = por %p43, %p44
      %p47 = scmp.ne.s32.totalorder %s30, %s46
      %p48 = scmp.eq.s32.totalorder %s22, 0
      %p49 = por %p47, %p48
      %s51 = sadd.s32 %s50, 1
      %p54 = scmp.eq.s32.totalorder %s16, 1
      %p55 = scmp.ne.s32.totalorder %s50, %s52
      %p56 = scmp.eq.s32.totalorder %s16, 0
      %p57 = por %p55, %p56
      %p58 = scmp.ne.s32.totalorder %s50, %s52
      %p59 = scmp.eq.s32.totalorder %s21, 1
      %p60 = por %p58, %p59
      %p61 = scmp.ne.s32.totalorder %s52, %s53
      %p62 = scmp.eq.s32.totalorder %s21, 0
      %p63 = por %p61, %p62
      %p64 = scmp.ne.s32.totalorder %s52, %s53
      %p65 = scmp.eq.s32.totalorder %s22, 1
      %p66 = por %p64, %p65
      %p68 = scmp.ne.s32.totalorder %s53, %s67
      %p69 = scmp.eq.s32.totalorder %s22, 0
      %p70 = por %p68, %p69
      %s72 = sadd.s32 %s71, 1
      %p75 = scmp.eq.s32.totalorder %s16, 1
      %p76 = scmp.ne.s32.totalorder %s71, %s73
      %p77 = scmp.eq.s32.totalorder %s16, 0
      %p78 = por %p76, %p77
      %p79 = scmp.ne.s32.totalorder %s71, %s73
      %p80 = scmp.eq.s32.totalorder %s21, 1
      %p81 = por %p79, %p80
      %p82 = scmp.ne.s32.totalorder %s73, %s74
      %p83 = scmp.eq.s32.totalorder %s21, 0
      %p84 = por %p82, %p83
      %p85 = scmp.ne.s32.totalorder %s73, %s74
      %p86 = scmp.eq.s32.totalorder %s22, 1
      %p87 = por %p85, %p86
      %p89 = scmp.ne.s32.totalorder %s74, %s88
      %p90 = scmp.eq.s32.totalorder %s22, 0
      %p91 = por %p89, %p90
      %s93 = sadd.s32 %s92, 1
      %p96 = scmp.eq.s32.totalorder %s16, 1
      %p97 = scmp.ne.s32.totalorder %s92, %s94
      %p98 = scmp.eq.s32.totalorder %s16, 0
      %p99 = por %p97, %p98
      %p100 = scmp.ne.s32.totalorder %s92, %s94
      %p101 = scmp.eq.s32.totalorder %s21, 1
      %p102 = por %p100, %p101
      %p103 = scmp.ne.s32.totalorder %s94, %s95
      %p104 = scmp.eq.s32.totalorder %s21, 0
      %p105 = por %p103, %p104
      %p106 = scmp.ne.s32.totalorder %s94, %s95
      %p107 = scmp.eq.s32.totalorder %s22, 1
      %p108 = por %p106, %p107
      %p110 = scmp.ne.s32.totalorder %s95, %s109
      %p111 = scmp.eq.s32.totalorder %s22, 0
      %p112 = por %p110, %p111
      %s114 = sadd.s32 %s113, 1
      %p117 = scmp.eq.s32.totalorder %s16, 1
      %p118 = scmp.ne.s32.totalorder %s113, %s115
      %p119 = scmp.eq.s32.totalorder %s16, 0
      %p120 = por %p118, %p119
      %p121 = scmp.ne.s32.totalorder %s113, %s115
      %p122 = scmp.eq.s32.totalorder %s21, 1
      %p123 = por %p121, %p122
      %p124 = scmp.ne.s32.totalorder %s115, %s116
      %p125 = scmp.eq.s32.totalorder %s21, 0
      %p126 = por %p124, %p125
      %p127 = scmp.ne.s32.totalorder %s115, %s116
      %p128 = scmp.eq.s32.totalorder %s22, 1
      %p129 = por %p127, %p128
      %p131 = scmp.ne.s32.totalorder %s116, %s130
      %p132 = scmp.eq.s32.totalorder %s22, 0
      %p133 = por %p131, %p132
      %s135 = sadd.s32 %s134, 1
      %p138 = scmp.eq.s32.totalorder %s16, 1
      %p139 = scmp.ne.s32.totalorder %s134, %s136
      %p140 = scmp.eq.s32.totalorder %s16, 0
      %p141 = por %p139, %p140
      %p142 = scmp.ne.s32.totalorder %s134, %s136
      %p143 = scmp.eq.s32.totalorder %s21, 1
      %p144 = por %p142, %p143
      %p145 = scmp.ne.s32.totalorder %s136, %s137
      %p146 = scmp.eq.s32.totalorder %s21, 0
      %p147 = por %p145, %p146
      %p148 = scmp.ne.s32.totalorder %s136, %s137
      %p149 = scmp.eq.s32.totalorder %s22, 1
      %p150 = por %p148, %p149
      %p152 = scmp.ne.s32.totalorder %s137, %s151
      %p153 = scmp.eq.s32.totalorder %s22, 0
      %p154 = por %p152, %p153
      %s156 = sadd.s32 %s155, 1
      %p159 = scmp.eq.s32.totalorder %s16, 1
      %p160 = scmp.ne.s32.totalorder %s155, %s157
      %p161 = scmp.eq.s32.totalorder %s16, 0
      %p162 = por %p160, %p161
      %p163 = scmp.ne.s32.totalorder %s155, %s157
      %p164 = scmp.eq.s32.totalorder %s21, 1
      %p165 = por %p163, %p164
      %p166 = scmp.ne.s32.totalorder %s157, %s158
      %p167 = scmp.eq.s32.totalorder %s21, 0
      %p168 = por %p166, %p167
      %p169 = scmp.ne.s32.totalorder %s157, %s158
      %p170 = scmp.eq.s32.totalorder %s22, 1
      %p171 = por %p169, %p170
      %p173 = scmp.ne.s32.totalorder %s158, %s172
      %p174 = scmp.eq.s32.totalorder %s22, 0
      %p175 = por %p173, %p174
      %s176 = ssub.s32 %s16, %s23
      %p177 = scmp.eq.s32.totalorder %s176, 0
      %s179 = sadd.s32 %s178, 1
      %s180 = scalar_select %p177, %s178, %s179
      %p183 = pneg %p177
      %p184 = scmp.eq.s32.totalorder %s16, 1
      %p185 = por %p183, %p184
      %p186 = scmp.ne.s32.totalorder %s178, %s181
      %p187 = scmp.eq.s32.totalorder %s16, 0
      %p188 = por %p186, %p187
      %p189 = scmp.ne.s32.totalorder %s178, %s181
      %p190 = scmp.eq.s32.totalorder %s21, 1
      %p191 = por %p189, %p190
      %p192 = scmp.ne.s32.totalorder %s181, %s182
      %p193 = scmp.eq.s32.totalorder %s21, 0
      %p194 = por %p192, %p193
      %p195 = scmp.ne.s32.totalorder %s181, %s182
      %p196 = scmp.eq.s32.totalorder %s22, 1
      %p197 = por %p195, %p196
      %p199 = scmp.ne.s32.totalorder %s182, %s198
      %p200 = scmp.eq.s32.totalorder %s22, 0
      %p201 = por %p199, %p200
      %p202 = scmp.le.s32.totalorder 1, %s16
      %p203 = scmp.lt.s32.totalorder %s16, 3
      %p204 = pnand %p202, %p203
      %p205 = pneg %p204
      // Predicated region
      $region9: #{net_forward.1} parent=5 // pred_check
        _
      $region10: #{net_forward.1} parent=5 // pred_check_branch
        %207 = sbr.rel (%p204) target = $region12
      $region11: #{net_forward.1} parent=5 // pred_region
        %s208 = ssub.s32 %s16, 1
        // Predicated region
        $region13: #{net_forward.1} parent=11 // pred_check
          %p209 = pneg %p63
        $region14: #{net_forward.1} parent=11 // pred_check_branch
          %211 = sbr.rel (%p209) target = $region16
        $region15: #{net_forward.1} parent=11 // pred_region
          _
        $region16: #{net_forward.1} parent=11 // pred_fallthru
          _
        // Predicated region
        $region17: #{net_forward.1} parent=11 // pred_check
          %p212 = pneg %p84
        $region18: #{net_forward.1} parent=11 // pred_check_branch
          %214 = sbr.rel (%p212) target = $region20
        $region19: #{net_forward.1} parent=11 // pred_region
          _
        $region20: #{net_forward.1} parent=11 // pred_fallthru
          _
        // Predicated region
        $region21: #{net_forward.1} parent=11 // pred_check
          %p215 = pneg %p105
        $region22: #{net_forward.1} parent=11 // pred_check_branch
          %217 = sbr.rel (%p215) target = $region24
        $region23: #{net_forward.1} parent=11 // pred_region
          _
        $region24: #{net_forward.1} parent=11 // pred_fallthru
          _
        // Predicated region
        $region25: #{net_forward.1} parent=11 // pred_check
          %p218 = pneg %p126
        $region26: #{net_forward.1} parent=11 // pred_check_branch
          %220 = sbr.rel (%p218) target = $region28
        $region27: #{net_forward.1} parent=11 // pred_region
          _
        $region28: #{net_forward.1} parent=11 // pred_fallthru
          _
        // Predicated region
        $region29: #{net_forward.1} parent=11 // pred_check
          %p221 = pneg %p147
        $region30: #{net_forward.1} parent=11 // pred_check_branch
          %223 = sbr.rel (%p221) target = $region32
        $region31: #{net_forward.1} parent=11 // pred_region
          _
        $region32: #{net_forward.1} parent=11 // pred_fallthru
          _
        // Predicated region
        $region33: #{net_forward.1} parent=11 // pred_check
          %p224 = pneg %p168
        $region34: #{net_forward.1} parent=11 // pred_check_branch
          %226 = sbr.rel (%p224) target = $region36
        $region35: #{net_forward.1} parent=11 // pred_region
          _
        $region36: #{net_forward.1} parent=11 // pred_fallthru
          _
      $region12: #{net_forward.1} parent=5 // pred_fallthru
        _
      %p227 = scmp.lt.s32.totalorder %s16, 2
      // Predicated region
      $region37: #{net_forward.1} parent=5 // pred_check
        %p228 = pneg %p227
      $region38: #{net_forward.1} parent=5 // pred_check_branch
        %230 = sbr.rel (%p228) target = $region40
      $region39: #{net_forward.1} parent=5 // pred_region
        // Predicated region
        $region41: #{net_forward.1} parent=39 // pred_check
          %p231 = pneg %p36
        $region42: #{net_forward.1} parent=39 // pred_check_branch
          %233 = sbr.rel (%p231) target = $region44
        $region43: #{net_forward.1} parent=39 // pred_region
          %p234 = scmp.lt.s32.totalorder %s16, 1
          %s235 = scalar_select %p234, %s16, 1
          %s236 = smul.addr %s235, 312
          %s237 = smul.addr %s236, 4
          %s238 = scalar_lea.vmem %s0, %s237
        $region44: #{net_forward.1} parent=39 // pred_fallthru
          _
      $region40: #{net_forward.1} parent=5 // pred_fallthru
        _
      %p239 = scmp.le.s32.totalorder 1, %s16
      %p240 = scmp.lt.s32.totalorder %s16, 3
      %p241 = pnand %p239, %p240
      %p242 = pneg %p241
      // Predicated region
      $region45: #{net_forward.1} parent=5 // pred_check
        _
      $region46: #{net_forward.1} parent=5 // pred_check_branch
        %244 = sbr.rel (%p241) target = $region48
      $region47: #{net_forward.1} parent=5 // pred_region
        %s245 = ssub.s32 %s16, 1
        %p246 = scmp.lt.s32.totalorder %s21, 1
        %s247 = scalar_select %p246, %s21, 1
        %s248 = smul.addr %s247, 312
        %s249 = smul.addr %s248, 4
        %s250 = scalar_lea.vmem %s0, %s249
        %p251 = pneg %p42
        %p252 = pneg %p39
        %p253 = pneg %p63
        %p254 = pneg %p60
        %p255 = pneg %p84
        %p256 = pneg %p81
        %p257 = pneg %p105
        %p258 = pneg %p102
        %p259 = pneg %p126
        %p260 = pneg %p123
        %p261 = pneg %p147
        %p262 = pneg %p144
        %p263 = pneg %p168
        %p264 = pneg %p165
        %p265 = pneg %p194
        %p266 = pneg %p191
        %s267 = sand.u32 %s181, 1
        %s268 = scalar_lea.sflag [#allocation3], %s267
        %s269 = sand.u32 %s181, 1
        %s270 = scalar_lea.vmem [#allocation2], %s269
        %p271 = scmp.lt.s32.totalorder %s21, 1
        %s272 = scalar_select %p271, %s21, 1
        %s273 = smul.addr %s272, 312
        %s274 = smul.addr %s273, 4
        %s275 = scalar_lea.vmem %s0, %s274
        %v277 = vld [vmem:[%s275] sm:$0xf]
        %v278 = vld [vmem:[%s275 + $0x4] sm:$0xf]
        %v279 = vld [vmem:[%s275 + $0x8] sm:$0xf]
        %v280 = vld [vmem:[%s275 + $0xc] sm:$0xf]
        %v281 = vld [vmem:[%s275 + $0x10] sm:$0xf]
        %v282 = vld [vmem:[%s275 + $0x14] sm:$0xf]
        %v283 = vld [vmem:[%s275 + $0x18] sm:$0xf]
        %v284 = vld [vmem:[%s275 + $0x1c] sm:$0xf]
        %v285 = vld [vmem:[%s275 + $0x20] sm:$0xf]
        %v286 = vld [vmem:[%s275 + $0x24] sm:$0xf]
        %v287 = vld [vmem:[%s275 + $0x28] sm:$0xf]
        %v288 = vld [vmem:[%s275 + $0x2c] sm:$0xf]
        %v289 = vld [vmem:[%s275 + $0x30] sm:$0xf]
        %v290 = vld [vmem:[%s275 + $0x34] sm:$0xf]
        %v291 = vld [vmem:[%s275 + $0x38] sm:$0xf]
        %v292 = vld [vmem:[%s275 + $0x3c] sm:$0xf]
        %v293 = vld [vmem:[%s275 + $0x40] sm:$0xf]
        %v294 = vld [vmem:[%s275 + $0x44] sm:$0xf]
        %v295 = vld [vmem:[%s275 + $0x48] sm:$0xf]
        %v296 = vld [vmem:[%s275 + $0x4c] sm:$0xf]
        %v297 = vld [vmem:[%s275 + $0x50] sm:$0xf]
        %v298 = vld [vmem:[%s275 + $0x54] sm:$0xf]
        %v299 = vld [vmem:[%s275 + $0x58] sm:$0xf]
        %v300 = vld [vmem:[%s275 + $0x5c] sm:$0xf]
        %v301 = vld [vmem:[%s275 + $0x60] sm:$0xf]
        %v302 = vld [vmem:[%s275 + $0x64] sm:$0xf]
        %v303 = vld [vmem:[%s275 + $0x68] sm:$0xf]
        %v304 = vld [vmem:[%s275 + $0x6c] sm:$0xf]
        %v305 = vld [vmem:[%s275 + $0x70] sm:$0xf]
        %v306 = vld [vmem:[%s275 + $0x74] sm:$0xf]
        %v307 = vld [vmem:[%s275 + $0x78] sm:$0xf]
        %v308 = vld [vmem:[%s275 + $0x7c] sm:$0xf]
        %v309 = vld [vmem:[%s275 + $0x80] sm:$0xf]
        %v310 = vld [vmem:[%s275 + $0x84] sm:$0xf]
        %v311 = vld [vmem:[%s275 + $0x88] sm:$0xf]
        %v312 = vld [vmem:[%s275 + $0x8c] sm:$0xf]
        %v313 = vld [vmem:[%s275 + $0x90] sm:$0xf]
        %v314 = vld [vmem:[%s275 + $0x94] sm:$0xf]
        %v315 = vld [vmem:[%s275 + $0x98] sm:$0xf]
        %v316 = vld [vmem:[%s275 + $0x9c] sm:$0xf]
        %v317 = vld [vmem:[%s275 + $0xa0] sm:$0xf]
        %v318 = vld [vmem:[%s275 + $0xa4] sm:$0xf]
        %v319 = vld [vmem:[%s275 + $0xa8] sm:$0xf]
        %v320 = vld [vmem:[%s275 + $0xac] sm:$0xf]
        %v321 = vld [vmem:[%s275 + $0xb0] sm:$0xf]
        %v322 = vld [vmem:[%s275 + $0xb4] sm:$0xf]
        %v323 = vld [vmem:[%s275 + $0xb8] sm:$0xf]
        %v324 = vld [vmem:[%s275 + $0xbc] sm:$0xf]
        %v325 = vld [vmem:[%s275 + $0xc0] sm:$0xf]
        %v326 = vld [vmem:[%s275 + $0xc4] sm:$0xf]
        %v327 = vld [vmem:[%s275 + $0xc8] sm:$0xf]
        %v328 = vld [vmem:[%s275 + $0xcc] sm:$0xf]
        %v329 = vld [vmem:[%s275 + $0xd0] sm:$0xf]
        %v330 = vld [vmem:[%s275 + $0xd4] sm:$0xf]
        %v331 = vld [vmem:[%s275 + $0xd8] sm:$0xf]
        %v332 = vld [vmem:[%s275 + $0xdc] sm:$0xf]
        %v333 = vld [vmem:[%s275 + $0xe0] sm:$0xf]
        %v334 = vld [vmem:[%s275 + $0xe4] sm:$0xf]
        %v335 = vld [vmem:[%s275 + $0xe8] sm:$0xf]
        %v336 = vld [vmem:[%s275 + $0xec] sm:$0xf]
        %v337 = vld [vmem:[%s275 + $0xf0] sm:$0xf]
        %v338 = vld [vmem:[%s275 + $0xf4] sm:$0xf]
        %v339 = vld [vmem:[%s275 + $0xf8] sm:$0xf]
        %v340 = vld [vmem:[%s275 + $0xfc] sm:$0xf]
        %v341 = vld [vmem:[%s275 + $0x100] sm:$0xf]
        %v342 = vld [vmem:[%s275 + $0x104] sm:$0xf]
        %v343 = vld [vmem:[%s275 + $0x108] sm:$0xf]
        %v344 = vld [vmem:[%s275 + $0x10c] sm:$0xf]
        %v345 = vld [vmem:[%s275 + $0x110] sm:$0xf]
        %v346 = vld [vmem:[%s275 + $0x114] sm:$0xf]
        %v347 = vld [vmem:[%s275 + $0x118] sm:$0xf]
        %v348 = vld [vmem:[%s275 + $0x11c] sm:$0xf]
        %v349 = vld [vmem:[%s275 + $0x120] sm:$0xf]
        %v350 = vld [vmem:[%s275 + $0x124] sm:$0xf]
        %v351 = vld [vmem:[%s275 + $0x128] sm:$0xf]
        %v352 = vld [vmem:[%s275 + $0x12c] sm:$0xf]
        %v353 = vld [vmem:[%s275 + $0x130] sm:$0xf]
        %v354 = vld [vmem:[%s275 + $0x134] sm:$0xf]
        %v355 = vld [vmem:[%s275 + $0x138] sm:$0xf]
        %v356 = vld [vmem:[%s275 + $0x13c] sm:$0xf]
        %v357 = vld [vmem:[%s275 + $0x140] sm:$0xf]
        %v358 = vld [vmem:[%s275 + $0x144] sm:$0xf]
        %v359 = vld [vmem:[%s275 + $0x148] sm:$0xf]
        %v360 = vld [vmem:[%s275 + $0x14c] sm:$0xf]
        %v361 = vld [vmem:[%s275 + $0x150] sm:$0xf]
        %v362 = vld [vmem:[%s275 + $0x154] sm:$0xf]
        %v363 = vld [vmem:[%s275 + $0x158] sm:$0xf]
        %v364 = vld [vmem:[%s275 + $0x15c] sm:$0xf]
        %v365 = vld [vmem:[%s275 + $0x160] sm:$0xf]
        %v366 = vld [vmem:[%s275 + $0x164] sm:$0xf]
        %v367 = vld [vmem:[%s275 + $0x168] sm:$0xf]
        %v368 = vld [vmem:[%s275 + $0x16c] sm:$0xf]
        %v369 = vld [vmem:[%s275 + $0x170] sm:$0xf]
        %v370 = vld [vmem:[%s275 + $0x174] sm:$0xf]
        %v371 = vld [vmem:[%s275 + $0x178] sm:$0xf]
        %v372 = vld [vmem:[%s275 + $0x17c] sm:$0xf]
        %v373 = vld [vmem:[%s275 + $0x180] sm:$0xf]
        %v374 = vld [vmem:[%s275 + $0x184] sm:$0xf]
        %v375 = vld [vmem:[%s275 + $0x188] sm:$0xf]
        %v376 = vld [vmem:[%s275 + $0x18c] sm:$0xf]
        %v377 = vld [vmem:[%s275 + $0x190] sm:$0xf]
        %v378 = vld [vmem:[%s275 + $0x194] sm:$0xf]
        %v379 = vld [vmem:[%s275 + $0x198] sm:$0xf]
        %v380 = vld [vmem:[%s275 + $0x19c] sm:$0xf]
        %v381 = vld [vmem:[%s275 + $0x1a0] sm:$0xf]
        %v382 = vld [vmem:[%s275 + $0x1a4] sm:$0xf]
        %v383 = vld [vmem:[%s275 + $0x1a8] sm:$0xf]
        %v384 = vld [vmem:[%s275 + $0x1ac] sm:$0xf]
        %v385 = vld [vmem:[%s275 + $0x1b0] sm:$0xf]
        %v386 = vld [vmem:[%s275 + $0x1b4] sm:$0xf]
        %v387 = vld [vmem:[%s275 + $0x1b8] sm:$0xf]
        %v388 = vld [vmem:[%s275 + $0x1bc] sm:$0xf]
        %v389 = vld [vmem:[%s275 + $0x1c0] sm:$0xf]
        %v390 = vld [vmem:[%s275 + $0x1c4] sm:$0xf]
        %v391 = vld [vmem:[%s275 + $0x1c8] sm:$0xf]
        %v392 = vld [vmem:[%s275 + $0x1cc] sm:$0xf]
        %v393 = vld [vmem:[%s275 + $0x1d0] sm:$0xf]
        %v394 = vld [vmem:[%s275 + $0x1d4] sm:$0xf]
        %v395 = vld [vmem:[%s275 + $0x1d8] sm:$0xf]
        %v396 = vld [vmem:[%s275 + $0x1dc] sm:$0xf]
        %v397 = vld [vmem:[%s275 + $0x1e0] sm:$0xf]
        %v398 = vld [vmem:[%s275 + $0x1e4] sm:$0xf]
        %v399 = vld [vmem:[%s275 + $0x1e8] sm:$0xf]
        %v400 = vld [vmem:[%s275 + $0x1ec] sm:$0xf]
        %v401 = vld [vmem:[%s275 + $0x1f0] sm:$0xf]
        %v402 = vld [vmem:[%s275 + $0x1f4] sm:$0xf]
        %v403 = vld [vmem:[%s275 + $0x1f8] sm:$0xf]
        %v404 = vld [vmem:[%s275 + $0x1fc] sm:$0xf]
        %v405 = vld [vmem:[%s275 + $0x200] sm:$0xf]
        %v406 = vld [vmem:[%s275 + $0x204] sm:$0xf]
        %v407 = vld [vmem:[%s275 + $0x208] sm:$0xf]
        %v408 = vld [vmem:[%s275 + $0x20c] sm:$0xf]
        %v409 = vld [vmem:[%s275 + $0x210] sm:$0xf]
        %v410 = vld [vmem:[%s275 + $0x214] sm:$0xf]
        %v411 = vld [vmem:[%s275 + $0x218] sm:$0xf]
        %v412 = vld [vmem:[%s275 + $0x21c] sm:$0xf]
        %v413 = vld [vmem:[%s275 + $0x220] sm:$0xf]
        %v414 = vld [vmem:[%s275 + $0x224] sm:$0xf]
        %v415 = vld [vmem:[%s275 + $0x228] sm:$0xf]
        %v416 = vld [vmem:[%s275 + $0x22c] sm:$0xf]
        %v417 = vld [vmem:[%s275 + $0x230] sm:$0xf]
        %v418 = vld [vmem:[%s275 + $0x234] sm:$0xf]
        %v419 = vld [vmem:[%s275 + $0x238] sm:$0xf]
        %v420 = vld [vmem:[%s275 + $0x23c] sm:$0xf]
        %v421 = vld [vmem:[%s275 + $0x240] sm:$0xf]
        %v422 = vld [vmem:[%s275 + $0x244] sm:$0xf]
        %v423 = vld [vmem:[%s275 + $0x248] sm:$0xf]
        %v424 = vld [vmem:[%s275 + $0x24c] sm:$0xf]
        %v425 = vld [vmem:[%s275 + $0x250] sm:$0xf]
        %v426 = vld [vmem:[%s275 + $0x254] sm:$0xf]
        %v427 = vld [vmem:[%s275 + $0x258] sm:$0xf]
        %v428 = vld [vmem:[%s275 + $0x25c] sm:$0xf]
        %v429 = vld [vmem:[%s275 + $0x260] sm:$0xf]
        %v430 = vld [vmem:[%s275 + $0x264] sm:$0xf]
        %v431 = vld [vmem:[%s275 + $0x268] sm:$0xf]
        %v432 = vld [vmem:[%s275 + $0x26c] sm:$0xf]
        %v433 = vld [vmem:[%s275 + $0x270] sm:$0xf]
        %v434 = vld [vmem:[%s275 + $0x274] sm:$0xf]
        %v435 = vld [vmem:[%s275 + $0x278] sm:$0xf]
        %v436 = vld [vmem:[%s275 + $0x27c] sm:$0xf]
        %v437 = vld [vmem:[%s275 + $0x280] sm:$0xf]
        %v438 = vld [vmem:[%s275 + $0x284] sm:$0xf]
        %v439 = vld [vmem:[%s275 + $0x288] sm:$0xf]
        %v440 = vld [vmem:[%s275 + $0x28c] sm:$0xf]
        %v441 = vld [vmem:[%s275 + $0x290] sm:$0xf]
        %v442 = vld [vmem:[%s275 + $0x294] sm:$0xf]
        %v443 = vld [vmem:[%s275 + $0x298] sm:$0xf]
        %v444 = vld [vmem:[%s275 + $0x29c] sm:$0xf]
        %v445 = vld [vmem:[%s275 + $0x2a0] sm:$0xf]
        %v446 = vld [vmem:[%s275 + $0x2a4] sm:$0xf]
        %v447 = vld [vmem:[%s275 + $0x2a8] sm:$0xf]
        %v448 = vld [vmem:[%s275 + $0x2ac] sm:$0xf]
        %v449 = vld [vmem:[%s275 + $0x2b0] sm:$0xf]
        %v450 = vld [vmem:[%s275 + $0x2b4] sm:$0xf]
        %v451 = vld [vmem:[%s275 + $0x2b8] sm:$0xf]
        %v452 = vld [vmem:[%s275 + $0x2bc] sm:$0xf]
        %v453 = vld [vmem:[%s275 + $0x2c0] sm:$0xf]
        %v454 = vld [vmem:[%s275 + $0x2c4] sm:$0xf]
        %v455 = vld [vmem:[%s275 + $0x2c8] sm:$0xf]
        %v456 = vld [vmem:[%s275 + $0x2cc] sm:$0xf]
        %v457 = vld [vmem:[%s275 + $0x2d0] sm:$0xf]
        %v458 = vld [vmem:[%s275 + $0x2d4] sm:$0xf]
        %v459 = vld [vmem:[%s275 + $0x2d8] sm:$0xf]
        %v460 = vld [vmem:[%s275 + $0x2dc] sm:$0xf]
        %v461 = vld [vmem:[%s275 + $0x2e0] sm:$0xf]
        %v462 = vld [vmem:[%s275 + $0x2e4] sm:$0xf]
        %v463 = vld [vmem:[%s275 + $0x2e8] sm:$0xf]
        %v464 = vld [vmem:[%s275 + $0x2ec] sm:$0xf]
        %v465 = vld [vmem:[%s275 + $0x2f0] sm:$0xf]
        %v466 = vld [vmem:[%s275 + $0x2f4] sm:$0xf]
        %v467 = vld [vmem:[%s275 + $0x2f8] sm:$0xf]
        %v468 = vld [vmem:[%s275 + $0x2fc] sm:$0xf]
        %v469 = vld [vmem:[%s275 + $0x300] sm:$0xf]
        %v470 = vld [vmem:[%s275 + $0x304] sm:$0xf]
        %v471 = vld [vmem:[%s275 + $0x308] sm:$0xf]
        %v472 = vld [vmem:[%s275 + $0x30c] sm:$0xf]
        %v473 = vld [vmem:[%s275 + $0x310] sm:$0xf]
        %v474 = vld [vmem:[%s275 + $0x314] sm:$0xf]
        %v475 = vld [vmem:[%s275 + $0x318] sm:$0xf]
        %v476 = vld [vmem:[%s275 + $0x31c] sm:$0xf]
        %v477 = vld [vmem:[%s275 + $0x320] sm:$0xf]
        %v478 = vld [vmem:[%s275 + $0x324] sm:$0xf]
        %v479 = vld [vmem:[%s275 + $0x328] sm:$0xf]
        %v480 = vld [vmem:[%s275 + $0x32c] sm:$0xf]
        %v481 = vld [vmem:[%s275 + $0x330] sm:$0xf]
        %v482 = vld [vmem:[%s275 + $0x334] sm:$0xf]
        %v483 = vld [vmem:[%s275 + $0x338] sm:$0xf]
        %v484 = vld [vmem:[%s275 + $0x33c] sm:$0xf]
        %v485 = vld [vmem:[%s275 + $0x340] sm:$0xf]
        %v486 = vld [vmem:[%s275 + $0x344] sm:$0xf]
        %v487 = vld [vmem:[%s275 + $0x348] sm:$0xf]
        %v488 = vld [vmem:[%s275 + $0x34c] sm:$0xf]
        %v489 = vld [vmem:[%s275 + $0x350] sm:$0xf]
        %v490 = vld [vmem:[%s275 + $0x354] sm:$0xf]
        %v491 = vld [vmem:[%s275 + $0x358] sm:$0xf]
        %v492 = vld [vmem:[%s275 + $0x35c] sm:$0xf]
        %v493 = vld [vmem:[%s275 + $0x360] sm:$0xf]
        %v494 = vld [vmem:[%s275 + $0x364] sm:$0xf]
        %v495 = vld [vmem:[%s275 + $0x368] sm:$0xf]
        %v496 = vld [vmem:[%s275 + $0x36c] sm:$0xf]
        %v497 = vld [vmem:[%s275 + $0x370] sm:$0xf]
        %v498 = vld [vmem:[%s275 + $0x374] sm:$0xf]
        %v499 = vld [vmem:[%s275 + $0x378] sm:$0xf]
        %v500 = vld [vmem:[%s275 + $0x37c] sm:$0xf]
        %v501 = vld [vmem:[%s275 + $0x380] sm:$0xf]
        %v502 = vld [vmem:[%s275 + $0x384] sm:$0xf]
        %v503 = vld [vmem:[%s275 + $0x388] sm:$0xf]
        %v504 = vld [vmem:[%s275 + $0x38c] sm:$0xf]
        %v505 = vld [vmem:[%s275 + $0x390] sm:$0xf]
        %v506 = vld [vmem:[%s275 + $0x394] sm:$0xf]
        %v507 = vld [vmem:[%s275 + $0x398] sm:$0xf]
        %v508 = vld [vmem:[%s275 + $0x39c] sm:$0xf]
        %v509 = vld [vmem:[%s275 + $0x3a0] sm:$0xf]
        %v510 = vld [vmem:[%s275 + $0x3a4] sm:$0xf]
        %v511 = vld [vmem:[%s275 + $0x3a8] sm:$0xf]
        %v512 = vld [vmem:[%s275 + $0x3ac] sm:$0xf]
        %v513 = vld [vmem:[%s275 + $0x3b0] sm:$0xf]
        %v514 = vld [vmem:[%s275 + $0x3b4] sm:$0xf]
        %v515 = vld [vmem:[%s275 + $0x3b8] sm:$0xf]
        %v516 = vld [vmem:[%s275 + $0x3bc] sm:$0xf]
        %v517 = vld [vmem:[%s275 + $0x3c0] sm:$0xf]
        %v518 = vld [vmem:[%s275 + $0x3c4] sm:$0xf]
        %v519 = vld [vmem:[%s275 + $0x3c8] sm:$0xf]
        %v520 = vld [vmem:[%s275 + $0x3cc] sm:$0xf]
        %v521 = vld [vmem:[%s275 + $0x3d0] sm:$0xf]
        %v522 = vld [vmem:[%s275 + $0x3d4] sm:$0xf]
        %v523 = vld [vmem:[%s275 + $0x3d8] sm:$0xf]
        %v524 = vld [vmem:[%s275 + $0x3dc] sm:$0xf]
        %v525 = vld [vmem:[%s275 + $0x3e0] sm:$0xf]
        %v526 = vld [vmem:[%s275 + $0x3e4] sm:$0xf]
        %v527 = vld [vmem:[%s275 + $0x3e8] sm:$0xf]
        %v528 = vld [vmem:[%s275 + $0x3ec] sm:$0xf]
        %v529 = vld [vmem:[%s275 + $0x3f0] sm:$0xf]
        %v530 = vld [vmem:[%s275 + $0x3f4] sm:$0xf]
        %v531 = vld [vmem:[%s275 + $0x3f8] sm:$0xf]
        %v532 = vld [vmem:[%s275 + $0x3fc] sm:$0xf]
        %v533 = vld [vmem:[%s275 + $0x400] sm:$0xf]
        %v534 = vld [vmem:[%s275 + $0x404] sm:$0xf]
        %v535 = vld [vmem:[%s275 + $0x408] sm:$0xf]
        %v536 = vld [vmem:[%s275 + $0x40c] sm:$0xf]
        %v537 = vld [vmem:[%s275 + $0x410] sm:$0xf]
        %v538 = vld [vmem:[%s275 + $0x414] sm:$0xf]
        %v539 = vld [vmem:[%s275 + $0x418] sm:$0xf]
        %v540 = vld [vmem:[%s275 + $0x41c] sm:$0xf]
        %v541 = vld [vmem:[%s275 + $0x420] sm:$0xf]
        %v542 = vld [vmem:[%s275 + $0x424] sm:$0xf]
        %v543 = vld [vmem:[%s275 + $0x428] sm:$0xf]
        %v544 = vld [vmem:[%s275 + $0x42c] sm:$0xf]
        %v545 = vld [vmem:[%s275 + $0x430] sm:$0xf]
        %v546 = vld [vmem:[%s275 + $0x434] sm:$0xf]
        %v547 = vld [vmem:[%s275 + $0x438] sm:$0xf]
        %v548 = vld [vmem:[%s275 + $0x43c] sm:$0xf]
        %v549 = vld [vmem:[%s275 + $0x440] sm:$0xf]
        %v550 = vld [vmem:[%s275 + $0x444] sm:$0xf]
        %v551 = vld [vmem:[%s275 + $0x448] sm:$0xf]
        %v552 = vld [vmem:[%s275 + $0x44c] sm:$0xf]
        %v553 = vld [vmem:[%s275 + $0x450] sm:$0xf]
        %v554 = vld [vmem:[%s275 + $0x454] sm:$0xf]
        %v555 = vld [vmem:[%s275 + $0x458] sm:$0xf]
        %v556 = vld [vmem:[%s275 + $0x45c] sm:$0xf]
        %v557 = vld [vmem:[%s275 + $0x460] sm:$0xf]
        %v558 = vld [vmem:[%s275 + $0x464] sm:$0xf]
        %v559 = vld [vmem:[%s275 + $0x468] sm:$0xf]
        %v560 = vld [vmem:[%s275 + $0x46c] sm:$0xf]
        %v561 = vld [vmem:[%s275 + $0x470] sm:$0xf]
        %v562 = vld [vmem:[%s275 + $0x474] sm:$0xf]
        %v563 = vld [vmem:[%s275 + $0x478] sm:$0xf]
        %v564 = vld [vmem:[%s275 + $0x47c] sm:$0xf]
        %v565 = vld [vmem:[%s275 + $0x480] sm:$0xf]
        %v566 = vld [vmem:[%s275 + $0x484] sm:$0xf]
        %v567 = vld [vmem:[%s275 + $0x488] sm:$0xf]
        %v568 = vld [vmem:[%s275 + $0x48c] sm:$0xf]
        %v569 = vld [vmem:[%s275 + $0x490] sm:$0xf]
        %v570 = vld [vmem:[%s275 + $0x494] sm:$0xf]
        %v571 = vld [vmem:[%s275 + $0x498] sm:$0xf]
        %v572 = vld [vmem:[%s275 + $0x49c] sm:$0xf]
        %v573 = vld [vmem:[%s275 + $0x4a0] sm:$0xf]
        %v574 = vld [vmem:[%s275 + $0x4a4] sm:$0xf]
        %v575 = vld [vmem:[%s275 + $0x4a8] sm:$0xf]
        %v576 = vld [vmem:[%s275 + $0x4ac] sm:$0xf]
        %v577 = vld [vmem:[%s275 + $0x4b0] sm:$0xf]
        %v578 = vld [vmem:[%s275 + $0x4b4] sm:$0xf]
        %v579 = vld [vmem:[%s275 + $0x4b8] sm:$0xf]
        %v580 = vld [vmem:[%s275 + $0x4bc] sm:$0xf]
        %v581 = vld [vmem:[%s275 + $0x4c0] sm:$0xf]
        %v582 = vld [vmem:[%s275 + $0x4c4] sm:$0xf]
        %v583 = vld [vmem:[%s275 + $0x4c8] sm:$0xf]
        %v584 = vld [vmem:[%s275 + $0x4cc] sm:$0xf]
        %v585 = vld [vmem:[%s275 + $0x4d0] sm:$0xf]
        %v586 = vld [vmem:[%s275 + $0x4d4] sm:$0xf]
        %v587 = vld [vmem:[%s275 + $0x4d8] sm:$0xf]
        %v588 = vld [vmem:[%s275 + $0x4dc] sm:$0xf]
        %v589 = vld [vmem:[%s1] sm:$0xff]
        %v590 = vld [vmem:[%s1 + $0x8] sm:$0xff]
        %v591 = vld [vmem:[%s1 + $0x10] sm:$0xff]
        %v592 = vld [vmem:[%s1 + $0x18] sm:$0xff]
        %v593 = vld [vmem:[%s1 + $0x20] sm:$0xff]
        %v594 = vld [vmem:[%s1 + $0x28] sm:$0xff]
        %v595 = vld [vmem:[%s1 + $0x30] sm:$0xff]
        %v596 = vld [vmem:[%s1 + $0x38] sm:$0xff]
        %v597 = vld [vmem:[%s1 + $0x40] sm:$0xff]
        %v598 = vld [vmem:[%s1 + $0x48] sm:$0xff]
        %v599 = vld [vmem:[%s2] sm:$0x3]
        %v601 = vlaneseq
        %v602 = vshrl.u32 %v601, 7
        %v603 = vsub.s32 0, %v602
        %v604 = vrot.slane %v599, %v603
        %v605 = vlaneseq
        %v606 = vshrl.u32 %v605, 7
        %v607 = vsub.s32 1, %v606
        %v608 = vrot.slane %v599, %v607
        %v923 = vunpack.c.l.b16 %v277
        %v924 = vunpack.c.l.b16 %v278
        %v925 = vunpack.c.l.b16 %v279
        %v926 = vunpack.c.l.b16 %v280
        %v927 = vunpack.c.l.b16 %v281
        %v928 = vunpack.c.l.b16 %v282
        %v929 = vunpack.c.l.b16 %v283
        %v930 = vunpack.c.l.b16 %v284
        %v931 = vunpack.c.l.b16 %v285
        %v932 = vunpack.c.l.b16 %v286
        %v933 = vunpack.c.l.b16 %v287
        %v934 = vunpack.c.l.b16 %v288
        %v935 = vunpack.c.l.b16 %v289
        %v936 = vunpack.c.l.b16 %v290
        %v937 = vunpack.c.l.b16 %v291
        %v938 = vunpack.c.l.b16 %v292
        %v939 = vunpack.c.l.b16 %v293
        %v940 = vunpack.c.l.b16 %v294
        %v941 = vunpack.c.l.b16 %v295
        %v942 = vunpack.c.l.b16 %v296
        %v943 = vunpack.c.l.b16 %v297
        %v944 = vunpack.c.l.b16 %v298
        %v945 = vunpack.c.l.b16 %v299
        %v946 = vunpack.c.l.b16 %v300
        %v947 = vunpack.c.l.b16 %v301
        %v948 = vunpack.c.l.b16 %v302
        %v949 = vunpack.c.l.b16 %v303
        %v950 = vunpack.c.l.b16 %v304
        %v951 = vunpack.c.l.b16 %v305
        %v952 = vunpack.c.l.b16 %v306
        %v953 = vunpack.c.l.b16 %v307
        %v954 = vunpack.c.l.b16 %v308
        %v955 = vunpack.c.l.b16 %v309
        %v956 = vunpack.c.l.b16 %v310
        %v957 = vunpack.c.l.b16 %v311
        %v958 = vunpack.c.l.b16 %v312
        %v959 = vunpack.c.l.b16 %v313
        %v960 = vunpack.c.l.b16 %v314
        %v961 = vunpack.c.l.b16 %v315
        %v962 = vunpack.c.l.b16 %v316
        %v963 = vunpack.c.l.b16 %v317
        %v964 = vunpack.c.l.b16 %v318
        %v965 = vunpack.c.l.b16 %v319
        %v966 = vunpack.c.l.b16 %v320
        %v967 = vunpack.c.l.b16 %v321
        %v968 = vunpack.c.l.b16 %v322
        %v969 = vunpack.c.l.b16 %v323
        %v970 = vunpack.c.l.b16 %v324
        %v971 = vunpack.c.l.b16 %v325
        %v972 = vunpack.c.l.b16 %v326
        %v973 = vunpack.c.l.b16 %v327
        %v974 = vunpack.c.l.b16 %v328
        %v975 = vunpack.c.l.b16 %v329
        %v976 = vunpack.c.l.b16 %v330
        %v977 = vunpack.c.l.b16 %v331
        %v978 = vunpack.c.l.b16 %v332
        %v979 = vunpack.c.l.b16 %v333
        %v980 = vunpack.c.l.b16 %v334
        %v981 = vunpack.c.l.b16 %v335
        %v982 = vunpack.c.l.b16 %v336
        %v983 = vunpack.c.l.b16 %v337
        %v984 = vunpack.c.l.b16 %v338
        %v985 = vunpack.c.l.b16 %v339
        %v986 = vunpack.c.l.b16 %v340
        %v987 = vunpack.c.l.b16 %v341
        %v988 = vunpack.c.l.b16 %v342
        %v989 = vunpack.c.l.b16 %v343
        %v990 = vunpack.c.l.b16 %v344
        %v991 = vunpack.c.l.b16 %v345
        %v992 = vunpack.c.l.b16 %v346
        %v993 = vunpack.c.l.b16 %v347
        %v994 = vunpack.c.l.b16 %v348
        %v995 = vunpack.c.l.b16 %v349
        %v996 = vunpack.c.l.b16 %v350
        %v997 = vunpack.c.l.b16 %v351
        %v998 = vunpack.c.l.b16 %v352
        %v999 = vunpack.c.l.b16 %v353
        %v1000 = vunpack.c.l.b16 %v354
        %v1001 = vunpack.c.l.b16 %v355
        %v1002 = vunpack.c.l.b16 %v356
        %v1003 = vunpack.c.l.b16 %v357
        %v1004 = vunpack.c.l.b16 %v358
        %v1005 = vunpack.c.l.b16 %v359
        %v1006 = vunpack.c.l.b16 %v360
        %v1007 = vunpack.c.l.b16 %v361
        %v1008 = vunpack.c.l.b16 %v362
        %v1009 = vunpack.c.l.b16 %v363
        %v1010 = vunpack.c.l.b16 %v364
        %v1011 = vunpack.c.l.b16 %v365
        %v1012 = vunpack.c.l.b16 %v366
        %v1013 = vunpack.c.l.b16 %v367
        %v1014 = vunpack.c.l.b16 %v368
        %v1015 = vunpack.c.l.b16 %v369
        %v1016 = vunpack.c.l.b16 %v370
        %v1017 = vunpack.c.l.b16 %v371
        %v1018 = vunpack.c.l.b16 %v372
        %v1019 = vunpack.c.l.b16 %v373
        %v1020 = vunpack.c.l.b16 %v374
        %v1021 = vunpack.c.l.b16 %v375
        %v1022 = vunpack.c.l.b16 %v376
        %v1023 = vunpack.c.l.b16 %v377
        %v1024 = vunpack.c.l.b16 %v378
        %v1025 = vunpack.c.l.b16 %v379
        %v1026 = vunpack.c.l.b16 %v380
        %v1027 = vunpack.c.l.b16 %v381
        %v1028 = vunpack.c.l.b16 %v382
        %v1029 = vunpack.c.l.b16 %v383
        %v1030 = vunpack.c.l.b16 %v384
        %v1031 = vunpack.c.l.b16 %v385
        %v1032 = vunpack.c.l.b16 %v386
        %v1033 = vunpack.c.l.b16 %v387
        %v1034 = vunpack.c.l.b16 %v388
        %v1035 = vunpack.c.l.b16 %v389
        %v1036 = vunpack.c.l.b16 %v390
        %v1037 = vunpack.c.l.b16 %v391
        %v1038 = vunpack.c.l.b16 %v392
        %v1039 = vunpack.c.l.b16 %v393
        %v1040 = vunpack.c.l.b16 %v394
        %v1041 = vunpack.c.l.b16 %v395
        %v1042 = vunpack.c.l.b16 %v396
        %v1043 = vunpack.c.l.b16 %v397
        %v1044 = vunpack.c.l.b16 %v398
        %v1045 = vunpack.c.l.b16 %v399
        %v1046 = vunpack.c.l.b16 %v400
        %v1047 = vunpack.c.l.b16 %v401
        %v1048 = vunpack.c.l.b16 %v402
        %v1049 = vunpack.c.l.b16 %v403
        %v1050 = vunpack.c.l.b16 %v404
        %v1051 = vunpack.c.l.b16 %v405
        %v1052 = vunpack.c.l.b16 %v406
        %v1053 = vunpack.c.l.b16 %v407
        %v1054 = vunpack.c.l.b16 %v408
        %v1055 = vunpack.c.l.b16 %v409
        %v1056 = vunpack.c.l.b16 %v410
        %v1057 = vunpack.c.l.b16 %v411
        %v1058 = vunpack.c.l.b16 %v412
        %v1059 = vunpack.c.l.b16 %v413
        %v1060 = vunpack.c.l.b16 %v414
        %v1061 = vunpack.c.l.b16 %v415
        %v1062 = vunpack.c.l.b16 %v416
        %v1063 = vunpack.c.l.b16 %v417
        %v1064 = vunpack.c.l.b16 %v418
        %v1065 = vunpack.c.l.b16 %v419
        %v1066 = vunpack.c.l.b16 %v420
        %v1067 = vunpack.c.l.b16 %v421
        %v1068 = vunpack.c.l.b16 %v422
        %v1069 = vunpack.c.l.b16 %v423
        %v1070 = vunpack.c.l.b16 %v424
        %v1071 = vunpack.c.l.b16 %v425
        %v1072 = vunpack.c.l.b16 %v426
        %v1073 = vunpack.c.l.b16 %v427
        %v1074 = vunpack.c.l.b16 %v428
        %v1075 = vunpack.c.l.b16 %v429
        %v1076 = vunpack.c.l.b16 %v430
        %v1077 = vunpack.c.l.b16 %v431
        %v1078 = vunpack.c.l.b16 %v432
        %v1079 = vunpack.c.l.b16 %v433
        %v1080 = vunpack.c.l.b16 %v434
        %v1081 = vunpack.c.l.b16 %v435
        %v1082 = vunpack.c.l.b16 %v436
        %v1083 = vunpack.c.l.b16 %v437
        %v1084 = vunpack.c.l.b16 %v438
        %v1085 = vunpack.c.l.b16 %v439
        %v1086 = vunpack.c.l.b16 %v440
        %v1087 = vunpack.c.l.b16 %v441
        %v1088 = vunpack.c.l.b16 %v442
        %v1089 = vunpack.c.l.b16 %v443
        %v1090 = vunpack.c.l.b16 %v444
        %v1091 = vunpack.c.l.b16 %v445
        %v1092 = vunpack.c.l.b16 %v446
        %v1093 = vunpack.c.l.b16 %v447
        %v1094 = vunpack.c.l.b16 %v448
        %v1095 = vunpack.c.l.b16 %v449
        %v1096 = vunpack.c.l.b16 %v450
        %v1097 = vunpack.c.l.b16 %v451
        %v1098 = vunpack.c.l.b16 %v452
        %v1099 = vunpack.c.l.b16 %v453
        %v1100 = vunpack.c.l.b16 %v454
        %v1101 = vunpack.c.l.b16 %v455
        %v1102 = vunpack.c.l.b16 %v456
        %v1103 = vunpack.c.l.b16 %v457
        %v1104 = vunpack.c.l.b16 %v458
        %v1105 = vunpack.c.l.b16 %v459
        %v1106 = vunpack.c.l.b16 %v460
        %v1107 = vunpack.c.l.b16 %v461
        %v1108 = vunpack.c.l.b16 %v462
        %v1109 = vunpack.c.l.b16 %v463
        %v1110 = vunpack.c.l.b16 %v464
        %v1111 = vunpack.c.l.b16 %v465
        %v1112 = vunpack.c.l.b16 %v466
        %v1113 = vunpack.c.l.b16 %v467
        %v1114 = vunpack.c.l.b16 %v468
        %v1115 = vunpack.c.l.b16 %v469
        %v1116 = vunpack.c.l.b16 %v470
        %v1117 = vunpack.c.l.b16 %v471
        %v1118 = vunpack.c.l.b16 %v472
        %v1119 = vunpack.c.l.b16 %v473
        %v1120 = vunpack.c.l.b16 %v474
        %v1121 = vunpack.c.l.b16 %v475
        %v1122 = vunpack.c.l.b16 %v476
        %v1123 = vunpack.c.l.b16 %v477
        %v1124 = vunpack.c.l.b16 %v478
        %v1125 = vunpack.c.l.b16 %v479
        %v1126 = vunpack.c.l.b16 %v480
        %v1127 = vunpack.c.l.b16 %v481
        %v1128 = vunpack.c.l.b16 %v482
        %v1129 = vunpack.c.l.b16 %v483
        %v1130 = vunpack.c.l.b16 %v484
        %v1131 = vunpack.c.l.b16 %v485
        %v1132 = vunpack.c.l.b16 %v486
        %v1133 = vunpack.c.l.b16 %v487
        %v1134 = vunpack.c.l.b16 %v488
        %v1135 = vunpack.c.l.b16 %v489
        %v1136 = vunpack.c.l.b16 %v490
        %v1137 = vunpack.c.l.b16 %v491
        %v1138 = vunpack.c.l.b16 %v492
        %v1139 = vunpack.c.l.b16 %v493
        %v1140 = vunpack.c.l.b16 %v494
        %v1141 = vunpack.c.l.b16 %v495
        %v1142 = vunpack.c.l.b16 %v496
        %v1143 = vunpack.c.l.b16 %v497
        %v1144 = vunpack.c.l.b16 %v498
        %v1145 = vunpack.c.l.b16 %v499
        %v1146 = vunpack.c.l.b16 %v500
        %v1147 = vunpack.c.l.b16 %v501
        %v1148 = vunpack.c.l.b16 %v502
        %v1149 = vunpack.c.l.b16 %v503
        %v1150 = vunpack.c.l.b16 %v504
        %v1151 = vunpack.c.l.b16 %v505
        %v1152 = vunpack.c.l.b16 %v506
        %v1153 = vunpack.c.l.b16 %v507
        %v1154 = vunpack.c.l.b16 %v508
        %v1155 = vunpack.c.l.b16 %v509
        %v1156 = vunpack.c.l.b16 %v510
        %v1157 = vunpack.c.l.b16 %v511
        %v1158 = vunpack.c.l.b16 %v512
        %v1159 = vunpack.c.l.b16 %v513
        %v1160 = vunpack.c.l.b16 %v514
        %v1161 = vunpack.c.l.b16 %v515
        %v1162 = vunpack.c.l.b16 %v516
        %v1163 = vunpack.c.l.b16 %v517
        %v1164 = vunpack.c.l.b16 %v518
        %v1165 = vunpack.c.l.b16 %v519
        %v1166 = vunpack.c.l.b16 %v520
        %v1167 = vunpack.c.l.b16 %v521
        %v1168 = vunpack.c.l.b16 %v522
        %v1169 = vunpack.c.l.b16 %v523
        %v1170 = vunpack.c.l.b16 %v524
        %v1171 = vunpack.c.l.b16 %v525
        %v1172 = vunpack.c.l.b16 %v526
        %v1173 = vunpack.c.l.b16 %v527
        %v1174 = vunpack.c.l.b16 %v528
        %v1175 = vunpack.c.l.b16 %v529
        %v1176 = vunpack.c.l.b16 %v530
        %v1177 = vunpack.c.l.b16 %v531
        %v1178 = vunpack.c.l.b16 %v532
        %v1179 = vunpack.c.l.b16 %v533
        %v1180 = vunpack.c.l.b16 %v534
        %v1181 = vunpack.c.l.b16 %v535
        %v1182 = vunpack.c.l.b16 %v536
        %v1183 = vunpack.c.l.b16 %v537
        %v1184 = vunpack.c.l.b16 %v538
        %v1185 = vunpack.c.l.b16 %v539
        %v1186 = vunpack.c.l.b16 %v540
        %v1187 = vunpack.c.l.b16 %v541
        %v1188 = vunpack.c.l.b16 %v542
        %v1189 = vunpack.c.l.b16 %v543
        %v1190 = vunpack.c.l.b16 %v544
        %v1191 = vunpack.c.l.b16 %v545
        %v1192 = vunpack.c.l.b16 %v546
        %v1193 = vunpack.c.l.b16 %v547
        %v1194 = vunpack.c.l.b16 %v548
        %v1195 = vunpack.c.l.b16 %v549
        %v1196 = vunpack.c.l.b16 %v550
        %v1197 = vunpack.c.l.b16 %v551
        %v1198 = vunpack.c.l.b16 %v552
        %v1199 = vunpack.c.l.b16 %v553
        %v1200 = vunpack.c.l.b16 %v554
        %v1201 = vunpack.c.l.b16 %v555
        %v1202 = vunpack.c.l.b16 %v556
        %v1203 = vunpack.c.l.b16 %v557
        %v1204 = vunpack.c.l.b16 %v558
        %v1205 = vunpack.c.l.b16 %v559
        %v1206 = vunpack.c.l.b16 %v560
        %v1207 = vunpack.c.l.b16 %v561
        %v1208 = vunpack.c.l.b16 %v562
        %v1209 = vunpack.c.l.b16 %v563
        %v1210 = vunpack.c.l.b16 %v564
        %v1211 = vunpack.c.l.b16 %v565
        %v1212 = vunpack.c.l.b16 %v566
        %v1213 = vunpack.c.l.b16 %v567
        %v1214 = vunpack.c.l.b16 %v568
        %v1215 = vunpack.c.l.b16 %v569
        %v1216 = vunpack.c.l.b16 %v570
        %v1217 = vunpack.c.l.b16 %v571
        %v1218 = vunpack.c.l.b16 %v572
        %v1219 = vunpack.c.l.b16 %v573
        %v1220 = vunpack.c.l.b16 %v574
        %v1221 = vunpack.c.l.b16 %v575
        %v1222 = vunpack.c.l.b16 %v576
        %v1223 = vunpack.c.l.b16 %v577
        %v1224 = vunpack.c.l.b16 %v578
        %v1225 = vunpack.c.l.b16 %v579
        %v1226 = vunpack.c.l.b16 %v580
        %v1227 = vunpack.c.l.b16 %v581
        %v1228 = vunpack.c.l.b16 %v582
        %v1229 = vunpack.c.l.b16 %v583
        %v1230 = vunpack.c.l.b16 %v584
        %v1231 = vunpack.c.l.b16 %v585
        %v1232 = vunpack.c.l.b16 %v586
        %v1233 = vunpack.c.l.b16 %v587
        %v1234 = vunpack.c.l.b16 %v588
        %v1235 = vpack.c.b16 %v924, %v923
        %v1236 = vpack.c.b16 %v926, %v925
        %v1237 = vpack.c.b16 %v928, %v927
        %v1238 = vpack.c.b16 %v930, %v929
        %v1239 = vpack.c.b16 %v932, %v931
        %v1240 = vpack.c.b16 %v934, %v933
        %v1241 = vpack.c.b16 %v936, %v935
        %v1242 = vpack.c.b16 %v938, %v937
        %v1243 = vpack.c.b16 %v940, %v939
        %v1244 = vpack.c.b16 %v942, %v941
        %v1245 = vpack.c.b16 %v944, %v943
        %v1246 = vpack.c.b16 %v946, %v945
        %v1247 = vpack.c.b16 %v948, %v947
        %v1248 = vpack.c.b16 %v950, %v949
        %v1249 = vpack.c.b16 %v952, %v951
        %v1250 = vpack.c.b16 %v954, %v953
        %v1251 = vpack.c.b16 %v956, %v955
        %v1252 = vpack.c.b16 %v958, %v957
        %v1253 = vpack.c.b16 %v960, %v959
        %v1254 = vpack.c.b16 %v962, %v961
        %v1255 = vpack.c.b16 %v964, %v963
        %v1256 = vpack.c.b16 %v966, %v965
        %v1257 = vpack.c.b16 %v968, %v967
        %v1258 = vpack.c.b16 %v970, %v969
        %v1259 = vpack.c.b16 %v972, %v971
        %v1260 = vpack.c.b16 %v974, %v973
        %v1261 = vpack.c.b16 %v976, %v975
        %v1262 = vpack.c.b16 %v978, %v977
        %v1263 = vpack.c.b16 %v980, %v979
        %v1264 = vpack.c.b16 %v982, %v981
        %v1265 = vpack.c.b16 %v984, %v983
        %v1266 = vpack.c.b16 %v986, %v985
        %v1267 = vpack.c.b16 %v988, %v987
        %v1268 = vpack.c.b16 %v990, %v989
        %v1269 = vpack.c.b16 %v992, %v991
        %v1270 = vpack.c.b16 %v994, %v993
        %v1271 = vpack.c.b16 %v996, %v995
        %v1272 = vpack.c.b16 %v998, %v997
        %v1273 = vpack.c.b16 %v1000, %v999
        %v1274 = vpack.c.b16 %v1002, %v1001
        %v1275 = vpack.c.b16 %v1004, %v1003
        %v1276 = vpack.c.b16 %v1006, %v1005
        %v1277 = vpack.c.b16 %v1008, %v1007
        %v1278 = vpack.c.b16 %v1010, %v1009
        %v1279 = vpack.c.b16 %v1012, %v1011
        %v1280 = vpack.c.b16 %v1014, %v1013
        %v1281 = vpack.c.b16 %v1016, %v1015
        %v1282 = vpack.c.b16 %v1018, %v1017
        %v1283 = vpack.c.b16 %v1020, %v1019
        %v1284 = vpack.c.b16 %v1022, %v1021
        %v1285 = vpack.c.b16 %v1024, %v1023
        %v1286 = vpack.c.b16 %v1026, %v1025
        %v1287 = vpack.c.b16 %v1028, %v1027
        %v1288 = vpack.c.b16 %v1030, %v1029
        %v1289 = vpack.c.b16 %v1032, %v1031
        %v1290 = vpack.c.b16 %v1034, %v1033
        %v1291 = vpack.c.b16 %v1036, %v1035
        %v1292 = vpack.c.b16 %v1038, %v1037
        %v1293 = vpack.c.b16 %v1040, %v1039
        %v1294 = vpack.c.b16 %v1042, %v1041
        %v1295 = vpack.c.b16 %v1044, %v1043
        %v1296 = vpack.c.b16 %v1046, %v1045
        %v1297 = vpack.c.b16 %v1048, %v1047
        %v1298 = vpack.c.b16 %v1050, %v1049
        %v1299 = vpack.c.b16 %v1052, %v1051
        %v1300 = vpack.c.b16 %v1054, %v1053
        %v1301 = vpack.c.b16 %v1056, %v1055
        %v1302 = vpack.c.b16 %v1058, %v1057
        %v1303 = vpack.c.b16 %v1060, %v1059
        %v1304 = vpack.c.b16 %v1062, %v1061
        %v1305 = vpack.c.b16 %v1064, %v1063
        %v1306 = vpack.c.b16 %v1066, %v1065
        %v1307 = vpack.c.b16 %v1068, %v1067
        %v1308 = vpack.c.b16 %v1070, %v1069
        %v1309 = vpack.c.b16 %v1072, %v1071
        %v1310 = vpack.c.b16 %v1074, %v1073
        %v1311 = vpack.c.b16 %v1076, %v1075
        %v1312 = vpack.c.b16 %v1078, %v1077
        %v1313 = vpack.c.b16 %v1080, %v1079
        %v1314 = vpack.c.b16 %v1082, %v1081
        %v1315 = vpack.c.b16 %v1084, %v1083
        %v1316 = vpack.c.b16 %v1086, %v1085
        %v1317 = vpack.c.b16 %v1088, %v1087
        %v1318 = vpack.c.b16 %v1090, %v1089
        %v1319 = vpack.c.b16 %v1092, %v1091
        %v1320 = vpack.c.b16 %v1094, %v1093
        %v1321 = vpack.c.b16 %v1096, %v1095
        %v1322 = vpack.c.b16 %v1098, %v1097
        %v1323 = vpack.c.b16 %v1100, %v1099
        %v1324 = vpack.c.b16 %v1102, %v1101
        %v1325 = vpack.c.b16 %v1104, %v1103
        %v1326 = vpack.c.b16 %v1106, %v1105
        %v1327 = vpack.c.b16 %v1108, %v1107
        %v1328 = vpack.c.b16 %v1110, %v1109
        %v1329 = vpack.c.b16 %v1112, %v1111
        %v1330 = vpack.c.b16 %v1114, %v1113
        %v1331 = vpack.c.b16 %v1116, %v1115
        %v1332 = vpack.c.b16 %v1118, %v1117
        %v1333 = vpack.c.b16 %v1120, %v1119
        %v1334 = vpack.c.b16 %v1122, %v1121
        %v1335 = vpack.c.b16 %v1124, %v1123
        %v1336 = vpack.c.b16 %v1126, %v1125
        %v1337 = vpack.c.b16 %v1128, %v1127
        %v1338 = vpack.c.b16 %v1130, %v1129
        %v1339 = vpack.c.b16 %v1132, %v1131
        %v1340 = vpack.c.b16 %v1134, %v1133
        %v1341 = vpack.c.b16 %v1136, %v1135
        %v1342 = vpack.c.b16 %v1138, %v1137
        %v1343 = vpack.c.b16 %v1140, %v1139
        %v1344 = vpack.c.b16 %v1142, %v1141
        %v1345 = vpack.c.b16 %v1144, %v1143
        %v1346 = vpack.c.b16 %v1146, %v1145
        %v1347 = vpack.c.b16 %v1148, %v1147
        %v1348 = vpack.c.b16 %v1150, %v1149
        %v1349 = vpack.c.b16 %v1152, %v1151
        %v1350 = vpack.c.b16 %v1154, %v1153
        %v1351 = vpack.c.b16 %v1156, %v1155
        %v1352 = vpack.c.b16 %v1158, %v1157
        %v1353 = vpack.c.b16 %v1160, %v1159
        %v1354 = vpack.c.b16 %v1162, %v1161
        %v1355 = vpack.c.b16 %v1164, %v1163
        %v1356 = vpack.c.b16 %v1166, %v1165
        %v1357 = vpack.c.b16 %v1168, %v1167
        %v1358 = vpack.c.b16 %v1170, %v1169
        %v1359 = vpack.c.b16 %v1172, %v1171
        %v1360 = vpack.c.b16 %v1174, %v1173
        %v1361 = vpack.c.b16 %v1176, %v1175
        %v1362 = vpack.c.b16 %v1178, %v1177
        %v1363 = vpack.c.b16 %v1180, %v1179
        %v1364 = vpack.c.b16 %v1182, %v1181
        %v1365 = vpack.c.b16 %v1184, %v1183
        %v1366 = vpack.c.b16 %v1186, %v1185
        %v1367 = vpack.c.b16 %v1188, %v1187
        %v1368 = vpack.c.b16 %v1190, %v1189
        %v1369 = vpack.c.b16 %v1192, %v1191
        %v1370 = vpack.c.b16 %v1194, %v1193
        %v1371 = vpack.c.b16 %v1196, %v1195
        %v1372 = vpack.c.b16 %v1198, %v1197
        %v1373 = vpack.c.b16 %v1200, %v1199
        %v1374 = vpack.c.b16 %v1202, %v1201
        %v1375 = vpack.c.b16 %v1204, %v1203
        %v1376 = vpack.c.b16 %v1206, %v1205
        %v1377 = vpack.c.b16 %v1208, %v1207
        %v1378 = vpack.c.b16 %v1210, %v1209
        %v1379 = vpack.c.b16 %v1212, %v1211
        %v1380 = vpack.c.b16 %v1214, %v1213
        %v1381 = vpack.c.b16 %v1216, %v1215
        %v1382 = vpack.c.b16 %v1218, %v1217
        %v1383 = vpack.c.b16 %v1220, %v1219
        %v1384 = vpack.c.b16 %v1222, %v1221
        %v1385 = vpack.c.b16 %v1224, %v1223
        %v1386 = vpack.c.b16 %v1226, %v1225
        %v1387 = vpack.c.b16 %v1228, %v1227
        %v1388 = vpack.c.b16 %v1230, %v1229
        %v1389 = vpack.c.b16 %v1232, %v1231
        %v1390 = vpack.c.b16 %v1234, %v1233
        %v1401 = vunpack.c.l.b16 %v589
        %v1402 = vunpack.c.h.b16 %v589
        %v1403 = vunpack.c.l.b16 %v590
        %v1404 = vunpack.c.h.b16 %v590
        %v1405 = vunpack.c.l.b16 %v591
        %v1406 = vunpack.c.h.b16 %v591
        %v1407 = vunpack.c.l.b16 %v592
        %v1408 = vunpack.c.h.b16 %v592
        %v1409 = vunpack.c.l.b16 %v593
        %v1410 = vunpack.c.h.b16 %v593
        %v1411 = vunpack.c.l.b16 %v594
        %v1412 = vunpack.c.h.b16 %v594
        %v1413 = vunpack.c.l.b16 %v595
        %v1414 = vunpack.c.h.b16 %v595
        %v1415 = vunpack.c.l.b16 %v596
        %v1416 = vunpack.c.h.b16 %v596
        %v1417 = vunpack.c.l.b16 %v597
        %v1418 = vunpack.c.h.b16 %v597
        %v1419 = vunpack.c.l.b16 %v598
        %v1420 = vunpack.c.h.b16 %v598
        %v1421 = vpack.c.b16 %v1403, %v1401
        %v1422 = vpack.c.b16 %v1404, %v1402
        %v1423 = vpack.c.b16 %v1407, %v1405
        %v1424 = vpack.c.b16 %v1408, %v1406
        %v1425 = vpack.c.b16 %v1411, %v1409
        %v1426 = vpack.c.b16 %v1412, %v1410
        %v1427 = vpack.c.b16 %v1415, %v1413
        %v1428 = vpack.c.b16 %v1416, %v1414
        %v1429 = vpack.c.b16 %v1419, %v1417
        %v1430 = vpack.c.b16 %v1420, %v1418
        %vm1441 = vcmask 654336
        %v1443 = vsel %vm1441, %v1235, 0
        %v1446 = vsel %vm1441, %v1236, 0
        %v1449 = vsel %vm1441, %v1237, 0
        %v1452 = vsel %vm1441, %v1238, 0
        %v1455 = vsel %vm1441, %v1239, 0
        %v1458 = vsel %vm1441, %v1240, 0
        %v1461 = vsel %vm1441, %v1241, 0
        %v1464 = vsel %vm1441, %v1242, 0
        %v1467 = vsel %vm1441, %v1243, 0
        %v1470 = vsel %vm1441, %v1244, 0
        %v1473 = vsel %vm1441, %v1245, 0
        %v1476 = vsel %vm1441, %v1246, 0
        %v1479 = vsel %vm1441, %v1247, 0
        %v1482 = vsel %vm1441, %v1248, 0
        %v1485 = vsel %vm1441, %v1249, 0
        %v1488 = vsel %vm1441, %v1250, 0
        %v1491 = vsel %vm1441, %v1251, 0
        %v1494 = vsel %vm1441, %v1252, 0
        %v1497 = vsel %vm1441, %v1253, 0
        %v1500 = vsel %vm1441, %v1254, 0
        %v1503 = vsel %vm1441, %v1255, 0
        %v1506 = vsel %vm1441, %v1256, 0
        %v1509 = vsel %vm1441, %v1257, 0
        %v1512 = vsel %vm1441, %v1258, 0
        %v1515 = vsel %vm1441, %v1259, 0
        %v1518 = vsel %vm1441, %v1260, 0
        %v1521 = vsel %vm1441, %v1261, 0
        %v1524 = vsel %vm1441, %v1262, 0
        %v1527 = vsel %vm1441, %v1263, 0
        %v1530 = vsel %vm1441, %v1264, 0
        %v1533 = vsel %vm1441, %v1265, 0
        %v1536 = vsel %vm1441, %v1266, 0
        %v1539 = vsel %vm1441, %v1267, 0
        %v1542 = vsel %vm1441, %v1268, 0
        %v1545 = vsel %vm1441, %v1269, 0
        %v1548 = vsel %vm1441, %v1270, 0
        %v1551 = vsel %vm1441, %v1271, 0
        %v1554 = vsel %vm1441, %v1272, 0
        %v1557 = vsel %vm1441, %v1273, 0
        %v1560 = vsel %vm1441, %v1274, 0
        %v1563 = vsel %vm1441, %v1275, 0
        %v1566 = vsel %vm1441, %v1276, 0
        %v1569 = vsel %vm1441, %v1277, 0
        %v1572 = vsel %vm1441, %v1278, 0
        %v1575 = vsel %vm1441, %v1279, 0
        %v1578 = vsel %vm1441, %v1280, 0
        %v1581 = vsel %vm1441, %v1281, 0
        %v1584 = vsel %vm1441, %v1282, 0
        %v1587 = vsel %vm1441, %v1283, 0
        %v1590 = vsel %vm1441, %v1284, 0
        %v1593 = vsel %vm1441, %v1285, 0
        %v1596 = vsel %vm1441, %v1286, 0
        %v1599 = vsel %vm1441, %v1287, 0
        %v1602 = vsel %vm1441, %v1288, 0
        %v1605 = vsel %vm1441, %v1289, 0
        %v1608 = vsel %vm1441, %v1290, 0
        %v1611 = vsel %vm1441, %v1291, 0
        %v1614 = vsel %vm1441, %v1292, 0
        %v1617 = vsel %vm1441, %v1293, 0
        %v1620 = vsel %vm1441, %v1294, 0
        %v1623 = vsel %vm1441, %v1295, 0
        %v1626 = vsel %vm1441, %v1296, 0
        %v1629 = vsel %vm1441, %v1297, 0
        %v1632 = vsel %vm1441, %v1298, 0
        %v1635 = vsel %vm1441, %v1299, 0
        %v1638 = vsel %vm1441, %v1300, 0
        %v1641 = vsel %vm1441, %v1301, 0
        %v1644 = vsel %vm1441, %v1302, 0
        %v1647 = vsel %vm1441, %v1303, 0
        %v1650 = vsel %vm1441, %v1304, 0
        %v1653 = vsel %vm1441, %v1305, 0
        %v1656 = vsel %vm1441, %v1306, 0
        %v1659 = vsel %vm1441, %v1307, 0
        %v1662 = vsel %vm1441, %v1308, 0
        %v1665 = vsel %vm1441, %v1309, 0
        %v1668 = vsel %vm1441, %v1310, 0
        %v1671 = vsel %vm1441, %v1311, 0
        %v1674 = vsel %vm1441, %v1312, 0
        %v1677 = vsel %vm1441, %v1313, 0
        %v1680 = vsel %vm1441, %v1314, 0
        %v1683 = vsel %vm1441, %v1315, 0
        %v1686 = vsel %vm1441, %v1316, 0
        %v1689 = vsel %vm1441, %v1317, 0
        %v1692 = vsel %vm1441, %v1318, 0
        %v1695 = vsel %vm1441, %v1319, 0
        %v1698 = vsel %vm1441, %v1320, 0
        %v1701 = vsel %vm1441, %v1321, 0
        %v1704 = vsel %vm1441, %v1322, 0
        %v1707 = vsel %vm1441, %v1323, 0
        %v1710 = vsel %vm1441, %v1324, 0
        %v1713 = vsel %vm1441, %v1325, 0
        %v1716 = vsel %vm1441, %v1326, 0
        %v1719 = vsel %vm1441, %v1327, 0
        %v1722 = vsel %vm1441, %v1328, 0
        %v1725 = vsel %vm1441, %v1329, 0
        %v1728 = vsel %vm1441, %v1330, 0
        %v1731 = vsel %vm1441, %v1331, 0
        %v1734 = vsel %vm1441, %v1332, 0
        %v1737 = vsel %vm1441, %v1333, 0
        %v1740 = vsel %vm1441, %v1334, 0
        %v1743 = vsel %vm1441, %v1335, 0
        %v1746 = vsel %vm1441, %v1336, 0
        %v1749 = vsel %vm1441, %v1337, 0
        %v1752 = vsel %vm1441, %v1338, 0
        %v1755 = vsel %vm1441, %v1339, 0
        %v1758 = vsel %vm1441, %v1340, 0
        %v1761 = vsel %vm1441, %v1341, 0
        %v1764 = vsel %vm1441, %v1342, 0
        %v1767 = vsel %vm1441, %v1343, 0
        %v1770 = vsel %vm1441, %v1344, 0
        %v1773 = vsel %vm1441, %v1345, 0
        %v1776 = vsel %vm1441, %v1346, 0
        %v1779 = vsel %vm1441, %v1347, 0
        %v1782 = vsel %vm1441, %v1348, 0
        %v1785 = vsel %vm1441, %v1349, 0
        %v1788 = vsel %vm1441, %v1350, 0
        %v1791 = vsel %vm1441, %v1351, 0
        %v1794 = vsel %vm1441, %v1352, 0
        %v1797 = vsel %vm1441, %v1353, 0
        %v1800 = vsel %vm1441, %v1354, 0
        %v1803 = vsel %vm1441, %v1355, 0
        %v1806 = vsel %vm1441, %v1356, 0
        %v1809 = vsel %vm1441, %v1357, 0
        %v1812 = vsel %vm1441, %v1358, 0
        %v1815 = vsel %vm1441, %v1359, 0
        %v1818 = vsel %vm1441, %v1360, 0
        %v1821 = vsel %vm1441, %v1361, 0
        %v1824 = vsel %vm1441, %v1362, 0
        %v1827 = vsel %vm1441, %v1363, 0
        %v1830 = vsel %vm1441, %v1364, 0
        %v1833 = vsel %vm1441, %v1365, 0
        %v1836 = vsel %vm1441, %v1366, 0
        %v1839 = vsel %vm1441, %v1367, 0
        %v1842 = vsel %vm1441, %v1368, 0
        %v1845 = vsel %vm1441, %v1369, 0
        %v1848 = vsel %vm1441, %v1370, 0
        %v1851 = vsel %vm1441, %v1371, 0
        %v1854 = vsel %vm1441, %v1372, 0
        %v1857 = vsel %vm1441, %v1373, 0
        %v1860 = vsel %vm1441, %v1374, 0
        %v1863 = vsel %vm1441, %v1375, 0
        %v1866 = vsel %vm1441, %v1376, 0
        %v1869 = vsel %vm1441, %v1377, 0
        %v1872 = vsel %vm1441, %v1378, 0
        %v1875 = vsel %vm1441, %v1379, 0
        %v1878 = vsel %vm1441, %v1380, 0
        %v1881 = vsel %vm1441, %v1381, 0
        %v1884 = vsel %vm1441, %v1382, 0
        %v1887 = vsel %vm1441, %v1383, 0
        %v1890 = vsel %vm1441, %v1384, 0
        %v1893 = vsel %vm1441, %v1385, 0
        %v1896 = vsel %vm1441, %v1386, 0
        %v1899 = vsel %vm1441, %v1387, 0
        %v1902 = vsel %vm1441, %v1388, 0
        %v1905 = vsel %vm1441, %v1389, 0
        %v1908 = vsel %vm1441, %v1390, 0
        %1910 = vmatprep.subr.bf16.mxu0 0
        %1911 = vmatpush1.bf16.msra.mxu0 0
        %1912 = vmatprep.subr.bf16.mxu0 0
        %1913 = vmatpush1.bf16.msra.mxu0 0
        %1914 = vmatprep.subr.bf16.mxu0 0
        %1915 = vmatpush1.bf16.msra.mxu0 0
        %1916 = vmatprep.subr.bf16.mxu0 %v1430
        %1917 = vmatpush1.bf16.msra.mxu0 %v1429
        %1918 = vmatprep.subr.bf16.mxu0 %v1428
        %1919 = vmatpush1.bf16.msra.mxu0 %v1427
        %1920 = vmatprep.subr.bf16.mxu0 %v1426
        %1921 = vmatpush1.bf16.msra.mxu0 %v1425
        %1922 = vmatprep.subr.bf16.mxu0 %v1424
        %1923 = vmatpush1.bf16.msra.mxu0 %v1423
        %1924 = vmatprep.subr.bf16.mxu0 %v1422
        %1925 = vmatpush1.bf16.msra.mxu0 %v1421
        %1926 = vmatprep.subr.bf16.mxu0 0
        %1927 = vmatpush2.bf16.msra.mxu0 0
        %1928 = vmatprep.subr.bf16.mxu0 0
        %1929 = vmatpush2.bf16.msra.mxu0 0
        %1930 = vmatprep.subr.bf16.mxu0 0
        %1931 = vmatpush2.bf16.msra.mxu0 0
        %1932 = vmatprep.subr.bf16.mxu0 0
        %1933 = vmatpush2.bf16.msra.mxu0 0
        %1934 = vmatprep.subr.bf16.mxu0 0
        %1935 = vmatpush2.bf16.msra.mxu0 0
        %1936 = vmatprep.subr.bf16.mxu0 0
        %1937 = vmatpush2.bf16.msra.mxu0 0
        %1938 = vmatprep.subr.bf16.mxu0 0
        %1939 = vmatpush2.bf16.msra.mxu0 0
        %1940 = vmatprep.subr.bf16.mxu0 0
        %1941 = vmatpush2.bf16.msra.mxu0 0
        %1942 = vmatprep.mubr.bf16.mxu0 0
        %1943 = vmatmul.mubr.bf16.gmra.mxu0 %v1443
        %v1944 = vpop.f32.mrf.mxu0
        %v1945 = vadd.f32 %v604, %v1944
        %v1946 = vpop.f32.mrf.mxu0
        %v1947 = vadd.f32 %v608, %v1946
        %v1948 = vpop.f32.mrf.mxu0
        %v1949 = vadd.f32 %v604, %v1948
        %v1950 = vpop.f32.mrf.mxu0
        %v1951 = vadd.f32 %v608, %v1950
        %1952 = vmatprep.mubr.bf16.mxu0 0
        %1953 = vmatmul.mubr.bf16.gmra.mxu0 %v1446
        %v1954 = vpop.f32.mrf.mxu0
        %v1955 = vadd.f32 %v604, %v1954
        %v1956 = vpop.f32.mrf.mxu0
        %v1957 = vadd.f32 %v608, %v1956
        %v1958 = vpop.f32.mrf.mxu0
        %v1959 = vadd.f32 %v604, %v1958
        %v1960 = vpop.f32.mrf.mxu0
        %v1961 = vadd.f32 %v608, %v1960
        %1962 = vmatprep.mubr.bf16.mxu0 0
        %1963 = vmatmul.mubr.bf16.gmra.mxu0 %v1449
        %v1964 = vpop.f32.mrf.mxu0
        %v1965 = vadd.f32 %v604, %v1964
        %v1966 = vpop.f32.mrf.mxu0
        %v1967 = vadd.f32 %v608, %v1966
        %v1968 = vpop.f32.mrf.mxu0
        %v1969 = vadd.f32 %v604, %v1968
        %v1970 = vpop.f32.mrf.mxu0
        %v1971 = vadd.f32 %v608, %v1970
        %1972 = vmatprep.mubr.bf16.mxu0 0
        %1973 = vmatmul.mubr.bf16.gmra.mxu0 %v1452
        %v1974 = vpop.f32.mrf.mxu0
        %v1975 = vadd.f32 %v604, %v1974
        %v1976 = vpop.f32.mrf.mxu0
        %v1977 = vadd.f32 %v608, %v1976
        %v1978 = vpop.f32.mrf.mxu0
        %v1979 = vadd.f32 %v604, %v1978
        %v1980 = vpop.f32.mrf.mxu0
        %v1981 = vadd.f32 %v608, %v1980
        %1982 = vmatprep.mubr.bf16.mxu0 0
        %1983 = vmatmul.mubr.bf16.gmra.mxu0 %v1455
        %v1984 = vpop.f32.mrf.mxu0
        %v1985 = vadd.f32 %v604, %v1984
        %v1986 = vpop.f32.mrf.mxu0
        %v1987 = vadd.f32 %v608, %v1986
        %v1988 = vpop.f32.mrf.mxu0
        %v1989 = vadd.f32 %v604, %v1988
        %v1990 = vpop.f32.mrf.mxu0
        %v1991 = vadd.f32 %v608, %v1990
        %1992 = vmatprep.mubr.bf16.mxu0 0
        %1993 = vmatmul.mubr.bf16.gmra.mxu0 %v1458
        %v1994 = vpop.f32.mrf.mxu0
        %v1995 = vadd.f32 %v604, %v1994
        %v1996 = vpop.f32.mrf.mxu0
        %v1997 = vadd.f32 %v608, %v1996
        %v1998 = vpop.f32.mrf.mxu0
        %v1999 = vadd.f32 %v604, %v1998
        %v2000 = vpop.f32.mrf.mxu0
        %v2001 = vadd.f32 %v608, %v2000
        %2002 = vmatprep.mubr.bf16.mxu0 0
        %2003 = vmatmul.mubr.bf16.gmra.mxu0 %v1461
        %v2004 = vpop.f32.mrf.mxu0
        %v2005 = vadd.f32 %v604, %v2004
        %v2006 = vpop.f32.mrf.mxu0
        %v2007 = vadd.f32 %v608, %v2006
        %v2008 = vpop.f32.mrf.mxu0
        %v2009 = vadd.f32 %v604, %v2008
        %v2010 = vpop.f32.mrf.mxu0
        %v2011 = vadd.f32 %v608, %v2010
        %2012 = vmatprep.mubr.bf16.mxu0 0
        %2013 = vmatmul.mubr.bf16.gmra.mxu0 %v1464
        %v2014 = vpop.f32.mrf.mxu0
        %v2015 = vadd.f32 %v604, %v2014
        %v2016 = vpop.f32.mrf.mxu0
        %v2017 = vadd.f32 %v608, %v2016
        %v2018 = vpop.f32.mrf.mxu0
        %v2019 = vadd.f32 %v604, %v2018
        %v2020 = vpop.f32.mrf.mxu0
        %v2021 = vadd.f32 %v608, %v2020
        %2022 = vmatprep.mubr.bf16.mxu0 0
        %2023 = vmatmul.mubr.bf16.gmra.mxu0 %v1467
        %v2024 = vpop.f32.mrf.mxu0
        %v2025 = vadd.f32 %v604, %v2024
        %v2026 = vpop.f32.mrf.mxu0
        %v2027 = vadd.f32 %v608, %v2026
        %v2028 = vpop.f32.mrf.mxu0
        %v2029 = vadd.f32 %v604, %v2028
        %v2030 = vpop.f32.mrf.mxu0
        %v2031 = vadd.f32 %v608, %v2030
        %2032 = vmatprep.mubr.bf16.mxu0 0
        %2033 = vmatmul.mubr.bf16.gmra.mxu0 %v1470
        %v2034 = vpop.f32.mrf.mxu0
        %v2035 = vadd.f32 %v604, %v2034
        %v2036 = vpop.f32.mrf.mxu0
        %v2037 = vadd.f32 %v608, %v2036
        %v2038 = vpop.f32.mrf.mxu0
        %v2039 = vadd.f32 %v604, %v2038
        %v2040 = vpop.f32.mrf.mxu0
        %v2041 = vadd.f32 %v608, %v2040
        %2042 = vmatprep.mubr.bf16.mxu0 0
        %2043 = vmatmul.mubr.bf16.gmra.mxu0 %v1473
        %v2044 = vpop.f32.mrf.mxu0
        %v2045 = vadd.f32 %v604, %v2044
        %v2046 = vpop.f32.mrf.mxu0
        %v2047 = vadd.f32 %v608, %v2046
        %v2048 = vpop.f32.mrf.mxu0
        %v2049 = vadd.f32 %v604, %v2048
        %v2050 = vpop.f32.mrf.mxu0
        %v2051 = vadd.f32 %v608, %v2050
        %2052 = vmatprep.mubr.bf16.mxu0 0
        %2053 = vmatmul.mubr.bf16.gmra.mxu0 %v1476
        %v2054 = vpop.f32.mrf.mxu0
        %v2055 = vadd.f32 %v604, %v2054
        %v2056 = vpop.f32.mrf.mxu0
        %v2057 = vadd.f32 %v608, %v2056
        %v2058 = vpop.f32.mrf.mxu0
        %v2059 = vadd.f32 %v604, %v2058
        %v2060 = vpop.f32.mrf.mxu0
        %v2061 = vadd.f32 %v608, %v2060
        %2062 = vmatprep.mubr.bf16.mxu0 0
        %2063 = vmatmul.mubr.bf16.gmra.mxu0 %v1479
        %v2064 = vpop.f32.mrf.mxu0
        %v2065 = vadd.f32 %v604, %v2064
        %v2066 = vpop.f32.mrf.mxu0
        %v2067 = vadd.f32 %v608, %v2066
        %v2068 = vpop.f32.mrf.mxu0
        %v2069 = vadd.f32 %v604, %v2068
        %v2070 = vpop.f32.mrf.mxu0
        %v2071 = vadd.f32 %v608, %v2070
        %2072 = vmatprep.mubr.bf16.mxu0 0
        %2073 = vmatmul.mubr.bf16.gmra.mxu0 %v1482
        %v2074 = vpop.f32.mrf.mxu0
        %v2075 = vadd.f32 %v604, %v2074
        %v2076 = vpop.f32.mrf.mxu0
        %v2077 = vadd.f32 %v608, %v2076
        %v2078 = vpop.f32.mrf.mxu0
        %v2079 = vadd.f32 %v604, %v2078
        %v2080 = vpop.f32.mrf.mxu0
        %v2081 = vadd.f32 %v608, %v2080
        %2082 = vmatprep.mubr.bf16.mxu0 0
        %2083 = vmatmul.mubr.bf16.gmra.mxu0 %v1485
        %v2084 = vpop.f32.mrf.mxu0
        %v2085 = vadd.f32 %v604, %v2084
        %v2086 = vpop.f32.mrf.mxu0
        %v2087 = vadd.f32 %v608, %v2086
        %v2088 = vpop.f32.mrf.mxu0
        %v2089 = vadd.f32 %v604, %v2088
        %v2090 = vpop.f32.mrf.mxu0
        %v2091 = vadd.f32 %v608, %v2090
        %2092 = vmatprep.mubr.bf16.mxu0 0
        %2093 = vmatmul.mubr.bf16.gmra.mxu0 %v1488
        %v2094 = vpop.f32.mrf.mxu0
        %v2095 = vadd.f32 %v604, %v2094
        %v2096 = vpop.f32.mrf.mxu0
        %v2097 = vadd.f32 %v608, %v2096
        %v2098 = vpop.f32.mrf.mxu0
        %v2099 = vadd.f32 %v604, %v2098
        %v2100 = vpop.f32.mrf.mxu0
        %v2101 = vadd.f32 %v608, %v2100
        %2102 = vmatprep.mubr.bf16.mxu0 0
        %2103 = vmatmul.mubr.bf16.gmra.mxu0 %v1491
        %v2104 = vpop.f32.mrf.mxu0
        %v2105 = vadd.f32 %v604, %v2104
        %v2106 = vpop.f32.mrf.mxu0
        %v2107 = vadd.f32 %v608, %v2106
        %v2108 = vpop.f32.mrf.mxu0
        %v2109 = vadd.f32 %v604, %v2108
        %v2110 = vpop.f32.mrf.mxu0
        %v2111 = vadd.f32 %v608, %v2110
        %2112 = vmatprep.mubr.bf16.mxu0 0
        %2113 = vmatmul.mubr.bf16.gmra.mxu0 %v1494
        %v2114 = vpop.f32.mrf.mxu0
        %v2115 = vadd.f32 %v604, %v2114
        %v2116 = vpop.f32.mrf.mxu0
        %v2117 = vadd.f32 %v608, %v2116
        %v2118 = vpop.f32.mrf.mxu0
        %v2119 = vadd.f32 %v604, %v2118
        %v2120 = vpop.f32.mrf.mxu0
        %v2121 = vadd.f32 %v608, %v2120
        %2122 = vmatprep.mubr.bf16.mxu0 0
        %2123 = vmatmul.mubr.bf16.gmra.mxu0 %v1497
        %v2124 = vpop.f32.mrf.mxu0
        %v2125 = vadd.f32 %v604, %v2124
        %v2126 = vpop.f32.mrf.mxu0
        %v2127 = vadd.f32 %v608, %v2126
        %v2128 = vpop.f32.mrf.mxu0
        %v2129 = vadd.f32 %v604, %v2128
        %v2130 = vpop.f32.mrf.mxu0
        %v2131 = vadd.f32 %v608, %v2130
        %2132 = vmatprep.mubr.bf16.mxu0 0
        %2133 = vmatmul.mubr.bf16.gmra.mxu0 %v1500
        %v2134 = vpop.f32.mrf.mxu0
        %v2135 = vadd.f32 %v604, %v2134
        %v2136 = vpop.f32.mrf.mxu0
        %v2137 = vadd.f32 %v608, %v2136
        %v2138 = vpop.f32.mrf.mxu0
        %v2139 = vadd.f32 %v604, %v2138
        %v2140 = vpop.f32.mrf.mxu0
        %v2141 = vadd.f32 %v608, %v2140
        %2142 = vmatprep.mubr.bf16.mxu0 0
        %2143 = vmatmul.mubr.bf16.gmra.mxu0 %v1503
        %v2144 = vpop.f32.mrf.mxu0
        %v2145 = vadd.f32 %v604, %v2144
        %v2146 = vpop.f32.mrf.mxu0
        %v2147 = vadd.f32 %v608, %v2146
        %v2148 = vpop.f32.mrf.mxu0
        %v2149 = vadd.f32 %v604, %v2148
        %v2150 = vpop.f32.mrf.mxu0
        %v2151 = vadd.f32 %v608, %v2150
        %2152 = vmatprep.mubr.bf16.mxu0 0
        %2153 = vmatmul.mubr.bf16.gmra.mxu0 %v1506
        %v2154 = vpop.f32.mrf.mxu0
        %v2155 = vadd.f32 %v604, %v2154
        %v2156 = vpop.f32.mrf.mxu0
        %v2157 = vadd.f32 %v608, %v2156
        %v2158 = vpop.f32.mrf.mxu0
        %v2159 = vadd.f32 %v604, %v2158
        %v2160 = vpop.f32.mrf.mxu0
        %v2161 = vadd.f32 %v608, %v2160
        %2162 = vmatprep.mubr.bf16.mxu0 0
        %2163 = vmatmul.mubr.bf16.gmra.mxu0 %v1509
        %v2164 = vpop.f32.mrf.mxu0
        %v2165 = vadd.f32 %v604, %v2164
        %v2166 = vpop.f32.mrf.mxu0
        %v2167 = vadd.f32 %v608, %v2166
        %v2168 = vpop.f32.mrf.mxu0
        %v2169 = vadd.f32 %v604, %v2168
        %v2170 = vpop.f32.mrf.mxu0
        %v2171 = vadd.f32 %v608, %v2170
        %2172 = vmatprep.mubr.bf16.mxu0 0
        %2173 = vmatmul.mubr.bf16.gmra.mxu0 %v1512
        %v2174 = vpop.f32.mrf.mxu0
        %v2175 = vadd.f32 %v604, %v2174
        %v2176 = vpop.f32.mrf.mxu0
        %v2177 = vadd.f32 %v608, %v2176
        %v2178 = vpop.f32.mrf.mxu0
        %v2179 = vadd.f32 %v604, %v2178
        %v2180 = vpop.f32.mrf.mxu0
        %v2181 = vadd.f32 %v608, %v2180
        %2182 = vmatprep.mubr.bf16.mxu0 0
        %2183 = vmatmul.mubr.bf16.gmra.mxu0 %v1515
        %v2184 = vpop.f32.mrf.mxu0
        %v2185 = vadd.f32 %v604, %v2184
        %v2186 = vpop.f32.mrf.mxu0
        %v2187 = vadd.f32 %v608, %v2186
        %v2188 = vpop.f32.mrf.mxu0
        %v2189 = vadd.f32 %v604, %v2188
        %v2190 = vpop.f32.mrf.mxu0
        %v2191 = vadd.f32 %v608, %v2190
        %2192 = vmatprep.mubr.bf16.mxu0 0
        %2193 = vmatmul.mubr.bf16.gmra.mxu0 %v1518
        %v2194 = vpop.f32.mrf.mxu0
        %v2195 = vadd.f32 %v604, %v2194
        %v2196 = vpop.f32.mrf.mxu0
        %v2197 = vadd.f32 %v608, %v2196
        %v2198 = vpop.f32.mrf.mxu0
        %v2199 = vadd.f32 %v604, %v2198
        %v2200 = vpop.f32.mrf.mxu0
        %v2201 = vadd.f32 %v608, %v2200
        %2202 = vmatprep.mubr.bf16.mxu0 0
        %2203 = vmatmul.mubr.bf16.gmra.mxu0 %v1521
        %v2204 = vpop.f32.mrf.mxu0
        %v2205 = vadd.f32 %v604, %v2204
        %v2206 = vpop.f32.mrf.mxu0
        %v2207 = vadd.f32 %v608, %v2206
        %v2208 = vpop.f32.mrf.mxu0
        %v2209 = vadd.f32 %v604, %v2208
        %v2210 = vpop.f32.mrf.mxu0
        %v2211 = vadd.f32 %v608, %v2210
        %2212 = vmatprep.mubr.bf16.mxu0 0
        %2213 = vmatmul.mubr.bf16.gmra.mxu0 %v1524
        %v2214 = vpop.f32.mrf.mxu0
        %v2215 = vadd.f32 %v604, %v2214
        %v2216 = vpop.f32.mrf.mxu0
        %v2217 = vadd.f32 %v608, %v2216
        %v2218 = vpop.f32.mrf.mxu0
        %v2219 = vadd.f32 %v604, %v2218
        %v2220 = vpop.f32.mrf.mxu0
        %v2221 = vadd.f32 %v608, %v2220
        %2222 = vmatprep.mubr.bf16.mxu0 0
        %2223 = vmatmul.mubr.bf16.gmra.mxu0 %v1527
        %v2224 = vpop.f32.mrf.mxu0
        %v2225 = vadd.f32 %v604, %v2224
        %v2226 = vpop.f32.mrf.mxu0
        %v2227 = vadd.f32 %v608, %v2226
        %v2228 = vpop.f32.mrf.mxu0
        %v2229 = vadd.f32 %v604, %v2228
        %v2230 = vpop.f32.mrf.mxu0
        %v2231 = vadd.f32 %v608, %v2230
        %2232 = vmatprep.mubr.bf16.mxu0 0
        %2233 = vmatmul.mubr.bf16.gmra.mxu0 %v1530
        %v2234 = vpop.f32.mrf.mxu0
        %v2235 = vadd.f32 %v604, %v2234
        %v2236 = vpop.f32.mrf.mxu0
        %v2237 = vadd.f32 %v608, %v2236
        %v2238 = vpop.f32.mrf.mxu0
        %v2239 = vadd.f32 %v604, %v2238
        %v2240 = vpop.f32.mrf.mxu0
        %v2241 = vadd.f32 %v608, %v2240
        %2242 = vmatprep.mubr.bf16.mxu0 0
        %2243 = vmatmul.mubr.bf16.gmra.mxu0 %v1533
        %v2244 = vpop.f32.mrf.mxu0
        %v2245 = vadd.f32 %v604, %v2244
        %v2246 = vpop.f32.mrf.mxu0
        %v2247 = vadd.f32 %v608, %v2246
        %v2248 = vpop.f32.mrf.mxu0
        %v2249 = vadd.f32 %v604, %v2248
        %v2250 = vpop.f32.mrf.mxu0
        %v2251 = vadd.f32 %v608, %v2250
        %2252 = vmatprep.mubr.bf16.mxu0 0
        %2253 = vmatmul.mubr.bf16.gmra.mxu0 %v1536
        %v2254 = vpop.f32.mrf.mxu0
        %v2255 = vadd.f32 %v604, %v2254
        %v2256 = vpop.f32.mrf.mxu0
        %v2257 = vadd.f32 %v608, %v2256
        %v2258 = vpop.f32.mrf.mxu0
        %v2259 = vadd.f32 %v604, %v2258
        %v2260 = vpop.f32.mrf.mxu0
        %v2261 = vadd.f32 %v608, %v2260
        %2262 = vmatprep.mubr.bf16.mxu0 0
        %2263 = vmatmul.mubr.bf16.gmra.mxu0 %v1539
        %v2264 = vpop.f32.mrf.mxu0
        %v2265 = vadd.f32 %v604, %v2264
        %v2266 = vpop.f32.mrf.mxu0
        %v2267 = vadd.f32 %v608, %v2266
        %v2268 = vpop.f32.mrf.mxu0
        %v2269 = vadd.f32 %v604, %v2268
        %v2270 = vpop.f32.mrf.mxu0
        %v2271 = vadd.f32 %v608, %v2270
        %2272 = vmatprep.mubr.bf16.mxu0 0
        %2273 = vmatmul.mubr.bf16.gmra.mxu0 %v1542
        %v2274 = vpop.f32.mrf.mxu0
        %v2275 = vadd.f32 %v604, %v2274
        %v2276 = vpop.f32.mrf.mxu0
        %v2277 = vadd.f32 %v608, %v2276
        %v2278 = vpop.f32.mrf.mxu0
        %v2279 = vadd.f32 %v604, %v2278
        %v2280 = vpop.f32.mrf.mxu0
        %v2281 = vadd.f32 %v608, %v2280
        %2282 = vmatprep.mubr.bf16.mxu0 0
        %2283 = vmatmul.mubr.bf16.gmra.mxu0 %v1545
        %v2284 = vpop.f32.mrf.mxu0
        %v2285 = vadd.f32 %v604, %v2284
        %v2286 = vpop.f32.mrf.mxu0
        %v2287 = vadd.f32 %v608, %v2286
        %v2288 = vpop.f32.mrf.mxu0
        %v2289 = vadd.f32 %v604, %v2288
        %v2290 = vpop.f32.mrf.mxu0
        %v2291 = vadd.f32 %v608, %v2290
        %2292 = vmatprep.mubr.bf16.mxu0 0
        %2293 = vmatmul.mubr.bf16.gmra.mxu0 %v1548
        %v2294 = vpop.f32.mrf.mxu0
        %v2295 = vadd.f32 %v604, %v2294
        %v2296 = vpop.f32.mrf.mxu0
        %v2297 = vadd.f32 %v608, %v2296
        %v2298 = vpop.f32.mrf.mxu0
        %v2299 = vadd.f32 %v604, %v2298
        %v2300 = vpop.f32.mrf.mxu0
        %v2301 = vadd.f32 %v608, %v2300
        %2302 = vmatprep.mubr.bf16.mxu0 0
        %2303 = vmatmul.mubr.bf16.gmra.mxu0 %v1551
        %v2304 = vpop.f32.mrf.mxu0
        %v2305 = vadd.f32 %v604, %v2304
        %v2306 = vpop.f32.mrf.mxu0
        %v2307 = vadd.f32 %v608, %v2306
        %v2308 = vpop.f32.mrf.mxu0
        %v2309 = vadd.f32 %v604, %v2308
        %v2310 = vpop.f32.mrf.mxu0
        %v2311 = vadd.f32 %v608, %v2310
        %2312 = vmatprep.mubr.bf16.mxu0 0
        %2313 = vmatmul.mubr.bf16.gmra.mxu0 %v1554
        %v2314 = vpop.f32.mrf.mxu0
        %v2315 = vadd.f32 %v604, %v2314
        %v2316 = vpop.f32.mrf.mxu0
        %v2317 = vadd.f32 %v608, %v2316
        %v2318 = vpop.f32.mrf.mxu0
        %v2319 = vadd.f32 %v604, %v2318
        %v2320 = vpop.f32.mrf.mxu0
        %v2321 = vadd.f32 %v608, %v2320
        %2322 = vmatprep.mubr.bf16.mxu0 0
        %2323 = vmatmul.mubr.bf16.gmra.mxu0 %v1557
        %v2324 = vpop.f32.mrf.mxu0
        %v2325 = vadd.f32 %v604, %v2324
        %v2326 = vpop.f32.mrf.mxu0
        %v2327 = vadd.f32 %v608, %v2326
        %v2328 = vpop.f32.mrf.mxu0
        %v2329 = vadd.f32 %v604, %v2328
        %v2330 = vpop.f32.mrf.mxu0
        %v2331 = vadd.f32 %v608, %v2330
        %2332 = vmatprep.mubr.bf16.mxu0 0
        %2333 = vmatmul.mubr.bf16.gmra.mxu0 %v1560
        %v2334 = vpop.f32.mrf.mxu0
        %v2335 = vadd.f32 %v604, %v2334
        %v2336 = vpop.f32.mrf.mxu0
        %v2337 = vadd.f32 %v608, %v2336
        %v2338 = vpop.f32.mrf.mxu0
        %v2339 = vadd.f32 %v604, %v2338
        %v2340 = vpop.f32.mrf.mxu0
        %v2341 = vadd.f32 %v608, %v2340
        %2342 = vmatprep.mubr.bf16.mxu0 0
        %2343 = vmatmul.mubr.bf16.gmra.mxu0 %v1563
        %v2344 = vpop.f32.mrf.mxu0
        %v2345 = vadd.f32 %v604, %v2344
        %v2346 = vpop.f32.mrf.mxu0
        %v2347 = vadd.f32 %v608, %v2346
        %v2348 = vpop.f32.mrf.mxu0
        %v2349 = vadd.f32 %v604, %v2348
        %v2350 = vpop.f32.mrf.mxu0
        %v2351 = vadd.f32 %v608, %v2350
        %2352 = vmatprep.mubr.bf16.mxu0 0
        %2353 = vmatmul.mubr.bf16.gmra.mxu0 %v1566
        %v2354 = vpop.f32.mrf.mxu0
        %v2355 = vadd.f32 %v604, %v2354
        %v2356 = vpop.f32.mrf.mxu0
        %v2357 = vadd.f32 %v608, %v2356
        %v2358 = vpop.f32.mrf.mxu0
        %v2359 = vadd.f32 %v604, %v2358
        %v2360 = vpop.f32.mrf.mxu0
        %v2361 = vadd.f32 %v608, %v2360
        %2362 = vmatprep.mubr.bf16.mxu0 0
        %2363 = vmatmul.mubr.bf16.gmra.mxu0 %v1569
        %v2364 = vpop.f32.mrf.mxu0
        %v2365 = vadd.f32 %v604, %v2364
        %v2366 = vpop.f32.mrf.mxu0
        %v2367 = vadd.f32 %v608, %v2366
        %v2368 = vpop.f32.mrf.mxu0
        %v2369 = vadd.f32 %v604, %v2368
        %v2370 = vpop.f32.mrf.mxu0
        %v2371 = vadd.f32 %v608, %v2370
        %2372 = vmatprep.mubr.bf16.mxu0 0
        %2373 = vmatmul.mubr.bf16.gmra.mxu0 %v1572
        %v2374 = vpop.f32.mrf.mxu0
        %v2375 = vadd.f32 %v604, %v2374
        %v2376 = vpop.f32.mrf.mxu0
        %v2377 = vadd.f32 %v608, %v2376
        %v2378 = vpop.f32.mrf.mxu0
        %v2379 = vadd.f32 %v604, %v2378
        %v2380 = vpop.f32.mrf.mxu0
        %v2381 = vadd.f32 %v608, %v2380
        %2382 = vmatprep.mubr.bf16.mxu0 0
        %2383 = vmatmul.mubr.bf16.gmra.mxu0 %v1575
        %v2384 = vpop.f32.mrf.mxu0
        %v2385 = vadd.f32 %v604, %v2384
        %v2386 = vpop.f32.mrf.mxu0
        %v2387 = vadd.f32 %v608, %v2386
        %v2388 = vpop.f32.mrf.mxu0
        %v2389 = vadd.f32 %v604, %v2388
        %v2390 = vpop.f32.mrf.mxu0
        %v2391 = vadd.f32 %v608, %v2390
        %2392 = vmatprep.mubr.bf16.mxu0 0
        %2393 = vmatmul.mubr.bf16.gmra.mxu0 %v1578
        %v2394 = vpop.f32.mrf.mxu0
        %v2395 = vadd.f32 %v604, %v2394
        %v2396 = vpop.f32.mrf.mxu0
        %v2397 = vadd.f32 %v608, %v2396
        %v2398 = vpop.f32.mrf.mxu0
        %v2399 = vadd.f32 %v604, %v2398
        %v2400 = vpop.f32.mrf.mxu0
        %v2401 = vadd.f32 %v608, %v2400
        %2402 = vmatprep.mubr.bf16.mxu0 0
        %2403 = vmatmul.mubr.bf16.gmra.mxu0 %v1581
        %v2404 = vpop.f32.mrf.mxu0
        %v2405 = vadd.f32 %v604, %v2404
        %v2406 = vpop.f32.mrf.mxu0
        %v2407 = vadd.f32 %v608, %v2406
        %v2408 = vpop.f32.mrf.mxu0
        %v2409 = vadd.f32 %v604, %v2408
        %v2410 = vpop.f32.mrf.mxu0
        %v2411 = vadd.f32 %v608, %v2410
        %2412 = vmatprep.mubr.bf16.mxu0 0
        %2413 = vmatmul.mubr.bf16.gmra.mxu0 %v1584
        %v2414 = vpop.f32.mrf.mxu0
        %v2415 = vadd.f32 %v604, %v2414
        %v2416 = vpop.f32.mrf.mxu0
        %v2417 = vadd.f32 %v608, %v2416
        %v2418 = vpop.f32.mrf.mxu0
        %v2419 = vadd.f32 %v604, %v2418
        %v2420 = vpop.f32.mrf.mxu0
        %v2421 = vadd.f32 %v608, %v2420
        %2422 = vmatprep.mubr.bf16.mxu0 0
        %2423 = vmatmul.mubr.bf16.gmra.mxu0 %v1587
        %v2424 = vpop.f32.mrf.mxu0
        %v2425 = vadd.f32 %v604, %v2424
        %v2426 = vpop.f32.mrf.mxu0
        %v2427 = vadd.f32 %v608, %v2426
        %v2428 = vpop.f32.mrf.mxu0
        %v2429 = vadd.f32 %v604, %v2428
        %v2430 = vpop.f32.mrf.mxu0
        %v2431 = vadd.f32 %v608, %v2430
        %2432 = vmatprep.mubr.bf16.mxu0 0
        %2433 = vmatmul.mubr.bf16.gmra.mxu0 %v1590
        %v2434 = vpop.f32.mrf.mxu0
        %v2435 = vadd.f32 %v604, %v2434
        %v2436 = vpop.f32.mrf.mxu0
        %v2437 = vadd.f32 %v608, %v2436
        %v2438 = vpop.f32.mrf.mxu0
        %v2439 = vadd.f32 %v604, %v2438
        %v2440 = vpop.f32.mrf.mxu0
        %v2441 = vadd.f32 %v608, %v2440
        %2442 = vmatprep.mubr.bf16.mxu0 0
        %2443 = vmatmul.mubr.bf16.gmra.mxu0 %v1593
        %v2444 = vpop.f32.mrf.mxu0
        %v2445 = vadd.f32 %v604, %v2444
        %v2446 = vpop.f32.mrf.mxu0
        %v2447 = vadd.f32 %v608, %v2446
        %v2448 = vpop.f32.mrf.mxu0
        %v2449 = vadd.f32 %v604, %v2448
        %v2450 = vpop.f32.mrf.mxu0
        %v2451 = vadd.f32 %v608, %v2450
        %2452 = vmatprep.mubr.bf16.mxu0 0
        %2453 = vmatmul.mubr.bf16.gmra.mxu0 %v1596
        %v2454 = vpop.f32.mrf.mxu0
        %v2455 = vadd.f32 %v604, %v2454
        %v2456 = vpop.f32.mrf.mxu0
        %v2457 = vadd.f32 %v608, %v2456
        %v2458 = vpop.f32.mrf.mxu0
        %v2459 = vadd.f32 %v604, %v2458
        %v2460 = vpop.f32.mrf.mxu0
        %v2461 = vadd.f32 %v608, %v2460
        %2462 = vmatprep.mubr.bf16.mxu0 0
        %2463 = vmatmul.mubr.bf16.gmra.mxu0 %v1599
        %v2464 = vpop.f32.mrf.mxu0
        %v2465 = vadd.f32 %v604, %v2464
        %v2466 = vpop.f32.mrf.mxu0
        %v2467 = vadd.f32 %v608, %v2466
        %v2468 = vpop.f32.mrf.mxu0
        %v2469 = vadd.f32 %v604, %v2468
        %v2470 = vpop.f32.mrf.mxu0
        %v2471 = vadd.f32 %v608, %v2470
        %2472 = vmatprep.mubr.bf16.mxu0 0
        %2473 = vmatmul.mubr.bf16.gmra.mxu0 %v1602
        %v2474 = vpop.f32.mrf.mxu0
        %v2475 = vadd.f32 %v604, %v2474
        %v2476 = vpop.f32.mrf.mxu0
        %v2477 = vadd.f32 %v608, %v2476
        %v2478 = vpop.f32.mrf.mxu0
        %v2479 = vadd.f32 %v604, %v2478
        %v2480 = vpop.f32.mrf.mxu0
        %v2481 = vadd.f32 %v608, %v2480
        %2482 = vmatprep.mubr.bf16.mxu0 0
        %2483 = vmatmul.mubr.bf16.gmra.mxu0 %v1605
        %v2484 = vpop.f32.mrf.mxu0
        %v2485 = vadd.f32 %v604, %v2484
        %v2486 = vpop.f32.mrf.mxu0
        %v2487 = vadd.f32 %v608, %v2486
        %v2488 = vpop.f32.mrf.mxu0
        %v2489 = vadd.f32 %v604, %v2488
        %v2490 = vpop.f32.mrf.mxu0
        %v2491 = vadd.f32 %v608, %v2490
        %2492 = vmatprep.mubr.bf16.mxu0 0
        %2493 = vmatmul.mubr.bf16.gmra.mxu0 %v1608
        %v2494 = vpop.f32.mrf.mxu0
        %v2495 = vadd.f32 %v604, %v2494
        %v2496 = vpop.f32.mrf.mxu0
        %v2497 = vadd.f32 %v608, %v2496
        %v2498 = vpop.f32.mrf.mxu0
        %v2499 = vadd.f32 %v604, %v2498
        %v2500 = vpop.f32.mrf.mxu0
        %v2501 = vadd.f32 %v608, %v2500
        %2502 = vmatprep.mubr.bf16.mxu0 0
        %2503 = vmatmul.mubr.bf16.gmra.mxu0 %v1611
        %v2504 = vpop.f32.mrf.mxu0
        %v2505 = vadd.f32 %v604, %v2504
        %v2506 = vpop.f32.mrf.mxu0
        %v2507 = vadd.f32 %v608, %v2506
        %v2508 = vpop.f32.mrf.mxu0
        %v2509 = vadd.f32 %v604, %v2508
        %v2510 = vpop.f32.mrf.mxu0
        %v2511 = vadd.f32 %v608, %v2510
        %2512 = vmatprep.mubr.bf16.mxu0 0
        %2513 = vmatmul.mubr.bf16.gmra.mxu0 %v1614
        %v2514 = vpop.f32.mrf.mxu0
        %v2515 = vadd.f32 %v604, %v2514
        %v2516 = vpop.f32.mrf.mxu0
        %v2517 = vadd.f32 %v608, %v2516
        %v2518 = vpop.f32.mrf.mxu0
        %v2519 = vadd.f32 %v604, %v2518
        %v2520 = vpop.f32.mrf.mxu0
        %v2521 = vadd.f32 %v608, %v2520
        %2522 = vmatprep.mubr.bf16.mxu0 0
        %2523 = vmatmul.mubr.bf16.gmra.mxu0 %v1617
        %v2524 = vpop.f32.mrf.mxu0
        %v2525 = vadd.f32 %v604, %v2524
        %v2526 = vpop.f32.mrf.mxu0
        %v2527 = vadd.f32 %v608, %v2526
        %v2528 = vpop.f32.mrf.mxu0
        %v2529 = vadd.f32 %v604, %v2528
        %v2530 = vpop.f32.mrf.mxu0
        %v2531 = vadd.f32 %v608, %v2530
        %2532 = vmatprep.mubr.bf16.mxu0 0
        %2533 = vmatmul.mubr.bf16.gmra.mxu0 %v1620
        %v2534 = vpop.f32.mrf.mxu0
        %v2535 = vadd.f32 %v604, %v2534
        %v2536 = vpop.f32.mrf.mxu0
        %v2537 = vadd.f32 %v608, %v2536
        %v2538 = vpop.f32.mrf.mxu0
        %v2539 = vadd.f32 %v604, %v2538
        %v2540 = vpop.f32.mrf.mxu0
        %v2541 = vadd.f32 %v608, %v2540
        %2542 = vmatprep.mubr.bf16.mxu0 0
        %2543 = vmatmul.mubr.bf16.gmra.mxu0 %v1623
        %v2544 = vpop.f32.mrf.mxu0
        %v2545 = vadd.f32 %v604, %v2544
        %v2546 = vpop.f32.mrf.mxu0
        %v2547 = vadd.f32 %v608, %v2546
        %v2548 = vpop.f32.mrf.mxu0
        %v2549 = vadd.f32 %v604, %v2548
        %v2550 = vpop.f32.mrf.mxu0
        %v2551 = vadd.f32 %v608, %v2550
        %2552 = vmatprep.mubr.bf16.mxu0 0
        %2553 = vmatmul.mubr.bf16.gmra.mxu0 %v1626
        %v2554 = vpop.f32.mrf.mxu0
        %v2555 = vadd.f32 %v604, %v2554
        %v2556 = vpop.f32.mrf.mxu0
        %v2557 = vadd.f32 %v608, %v2556
        %v2558 = vpop.f32.mrf.mxu0
        %v2559 = vadd.f32 %v604, %v2558
        %v2560 = vpop.f32.mrf.mxu0
        %v2561 = vadd.f32 %v608, %v2560
        %2562 = vmatprep.mubr.bf16.mxu0 0
        %2563 = vmatmul.mubr.bf16.gmra.mxu0 %v1629
        %v2564 = vpop.f32.mrf.mxu0
        %v2565 = vadd.f32 %v604, %v2564
        %v2566 = vpop.f32.mrf.mxu0
        %v2567 = vadd.f32 %v608, %v2566
        %v2568 = vpop.f32.mrf.mxu0
        %v2569 = vadd.f32 %v604, %v2568
        %v2570 = vpop.f32.mrf.mxu0
        %v2571 = vadd.f32 %v608, %v2570
        %2572 = vmatprep.mubr.bf16.mxu0 0
        %2573 = vmatmul.mubr.bf16.gmra.mxu0 %v1632
        %v2574 = vpop.f32.mrf.mxu0
        %v2575 = vadd.f32 %v604, %v2574
        %v2576 = vpop.f32.mrf.mxu0
        %v2577 = vadd.f32 %v608, %v2576
        %v2578 = vpop.f32.mrf.mxu0
        %v2579 = vadd.f32 %v604, %v2578
        %v2580 = vpop.f32.mrf.mxu0
        %v2581 = vadd.f32 %v608, %v2580
        %2582 = vmatprep.mubr.bf16.mxu0 0
        %2583 = vmatmul.mubr.bf16.gmra.mxu0 %v1635
        %v2584 = vpop.f32.mrf.mxu0
        %v2585 = vadd.f32 %v604, %v2584
        %v2586 = vpop.f32.mrf.mxu0
        %v2587 = vadd.f32 %v608, %v2586
        %v2588 = vpop.f32.mrf.mxu0
        %v2589 = vadd.f32 %v604, %v2588
        %v2590 = vpop.f32.mrf.mxu0
        %v2591 = vadd.f32 %v608, %v2590
        %2592 = vmatprep.mubr.bf16.mxu0 0
        %2593 = vmatmul.mubr.bf16.gmra.mxu0 %v1638
        %v2594 = vpop.f32.mrf.mxu0
        %v2595 = vadd.f32 %v604, %v2594
        %v2596 = vpop.f32.mrf.mxu0
        %v2597 = vadd.f32 %v608, %v2596
        %v2598 = vpop.f32.mrf.mxu0
        %v2599 = vadd.f32 %v604, %v2598
        %v2600 = vpop.f32.mrf.mxu0
        %v2601 = vadd.f32 %v608, %v2600
        %2602 = vmatprep.mubr.bf16.mxu0 0
        %2603 = vmatmul.mubr.bf16.gmra.mxu0 %v1641
        %v2604 = vpop.f32.mrf.mxu0
        %v2605 = vadd.f32 %v604, %v2604
        %v2606 = vpop.f32.mrf.mxu0
        %v2607 = vadd.f32 %v608, %v2606
        %v2608 = vpop.f32.mrf.mxu0
        %v2609 = vadd.f32 %v604, %v2608
        %v2610 = vpop.f32.mrf.mxu0
        %v2611 = vadd.f32 %v608, %v2610
        %2612 = vmatprep.mubr.bf16.mxu0 0
        %2613 = vmatmul.mubr.bf16.gmra.mxu0 %v1644
        %v2614 = vpop.f32.mrf.mxu0
        %v2615 = vadd.f32 %v604, %v2614
        %v2616 = vpop.f32.mrf.mxu0
        %v2617 = vadd.f32 %v608, %v2616
        %v2618 = vpop.f32.mrf.mxu0
        %v2619 = vadd.f32 %v604, %v2618
        %v2620 = vpop.f32.mrf.mxu0
        %v2621 = vadd.f32 %v608, %v2620
        %2622 = vmatprep.mubr.bf16.mxu0 0
        %2623 = vmatmul.mubr.bf16.gmra.mxu0 %v1647
        %v2624 = vpop.f32.mrf.mxu0
        %v2625 = vadd.f32 %v604, %v2624
        %v2626 = vpop.f32.mrf.mxu0
        %v2627 = vadd.f32 %v608, %v2626
        %v2628 = vpop.f32.mrf.mxu0
        %v2629 = vadd.f32 %v604, %v2628
        %v2630 = vpop.f32.mrf.mxu0
        %v2631 = vadd.f32 %v608, %v2630
        %2632 = vmatprep.mubr.bf16.mxu0 0
        %2633 = vmatmul.mubr.bf16.gmra.mxu0 %v1650
        %v2634 = vpop.f32.mrf.mxu0
        %v2635 = vadd.f32 %v604, %v2634
        %v2636 = vpop.f32.mrf.mxu0
        %v2637 = vadd.f32 %v608, %v2636
        %v2638 = vpop.f32.mrf.mxu0
        %v2639 = vadd.f32 %v604, %v2638
        %v2640 = vpop.f32.mrf.mxu0
        %v2641 = vadd.f32 %v608, %v2640
        %2642 = vmatprep.mubr.bf16.mxu0 0
        %2643 = vmatmul.mubr.bf16.gmra.mxu0 %v1653
        %v2644 = vpop.f32.mrf.mxu0
        %v2645 = vadd.f32 %v604, %v2644
        %v2646 = vpop.f32.mrf.mxu0
        %v2647 = vadd.f32 %v608, %v2646
        %v2648 = vpop.f32.mrf.mxu0
        %v2649 = vadd.f32 %v604, %v2648
        %v2650 = vpop.f32.mrf.mxu0
        %v2651 = vadd.f32 %v608, %v2650
        %2652 = vmatprep.mubr.bf16.mxu0 0
        %2653 = vmatmul.mubr.bf16.gmra.mxu0 %v1656
        %v2654 = vpop.f32.mrf.mxu0
        %v2655 = vadd.f32 %v604, %v2654
        %v2656 = vpop.f32.mrf.mxu0
        %v2657 = vadd.f32 %v608, %v2656
        %v2658 = vpop.f32.mrf.mxu0
        %v2659 = vadd.f32 %v604, %v2658
        %v2660 = vpop.f32.mrf.mxu0
        %v2661 = vadd.f32 %v608, %v2660
        %2662 = vmatprep.mubr.bf16.mxu0 0
        %2663 = vmatmul.mubr.bf16.gmra.mxu0 %v1659
        %v2664 = vpop.f32.mrf.mxu0
        %v2665 = vadd.f32 %v604, %v2664
        %v2666 = vpop.f32.mrf.mxu0
        %v2667 = vadd.f32 %v608, %v2666
        %v2668 = vpop.f32.mrf.mxu0
        %v2669 = vadd.f32 %v604, %v2668
        %v2670 = vpop.f32.mrf.mxu0
        %v2671 = vadd.f32 %v608, %v2670
        %2672 = vmatprep.mubr.bf16.mxu0 0
        %2673 = vmatmul.mubr.bf16.gmra.mxu0 %v1662
        %v2674 = vpop.f32.mrf.mxu0
        %v2675 = vadd.f32 %v604, %v2674
        %v2676 = vpop.f32.mrf.mxu0
        %v2677 = vadd.f32 %v608, %v2676
        %v2678 = vpop.f32.mrf.mxu0
        %v2679 = vadd.f32 %v604, %v2678
        %v2680 = vpop.f32.mrf.mxu0
        %v2681 = vadd.f32 %v608, %v2680
        %2682 = vmatprep.mubr.bf16.mxu0 0
        %2683 = vmatmul.mubr.bf16.gmra.mxu0 %v1665
        %v2684 = vpop.f32.mrf.mxu0
        %v2685 = vadd.f32 %v604, %v2684
        %v2686 = vpop.f32.mrf.mxu0
        %v2687 = vadd.f32 %v608, %v2686
        %v2688 = vpop.f32.mrf.mxu0
        %v2689 = vadd.f32 %v604, %v2688
        %v2690 = vpop.f32.mrf.mxu0
        %v2691 = vadd.f32 %v608, %v2690
        %2692 = vmatprep.mubr.bf16.mxu0 0
        %2693 = vmatmul.mubr.bf16.gmra.mxu0 %v1668
        %v2694 = vpop.f32.mrf.mxu0
        %v2695 = vadd.f32 %v604, %v2694
        %v2696 = vpop.f32.mrf.mxu0
        %v2697 = vadd.f32 %v608, %v2696
        %v2698 = vpop.f32.mrf.mxu0
        %v2699 = vadd.f32 %v604, %v2698
        %v2700 = vpop.f32.mrf.mxu0
        %v2701 = vadd.f32 %v608, %v2700
        %2702 = vmatprep.mubr.bf16.mxu0 0
        %2703 = vmatmul.mubr.bf16.gmra.mxu0 %v1671
        %v2704 = vpop.f32.mrf.mxu0
        %v2705 = vadd.f32 %v604, %v2704
        %v2706 = vpop.f32.mrf.mxu0
        %v2707 = vadd.f32 %v608, %v2706
        %v2708 = vpop.f32.mrf.mxu0
        %v2709 = vadd.f32 %v604, %v2708
        %v2710 = vpop.f32.mrf.mxu0
        %v2711 = vadd.f32 %v608, %v2710
        %2712 = vmatprep.mubr.bf16.mxu0 0
        %2713 = vmatmul.mubr.bf16.gmra.mxu0 %v1674
        %v2714 = vpop.f32.mrf.mxu0
        %v2715 = vadd.f32 %v604, %v2714
        %v2716 = vpop.f32.mrf.mxu0
        %v2717 = vadd.f32 %v608, %v2716
        %v2718 = vpop.f32.mrf.mxu0
        %v2719 = vadd.f32 %v604, %v2718
        %v2720 = vpop.f32.mrf.mxu0
        %v2721 = vadd.f32 %v608, %v2720
        %2722 = vmatprep.mubr.bf16.mxu0 0
        %2723 = vmatmul.mubr.bf16.gmra.mxu0 %v1677
        %v2724 = vpop.f32.mrf.mxu0
        %v2725 = vadd.f32 %v604, %v2724
        %v2726 = vpop.f32.mrf.mxu0
        %v2727 = vadd.f32 %v608, %v2726
        %v2728 = vpop.f32.mrf.mxu0
        %v2729 = vadd.f32 %v604, %v2728
        %v2730 = vpop.f32.mrf.mxu0
        %v2731 = vadd.f32 %v608, %v2730
        %2732 = vmatprep.mubr.bf16.mxu0 0
        %2733 = vmatmul.mubr.bf16.gmra.mxu0 %v1680
        %v2734 = vpop.f32.mrf.mxu0
        %v2735 = vadd.f32 %v604, %v2734
        %v2736 = vpop.f32.mrf.mxu0
        %v2737 = vadd.f32 %v608, %v2736
        %v2738 = vpop.f32.mrf.mxu0
        %v2739 = vadd.f32 %v604, %v2738
        %v2740 = vpop.f32.mrf.mxu0
        %v2741 = vadd.f32 %v608, %v2740
        %2742 = vmatprep.mubr.bf16.mxu0 0
        %2743 = vmatmul.mubr.bf16.gmra.mxu0 %v1683
        %v2744 = vpop.f32.mrf.mxu0
        %v2745 = vadd.f32 %v604, %v2744
        %v2746 = vpop.f32.mrf.mxu0
        %v2747 = vadd.f32 %v608, %v2746
        %v2748 = vpop.f32.mrf.mxu0
        %v2749 = vadd.f32 %v604, %v2748
        %v2750 = vpop.f32.mrf.mxu0
        %v2751 = vadd.f32 %v608, %v2750
        %2752 = vmatprep.mubr.bf16.mxu0 0
        %2753 = vmatmul.mubr.bf16.gmra.mxu0 %v1686
        %v2754 = vpop.f32.mrf.mxu0
        %v2755 = vadd.f32 %v604, %v2754
        %v2756 = vpop.f32.mrf.mxu0
        %v2757 = vadd.f32 %v608, %v2756
        %v2758 = vpop.f32.mrf.mxu0
        %v2759 = vadd.f32 %v604, %v2758
        %v2760 = vpop.f32.mrf.mxu0
        %v2761 = vadd.f32 %v608, %v2760
        %2762 = vmatprep.mubr.bf16.mxu0 0
        %2763 = vmatmul.mubr.bf16.gmra.mxu0 %v1689
        %v2764 = vpop.f32.mrf.mxu0
        %v2765 = vadd.f32 %v604, %v2764
        %v2766 = vpop.f32.mrf.mxu0
        %v2767 = vadd.f32 %v608, %v2766
        %v2768 = vpop.f32.mrf.mxu0
        %v2769 = vadd.f32 %v604, %v2768
        %v2770 = vpop.f32.mrf.mxu0
        %v2771 = vadd.f32 %v608, %v2770
        %2772 = vmatprep.mubr.bf16.mxu0 0
        %2773 = vmatmul.mubr.bf16.gmra.mxu0 %v1692
        %v2774 = vpop.f32.mrf.mxu0
        %v2775 = vadd.f32 %v604, %v2774
        %v2776 = vpop.f32.mrf.mxu0
        %v2777 = vadd.f32 %v608, %v2776
        %v2778 = vpop.f32.mrf.mxu0
        %v2779 = vadd.f32 %v604, %v2778
        %v2780 = vpop.f32.mrf.mxu0
        %v2781 = vadd.f32 %v608, %v2780
        %2782 = vmatprep.mubr.bf16.mxu0 0
        %2783 = vmatmul.mubr.bf16.gmra.mxu0 %v1695
        %v2784 = vpop.f32.mrf.mxu0
        %v2785 = vadd.f32 %v604, %v2784
        %v2786 = vpop.f32.mrf.mxu0
        %v2787 = vadd.f32 %v608, %v2786
        %v2788 = vpop.f32.mrf.mxu0
        %v2789 = vadd.f32 %v604, %v2788
        %v2790 = vpop.f32.mrf.mxu0
        %v2791 = vadd.f32 %v608, %v2790
        %2792 = vmatprep.mubr.bf16.mxu0 0
        %2793 = vmatmul.mubr.bf16.gmra.mxu0 %v1698
        %v2794 = vpop.f32.mrf.mxu0
        %v2795 = vadd.f32 %v604, %v2794
        %v2796 = vpop.f32.mrf.mxu0
        %v2797 = vadd.f32 %v608, %v2796
        %v2798 = vpop.f32.mrf.mxu0
        %v2799 = vadd.f32 %v604, %v2798
        %v2800 = vpop.f32.mrf.mxu0
        %v2801 = vadd.f32 %v608, %v2800
        %2802 = vmatprep.mubr.bf16.mxu0 0
        %2803 = vmatmul.mubr.bf16.gmra.mxu0 %v1701
        %v2804 = vpop.f32.mrf.mxu0
        %v2805 = vadd.f32 %v604, %v2804
        %v2806 = vpop.f32.mrf.mxu0
        %v2807 = vadd.f32 %v608, %v2806
        %v2808 = vpop.f32.mrf.mxu0
        %v2809 = vadd.f32 %v604, %v2808
        %v2810 = vpop.f32.mrf.mxu0
        %v2811 = vadd.f32 %v608, %v2810
        %2812 = vmatprep.mubr.bf16.mxu0 0
        %2813 = vmatmul.mubr.bf16.gmra.mxu0 %v1704
        %v2814 = vpop.f32.mrf.mxu0
        %v2815 = vadd.f32 %v604, %v2814
        %v2816 = vpop.f32.mrf.mxu0
        %v2817 = vadd.f32 %v608, %v2816
        %v2818 = vpop.f32.mrf.mxu0
        %v2819 = vadd.f32 %v604, %v2818
        %v2820 = vpop.f32.mrf.mxu0
        %v2821 = vadd.f32 %v608, %v2820
        %2822 = vmatprep.mubr.bf16.mxu0 0
        %2823 = vmatmul.mubr.bf16.gmra.mxu0 %v1707
        %v2824 = vpop.f32.mrf.mxu0
        %v2825 = vadd.f32 %v604, %v2824
        %v2826 = vpop.f32.mrf.mxu0
        %v2827 = vadd.f32 %v608, %v2826
        %v2828 = vpop.f32.mrf.mxu0
        %v2829 = vadd.f32 %v604, %v2828
        %v2830 = vpop.f32.mrf.mxu0
        %v2831 = vadd.f32 %v608, %v2830
        %2832 = vmatprep.mubr.bf16.mxu0 0
        %2833 = vmatmul.mubr.bf16.gmra.mxu0 %v1710
        %v2834 = vpop.f32.mrf.mxu0
        %v2835 = vadd.f32 %v604, %v2834
        %v2836 = vpop.f32.mrf.mxu0
        %v2837 = vadd.f32 %v608, %v2836
        %v2838 = vpop.f32.mrf.mxu0
        %v2839 = vadd.f32 %v604, %v2838
        %v2840 = vpop.f32.mrf.mxu0
        %v2841 = vadd.f32 %v608, %v2840
        %2842 = vmatprep.mubr.bf16.mxu0 0
        %2843 = vmatmul.mubr.bf16.gmra.mxu0 %v1713
        %v2844 = vpop.f32.mrf.mxu0
        %v2845 = vadd.f32 %v604, %v2844
        %v2846 = vpop.f32.mrf.mxu0
        %v2847 = vadd.f32 %v608, %v2846
        %v2848 = vpop.f32.mrf.mxu0
        %v2849 = vadd.f32 %v604, %v2848
        %v2850 = vpop.f32.mrf.mxu0
        %v2851 = vadd.f32 %v608, %v2850
        %2852 = vmatprep.mubr.bf16.mxu0 0
        %2853 = vmatmul.mubr.bf16.gmra.mxu0 %v1716
        %v2854 = vpop.f32.mrf.mxu0
        %v2855 = vadd.f32 %v604, %v2854
        %v2856 = vpop.f32.mrf.mxu0
        %v2857 = vadd.f32 %v608, %v2856
        %v2858 = vpop.f32.mrf.mxu0
        %v2859 = vadd.f32 %v604, %v2858
        %v2860 = vpop.f32.mrf.mxu0
        %v2861 = vadd.f32 %v608, %v2860
        %2862 = vmatprep.mubr.bf16.mxu0 0
        %2863 = vmatmul.mubr.bf16.gmra.mxu0 %v1719
        %v2864 = vpop.f32.mrf.mxu0
        %v2865 = vadd.f32 %v604, %v2864
        %v2866 = vpop.f32.mrf.mxu0
        %v2867 = vadd.f32 %v608, %v2866
        %v2868 = vpop.f32.mrf.mxu0
        %v2869 = vadd.f32 %v604, %v2868
        %v2870 = vpop.f32.mrf.mxu0
        %v2871 = vadd.f32 %v608, %v2870
        %2872 = vmatprep.mubr.bf16.mxu0 0
        %2873 = vmatmul.mubr.bf16.gmra.mxu0 %v1722
        %v2874 = vpop.f32.mrf.mxu0
        %v2875 = vadd.f32 %v604, %v2874
        %v2876 = vpop.f32.mrf.mxu0
        %v2877 = vadd.f32 %v608, %v2876
        %v2878 = vpop.f32.mrf.mxu0
        %v2879 = vadd.f32 %v604, %v2878
        %v2880 = vpop.f32.mrf.mxu0
        %v2881 = vadd.f32 %v608, %v2880
        %2882 = vmatprep.mubr.bf16.mxu0 0
        %2883 = vmatmul.mubr.bf16.gmra.mxu0 %v1725
        %v2884 = vpop.f32.mrf.mxu0
        %v2885 = vadd.f32 %v604, %v2884
        %v2886 = vpop.f32.mrf.mxu0
        %v2887 = vadd.f32 %v608, %v2886
        %v2888 = vpop.f32.mrf.mxu0
        %v2889 = vadd.f32 %v604, %v2888
        %v2890 = vpop.f32.mrf.mxu0
        %v2891 = vadd.f32 %v608, %v2890
        %2892 = vmatprep.mubr.bf16.mxu0 0
        %2893 = vmatmul.mubr.bf16.gmra.mxu0 %v1728
        %v2894 = vpop.f32.mrf.mxu0
        %v2895 = vadd.f32 %v604, %v2894
        %v2896 = vpop.f32.mrf.mxu0
        %v2897 = vadd.f32 %v608, %v2896
        %v2898 = vpop.f32.mrf.mxu0
        %v2899 = vadd.f32 %v604, %v2898
        %v2900 = vpop.f32.mrf.mxu0
        %v2901 = vadd.f32 %v608, %v2900
        %2902 = vmatprep.mubr.bf16.mxu0 0
        %2903 = vmatmul.mubr.bf16.gmra.mxu0 %v1731
        %v2904 = vpop.f32.mrf.mxu0
        %v2905 = vadd.f32 %v604, %v2904
        %v2906 = vpop.f32.mrf.mxu0
        %v2907 = vadd.f32 %v608, %v2906
        %v2908 = vpop.f32.mrf.mxu0
        %v2909 = vadd.f32 %v604, %v2908
        %v2910 = vpop.f32.mrf.mxu0
        %v2911 = vadd.f32 %v608, %v2910
        %2912 = vmatprep.mubr.bf16.mxu0 0
        %2913 = vmatmul.mubr.bf16.gmra.mxu0 %v1734
        %v2914 = vpop.f32.mrf.mxu0
        %v2915 = vadd.f32 %v604, %v2914
        %v2916 = vpop.f32.mrf.mxu0
        %v2917 = vadd.f32 %v608, %v2916
        %v2918 = vpop.f32.mrf.mxu0
        %v2919 = vadd.f32 %v604, %v2918
        %v2920 = vpop.f32.mrf.mxu0
        %v2921 = vadd.f32 %v608, %v2920
        %2922 = vmatprep.mubr.bf16.mxu0 0
        %2923 = vmatmul.mubr.bf16.gmra.mxu0 %v1737
        %v2924 = vpop.f32.mrf.mxu0
        %v2925 = vadd.f32 %v604, %v2924
        %v2926 = vpop.f32.mrf.mxu0
        %v2927 = vadd.f32 %v608, %v2926
        %v2928 = vpop.f32.mrf.mxu0
        %v2929 = vadd.f32 %v604, %v2928
        %v2930 = vpop.f32.mrf.mxu0
        %v2931 = vadd.f32 %v608, %v2930
        %2932 = vmatprep.mubr.bf16.mxu0 0
        %2933 = vmatmul.mubr.bf16.gmra.mxu0 %v1740
        %v2934 = vpop.f32.mrf.mxu0
        %v2935 = vadd.f32 %v604, %v2934
        %v2936 = vpop.f32.mrf.mxu0
        %v2937 = vadd.f32 %v608, %v2936
        %v2938 = vpop.f32.mrf.mxu0
        %v2939 = vadd.f32 %v604, %v2938
        %v2940 = vpop.f32.mrf.mxu0
        %v2941 = vadd.f32 %v608, %v2940
        %2942 = vmatprep.mubr.bf16.mxu0 0
        %2943 = vmatmul.mubr.bf16.gmra.mxu0 %v1743
        %v2944 = vpop.f32.mrf.mxu0
        %v2945 = vadd.f32 %v604, %v2944
        %v2946 = vpop.f32.mrf.mxu0
        %v2947 = vadd.f32 %v608, %v2946
        %v2948 = vpop.f32.mrf.mxu0
        %v2949 = vadd.f32 %v604, %v2948
        %v2950 = vpop.f32.mrf.mxu0
        %v2951 = vadd.f32 %v608, %v2950
        %2952 = vmatprep.mubr.bf16.mxu0 0
        %2953 = vmatmul.mubr.bf16.gmra.mxu0 %v1746
        %v2954 = vpop.f32.mrf.mxu0
        %v2955 = vadd.f32 %v604, %v2954
        %v2956 = vpop.f32.mrf.mxu0
        %v2957 = vadd.f32 %v608, %v2956
        %v2958 = vpop.f32.mrf.mxu0
        %v2959 = vadd.f32 %v604, %v2958
        %v2960 = vpop.f32.mrf.mxu0
        %v2961 = vadd.f32 %v608, %v2960
        %2962 = vmatprep.mubr.bf16.mxu0 0
        %2963 = vmatmul.mubr.bf16.gmra.mxu0 %v1749
        %v2964 = vpop.f32.mrf.mxu0
        %v2965 = vadd.f32 %v604, %v2964
        %v2966 = vpop.f32.mrf.mxu0
        %v2967 = vadd.f32 %v608, %v2966
        %v2968 = vpop.f32.mrf.mxu0
        %v2969 = vadd.f32 %v604, %v2968
        %v2970 = vpop.f32.mrf.mxu0
        %v2971 = vadd.f32 %v608, %v2970
        %2972 = vmatprep.mubr.bf16.mxu0 0
        %2973 = vmatmul.mubr.bf16.gmra.mxu0 %v1752
        %v2974 = vpop.f32.mrf.mxu0
        %v2975 = vadd.f32 %v604, %v2974
        %v2976 = vpop.f32.mrf.mxu0
        %v2977 = vadd.f32 %v608, %v2976
        %v2978 = vpop.f32.mrf.mxu0
        %v2979 = vadd.f32 %v604, %v2978
        %v2980 = vpop.f32.mrf.mxu0
        %v2981 = vadd.f32 %v608, %v2980
        %2982 = vmatprep.mubr.bf16.mxu0 0
        %2983 = vmatmul.mubr.bf16.gmra.mxu0 %v1755
        %v2984 = vpop.f32.mrf.mxu0
        %v2985 = vadd.f32 %v604, %v2984
        %v2986 = vpop.f32.mrf.mxu0
        %v2987 = vadd.f32 %v608, %v2986
        %v2988 = vpop.f32.mrf.mxu0
        %v2989 = vadd.f32 %v604, %v2988
        %v2990 = vpop.f32.mrf.mxu0
        %v2991 = vadd.f32 %v608, %v2990
        %2992 = vmatprep.mubr.bf16.mxu0 0
        %2993 = vmatmul.mubr.bf16.gmra.mxu0 %v1758
        %v2994 = vpop.f32.mrf.mxu0
        %v2995 = vadd.f32 %v604, %v2994
        %v2996 = vpop.f32.mrf.mxu0
        %v2997 = vadd.f32 %v608, %v2996
        %v2998 = vpop.f32.mrf.mxu0
        %v2999 = vadd.f32 %v604, %v2998
        %v3000 = vpop.f32.mrf.mxu0
        %v3001 = vadd.f32 %v608, %v3000
        %3002 = vmatprep.mubr.bf16.mxu0 0
        %3003 = vmatmul.mubr.bf16.gmra.mxu0 %v1761
        %v3004 = vpop.f32.mrf.mxu0
        %v3005 = vadd.f32 %v604, %v3004
        %v3006 = vpop.f32.mrf.mxu0
        %v3007 = vadd.f32 %v608, %v3006
        %v3008 = vpop.f32.mrf.mxu0
        %v3009 = vadd.f32 %v604, %v3008
        %v3010 = vpop.f32.mrf.mxu0
        %v3011 = vadd.f32 %v608, %v3010
        %3012 = vmatprep.mubr.bf16.mxu0 0
        %3013 = vmatmul.mubr.bf16.gmra.mxu0 %v1764
        %v3014 = vpop.f32.mrf.mxu0
        %v3015 = vadd.f32 %v604, %v3014
        %v3016 = vpop.f32.mrf.mxu0
        %v3017 = vadd.f32 %v608, %v3016
        %v3018 = vpop.f32.mrf.mxu0
        %v3019 = vadd.f32 %v604, %v3018
        %v3020 = vpop.f32.mrf.mxu0
        %v3021 = vadd.f32 %v608, %v3020
        %3022 = vmatprep.mubr.bf16.mxu0 0
        %3023 = vmatmul.mubr.bf16.gmra.mxu0 %v1767
        %v3024 = vpop.f32.mrf.mxu0
        %v3025 = vadd.f32 %v604, %v3024
        %v3026 = vpop.f32.mrf.mxu0
        %v3027 = vadd.f32 %v608, %v3026
        %v3028 = vpop.f32.mrf.mxu0
        %v3029 = vadd.f32 %v604, %v3028
        %v3030 = vpop.f32.mrf.mxu0
        %v3031 = vadd.f32 %v608, %v3030
        %3032 = vmatprep.mubr.bf16.mxu0 0
        %3033 = vmatmul.mubr.bf16.gmra.mxu0 %v1770
        %v3034 = vpop.f32.mrf.mxu0
        %v3035 = vadd.f32 %v604, %v3034
        %v3036 = vpop.f32.mrf.mxu0
        %v3037 = vadd.f32 %v608, %v3036
        %v3038 = vpop.f32.mrf.mxu0
        %v3039 = vadd.f32 %v604, %v3038
        %v3040 = vpop.f32.mrf.mxu0
        %v3041 = vadd.f32 %v608, %v3040
        %3042 = vmatprep.mubr.bf16.mxu0 0
        %3043 = vmatmul.mubr.bf16.gmra.mxu0 %v1773
        %v3044 = vpop.f32.mrf.mxu0
        %v3045 = vadd.f32 %v604, %v3044
        %v3046 = vpop.f32.mrf.mxu0
        %v3047 = vadd.f32 %v608, %v3046
        %v3048 = vpop.f32.mrf.mxu0
        %v3049 = vadd.f32 %v604, %v3048
        %v3050 = vpop.f32.mrf.mxu0
        %v3051 = vadd.f32 %v608, %v3050
        %3052 = vmatprep.mubr.bf16.mxu0 0
        %3053 = vmatmul.mubr.bf16.gmra.mxu0 %v1776
        %v3054 = vpop.f32.mrf.mxu0
        %v3055 = vadd.f32 %v604, %v3054
        %v3056 = vpop.f32.mrf.mxu0
        %v3057 = vadd.f32 %v608, %v3056
        %v3058 = vpop.f32.mrf.mxu0
        %v3059 = vadd.f32 %v604, %v3058
        %v3060 = vpop.f32.mrf.mxu0
        %v3061 = vadd.f32 %v608, %v3060
        %3062 = vmatprep.mubr.bf16.mxu0 0
        %3063 = vmatmul.mubr.bf16.gmra.mxu0 %v1779
        %v3064 = vpop.f32.mrf.mxu0
        %v3065 = vadd.f32 %v604, %v3064
        %v3066 = vpop.f32.mrf.mxu0
        %v3067 = vadd.f32 %v608, %v3066
        %v3068 = vpop.f32.mrf.mxu0
        %v3069 = vadd.f32 %v604, %v3068
        %v3070 = vpop.f32.mrf.mxu0
        %v3071 = vadd.f32 %v608, %v3070
        %3072 = vmatprep.mubr.bf16.mxu0 0
        %3073 = vmatmul.mubr.bf16.gmra.mxu0 %v1782
        %v3074 = vpop.f32.mrf.mxu0
        %v3075 = vadd.f32 %v604, %v3074
        %v3076 = vpop.f32.mrf.mxu0
        %v3077 = vadd.f32 %v608, %v3076
        %v3078 = vpop.f32.mrf.mxu0
        %v3079 = vadd.f32 %v604, %v3078
        %v3080 = vpop.f32.mrf.mxu0
        %v3081 = vadd.f32 %v608, %v3080
        %3082 = vmatprep.mubr.bf16.mxu0 0
        %3083 = vmatmul.mubr.bf16.gmra.mxu0 %v1785
        %v3084 = vpop.f32.mrf.mxu0
        %v3085 = vadd.f32 %v604, %v3084
        %v3086 = vpop.f32.mrf.mxu0
        %v3087 = vadd.f32 %v608, %v3086
        %v3088 = vpop.f32.mrf.mxu0
        %v3089 = vadd.f32 %v604, %v3088
        %v3090 = vpop.f32.mrf.mxu0
        %v3091 = vadd.f32 %v608, %v3090
        %3092 = vmatprep.mubr.bf16.mxu0 0
        %3093 = vmatmul.mubr.bf16.gmra.mxu0 %v1788
        %v3094 = vpop.f32.mrf.mxu0
        %v3095 = vadd.f32 %v604, %v3094
        %v3096 = vpop.f32.mrf.mxu0
        %v3097 = vadd.f32 %v608, %v3096
        %v3098 = vpop.f32.mrf.mxu0
        %v3099 = vadd.f32 %v604, %v3098
        %v3100 = vpop.f32.mrf.mxu0
        %v3101 = vadd.f32 %v608, %v3100
        %3102 = vmatprep.mubr.bf16.mxu0 0
        %3103 = vmatmul.mubr.bf16.gmra.mxu0 %v1791
        %v3104 = vpop.f32.mrf.mxu0
        %v3105 = vadd.f32 %v604, %v3104
        %v3106 = vpop.f32.mrf.mxu0
        %v3107 = vadd.f32 %v608, %v3106
        %v3108 = vpop.f32.mrf.mxu0
        %v3109 = vadd.f32 %v604, %v3108
        %v3110 = vpop.f32.mrf.mxu0
        %v3111 = vadd.f32 %v608, %v3110
        %3112 = vmatprep.mubr.bf16.mxu0 0
        %3113 = vmatmul.mubr.bf16.gmra.mxu0 %v1794
        %v3114 = vpop.f32.mrf.mxu0
        %v3115 = vadd.f32 %v604, %v3114
        %v3116 = vpop.f32.mrf.mxu0
        %v3117 = vadd.f32 %v608, %v3116
        %v3118 = vpop.f32.mrf.mxu0
        %v3119 = vadd.f32 %v604, %v3118
        %v3120 = vpop.f32.mrf.mxu0
        %v3121 = vadd.f32 %v608, %v3120
        %3122 = vmatprep.mubr.bf16.mxu0 0
        %3123 = vmatmul.mubr.bf16.gmra.mxu0 %v1797
        %v3124 = vpop.f32.mrf.mxu0
        %v3125 = vadd.f32 %v604, %v3124
        %v3126 = vpop.f32.mrf.mxu0
        %v3127 = vadd.f32 %v608, %v3126
        %v3128 = vpop.f32.mrf.mxu0
        %v3129 = vadd.f32 %v604, %v3128
        %v3130 = vpop.f32.mrf.mxu0
        %v3131 = vadd.f32 %v608, %v3130
        %3132 = vmatprep.mubr.bf16.mxu0 0
        %3133 = vmatmul.mubr.bf16.gmra.mxu0 %v1800
        %v3134 = vpop.f32.mrf.mxu0
        %v3135 = vadd.f32 %v604, %v3134
        %v3136 = vpop.f32.mrf.mxu0
        %v3137 = vadd.f32 %v608, %v3136
        %v3138 = vpop.f32.mrf.mxu0
        %v3139 = vadd.f32 %v604, %v3138
        %v3140 = vpop.f32.mrf.mxu0
        %v3141 = vadd.f32 %v608, %v3140
        %3142 = vmatprep.mubr.bf16.mxu0 0
        %3143 = vmatmul.mubr.bf16.gmra.mxu0 %v1803
        %v3144 = vpop.f32.mrf.mxu0
        %v3145 = vadd.f32 %v604, %v3144
        %v3146 = vpop.f32.mrf.mxu0
        %v3147 = vadd.f32 %v608, %v3146
        %v3148 = vpop.f32.mrf.mxu0
        %v3149 = vadd.f32 %v604, %v3148
        %v3150 = vpop.f32.mrf.mxu0
        %v3151 = vadd.f32 %v608, %v3150
        %3152 = vmatprep.mubr.bf16.mxu0 0
        %3153 = vmatmul.mubr.bf16.gmra.mxu0 %v1806
        %v3154 = vpop.f32.mrf.mxu0
        %v3155 = vadd.f32 %v604, %v3154
        %v3156 = vpop.f32.mrf.mxu0
        %v3157 = vadd.f32 %v608, %v3156
        %v3158 = vpop.f32.mrf.mxu0
        %v3159 = vadd.f32 %v604, %v3158
        %v3160 = vpop.f32.mrf.mxu0
        %v3161 = vadd.f32 %v608, %v3160
        %3162 = vmatprep.mubr.bf16.mxu0 0
        %3163 = vmatmul.mubr.bf16.gmra.mxu0 %v1809
        %v3164 = vpop.f32.mrf.mxu0
        %v3165 = vadd.f32 %v604, %v3164
        %v3166 = vpop.f32.mrf.mxu0
        %v3167 = vadd.f32 %v608, %v3166
        %v3168 = vpop.f32.mrf.mxu0
        %v3169 = vadd.f32 %v604, %v3168
        %v3170 = vpop.f32.mrf.mxu0
        %v3171 = vadd.f32 %v608, %v3170
        %3172 = vmatprep.mubr.bf16.mxu0 0
        %3173 = vmatmul.mubr.bf16.gmra.mxu0 %v1812
        %v3174 = vpop.f32.mrf.mxu0
        %v3175 = vadd.f32 %v604, %v3174
        %v3176 = vpop.f32.mrf.mxu0
        %v3177 = vadd.f32 %v608, %v3176
        %v3178 = vpop.f32.mrf.mxu0
        %v3179 = vadd.f32 %v604, %v3178
        %v3180 = vpop.f32.mrf.mxu0
        %v3181 = vadd.f32 %v608, %v3180
        %3182 = vmatprep.mubr.bf16.mxu0 0
        %3183 = vmatmul.mubr.bf16.gmra.mxu0 %v1815
        %v3184 = vpop.f32.mrf.mxu0
        %v3185 = vadd.f32 %v604, %v3184
        %v3186 = vpop.f32.mrf.mxu0
        %v3187 = vadd.f32 %v608, %v3186
        %v3188 = vpop.f32.mrf.mxu0
        %v3189 = vadd.f32 %v604, %v3188
        %v3190 = vpop.f32.mrf.mxu0
        %v3191 = vadd.f32 %v608, %v3190
        %3192 = vmatprep.mubr.bf16.mxu0 0
        %3193 = vmatmul.mubr.bf16.gmra.mxu0 %v1818
        %v3194 = vpop.f32.mrf.mxu0
        %v3195 = vadd.f32 %v604, %v3194
        %v3196 = vpop.f32.mrf.mxu0
        %v3197 = vadd.f32 %v608, %v3196
        %v3198 = vpop.f32.mrf.mxu0
        %v3199 = vadd.f32 %v604, %v3198
        %v3200 = vpop.f32.mrf.mxu0
        %v3201 = vadd.f32 %v608, %v3200
        %3202 = vmatprep.mubr.bf16.mxu0 0
        %3203 = vmatmul.mubr.bf16.gmra.mxu0 %v1821
        %v3204 = vpop.f32.mrf.mxu0
        %v3205 = vadd.f32 %v604, %v3204
        %v3206 = vpop.f32.mrf.mxu0
        %v3207 = vadd.f32 %v608, %v3206
        %v3208 = vpop.f32.mrf.mxu0
        %v3209 = vadd.f32 %v604, %v3208
        %v3210 = vpop.f32.mrf.mxu0
        %v3211 = vadd.f32 %v608, %v3210
        %3212 = vmatprep.mubr.bf16.mxu0 0
        %3213 = vmatmul.mubr.bf16.gmra.mxu0 %v1824
        %v3214 = vpop.f32.mrf.mxu0
        %v3215 = vadd.f32 %v604, %v3214
        %v3216 = vpop.f32.mrf.mxu0
        %v3217 = vadd.f32 %v608, %v3216
        %v3218 = vpop.f32.mrf.mxu0
        %v3219 = vadd.f32 %v604, %v3218
        %v3220 = vpop.f32.mrf.mxu0
        %v3221 = vadd.f32 %v608, %v3220
        %3222 = vmatprep.mubr.bf16.mxu0 0
        %3223 = vmatmul.mubr.bf16.gmra.mxu0 %v1827
        %v3224 = vpop.f32.mrf.mxu0
        %v3225 = vadd.f32 %v604, %v3224
        %v3226 = vpop.f32.mrf.mxu0
        %v3227 = vadd.f32 %v608, %v3226
        %v3228 = vpop.f32.mrf.mxu0
        %v3229 = vadd.f32 %v604, %v3228
        %v3230 = vpop.f32.mrf.mxu0
        %v3231 = vadd.f32 %v608, %v3230
        %3232 = vmatprep.mubr.bf16.mxu0 0
        %3233 = vmatmul.mubr.bf16.gmra.mxu0 %v1830
        %v3234 = vpop.f32.mrf.mxu0
        %v3235 = vadd.f32 %v604, %v3234
        %v3236 = vpop.f32.mrf.mxu0
        %v3237 = vadd.f32 %v608, %v3236
        %v3238 = vpop.f32.mrf.mxu0
        %v3239 = vadd.f32 %v604, %v3238
        %v3240 = vpop.f32.mrf.mxu0
        %v3241 = vadd.f32 %v608, %v3240
        %3242 = vmatprep.mubr.bf16.mxu0 0
        %3243 = vmatmul.mubr.bf16.gmra.mxu0 %v1833
        %v3244 = vpop.f32.mrf.mxu0
        %v3245 = vadd.f32 %v604, %v3244
        %v3246 = vpop.f32.mrf.mxu0
        %v3247 = vadd.f32 %v608, %v3246
        %v3248 = vpop.f32.mrf.mxu0
        %v3249 = vadd.f32 %v604, %v3248
        %v3250 = vpop.f32.mrf.mxu0
        %v3251 = vadd.f32 %v608, %v3250
        %3252 = vmatprep.mubr.bf16.mxu0 0
        %3253 = vmatmul.mubr.bf16.gmra.mxu0 %v1836
        %v3254 = vpop.f32.mrf.mxu0
        %v3255 = vadd.f32 %v604, %v3254
        %v3256 = vpop.f32.mrf.mxu0
        %v3257 = vadd.f32 %v608, %v3256
        %v3258 = vpop.f32.mrf.mxu0
        %v3259 = vadd.f32 %v604, %v3258
        %v3260 = vpop.f32.mrf.mxu0
        %v3261 = vadd.f32 %v608, %v3260
        %3262 = vmatprep.mubr.bf16.mxu0 0
        %3263 = vmatmul.mubr.bf16.gmra.mxu0 %v1839
        %v3264 = vpop.f32.mrf.mxu0
        %v3265 = vadd.f32 %v604, %v3264
        %v3266 = vpop.f32.mrf.mxu0
        %v3267 = vadd.f32 %v608, %v3266
        %v3268 = vpop.f32.mrf.mxu0
        %v3269 = vadd.f32 %v604, %v3268
        %v3270 = vpop.f32.mrf.mxu0
        %v3271 = vadd.f32 %v608, %v3270
        %3272 = vmatprep.mubr.bf16.mxu0 0
        %3273 = vmatmul.mubr.bf16.gmra.mxu0 %v1842
        %v3274 = vpop.f32.mrf.mxu0
        %v3275 = vadd.f32 %v604, %v3274
        %v3276 = vpop.f32.mrf.mxu0
        %v3277 = vadd.f32 %v608, %v3276
        %v3278 = vpop.f32.mrf.mxu0
        %v3279 = vadd.f32 %v604, %v3278
        %v3280 = vpop.f32.mrf.mxu0
        %v3281 = vadd.f32 %v608, %v3280
        %3282 = vmatprep.mubr.bf16.mxu0 0
        %3283 = vmatmul.mubr.bf16.gmra.mxu0 %v1845
        %v3284 = vpop.f32.mrf.mxu0
        %v3285 = vadd.f32 %v604, %v3284
        %v3286 = vpop.f32.mrf.mxu0
        %v3287 = vadd.f32 %v608, %v3286
        %v3288 = vpop.f32.mrf.mxu0
        %v3289 = vadd.f32 %v604, %v3288
        %v3290 = vpop.f32.mrf.mxu0
        %v3291 = vadd.f32 %v608, %v3290
        %3292 = vmatprep.mubr.bf16.mxu0 0
        %3293 = vmatmul.mubr.bf16.gmra.mxu0 %v1848
        %v3294 = vpop.f32.mrf.mxu0
        %v3295 = vadd.f32 %v604, %v3294
        %v3296 = vpop.f32.mrf.mxu0
        %v3297 = vadd.f32 %v608, %v3296
        %v3298 = vpop.f32.mrf.mxu0
        %v3299 = vadd.f32 %v604, %v3298
        %v3300 = vpop.f32.mrf.mxu0
        %v3301 = vadd.f32 %v608, %v3300
        %3302 = vmatprep.mubr.bf16.mxu0 0
        %3303 = vmatmul.mubr.bf16.gmra.mxu0 %v1851
        %v3304 = vpop.f32.mrf.mxu0
        %v3305 = vadd.f32 %v604, %v3304
        %v3306 = vpop.f32.mrf.mxu0
        %v3307 = vadd.f32 %v608, %v3306
        %v3308 = vpop.f32.mrf.mxu0
        %v3309 = vadd.f32 %v604, %v3308
        %v3310 = vpop.f32.mrf.mxu0
        %v3311 = vadd.f32 %v608, %v3310
        %3312 = vmatprep.mubr.bf16.mxu0 0
        %3313 = vmatmul.mubr.bf16.gmra.mxu0 %v1854
        %v3314 = vpop.f32.mrf.mxu0
        %v3315 = vadd.f32 %v604, %v3314
        %v3316 = vpop.f32.mrf.mxu0
        %v3317 = vadd.f32 %v608, %v3316
        %v3318 = vpop.f32.mrf.mxu0
        %v3319 = vadd.f32 %v604, %v3318
        %v3320 = vpop.f32.mrf.mxu0
        %v3321 = vadd.f32 %v608, %v3320
        %3322 = vmatprep.mubr.bf16.mxu0 0
        %3323 = vmatmul.mubr.bf16.gmra.mxu0 %v1857
        %v3324 = vpop.f32.mrf.mxu0
        %v3325 = vadd.f32 %v604, %v3324
        %v3326 = vpop.f32.mrf.mxu0
        %v3327 = vadd.f32 %v608, %v3326
        %v3328 = vpop.f32.mrf.mxu0
        %v3329 = vadd.f32 %v604, %v3328
        %v3330 = vpop.f32.mrf.mxu0
        %v3331 = vadd.f32 %v608, %v3330
        %3332 = vmatprep.mubr.bf16.mxu0 0
        %3333 = vmatmul.mubr.bf16.gmra.mxu0 %v1860
        %v3334 = vpop.f32.mrf.mxu0
        %v3335 = vadd.f32 %v604, %v3334
        %v3336 = vpop.f32.mrf.mxu0
        %v3337 = vadd.f32 %v608, %v3336
        %v3338 = vpop.f32.mrf.mxu0
        %v3339 = vadd.f32 %v604, %v3338
        %v3340 = vpop.f32.mrf.mxu0
        %v3341 = vadd.f32 %v608, %v3340
        %3342 = vmatprep.mubr.bf16.mxu0 0
        %3343 = vmatmul.mubr.bf16.gmra.mxu0 %v1863
        %v3344 = vpop.f32.mrf.mxu0
        %v3345 = vadd.f32 %v604, %v3344
        %v3346 = vpop.f32.mrf.mxu0
        %v3347 = vadd.f32 %v608, %v3346
        %v3348 = vpop.f32.mrf.mxu0
        %v3349 = vadd.f32 %v604, %v3348
        %v3350 = vpop.f32.mrf.mxu0
        %v3351 = vadd.f32 %v608, %v3350
        %3352 = vmatprep.mubr.bf16.mxu0 0
        %3353 = vmatmul.mubr.bf16.gmra.mxu0 %v1866
        %v3354 = vpop.f32.mrf.mxu0
        %v3355 = vadd.f32 %v604, %v3354
        %v3356 = vpop.f32.mrf.mxu0
        %v3357 = vadd.f32 %v608, %v3356
        %v3358 = vpop.f32.mrf.mxu0
        %v3359 = vadd.f32 %v604, %v3358
        %v3360 = vpop.f32.mrf.mxu0
        %v3361 = vadd.f32 %v608, %v3360
        %3362 = vmatprep.mubr.bf16.mxu0 0
        %3363 = vmatmul.mubr.bf16.gmra.mxu0 %v1869
        %v3364 = vpop.f32.mrf.mxu0
        %v3365 = vadd.f32 %v604, %v3364
        %v3366 = vpop.f32.mrf.mxu0
        %v3367 = vadd.f32 %v608, %v3366
        %v3368 = vpop.f32.mrf.mxu0
        %v3369 = vadd.f32 %v604, %v3368
        %v3370 = vpop.f32.mrf.mxu0
        %v3371 = vadd.f32 %v608, %v3370
        %3372 = vmatprep.mubr.bf16.mxu0 0
        %3373 = vmatmul.mubr.bf16.gmra.mxu0 %v1872
        %v3374 = vpop.f32.mrf.mxu0
        %v3375 = vadd.f32 %v604, %v3374
        %v3376 = vpop.f32.mrf.mxu0
        %v3377 = vadd.f32 %v608, %v3376
        %v3378 = vpop.f32.mrf.mxu0
        %v3379 = vadd.f32 %v604, %v3378
        %v3380 = vpop.f32.mrf.mxu0
        %v3381 = vadd.f32 %v608, %v3380
        %3382 = vmatprep.mubr.bf16.mxu0 0
        %3383 = vmatmul.mubr.bf16.gmra.mxu0 %v1875
        %v3384 = vpop.f32.mrf.mxu0
        %v3385 = vadd.f32 %v604, %v3384
        %v3386 = vpop.f32.mrf.mxu0
        %v3387 = vadd.f32 %v608, %v3386
        %v3388 = vpop.f32.mrf.mxu0
        %v3389 = vadd.f32 %v604, %v3388
        %v3390 = vpop.f32.mrf.mxu0
        %v3391 = vadd.f32 %v608, %v3390
        %3392 = vmatprep.mubr.bf16.mxu0 0
        %3393 = vmatmul.mubr.bf16.gmra.mxu0 %v1878
        %v3394 = vpop.f32.mrf.mxu0
        %v3395 = vadd.f32 %v604, %v3394
        %v3396 = vpop.f32.mrf.mxu0
        %v3397 = vadd.f32 %v608, %v3396
        %v3398 = vpop.f32.mrf.mxu0
        %v3399 = vadd.f32 %v604, %v3398
        %v3400 = vpop.f32.mrf.mxu0
        %v3401 = vadd.f32 %v608, %v3400
        %3402 = vmatprep.mubr.bf16.mxu0 0
        %3403 = vmatmul.mubr.bf16.gmra.mxu0 %v1881
        %v3404 = vpop.f32.mrf.mxu0
        %v3405 = vadd.f32 %v604, %v3404
        %v3406 = vpop.f32.mrf.mxu0
        %v3407 = vadd.f32 %v608, %v3406
        %v3408 = vpop.f32.mrf.mxu0
        %v3409 = vadd.f32 %v604, %v3408
        %v3410 = vpop.f32.mrf.mxu0
        %v3411 = vadd.f32 %v608, %v3410
        %3412 = vmatprep.mubr.bf16.mxu0 0
        %3413 = vmatmul.mubr.bf16.gmra.mxu0 %v1884
        %v3414 = vpop.f32.mrf.mxu0
        %v3415 = vadd.f32 %v604, %v3414
        %v3416 = vpop.f32.mrf.mxu0
        %v3417 = vadd.f32 %v608, %v3416
        %v3418 = vpop.f32.mrf.mxu0
        %v3419 = vadd.f32 %v604, %v3418
        %v3420 = vpop.f32.mrf.mxu0
        %v3421 = vadd.f32 %v608, %v3420
        %3422 = vmatprep.mubr.bf16.mxu0 0
        %3423 = vmatmul.mubr.bf16.gmra.mxu0 %v1887
        %v3424 = vpop.f32.mrf.mxu0
        %v3425 = vadd.f32 %v604, %v3424
        %v3426 = vpop.f32.mrf.mxu0
        %v3427 = vadd.f32 %v608, %v3426
        %v3428 = vpop.f32.mrf.mxu0
        %v3429 = vadd.f32 %v604, %v3428
        %v3430 = vpop.f32.mrf.mxu0
        %v3431 = vadd.f32 %v608, %v3430
        %3432 = vmatprep.mubr.bf16.mxu0 0
        %3433 = vmatmul.mubr.bf16.gmra.mxu0 %v1890
        %v3434 = vpop.f32.mrf.mxu0
        %v3435 = vadd.f32 %v604, %v3434
        %v3436 = vpop.f32.mrf.mxu0
        %v3437 = vadd.f32 %v608, %v3436
        %v3438 = vpop.f32.mrf.mxu0
        %v3439 = vadd.f32 %v604, %v3438
        %v3440 = vpop.f32.mrf.mxu0
        %v3441 = vadd.f32 %v608, %v3440
        %3442 = vmatprep.mubr.bf16.mxu0 0
        %3443 = vmatmul.mubr.bf16.gmra.mxu0 %v1893
        %v3444 = vpop.f32.mrf.mxu0
        %v3445 = vadd.f32 %v604, %v3444
        %v3446 = vpop.f32.mrf.mxu0
        %v3447 = vadd.f32 %v608, %v3446
        %v3448 = vpop.f32.mrf.mxu0
        %v3449 = vadd.f32 %v604, %v3448
        %v3450 = vpop.f32.mrf.mxu0
        %v3451 = vadd.f32 %v608, %v3450
        %3452 = vmatprep.mubr.bf16.mxu0 0
        %3453 = vmatmul.mubr.bf16.gmra.mxu0 %v1896
        %v3454 = vpop.f32.mrf.mxu0
        %v3455 = vadd.f32 %v604, %v3454
        %v3456 = vpop.f32.mrf.mxu0
        %v3457 = vadd.f32 %v608, %v3456
        %v3458 = vpop.f32.mrf.mxu0
        %v3459 = vadd.f32 %v604, %v3458
        %v3460 = vpop.f32.mrf.mxu0
        %v3461 = vadd.f32 %v608, %v3460
        %3462 = vmatprep.mubr.bf16.mxu0 0
        %3463 = vmatmul.mubr.bf16.gmra.mxu0 %v1899
        %v3464 = vpop.f32.mrf.mxu0
        %v3465 = vadd.f32 %v604, %v3464
        %v3466 = vpop.f32.mrf.mxu0
        %v3467 = vadd.f32 %v608, %v3466
        %v3468 = vpop.f32.mrf.mxu0
        %v3469 = vadd.f32 %v604, %v3468
        %v3470 = vpop.f32.mrf.mxu0
        %v3471 = vadd.f32 %v608, %v3470
        %3472 = vmatprep.mubr.bf16.mxu0 0
        %3473 = vmatmul.mubr.bf16.gmra.mxu0 %v1902
        %v3474 = vpop.f32.mrf.mxu0
        %v3475 = vadd.f32 %v604, %v3474
        %v3476 = vpop.f32.mrf.mxu0
        %v3477 = vadd.f32 %v608, %v3476
        %v3478 = vpop.f32.mrf.mxu0
        %v3479 = vadd.f32 %v604, %v3478
        %v3480 = vpop.f32.mrf.mxu0
        %v3481 = vadd.f32 %v608, %v3480
        %3482 = vmatprep.mubr.bf16.mxu0 0
        %3483 = vmatmul.mubr.bf16.gmra.mxu0 %v1905
        %v3484 = vpop.f32.mrf.mxu0
        %v3485 = vadd.f32 %v604, %v3484
        %v3486 = vpop.f32.mrf.mxu0
        %v3487 = vadd.f32 %v608, %v3486
        %v3488 = vpop.f32.mrf.mxu0
        %v3489 = vadd.f32 %v604, %v3488
        %v3490 = vpop.f32.mrf.mxu0
        %v3491 = vadd.f32 %v608, %v3490
        %3492 = vmatprep.mubr.bf16.mxu0 0
        %3493 = vmatmul.mubr.bf16.gmra.mxu0 %v1908
        %v3494 = vpop.f32.mrf.mxu0
        %v3495 = vadd.f32 %v604, %v3494
        %v3496 = vpop.f32.mrf.mxu0
        %v3497 = vadd.f32 %v608, %v3496
        %v3498 = vpop.f32.mrf.mxu0
        %v3499 = vadd.f32 %v604, %v3498
        %v3500 = vpop.f32.mrf.mxu0
        %v3501 = vadd.f32 %v608, %v3500
        %3502 = vdwg.mxu0
        %v3503 = vmax.f32 %v1945, 0.0
        %v3504 = vmax.f32 %v1947, 0.0
        %v3505 = vmax.f32 %v1949, 0.0
        %v3506 = vmax.f32 %v1951, 0.0
        %v3507 = vmax.f32 %v1955, 0.0
        %v3508 = vmax.f32 %v1957, 0.0
        %v3509 = vmax.f32 %v1959, 0.0
        %v3510 = vmax.f32 %v1961, 0.0
        %v3511 = vmax.f32 %v1965, 0.0
        %v3512 = vmax.f32 %v1967, 0.0
        %v3513 = vmax.f32 %v1969, 0.0
        %v3514 = vmax.f32 %v1971, 0.0
        %v3515 = vmax.f32 %v1975, 0.0
        %v3516 = vmax.f32 %v1977, 0.0
        %v3517 = vmax.f32 %v1979, 0.0
        %v3518 = vmax.f32 %v1981, 0.0
        %v3519 = vmax.f32 %v1985, 0.0
        %v3520 = vmax.f32 %v1987, 0.0
        %v3521 = vmax.f32 %v1989, 0.0
        %v3522 = vmax.f32 %v1991, 0.0
        %v3523 = vmax.f32 %v1995, 0.0
        %v3524 = vmax.f32 %v1997, 0.0
        %v3525 = vmax.f32 %v1999, 0.0
        %v3526 = vmax.f32 %v2001, 0.0
        %v3527 = vmax.f32 %v2005, 0.0
        %v3528 = vmax.f32 %v2007, 0.0
        %v3529 = vmax.f32 %v2009, 0.0
        %v3530 = vmax.f32 %v2011, 0.0
        %v3531 = vmax.f32 %v2015, 0.0
        %v3532 = vmax.f32 %v2017, 0.0
        %v3533 = vmax.f32 %v2019, 0.0
        %v3534 = vmax.f32 %v2021, 0.0
        %v3535 = vmax.f32 %v2025, 0.0
        %v3536 = vmax.f32 %v2027, 0.0
        %v3537 = vmax.f32 %v2029, 0.0
        %v3538 = vmax.f32 %v2031, 0.0
        %v3539 = vmax.f32 %v2035, 0.0
        %v3540 = vmax.f32 %v2037, 0.0
        %v3541 = vmax.f32 %v2039, 0.0
        %v3542 = vmax.f32 %v2041, 0.0
        %v3543 = vmax.f32 %v2045, 0.0
        %v3544 = vmax.f32 %v2047, 0.0
        %v3545 = vmax.f32 %v2049, 0.0
        %v3546 = vmax.f32 %v2051, 0.0
        %v3547 = vmax.f32 %v2055, 0.0
        %v3548 = vmax.f32 %v2057, 0.0
        %v3549 = vmax.f32 %v2059, 0.0
        %v3550 = vmax.f32 %v2061, 0.0
        %v3551 = vmax.f32 %v2065, 0.0
        %v3552 = vmax.f32 %v2067, 0.0
        %v3553 = vmax.f32 %v2069, 0.0
        %v3554 = vmax.f32 %v2071, 0.0
        %v3555 = vmax.f32 %v2075, 0.0
        %v3556 = vmax.f32 %v2077, 0.0
        %v3557 = vmax.f32 %v2079, 0.0
        %v3558 = vmax.f32 %v2081, 0.0
        %v3559 = vmax.f32 %v2085, 0.0
        %v3560 = vmax.f32 %v2087, 0.0
        %v3561 = vmax.f32 %v2089, 0.0
        %v3562 = vmax.f32 %v2091, 0.0
        %v3563 = vmax.f32 %v2095, 0.0
        %v3564 = vmax.f32 %v2097, 0.0
        %v3565 = vmax.f32 %v2099, 0.0
        %v3566 = vmax.f32 %v2101, 0.0
        %v3567 = vmax.f32 %v2105, 0.0
        %v3568 = vmax.f32 %v2107, 0.0
        %v3569 = vmax.f32 %v2109, 0.0
        %v3570 = vmax.f32 %v2111, 0.0
        %v3571 = vmax.f32 %v2115, 0.0
        %v3572 = vmax.f32 %v2117, 0.0
        %v3573 = vmax.f32 %v2119, 0.0
        %v3574 = vmax.f32 %v2121, 0.0
        %v3575 = vmax.f32 %v2125, 0.0
        %v3576 = vmax.f32 %v2127, 0.0
        %v3577 = vmax.f32 %v2129, 0.0
        %v3578 = vmax.f32 %v2131, 0.0
        %v3579 = vmax.f32 %v2135, 0.0
        %v3580 = vmax.f32 %v2137, 0.0
        %v3581 = vmax.f32 %v2139, 0.0
        %v3582 = vmax.f32 %v2141, 0.0
        %v3583 = vmax.f32 %v2145, 0.0
        %v3584 = vmax.f32 %v2147, 0.0
        %v3585 = vmax.f32 %v2149, 0.0
        %v3586 = vmax.f32 %v2151, 0.0
        %v3587 = vmax.f32 %v2155, 0.0
        %v3588 = vmax.f32 %v2157, 0.0
        %v3589 = vmax.f32 %v2159, 0.0
        %v3590 = vmax.f32 %v2161, 0.0
        %v3591 = vmax.f32 %v2165, 0.0
        %v3592 = vmax.f32 %v2167, 0.0
        %v3593 = vmax.f32 %v2169, 0.0
        %v3594 = vmax.f32 %v2171, 0.0
        %v3595 = vmax.f32 %v2175, 0.0
        %v3596 = vmax.f32 %v2177, 0.0
        %v3597 = vmax.f32 %v2179, 0.0
        %v3598 = vmax.f32 %v2181, 0.0
        %v3599 = vmax.f32 %v2185, 0.0
        %v3600 = vmax.f32 %v2187, 0.0
        %v3601 = vmax.f32 %v2189, 0.0
        %v3602 = vmax.f32 %v2191, 0.0
        %v3603 = vmax.f32 %v2195, 0.0
        %v3604 = vmax.f32 %v2197, 0.0
        %v3605 = vmax.f32 %v2199, 0.0
        %v3606 = vmax.f32 %v2201, 0.0
        %v3607 = vmax.f32 %v2205, 0.0
        %v3608 = vmax.f32 %v2207, 0.0
        %v3609 = vmax.f32 %v2209, 0.0
        %v3610 = vmax.f32 %v2211, 0.0
        %v3611 = vmax.f32 %v2215, 0.0
        %v3612 = vmax.f32 %v2217, 0.0
        %v3613 = vmax.f32 %v2219, 0.0
        %v3614 = vmax.f32 %v2221, 0.0
        %v3615 = vmax.f32 %v2225, 0.0
        %v3616 = vmax.f32 %v2227, 0.0
        %v3617 = vmax.f32 %v2229, 0.0
        %v3618 = vmax.f32 %v2231, 0.0
        %v3619 = vmax.f32 %v2235, 0.0
        %v3620 = vmax.f32 %v2237, 0.0
        %v3621 = vmax.f32 %v2239, 0.0
        %v3622 = vmax.f32 %v2241, 0.0
        %v3623 = vmax.f32 %v2245, 0.0
        %v3624 = vmax.f32 %v2247, 0.0
        %v3625 = vmax.f32 %v2249, 0.0
        %v3626 = vmax.f32 %v2251, 0.0
        %v3627 = vmax.f32 %v2255, 0.0
        %v3628 = vmax.f32 %v2257, 0.0
        %v3629 = vmax.f32 %v2259, 0.0
        %v3630 = vmax.f32 %v2261, 0.0
        %v3631 = vmax.f32 %v2265, 0.0
        %v3632 = vmax.f32 %v2267, 0.0
        %v3633 = vmax.f32 %v2269, 0.0
        %v3634 = vmax.f32 %v2271, 0.0
        %v3635 = vmax.f32 %v2275, 0.0
        %v3636 = vmax.f32 %v2277, 0.0
        %v3637 = vmax.f32 %v2279, 0.0
        %v3638 = vmax.f32 %v2281, 0.0
        %v3639 = vmax.f32 %v2285, 0.0
        %v3640 = vmax.f32 %v2287, 0.0
        %v3641 = vmax.f32 %v2289, 0.0
        %v3642 = vmax.f32 %v2291, 0.0
        %v3643 = vmax.f32 %v2295, 0.0
        %v3644 = vmax.f32 %v2297, 0.0
        %v3645 = vmax.f32 %v2299, 0.0
        %v3646 = vmax.f32 %v2301, 0.0
        %v3647 = vmax.f32 %v2305, 0.0
        %v3648 = vmax.f32 %v2307, 0.0
        %v3649 = vmax.f32 %v2309, 0.0
        %v3650 = vmax.f32 %v2311, 0.0
        %v3651 = vmax.f32 %v2315, 0.0
        %v3652 = vmax.f32 %v2317, 0.0
        %v3653 = vmax.f32 %v2319, 0.0
        %v3654 = vmax.f32 %v2321, 0.0
        %v3655 = vmax.f32 %v2325, 0.0
        %v3656 = vmax.f32 %v2327, 0.0
        %v3657 = vmax.f32 %v2329, 0.0
        %v3658 = vmax.f32 %v2331, 0.0
        %v3659 = vmax.f32 %v2335, 0.0
        %v3660 = vmax.f32 %v2337, 0.0
        %v3661 = vmax.f32 %v2339, 0.0
        %v3662 = vmax.f32 %v2341, 0.0
        %v3663 = vmax.f32 %v2345, 0.0
        %v3664 = vmax.f32 %v2347, 0.0
        %v3665 = vmax.f32 %v2349, 0.0
        %v3666 = vmax.f32 %v2351, 0.0
        %v3667 = vmax.f32 %v2355, 0.0
        %v3668 = vmax.f32 %v2357, 0.0
        %v3669 = vmax.f32 %v2359, 0.0
        %v3670 = vmax.f32 %v2361, 0.0
        %v3671 = vmax.f32 %v2365, 0.0
        %v3672 = vmax.f32 %v2367, 0.0
        %v3673 = vmax.f32 %v2369, 0.0
        %v3674 = vmax.f32 %v2371, 0.0
        %v3675 = vmax.f32 %v2375, 0.0
        %v3676 = vmax.f32 %v2377, 0.0
        %v3677 = vmax.f32 %v2379, 0.0
        %v3678 = vmax.f32 %v2381, 0.0
        %v3679 = vmax.f32 %v2385, 0.0
        %v3680 = vmax.f32 %v2387, 0.0
        %v3681 = vmax.f32 %v2389, 0.0
        %v3682 = vmax.f32 %v2391, 0.0
        %v3683 = vmax.f32 %v2395, 0.0
        %v3684 = vmax.f32 %v2397, 0.0
        %v3685 = vmax.f32 %v2399, 0.0
        %v3686 = vmax.f32 %v2401, 0.0
        %v3687 = vmax.f32 %v2405, 0.0
        %v3688 = vmax.f32 %v2407, 0.0
        %v3689 = vmax.f32 %v2409, 0.0
        %v3690 = vmax.f32 %v2411, 0.0
        %v3691 = vmax.f32 %v2415, 0.0
        %v3692 = vmax.f32 %v2417, 0.0
        %v3693 = vmax.f32 %v2419, 0.0
        %v3694 = vmax.f32 %v2421, 0.0
        %v3695 = vmax.f32 %v2425, 0.0
        %v3696 = vmax.f32 %v2427, 0.0
        %v3697 = vmax.f32 %v2429, 0.0
        %v3698 = vmax.f32 %v2431, 0.0
        %v3699 = vmax.f32 %v2435, 0.0
        %v3700 = vmax.f32 %v2437, 0.0
        %v3701 = vmax.f32 %v2439, 0.0
        %v3702 = vmax.f32 %v2441, 0.0
        %v3703 = vmax.f32 %v2445, 0.0
        %v3704 = vmax.f32 %v2447, 0.0
        %v3705 = vmax.f32 %v2449, 0.0
        %v3706 = vmax.f32 %v2451, 0.0
        %v3707 = vmax.f32 %v2455, 0.0
        %v3708 = vmax.f32 %v2457, 0.0
        %v3709 = vmax.f32 %v2459, 0.0
        %v3710 = vmax.f32 %v2461, 0.0
        %v3711 = vmax.f32 %v2465, 0.0
        %v3712 = vmax.f32 %v2467, 0.0
        %v3713 = vmax.f32 %v2469, 0.0
        %v3714 = vmax.f32 %v2471, 0.0
        %v3715 = vmax.f32 %v2475, 0.0
        %v3716 = vmax.f32 %v2477, 0.0
        %v3717 = vmax.f32 %v2479, 0.0
        %v3718 = vmax.f32 %v2481, 0.0
        %v3719 = vmax.f32 %v2485, 0.0
        %v3720 = vmax.f32 %v2487, 0.0
        %v3721 = vmax.f32 %v2489, 0.0
        %v3722 = vmax.f32 %v2491, 0.0
        %v3723 = vmax.f32 %v2495, 0.0
        %v3724 = vmax.f32 %v2497, 0.0
        %v3725 = vmax.f32 %v2499, 0.0
        %v3726 = vmax.f32 %v2501, 0.0
        %v3727 = vmax.f32 %v2505, 0.0
        %v3728 = vmax.f32 %v2507, 0.0
        %v3729 = vmax.f32 %v2509, 0.0
        %v3730 = vmax.f32 %v2511, 0.0
        %v3731 = vmax.f32 %v2515, 0.0
        %v3732 = vmax.f32 %v2517, 0.0
        %v3733 = vmax.f32 %v2519, 0.0
        %v3734 = vmax.f32 %v2521, 0.0
        %v3735 = vmax.f32 %v2525, 0.0
        %v3736 = vmax.f32 %v2527, 0.0
        %v3737 = vmax.f32 %v2529, 0.0
        %v3738 = vmax.f32 %v2531, 0.0
        %v3739 = vmax.f32 %v2535, 0.0
        %v3740 = vmax.f32 %v2537, 0.0
        %v3741 = vmax.f32 %v2539, 0.0
        %v3742 = vmax.f32 %v2541, 0.0
        %v3743 = vmax.f32 %v2545, 0.0
        %v3744 = vmax.f32 %v2547, 0.0
        %v3745 = vmax.f32 %v2549, 0.0
        %v3746 = vmax.f32 %v2551, 0.0
        %v3747 = vmax.f32 %v2555, 0.0
        %v3748 = vmax.f32 %v2557, 0.0
        %v3749 = vmax.f32 %v2559, 0.0
        %v3750 = vmax.f32 %v2561, 0.0
        %v3751 = vmax.f32 %v2565, 0.0
        %v3752 = vmax.f32 %v2567, 0.0
        %v3753 = vmax.f32 %v2569, 0.0
        %v3754 = vmax.f32 %v2571, 0.0
        %v3755 = vmax.f32 %v2575, 0.0
        %v3756 = vmax.f32 %v2577, 0.0
        %v3757 = vmax.f32 %v2579, 0.0
        %v3758 = vmax.f32 %v2581, 0.0
        %v3759 = vmax.f32 %v2585, 0.0
        %v3760 = vmax.f32 %v2587, 0.0
        %v3761 = vmax.f32 %v2589, 0.0
        %v3762 = vmax.f32 %v2591, 0.0
        %v3763 = vmax.f32 %v2595, 0.0
        %v3764 = vmax.f32 %v2597, 0.0
        %v3765 = vmax.f32 %v2599, 0.0
        %v3766 = vmax.f32 %v2601, 0.0
        %v3767 = vmax.f32 %v2605, 0.0
        %v3768 = vmax.f32 %v2607, 0.0
        %v3769 = vmax.f32 %v2609, 0.0
        %v3770 = vmax.f32 %v2611, 0.0
        %v3771 = vmax.f32 %v2615, 0.0
        %v3772 = vmax.f32 %v2617, 0.0
        %v3773 = vmax.f32 %v2619, 0.0
        %v3774 = vmax.f32 %v2621, 0.0
        %v3775 = vmax.f32 %v2625, 0.0
        %v3776 = vmax.f32 %v2627, 0.0
        %v3777 = vmax.f32 %v2629, 0.0
        %v3778 = vmax.f32 %v2631, 0.0
        %v3779 = vmax.f32 %v2635, 0.0
        %v3780 = vmax.f32 %v2637, 0.0
        %v3781 = vmax.f32 %v2639, 0.0
        %v3782 = vmax.f32 %v2641, 0.0
        %v3783 = vmax.f32 %v2645, 0.0
        %v3784 = vmax.f32 %v2647, 0.0
        %v3785 = vmax.f32 %v2649, 0.0
        %v3786 = vmax.f32 %v2651, 0.0
        %v3787 = vmax.f32 %v2655, 0.0
        %v3788 = vmax.f32 %v2657, 0.0
        %v3789 = vmax.f32 %v2659, 0.0
        %v3790 = vmax.f32 %v2661, 0.0
        %v3791 = vmax.f32 %v2665, 0.0
        %v3792 = vmax.f32 %v2667, 0.0
        %v3793 = vmax.f32 %v2669, 0.0
        %v3794 = vmax.f32 %v2671, 0.0
        %v3795 = vmax.f32 %v2675, 0.0
        %v3796 = vmax.f32 %v2677, 0.0
        %v3797 = vmax.f32 %v2679, 0.0
        %v3798 = vmax.f32 %v2681, 0.0
        %v3799 = vmax.f32 %v2685, 0.0
        %v3800 = vmax.f32 %v2687, 0.0
        %v3801 = vmax.f32 %v2689, 0.0
        %v3802 = vmax.f32 %v2691, 0.0
        %v3803 = vmax.f32 %v2695, 0.0
        %v3804 = vmax.f32 %v2697, 0.0
        %v3805 = vmax.f32 %v2699, 0.0
        %v3806 = vmax.f32 %v2701, 0.0
        %v3807 = vmax.f32 %v2705, 0.0
        %v3808 = vmax.f32 %v2707, 0.0
        %v3809 = vmax.f32 %v2709, 0.0
        %v3810 = vmax.f32 %v2711, 0.0
        %v3811 = vmax.f32 %v2715, 0.0
        %v3812 = vmax.f32 %v2717, 0.0
        %v3813 = vmax.f32 %v2719, 0.0
        %v3814 = vmax.f32 %v2721, 0.0
        %v3815 = vmax.f32 %v2725, 0.0
        %v3816 = vmax.f32 %v2727, 0.0
        %v3817 = vmax.f32 %v2729, 0.0
        %v3818 = vmax.f32 %v2731, 0.0
        %v3819 = vmax.f32 %v2735, 0.0
        %v3820 = vmax.f32 %v2737, 0.0
        %v3821 = vmax.f32 %v2739, 0.0
        %v3822 = vmax.f32 %v2741, 0.0
        %v3823 = vmax.f32 %v2745, 0.0
        %v3824 = vmax.f32 %v2747, 0.0
        %v3825 = vmax.f32 %v2749, 0.0
        %v3826 = vmax.f32 %v2751, 0.0
        %v3827 = vmax.f32 %v2755, 0.0
        %v3828 = vmax.f32 %v2757, 0.0
        %v3829 = vmax.f32 %v2759, 0.0
        %v3830 = vmax.f32 %v2761, 0.0
        %v3831 = vmax.f32 %v2765, 0.0
        %v3832 = vmax.f32 %v2767, 0.0
        %v3833 = vmax.f32 %v2769, 0.0
        %v3834 = vmax.f32 %v2771, 0.0
        %v3835 = vmax.f32 %v2775, 0.0
        %v3836 = vmax.f32 %v2777, 0.0
        %v3837 = vmax.f32 %v2779, 0.0
        %v3838 = vmax.f32 %v2781, 0.0
        %v3839 = vmax.f32 %v2785, 0.0
        %v3840 = vmax.f32 %v2787, 0.0
        %v3841 = vmax.f32 %v2789, 0.0
        %v3842 = vmax.f32 %v2791, 0.0
        %v3843 = vmax.f32 %v2795, 0.0
        %v3844 = vmax.f32 %v2797, 0.0
        %v3845 = vmax.f32 %v2799, 0.0
        %v3846 = vmax.f32 %v2801, 0.0
        %v3847 = vmax.f32 %v2805, 0.0
        %v3848 = vmax.f32 %v2807, 0.0
        %v3849 = vmax.f32 %v2809, 0.0
        %v3850 = vmax.f32 %v2811, 0.0
        %v3851 = vmax.f32 %v2815, 0.0
        %v3852 = vmax.f32 %v2817, 0.0
        %v3853 = vmax.f32 %v2819, 0.0
        %v3854 = vmax.f32 %v2821, 0.0
        %v3855 = vmax.f32 %v2825, 0.0
        %v3856 = vmax.f32 %v2827, 0.0
        %v3857 = vmax.f32 %v2829, 0.0
        %v3858 = vmax.f32 %v2831, 0.0
        %v3859 = vmax.f32 %v2835, 0.0
        %v3860 = vmax.f32 %v2837, 0.0
        %v3861 = vmax.f32 %v2839, 0.0
        %v3862 = vmax.f32 %v2841, 0.0
        %v3863 = vmax.f32 %v2845, 0.0
        %v3864 = vmax.f32 %v2847, 0.0
        %v3865 = vmax.f32 %v2849, 0.0
        %v3866 = vmax.f32 %v2851, 0.0
        %v3867 = vmax.f32 %v2855, 0.0
        %v3868 = vmax.f32 %v2857, 0.0
        %v3869 = vmax.f32 %v2859, 0.0
        %v3870 = vmax.f32 %v2861, 0.0
        %v3871 = vmax.f32 %v2865, 0.0
        %v3872 = vmax.f32 %v2867, 0.0
        %v3873 = vmax.f32 %v2869, 0.0
        %v3874 = vmax.f32 %v2871, 0.0
        %v3875 = vmax.f32 %v2875, 0.0
        %v3876 = vmax.f32 %v2877, 0.0
        %v3877 = vmax.f32 %v2879, 0.0
        %v3878 = vmax.f32 %v2881, 0.0
        %v3879 = vmax.f32 %v2885, 0.0
        %v3880 = vmax.f32 %v2887, 0.0
        %v3881 = vmax.f32 %v2889, 0.0
        %v3882 = vmax.f32 %v2891, 0.0
        %v3883 = vmax.f32 %v2895, 0.0
        %v3884 = vmax.f32 %v2897, 0.0
        %v3885 = vmax.f32 %v2899, 0.0
        %v3886 = vmax.f32 %v2901, 0.0
        %v3887 = vmax.f32 %v2905, 0.0
        %v3888 = vmax.f32 %v2907, 0.0
        %v3889 = vmax.f32 %v2909, 0.0
        %v3890 = vmax.f32 %v2911, 0.0
        %v3891 = vmax.f32 %v2915, 0.0
        %v3892 = vmax.f32 %v2917, 0.0
        %v3893 = vmax.f32 %v2919, 0.0
        %v3894 = vmax.f32 %v2921, 0.0
        %v3895 = vmax.f32 %v2925, 0.0
        %v3896 = vmax.f32 %v2927, 0.0
        %v3897 = vmax.f32 %v2929, 0.0
        %v3898 = vmax.f32 %v2931, 0.0
        %v3899 = vmax.f32 %v2935, 0.0
        %v3900 = vmax.f32 %v2937, 0.0
        %v3901 = vmax.f32 %v2939, 0.0
        %v3902 = vmax.f32 %v2941, 0.0
        %v3903 = vmax.f32 %v2945, 0.0
        %v3904 = vmax.f32 %v2947, 0.0
        %v3905 = vmax.f32 %v2949, 0.0
        %v3906 = vmax.f32 %v2951, 0.0
        %v3907 = vmax.f32 %v2955, 0.0
        %v3908 = vmax.f32 %v2957, 0.0
        %v3909 = vmax.f32 %v2959, 0.0
        %v3910 = vmax.f32 %v2961, 0.0
        %v3911 = vmax.f32 %v2965, 0.0
        %v3912 = vmax.f32 %v2967, 0.0
        %v3913 = vmax.f32 %v2969, 0.0
        %v3914 = vmax.f32 %v2971, 0.0
        %v3915 = vmax.f32 %v2975, 0.0
        %v3916 = vmax.f32 %v2977, 0.0
        %v3917 = vmax.f32 %v2979, 0.0
        %v3918 = vmax.f32 %v2981, 0.0
        %v3919 = vmax.f32 %v2985, 0.0
        %v3920 = vmax.f32 %v2987, 0.0
        %v3921 = vmax.f32 %v2989, 0.0
        %v3922 = vmax.f32 %v2991, 0.0
        %v3923 = vmax.f32 %v2995, 0.0
        %v3924 = vmax.f32 %v2997, 0.0
        %v3925 = vmax.f32 %v2999, 0.0
        %v3926 = vmax.f32 %v3001, 0.0
        %v3927 = vmax.f32 %v3005, 0.0
        %v3928 = vmax.f32 %v3007, 0.0
        %v3929 = vmax.f32 %v3009, 0.0
        %v3930 = vmax.f32 %v3011, 0.0
        %v3931 = vmax.f32 %v3015, 0.0
        %v3932 = vmax.f32 %v3017, 0.0
        %v3933 = vmax.f32 %v3019, 0.0
        %v3934 = vmax.f32 %v3021, 0.0
        %v3935 = vmax.f32 %v3025, 0.0
        %v3936 = vmax.f32 %v3027, 0.0
        %v3937 = vmax.f32 %v3029, 0.0
        %v3938 = vmax.f32 %v3031, 0.0
        %v3939 = vmax.f32 %v3035, 0.0
        %v3940 = vmax.f32 %v3037, 0.0
        %v3941 = vmax.f32 %v3039, 0.0
        %v3942 = vmax.f32 %v3041, 0.0
        %v3943 = vmax.f32 %v3045, 0.0
        %v3944 = vmax.f32 %v3047, 0.0
        %v3945 = vmax.f32 %v3049, 0.0
        %v3946 = vmax.f32 %v3051, 0.0
        %v3947 = vmax.f32 %v3055, 0.0
        %v3948 = vmax.f32 %v3057, 0.0
        %v3949 = vmax.f32 %v3059, 0.0
        %v3950 = vmax.f32 %v3061, 0.0
        %v3951 = vmax.f32 %v3065, 0.0
        %v3952 = vmax.f32 %v3067, 0.0
        %v3953 = vmax.f32 %v3069, 0.0
        %v3954 = vmax.f32 %v3071, 0.0
        %v3955 = vmax.f32 %v3075, 0.0
        %v3956 = vmax.f32 %v3077, 0.0
        %v3957 = vmax.f32 %v3079, 0.0
        %v3958 = vmax.f32 %v3081, 0.0
        %v3959 = vmax.f32 %v3085, 0.0
        %v3960 = vmax.f32 %v3087, 0.0
        %v3961 = vmax.f32 %v3089, 0.0
        %v3962 = vmax.f32 %v3091, 0.0
        %v3963 = vmax.f32 %v3095, 0.0
        %v3964 = vmax.f32 %v3097, 0.0
        %v3965 = vmax.f32 %v3099, 0.0
        %v3966 = vmax.f32 %v3101, 0.0
        %v3967 = vmax.f32 %v3105, 0.0
        %v3968 = vmax.f32 %v3107, 0.0
        %v3969 = vmax.f32 %v3109, 0.0
        %v3970 = vmax.f32 %v3111, 0.0
        %v3971 = vmax.f32 %v3115, 0.0
        %v3972 = vmax.f32 %v3117, 0.0
        %v3973 = vmax.f32 %v3119, 0.0
        %v3974 = vmax.f32 %v3121, 0.0
        %v3975 = vmax.f32 %v3125, 0.0
        %v3976 = vmax.f32 %v3127, 0.0
        %v3977 = vmax.f32 %v3129, 0.0
        %v3978 = vmax.f32 %v3131, 0.0
        %v3979 = vmax.f32 %v3135, 0.0
        %v3980 = vmax.f32 %v3137, 0.0
        %v3981 = vmax.f32 %v3139, 0.0
        %v3982 = vmax.f32 %v3141, 0.0
        %v3983 = vmax.f32 %v3145, 0.0
        %v3984 = vmax.f32 %v3147, 0.0
        %v3985 = vmax.f32 %v3149, 0.0
        %v3986 = vmax.f32 %v3151, 0.0
        %v3987 = vmax.f32 %v3155, 0.0
        %v3988 = vmax.f32 %v3157, 0.0
        %v3989 = vmax.f32 %v3159, 0.0
        %v3990 = vmax.f32 %v3161, 0.0
        %v3991 = vmax.f32 %v3165, 0.0
        %v3992 = vmax.f32 %v3167, 0.0
        %v3993 = vmax.f32 %v3169, 0.0
        %v3994 = vmax.f32 %v3171, 0.0
        %v3995 = vmax.f32 %v3175, 0.0
        %v3996 = vmax.f32 %v3177, 0.0
        %v3997 = vmax.f32 %v3179, 0.0
        %v3998 = vmax.f32 %v3181, 0.0
        %v3999 = vmax.f32 %v3185, 0.0
        %v4000 = vmax.f32 %v3187, 0.0
        %v4001 = vmax.f32 %v3189, 0.0
        %v4002 = vmax.f32 %v3191, 0.0
        %v4003 = vmax.f32 %v3195, 0.0
        %v4004 = vmax.f32 %v3197, 0.0
        %v4005 = vmax.f32 %v3199, 0.0
        %v4006 = vmax.f32 %v3201, 0.0
        %v4007 = vmax.f32 %v3205, 0.0
        %v4008 = vmax.f32 %v3207, 0.0
        %v4009 = vmax.f32 %v3209, 0.0
        %v4010 = vmax.f32 %v3211, 0.0
        %v4011 = vmax.f32 %v3215, 0.0
        %v4012 = vmax.f32 %v3217, 0.0
        %v4013 = vmax.f32 %v3219, 0.0
        %v4014 = vmax.f32 %v3221, 0.0
        %v4015 = vmax.f32 %v3225, 0.0
        %v4016 = vmax.f32 %v3227, 0.0
        %v4017 = vmax.f32 %v3229, 0.0
        %v4018 = vmax.f32 %v3231, 0.0
        %v4019 = vmax.f32 %v3235, 0.0
        %v4020 = vmax.f32 %v3237, 0.0
        %v4021 = vmax.f32 %v3239, 0.0
        %v4022 = vmax.f32 %v3241, 0.0
        %v4023 = vmax.f32 %v3245, 0.0
        %v4024 = vmax.f32 %v3247, 0.0
        %v4025 = vmax.f32 %v3249, 0.0
        %v4026 = vmax.f32 %v3251, 0.0
        %v4027 = vmax.f32 %v3255, 0.0
        %v4028 = vmax.f32 %v3257, 0.0
        %v4029 = vmax.f32 %v3259, 0.0
        %v4030 = vmax.f32 %v3261, 0.0
        %v4031 = vmax.f32 %v3265, 0.0
        %v4032 = vmax.f32 %v3267, 0.0
        %v4033 = vmax.f32 %v3269, 0.0
        %v4034 = vmax.f32 %v3271, 0.0
        %v4035 = vmax.f32 %v3275, 0.0
        %v4036 = vmax.f32 %v3277, 0.0
        %v4037 = vmax.f32 %v3279, 0.0
        %v4038 = vmax.f32 %v3281, 0.0
        %v4039 = vmax.f32 %v3285, 0.0
        %v4040 = vmax.f32 %v3287, 0.0
        %v4041 = vmax.f32 %v3289, 0.0
        %v4042 = vmax.f32 %v3291, 0.0
        %v4043 = vmax.f32 %v3295, 0.0
        %v4044 = vmax.f32 %v3297, 0.0
        %v4045 = vmax.f32 %v3299, 0.0
        %v4046 = vmax.f32 %v3301, 0.0
        %v4047 = vmax.f32 %v3305, 0.0
        %v4048 = vmax.f32 %v3307, 0.0
        %v4049 = vmax.f32 %v3309, 0.0
        %v4050 = vmax.f32 %v3311, 0.0
        %v4051 = vmax.f32 %v3315, 0.0
        %v4052 = vmax.f32 %v3317, 0.0
        %v4053 = vmax.f32 %v3319, 0.0
        %v4054 = vmax.f32 %v3321, 0.0
        %v4055 = vmax.f32 %v3325, 0.0
        %v4056 = vmax.f32 %v3327, 0.0
        %v4057 = vmax.f32 %v3329, 0.0
        %v4058 = vmax.f32 %v3331, 0.0
        %v4059 = vmax.f32 %v3335, 0.0
        %v4060 = vmax.f32 %v3337, 0.0
        %v4061 = vmax.f32 %v3339, 0.0
        %v4062 = vmax.f32 %v3341, 0.0
        %v4063 = vmax.f32 %v3345, 0.0
        %v4064 = vmax.f32 %v3347, 0.0
        %v4065 = vmax.f32 %v3349, 0.0
        %v4066 = vmax.f32 %v3351, 0.0
        %v4067 = vmax.f32 %v3355, 0.0
        %v4068 = vmax.f32 %v3357, 0.0
        %v4069 = vmax.f32 %v3359, 0.0
        %v4070 = vmax.f32 %v3361, 0.0
        %v4071 = vmax.f32 %v3365, 0.0
        %v4072 = vmax.f32 %v3367, 0.0
        %v4073 = vmax.f32 %v3369, 0.0
        %v4074 = vmax.f32 %v3371, 0.0
        %v4075 = vmax.f32 %v3375, 0.0
        %v4076 = vmax.f32 %v3377, 0.0
        %v4077 = vmax.f32 %v3379, 0.0
        %v4078 = vmax.f32 %v3381, 0.0
        %v4079 = vmax.f32 %v3385, 0.0
        %v4080 = vmax.f32 %v3387, 0.0
        %v4081 = vmax.f32 %v3389, 0.0
        %v4082 = vmax.f32 %v3391, 0.0
        %v4083 = vmax.f32 %v3395, 0.0
        %v4084 = vmax.f32 %v3397, 0.0
        %v4085 = vmax.f32 %v3399, 0.0
        %v4086 = vmax.f32 %v3401, 0.0
        %v4087 = vmax.f32 %v3405, 0.0
        %v4088 = vmax.f32 %v3407, 0.0
        %v4089 = vmax.f32 %v3409, 0.0
        %v4090 = vmax.f32 %v3411, 0.0
        %v4091 = vmax.f32 %v3415, 0.0
        %v4092 = vmax.f32 %v3417, 0.0
        %v4093 = vmax.f32 %v3419, 0.0
        %v4094 = vmax.f32 %v3421, 0.0
        %v4095 = vmax.f32 %v3425, 0.0
        %v4096 = vmax.f32 %v3427, 0.0
        %v4097 = vmax.f32 %v3429, 0.0
        %v4098 = vmax.f32 %v3431, 0.0
        %v4099 = vmax.f32 %v3435, 0.0
        %v4100 = vmax.f32 %v3437, 0.0
        %v4101 = vmax.f32 %v3439, 0.0
        %v4102 = vmax.f32 %v3441, 0.0
        %v4103 = vmax.f32 %v3445, 0.0
        %v4104 = vmax.f32 %v3447, 0.0
        %v4105 = vmax.f32 %v3449, 0.0
        %v4106 = vmax.f32 %v3451, 0.0
        %v4107 = vmax.f32 %v3455, 0.0
        %v4108 = vmax.f32 %v3457, 0.0
        %v4109 = vmax.f32 %v3459, 0.0
        %v4110 = vmax.f32 %v3461, 0.0
        %v4111 = vmax.f32 %v3465, 0.0
        %v4112 = vmax.f32 %v3467, 0.0
        %v4113 = vmax.f32 %v3469, 0.0
        %v4114 = vmax.f32 %v3471, 0.0
        %v4115 = vmax.f32 %v3475, 0.0
        %v4116 = vmax.f32 %v3477, 0.0
        %v4117 = vmax.f32 %v3479, 0.0
        %v4118 = vmax.f32 %v3481, 0.0
        %v4119 = vmax.f32 %v3485, 0.0
        %v4120 = vmax.f32 %v3487, 0.0
        %v4121 = vmax.f32 %v3489, 0.0
        %v4122 = vmax.f32 %v3491, 0.0
        %v4123 = vmax.f32 %v3495, 0.0
        %v4124 = vmax.f32 %v3497, 0.0
        %v4125 = vmax.f32 %v3499, 0.0
        %v4126 = vmax.f32 %v3501, 0.0
        %v4127 = vld [vmem:[%s4] sm:$0x3]
        %v4128 = vld [vmem:[%s5] sm:$0xf]
        %v4129 = vld [vmem:[%s5 + $0x4] sm:$0xf]
        %v4130 = vld [vmem:[%s5 + $0x8] sm:$0xf]
        %v4131 = vld [vmem:[%s5 + $0xc] sm:$0xf]
        %v4132 = vld [vmem:[%s5 + $0x10] sm:$0xf]
        %v4133 = vld [vmem:[%s5 + $0x14] sm:$0xf]
        %v4134 = vld [vmem:[%s5 + $0x18] sm:$0xf]
        %v4135 = vld [vmem:[%s5 + $0x1c] sm:$0xf]
        %v4136 = vld [vmem:[%s5 + $0x20] sm:$0xf]
        %v4137 = vld [vmem:[%s5 + $0x24] sm:$0xf]
        %v4138 = vld [vmem:[%s5 + $0x28] sm:$0xf]
        %v4139 = vld [vmem:[%s5 + $0x2c] sm:$0xf]
        %v4140 = vld [vmem:[%s5 + $0x30] sm:$0xf]
        %v4141 = vld [vmem:[%s5 + $0x34] sm:$0xf]
        %v4142 = vld [vmem:[%s5 + $0x38] sm:$0xf]
        %v4143 = vld [vmem:[%s5 + $0x3c] sm:$0xf]
        %v4144 = vld [vmem:[%s5 + $0x40] sm:$0xf]
        %v4145 = vld [vmem:[%s5 + $0x44] sm:$0xf]
        %v4146 = vld [vmem:[%s5 + $0x48] sm:$0xf]
        %v4147 = vld [vmem:[%s5 + $0x4c] sm:$0xf]
        %v4148 = vld [vmem:[%s5 + $0x50] sm:$0xf]
        %v4149 = vld [vmem:[%s5 + $0x54] sm:$0xf]
        %v4150 = vld [vmem:[%s5 + $0x58] sm:$0xf]
        %v4151 = vld [vmem:[%s5 + $0x5c] sm:$0xf]
        %v4152 = vld [vmem:[%s5 + $0x60] sm:$0xf]
        %v4153 = vld [vmem:[%s5 + $0x64] sm:$0xf]
        %v4154 = vld [vmem:[%s5 + $0x68] sm:$0xf]
        %v4155 = vld [vmem:[%s5 + $0x6c] sm:$0xf]
        %v4156 = vld [vmem:[%s5 + $0x70] sm:$0xf]
        %v4157 = vld [vmem:[%s5 + $0x74] sm:$0xf]
        %v4158 = vld [vmem:[%s5 + $0x78] sm:$0xf]
        %v4159 = vld [vmem:[%s5 + $0x7c] sm:$0xf]
        %v4160 = vld [vmem:[%s6] sm:$0x1]
        %v4161 = vld [vmem:[%s3] sm:$0xff]
        %v4162 = vld [vmem:[%s3 + $0x8] sm:$0xff]
        %v4163 = vld [vmem:[%s3 + $0x10] sm:$0xff]
        %v4164 = vld [vmem:[%s3 + $0x18] sm:$0xff]
        %v4165 = vld [vmem:[%s3 + $0x20] sm:$0xff]
        %v4166 = vld [vmem:[%s3 + $0x28] sm:$0xff]
        %v4167 = vld [vmem:[%s3 + $0x30] sm:$0xff]
        %v4168 = vld [vmem:[%s3 + $0x38] sm:$0xff]
        %v4169 = vld [vmem:[%s3 + $0x40] sm:$0xff]
        %v4170 = vld [vmem:[%s3 + $0x48] sm:$0xff]
        %v4171 = vld [vmem:[%s3 + $0x50] sm:$0xff]
        %v4172 = vld [vmem:[%s3 + $0x58] sm:$0xff]
        %v4173 = vld [vmem:[%s3 + $0x60] sm:$0xff]
        %v4174 = vld [vmem:[%s3 + $0x68] sm:$0xff]
        %v4175 = vld [vmem:[%s3 + $0x70] sm:$0xff]
        %v4176 = vld [vmem:[%s3 + $0x78] sm:$0xff]
        %v4177 = vld [vmem:[%s3 + $0x80] sm:$0xff]
        %v4178 = vld [vmem:[%s3 + $0x88] sm:$0xff]
        %v4179 = vld [vmem:[%s3 + $0x90] sm:$0xff]
        %v4180 = vld [vmem:[%s3 + $0x98] sm:$0xff]
        %v4181 = vld [vmem:[%s3 + $0xa0] sm:$0xff]
        %v4182 = vld [vmem:[%s3 + $0xa8] sm:$0xff]
        %v4183 = vld [vmem:[%s3 + $0xb0] sm:$0xff]
        %v4184 = vld [vmem:[%s3 + $0xb8] sm:$0xff]
        %v4185 = vld [vmem:[%s3 + $0xc0] sm:$0xff]
        %v4186 = vld [vmem:[%s3 + $0xc8] sm:$0xff]
        %v4187 = vld [vmem:[%s3 + $0xd0] sm:$0xff]
        %v4188 = vld [vmem:[%s3 + $0xd8] sm:$0xff]
        %v4189 = vld [vmem:[%s3 + $0xe0] sm:$0xff]
        %v4190 = vld [vmem:[%s3 + $0xe8] sm:$0xff]
        %v4191 = vld [vmem:[%s3 + $0xf0] sm:$0xff]
        %v4192 = vld [vmem:[%s3 + $0xf8] sm:$0xff]
        %v4193 = vld [vmem:[%s3 + $0x100] sm:$0xff]
        %v4194 = vld [vmem:[%s3 + $0x108] sm:$0xff]
        %v4195 = vld [vmem:[%s3 + $0x110] sm:$0xff]
        %v4196 = vld [vmem:[%s3 + $0x118] sm:$0xff]
        %v4197 = vld [vmem:[%s3 + $0x120] sm:$0xff]
        %v4198 = vld [vmem:[%s3 + $0x128] sm:$0xff]
        %v4199 = vld [vmem:[%s3 + $0x130] sm:$0xff]
        %v4200 = vld [vmem:[%s3 + $0x138] sm:$0xff]
        %v4201 = vld [vmem:[%s3 + $0x140] sm:$0xff]
        %v4202 = vld [vmem:[%s3 + $0x148] sm:$0xff]
        %v4203 = vld [vmem:[%s3 + $0x150] sm:$0xff]
        %v4204 = vld [vmem:[%s3 + $0x158] sm:$0xff]
        %v4205 = vld [vmem:[%s3 + $0x160] sm:$0xff]
        %v4206 = vld [vmem:[%s3 + $0x168] sm:$0xff]
        %v4207 = vld [vmem:[%s3 + $0x170] sm:$0xff]
        %v4208 = vld [vmem:[%s3 + $0x178] sm:$0xff]
        %v4209 = vld [vmem:[%s3 + $0x180] sm:$0xff]
        %v4210 = vld [vmem:[%s3 + $0x188] sm:$0xff]
        %v4211 = vld [vmem:[%s3 + $0x190] sm:$0xff]
        %v4212 = vld [vmem:[%s3 + $0x198] sm:$0xff]
        %v4213 = vld [vmem:[%s3 + $0x1a0] sm:$0xff]
        %v4214 = vld [vmem:[%s3 + $0x1a8] sm:$0xff]
        %v4215 = vld [vmem:[%s3 + $0x1b0] sm:$0xff]
        %v4216 = vld [vmem:[%s3 + $0x1b8] sm:$0xff]
        %v4217 = vld [vmem:[%s3 + $0x1c0] sm:$0xff]
        %v4218 = vld [vmem:[%s3 + $0x1c8] sm:$0xff]
        %v4219 = vld [vmem:[%s3 + $0x1d0] sm:$0xff]
        %v4220 = vld [vmem:[%s3 + $0x1d8] sm:$0xff]
        %v4221 = vld [vmem:[%s3 + $0x1e0] sm:$0xff]
        %v4222 = vld [vmem:[%s3 + $0x1e8] sm:$0xff]
        %v4223 = vld [vmem:[%s3 + $0x1f0] sm:$0xff]
        %v4224 = vld [vmem:[%s3 + $0x1f8] sm:$0xff]
        %v4225 = vld [vmem:[%s3 + $0x200] sm:$0xff]
        %v4226 = vld [vmem:[%s3 + $0x208] sm:$0xff]
        %v4227 = vld [vmem:[%s3 + $0x210] sm:$0xff]
        %v4228 = vld [vmem:[%s3 + $0x218] sm:$0xff]
        %v4229 = vld [vmem:[%s3 + $0x220] sm:$0xff]
        %v4230 = vld [vmem:[%s3 + $0x228] sm:$0xff]
        %v4231 = vld [vmem:[%s3 + $0x230] sm:$0xff]
        %v4232 = vld [vmem:[%s3 + $0x238] sm:$0xff]
        %v4233 = vld [vmem:[%s3 + $0x240] sm:$0xff]
        %v4234 = vld [vmem:[%s3 + $0x248] sm:$0xff]
        %v4235 = vld [vmem:[%s3 + $0x250] sm:$0xff]
        %v4236 = vld [vmem:[%s3 + $0x258] sm:$0xff]
        %v4237 = vld [vmem:[%s3 + $0x260] sm:$0xff]
        %v4238 = vld [vmem:[%s3 + $0x268] sm:$0xff]
        %v4239 = vld [vmem:[%s3 + $0x270] sm:$0xff]
        %v4240 = vld [vmem:[%s3 + $0x278] sm:$0xff]
        %v4241 = vld [vmem:[%s3 + $0x280] sm:$0xff]
        %v4242 = vld [vmem:[%s3 + $0x288] sm:$0xff]
        %v4243 = vld [vmem:[%s3 + $0x290] sm:$0xff]
        %v4244 = vld [vmem:[%s3 + $0x298] sm:$0xff]
        %v4245 = vld [vmem:[%s3 + $0x2a0] sm:$0xff]
        %v4246 = vld [vmem:[%s3 + $0x2a8] sm:$0xff]
        %v4247 = vld [vmem:[%s3 + $0x2b0] sm:$0xff]
        %v4248 = vld [vmem:[%s3 + $0x2b8] sm:$0xff]
        %v4249 = vld [vmem:[%s3 + $0x2c0] sm:$0xff]
        %v4250 = vld [vmem:[%s3 + $0x2c8] sm:$0xff]
        %v4251 = vld [vmem:[%s3 + $0x2d0] sm:$0xff]
        %v4252 = vld [vmem:[%s3 + $0x2d8] sm:$0xff]
        %v4253 = vld [vmem:[%s3 + $0x2e0] sm:$0xff]
        %v4254 = vld [vmem:[%s3 + $0x2e8] sm:$0xff]
        %v4255 = vld [vmem:[%s3 + $0x2f0] sm:$0xff]
        %v4256 = vld [vmem:[%s3 + $0x2f8] sm:$0xff]
        %v4257 = vlaneseq
        %v4258 = vand.u32 %v4257, 127
        %v4259 = vadd.s32 %v4258, 128
        %v4260 = vadd.s32 %v4258, 256
        %v4261 = vadd.s32 %v4258, 384
        %v4262 = vadd.s32 %v4258, 512
        %vm4263 = vcmp.lt.s32.totalorder %v4258, 0
        %v4264 = vsub.s32 0, %v4258
        %v4265 = vsel %vm4263, %v4264, %v4258
        %v4266 = vshrl.u32 %v4265, 2
        %v4267 = vand.u32 %v4265, 3
        %v4268 = vsub.s32 0, %v4267
        %v4269 = vsel %vm4263, %v4268, %v4267
        %vm4270 = vcmp.lt.s32.totalorder %v4259, 0
        %v4271 = vsub.s32 0, %v4259
        %v4272 = vsel %vm4270, %v4271, %v4259
        %v4273 = vshrl.u32 %v4272, 2
        %v4274 = vand.u32 %v4272, 3
        %v4275 = vsub.s32 0, %v4274
        %v4276 = vsel %vm4270, %v4275, %v4274
        %vm4277 = vcmp.lt.s32.totalorder %v4260, 0
        %v4278 = vsub.s32 0, %v4260
        %v4279 = vsel %vm4277, %v4278, %v4260
        %v4280 = vshrl.u32 %v4279, 2
        %v4281 = vand.u32 %v4279, 3
        %v4282 = vsub.s32 0, %v4281
        %v4283 = vsel %vm4277, %v4282, %v4281
        %vm4284 = vcmp.lt.s32.totalorder %v4261, 0
        %v4285 = vsub.s32 0, %v4261
        %v4286 = vsel %vm4284, %v4285, %v4261
        %v4287 = vshrl.u32 %v4286, 2
        %v4288 = vand.u32 %v4286, 3
        %v4289 = vsub.s32 0, %v4288
        %v4290 = vsel %vm4284, %v4289, %v4288
        %vm4291 = vcmp.lt.s32.totalorder %v4262, 0
        %v4292 = vsub.s32 0, %v4262
        %v4293 = vsel %vm4291, %v4292, %v4262
        %v4294 = vshrl.u32 %v4293, 2
        %v4295 = vand.u32 %v4293, 3
        %v4296 = vsub.s32 0, %v4295
        %v4297 = vsel %vm4291, %v4296, %v4295
        %vm4298 = vcmp.ne.s32.totalorder %v4269, 0
        %vm4299 = vcmp.ne.s32.totalorder %v4276, 0
        %vm4300 = vcmp.ne.s32.totalorder %v4283, 0
        %vm4301 = vcmp.ne.s32.totalorder %v4290, 0
        %vm4302 = vcmp.ne.s32.totalorder %v4297, 0
        %vm4303 = vcmp.lt.s32.totalorder %v4269, 0
        %vm4304 = vcmp.lt.s32.totalorder %v4276, 0
        %vm4305 = vcmp.lt.s32.totalorder %v4283, 0
        %vm4306 = vcmp.lt.s32.totalorder %v4290, 0
        %vm4307 = vcmp.lt.s32.totalorder %v4297, 0
        %vm4308 = vmand %vm4303, %vm4298
        %vm4309 = vmand %vm4304, %vm4299
        %vm4310 = vmand %vm4305, %vm4300
        %vm4311 = vmand %vm4306, %vm4301
        %vm4312 = vmand %vm4307, %vm4302
        %v4313 = vadd.s32 %v4269, 4
        %v4314 = vadd.s32 %v4276, 4
        %v4315 = vadd.s32 %v4283, 4
        %v4316 = vadd.s32 %v4290, 4
        %v4317 = vadd.s32 %v4297, 4
        %v4318 = vsel %vm4308, %v4313, %v4269
        %v4319 = vsel %vm4309, %v4314, %v4276
        %v4320 = vsel %vm4310, %v4315, %v4283
        %v4321 = vsel %vm4311, %v4316, %v4290
        %v4322 = vsel %vm4312, %v4317, %v4297
        %vm4323 = vcmp.eq.s32.totalorder %v4318, 0
        %vm4324 = vcmp.eq.s32.totalorder %v4319, 0
        %vm4325 = vcmp.eq.s32.totalorder %v4320, 0
        %vm4326 = vcmp.eq.s32.totalorder %v4321, 0
        %vm4327 = vcmp.eq.s32.totalorder %v4322, 0
        %vm4328 = vcmp.lt.s32.totalorder %v4258, 616
        %vm4329 = vcmp.lt.s32.totalorder %v4259, 616
        %vm4330 = vcmp.lt.s32.totalorder %v4260, 616
        %vm4331 = vcmp.lt.s32.totalorder %v4261, 616
        %vm4332 = vcmp.lt.s32.totalorder %v4262, 616
        %vm4333 = vmand %vm4323, %vm4328
        %vm4334 = vmand %vm4324, %vm4329
        %vm4335 = vmand %vm4325, %vm4330
        %vm4336 = vmand %vm4326, %vm4331
        %vm4337 = vmand %vm4327, %vm4332
        %v4338 = vsel %vm4333, 1.0, 0.0
        %v4339 = vsel %vm4334, 1.0, 0.0
        %v4340 = vsel %vm4335, 1.0, 0.0
        %v4341 = vsel %vm4336, 1.0, 0.0
        %v4342 = vsel %vm4337, 1.0, 0.0
        %v4343 = vmax.f32 %v3503, %v3659
        %v4344 = vmax.f32 %v3504, %v3660
        %v4345 = vmax.f32 %v3505, %v3661
        %v4346 = vmax.f32 %v3506, %v3662
        %v4347 = vmax.f32 %v3507, %v3663
        %v4348 = vmax.f32 %v3508, %v3664
        %v4349 = vmax.f32 %v3509, %v3665
        %v4350 = vmax.f32 %v3510, %v3666
        %v4351 = vmax.f32 %v3511, %v3667
        %v4352 = vmax.f32 %v3512, %v3668
        %v4353 = vmax.f32 %v3513, %v3669
        %v4354 = vmax.f32 %v3514, %v3670
        %v4355 = vmax.f32 %v3515, %v3671
        %v4356 = vmax.f32 %v3516, %v3672
        %v4357 = vmax.f32 %v3517, %v3673
        %v4358 = vmax.f32 %v3518, %v3674
        %v4359 = vmax.f32 %v3519, %v3675
        %v4360 = vmax.f32 %v3520, %v3676
        %v4361 = vmax.f32 %v3521, %v3677
        %v4362 = vmax.f32 %v3522, %v3678
        %v4363 = vmax.f32 %v3523, %v3679
        %v4364 = vmax.f32 %v3524, %v3680
        %v4365 = vmax.f32 %v3525, %v3681
        %v4366 = vmax.f32 %v3526, %v3682
        %v4367 = vmax.f32 %v3527, %v3683
        %v4368 = vmax.f32 %v3528, %v3684
        %v4369 = vmax.f32 %v3529, %v3685
        %v4370 = vmax.f32 %v3530, %v3686
        %v4371 = vmax.f32 %v3531, %v3687
        %v4372 = vmax.f32 %v3532, %v3688
        %v4373 = vmax.f32 %v3533, %v3689
        %v4374 = vmax.f32 %v3534, %v3690
        %v4375 = vmax.f32 %v3535, %v3691
        %v4376 = vmax.f32 %v3536, %v3692
        %v4377 = vmax.f32 %v3537, %v3693
        %v4378 = vmax.f32 %v3538, %v3694
        %v4379 = vmax.f32 %v3539, %v3695
        %v4380 = vmax.f32 %v3540, %v3696
        %v4381 = vmax.f32 %v3541, %v3697
        %v4382 = vmax.f32 %v3542, %v3698
        %v4383 = vmax.f32 %v3543, %v3699
        %v4384 = vmax.f32 %v3544, %v3700
        %v4385 = vmax.f32 %v3545, %v3701
        %v4386 = vmax.f32 %v3546, %v3702
        %v4387 = vmax.f32 %v3547, %v3703
        %v4388 = vmax.f32 %v3548, %v3704
        %v4389 = vmax.f32 %v3549, %v3705
        %v4390 = vmax.f32 %v3550, %v3706
        %v4391 = vmax.f32 %v3551, %v3707
        %v4392 = vmax.f32 %v3552, %v3708
        %v4393 = vmax.f32 %v3553, %v3709
        %v4394 = vmax.f32 %v3554, %v3710
        %v4395 = vmax.f32 %v3555, %v3711
        %v4396 = vmax.f32 %v3556, %v3712
        %v4397 = vmax.f32 %v3557, %v3713
        %v4398 = vmax.f32 %v3558, %v3714
        %v4399 = vmax.f32 %v3559, %v3715
        %v4400 = vmax.f32 %v3560, %v3716
        %v4401 = vmax.f32 %v3561, %v3717
        %v4402 = vmax.f32 %v3562, %v3718
        %v4403 = vmax.f32 %v3563, %v3719
        %v4404 = vmax.f32 %v3564, %v3720
        %v4405 = vmax.f32 %v3565, %v3721
        %v4406 = vmax.f32 %v3566, %v3722
        %v4407 = vmax.f32 %v3567, %v3723
        %v4408 = vmax.f32 %v3568, %v3724
        %v4409 = vmax.f32 %v3569, %v3725
        %v4410 = vmax.f32 %v3570, %v3726
        %v4411 = vmax.f32 %v3571, %v3727
        %v4412 = vmax.f32 %v3572, %v3728
        %v4413 = vmax.f32 %v3573, %v3729
        %v4414 = vmax.f32 %v3574, %v3730
        %v4415 = vmax.f32 %v3575, %v3731
        %v4416 = vmax.f32 %v3576, %v3732
        %v4417 = vmax.f32 %v3577, %v3733
        %v4418 = vmax.f32 %v3578, %v3734
        %v4419 = vmax.f32 %v3579, %v3735
        %v4420 = vmax.f32 %v3580, %v3736
        %v4421 = vmax.f32 %v3581, %v3737
        %v4422 = vmax.f32 %v3582, %v3738
        %v4423 = vmax.f32 %v3583, %v3739
        %v4424 = vmax.f32 %v3584, %v3740
        %v4425 = vmax.f32 %v3585, %v3741
        %v4426 = vmax.f32 %v3586, %v3742
        %v4427 = vmax.f32 %v3587, %v3743
        %v4428 = vmax.f32 %v3588, %v3744
        %v4429 = vmax.f32 %v3589, %v3745
        %v4430 = vmax.f32 %v3590, %v3746
        %v4431 = vmax.f32 %v3591, %v3747
        %v4432 = vmax.f32 %v3592, %v3748
        %v4433 = vmax.f32 %v3593, %v3749
        %v4434 = vmax.f32 %v3594, %v3750
        %v4435 = vmax.f32 %v3595, %v3751
        %v4436 = vmax.f32 %v3596, %v3752
        %v4437 = vmax.f32 %v3597, %v3753
        %v4438 = vmax.f32 %v3598, %v3754
        %v4439 = vmax.f32 %v3599, %v3755
        %v4440 = vmax.f32 %v3600, %v3756
        %v4441 = vmax.f32 %v3601, %v3757
        %v4442 = vmax.f32 %v3602, %v3758
        %v4443 = vmax.f32 %v3603, %v3759
        %v4444 = vmax.f32 %v3604, %v3760
        %v4445 = vmax.f32 %v3605, %v3761
        %v4446 = vmax.f32 %v3606, %v3762
        %v4447 = vmax.f32 %v3607, %v3763
        %v4448 = vmax.f32 %v3608, %v3764
        %v4449 = vmax.f32 %v3609, %v3765
        %v4450 = vmax.f32 %v3610, %v3766
        %v4451 = vmax.f32 %v3611, %v3767
        %v4452 = vmax.f32 %v3612, %v3768
        %v4453 = vmax.f32 %v3613, %v3769
        %v4454 = vmax.f32 %v3614, %v3770
        %v4455 = vmax.f32 %v3615, %v3771
        %v4456 = vmax.f32 %v3616, %v3772
        %v4457 = vmax.f32 %v3617, %v3773
        %v4458 = vmax.f32 %v3618, %v3774
        %v4459 = vmax.f32 %v3619, %v3775
        %v4460 = vmax.f32 %v3620, %v3776
        %v4461 = vmax.f32 %v3621, %v3777
        %v4462 = vmax.f32 %v3622, %v3778
        %v4463 = vmax.f32 %v3623, %v3779
        %v4464 = vmax.f32 %v3624, %v3780
        %v4465 = vmax.f32 %v3625, %v3781
        %v4466 = vmax.f32 %v3626, %v3782
        %v4467 = vmax.f32 %v3627, %v3783
        %v4468 = vmax.f32 %v3628, %v3784
        %v4469 = vmax.f32 %v3629, %v3785
        %v4470 = vmax.f32 %v3630, %v3786
        %v4471 = vmax.f32 %v3631, %v3787
        %v4472 = vmax.f32 %v3632, %v3788
        %v4473 = vmax.f32 %v3633, %v3789
        %v4474 = vmax.f32 %v3634, %v3790
        %v4475 = vmax.f32 %v3635, %v3791
        %v4476 = vmax.f32 %v3636, %v3792
        %v4477 = vmax.f32 %v3637, %v3793
        %v4478 = vmax.f32 %v3638, %v3794
        %v4479 = vmax.f32 %v3639, %v3795
        %v4480 = vmax.f32 %v3640, %v3796
        %v4481 = vmax.f32 %v3641, %v3797
        %v4482 = vmax.f32 %v3642, %v3798
        %v4483 = vmax.f32 %v3643, %v3799
        %v4484 = vmax.f32 %v3644, %v3800
        %v4485 = vmax.f32 %v3645, %v3801
        %v4486 = vmax.f32 %v3646, %v3802
        %v4487 = vmax.f32 %v3647, %v3803
        %v4488 = vmax.f32 %v3648, %v3804
        %v4489 = vmax.f32 %v3649, %v3805
        %v4490 = vmax.f32 %v3650, %v3806
        %v4491 = vmax.f32 %v3651, %v3807
        %v4492 = vmax.f32 %v3652, %v3808
        %v4493 = vmax.f32 %v3653, %v3809
        %v4494 = vmax.f32 %v3654, %v3810
        %v4495 = vmax.f32 %v3655, %v3811
        %v4496 = vmax.f32 %v3656, %v3812
        %v4497 = vmax.f32 %v3657, %v3813
        %v4498 = vmax.f32 %v3658, %v3814
        %v4499 = vmax.f32 %v3815, %v3971
        %v4500 = vmax.f32 %v3816, %v3972
        %v4501 = vmax.f32 %v3817, %v3973
        %v4502 = vmax.f32 %v3818, %v3974
        %v4503 = vmax.f32 %v3819, %v3975
        %v4504 = vmax.f32 %v3820, %v3976
        %v4505 = vmax.f32 %v3821, %v3977
        %v4506 = vmax.f32 %v3822, %v3978
        %v4507 = vmax.f32 %v3823, %v3979
        %v4508 = vmax.f32 %v3824, %v3980
        %v4509 = vmax.f32 %v3825, %v3981
        %v4510 = vmax.f32 %v3826, %v3982
        %v4511 = vmax.f32 %v3827, %v3983
        %v4512 = vmax.f32 %v3828, %v3984
        %v4513 = vmax.f32 %v3829, %v3985
        %v4514 = vmax.f32 %v3830, %v3986
        %v4515 = vmax.f32 %v3831, %v3987
        %v4516 = vmax.f32 %v3832, %v3988
        %v4517 = vmax.f32 %v3833, %v3989
        %v4518 = vmax.f32 %v3834, %v3990
        %v4519 = vmax.f32 %v3835, %v3991
        %v4520 = vmax.f32 %v3836, %v3992
        %v4521 = vmax.f32 %v3837, %v3993
        %v4522 = vmax.f32 %v3838, %v3994
        %v4523 = vmax.f32 %v3839, %v3995
        %v4524 = vmax.f32 %v3840, %v3996
        %v4525 = vmax.f32 %v3841, %v3997
        %v4526 = vmax.f32 %v3842, %v3998
        %v4527 = vmax.f32 %v3843, %v3999
        %v4528 = vmax.f32 %v3844, %v4000
        %v4529 = vmax.f32 %v3845, %v4001
        %v4530 = vmax.f32 %v3846, %v4002
        %v4531 = vmax.f32 %v3847, %v4003
        %v4532 = vmax.f32 %v3848, %v4004
        %v4533 = vmax.f32 %v3849, %v4005
        %v4534 = vmax.f32 %v3850, %v4006
        %v4535 = vmax.f32 %v3851, %v4007
        %v4536 = vmax.f32 %v3852, %v4008
        %v4537 = vmax.f32 %v3853, %v4009
        %v4538 = vmax.f32 %v3854, %v4010
        %v4539 = vmax.f32 %v3855, %v4011
        %v4540 = vmax.f32 %v3856, %v4012
        %v4541 = vmax.f32 %v3857, %v4013
        %v4542 = vmax.f32 %v3858, %v4014
        %v4543 = vmax.f32 %v3859, %v4015
        %v4544 = vmax.f32 %v3860, %v4016
        %v4545 = vmax.f32 %v3861, %v4017
        %v4546 = vmax.f32 %v3862, %v4018
        %v4547 = vmax.f32 %v3863, %v4019
        %v4548 = vmax.f32 %v3864, %v4020
        %v4549 = vmax.f32 %v3865, %v4021
        %v4550 = vmax.f32 %v3866, %v4022
        %v4551 = vmax.f32 %v3867, %v4023
        %v4552 = vmax.f32 %v3868, %v4024
        %v4553 = vmax.f32 %v3869, %v4025
        %v4554 = vmax.f32 %v3870, %v4026
        %v4555 = vmax.f32 %v3871, %v4027
        %v4556 = vmax.f32 %v3872, %v4028
        %v4557 = vmax.f32 %v3873, %v4029
        %v4558 = vmax.f32 %v3874, %v4030
        %v4559 = vmax.f32 %v3875, %v4031
        %v4560 = vmax.f32 %v3876, %v4032
        %v4561 = vmax.f32 %v3877, %v4033
        %v4562 = vmax.f32 %v3878, %v4034
        %v4563 = vmax.f32 %v3879, %v4035
        %v4564 = vmax.f32 %v3880, %v4036
        %v4565 = vmax.f32 %v3881, %v4037
        %v4566 = vmax.f32 %v3882, %v4038
        %v4567 = vmax.f32 %v3883, %v4039
        %v4568 = vmax.f32 %v3884, %v4040
        %v4569 = vmax.f32 %v3885, %v4041
        %v4570 = vmax.f32 %v3886, %v4042
        %v4571 = vmax.f32 %v3887, %v4043
        %v4572 = vmax.f32 %v3888, %v4044
        %v4573 = vmax.f32 %v3889, %v4045
        %v4574 = vmax.f32 %v3890, %v4046
        %v4575 = vmax.f32 %v3891, %v4047
        %v4576 = vmax.f32 %v3892, %v4048
        %v4577 = vmax.f32 %v3893, %v4049
        %v4578 = vmax.f32 %v3894, %v4050
        %v4579 = vmax.f32 %v3895, %v4051
        %v4580 = vmax.f32 %v3896, %v4052
        %v4581 = vmax.f32 %v3897, %v4053
        %v4582 = vmax.f32 %v3898, %v4054
        %v4583 = vmax.f32 %v3899, %v4055
        %v4584 = vmax.f32 %v3900, %v4056
        %v4585 = vmax.f32 %v3901, %v4057
        %v4586 = vmax.f32 %v3902, %v4058
        %v4587 = vmax.f32 %v3903, %v4059
        %v4588 = vmax.f32 %v3904, %v4060
        %v4589 = vmax.f32 %v3905, %v4061
        %v4590 = vmax.f32 %v3906, %v4062
        %v4591 = vmax.f32 %v3907, %v4063
        %v4592 = vmax.f32 %v3908, %v4064
        %v4593 = vmax.f32 %v3909, %v4065
        %v4594 = vmax.f32 %v3910, %v4066
        %v4595 = vmax.f32 %v3911, %v4067
        %v4596 = vmax.f32 %v3912, %v4068
        %v4597 = vmax.f32 %v3913, %v4069
        %v4598 = vmax.f32 %v3914, %v4070
        %v4599 = vmax.f32 %v3915, %v4071
        %v4600 = vmax.f32 %v3916, %v4072
        %v4601 = vmax.f32 %v3917, %v4073
        %v4602 = vmax.f32 %v3918, %v4074
        %v4603 = vmax.f32 %v3919, %v4075
        %v4604 = vmax.f32 %v3920, %v4076
        %v4605 = vmax.f32 %v3921, %v4077
        %v4606 = vmax.f32 %v3922, %v4078
        %v4607 = vmax.f32 %v3923, %v4079
        %v4608 = vmax.f32 %v3924, %v4080
        %v4609 = vmax.f32 %v3925, %v4081
        %v4610 = vmax.f32 %v3926, %v4082
        %v4611 = vmax.f32 %v3927, %v4083
        %v4612 = vmax.f32 %v3928, %v4084
        %v4613 = vmax.f32 %v3929, %v4085
        %v4614 = vmax.f32 %v3930, %v4086
        %v4615 = vmax.f32 %v3931, %v4087
        %v4616 = vmax.f32 %v3932, %v4088
        %v4617 = vmax.f32 %v3933, %v4089
        %v4618 = vmax.f32 %v3934, %v4090
        %v4619 = vmax.f32 %v3935, %v4091
        %v4620 = vmax.f32 %v3936, %v4092
        %v4621 = vmax.f32 %v3937, %v4093
        %v4622 = vmax.f32 %v3938, %v4094
        %v4623 = vmax.f32 %v3939, %v4095
        %v4624 = vmax.f32 %v3940, %v4096
        %v4625 = vmax.f32 %v3941, %v4097
        %v4626 = vmax.f32 %v3942, %v4098
        %v4627 = vmax.f32 %v3943, %v4099
        %v4628 = vmax.f32 %v3944, %v4100
        %v4629 = vmax.f32 %v3945, %v4101
        %v4630 = vmax.f32 %v3946, %v4102
        %v4631 = vmax.f32 %v3947, %v4103
        %v4632 = vmax.f32 %v3948, %v4104
        %v4633 = vmax.f32 %v3949, %v4105
        %v4634 = vmax.f32 %v3950, %v4106
        %v4635 = vmax.f32 %v3951, %v4107
        %v4636 = vmax.f32 %v3952, %v4108
        %v4637 = vmax.f32 %v3953, %v4109
        %v4638 = vmax.f32 %v3954, %v4110
        %v4639 = vmax.f32 %v3955, %v4111
        %v4640 = vmax.f32 %v3956, %v4112
        %v4641 = vmax.f32 %v3957, %v4113
        %v4642 = vmax.f32 %v3958, %v4114
        %v4643 = vmax.f32 %v3959, %v4115
        %v4644 = vmax.f32 %v3960, %v4116
        %v4645 = vmax.f32 %v3961, %v4117
        %v4646 = vmax.f32 %v3962, %v4118
        %v4647 = vmax.f32 %v3963, %v4119
        %v4648 = vmax.f32 %v3964, %v4120
        %v4649 = vmax.f32 %v3965, %v4121
        %v4650 = vmax.f32 %v3966, %v4122
        %v4651 = vmax.f32 %v3967, %v4123
        %v4652 = vmax.f32 %v3968, %v4124
        %v4653 = vmax.f32 %v3969, %v4125
        %v4654 = vmax.f32 %v3970, %v4126
        %v4655 = vmax.f32 %v4343, %v4499
        %v4656 = vmax.f32 %v4344, %v4500
        %v4657 = vmax.f32 %v4345, %v4501
        %v4658 = vmax.f32 %v4346, %v4502
        %v4659 = vmax.f32 %v4347, %v4503
        %v4660 = vmax.f32 %v4348, %v4504
        %v4661 = vmax.f32 %v4349, %v4505
        %v4662 = vmax.f32 %v4350, %v4506
        %v4663 = vmax.f32 %v4351, %v4507
        %v4664 = vmax.f32 %v4352, %v4508
        %v4665 = vmax.f32 %v4353, %v4509
        %v4666 = vmax.f32 %v4354, %v4510
        %v4667 = vmax.f32 %v4355, %v4511
        %v4668 = vmax.f32 %v4356, %v4512
        %v4669 = vmax.f32 %v4357, %v4513
        %v4670 = vmax.f32 %v4358, %v4514
        %v4671 = vmax.f32 %v4359, %v4515
        %v4672 = vmax.f32 %v4360, %v4516
        %v4673 = vmax.f32 %v4361, %v4517
        %v4674 = vmax.f32 %v4362, %v4518
        %v4675 = vmax.f32 %v4363, %v4519
        %v4676 = vmax.f32 %v4364, %v4520
        %v4677 = vmax.f32 %v4365, %v4521
        %v4678 = vmax.f32 %v4366, %v4522
        %v4679 = vmax.f32 %v4367, %v4523
        %v4680 = vmax.f32 %v4368, %v4524
        %v4681 = vmax.f32 %v4369, %v4525
        %v4682 = vmax.f32 %v4370, %v4526
        %v4683 = vmax.f32 %v4371, %v4527
        %v4684 = vmax.f32 %v4372, %v4528
        %v4685 = vmax.f32 %v4373, %v4529
        %v4686 = vmax.f32 %v4374, %v4530
        %v4687 = vmax.f32 %v4375, %v4531
        %v4688 = vmax.f32 %v4376, %v4532
        %v4689 = vmax.f32 %v4377, %v4533
        %v4690 = vmax.f32 %v4378, %v4534
        %v4691 = vmax.f32 %v4379, %v4535
        %v4692 = vmax.f32 %v4380, %v4536
        %v4693 = vmax.f32 %v4381, %v4537
        %v4694 = vmax.f32 %v4382, %v4538
        %v4695 = vmax.f32 %v4383, %v4539
        %v4696 = vmax.f32 %v4384, %v4540
        %v4697 = vmax.f32 %v4385, %v4541
        %v4698 = vmax.f32 %v4386, %v4542
        %v4699 = vmax.f32 %v4387, %v4543
        %v4700 = vmax.f32 %v4388, %v4544
        %v4701 = vmax.f32 %v4389, %v4545
        %v4702 = vmax.f32 %v4390, %v4546
        %v4703 = vmax.f32 %v4391, %v4547
        %v4704 = vmax.f32 %v4392, %v4548
        %v4705 = vmax.f32 %v4393, %v4549
        %v4706 = vmax.f32 %v4394, %v4550
        %v4707 = vmax.f32 %v4395, %v4551
        %v4708 = vmax.f32 %v4396, %v4552
        %v4709 = vmax.f32 %v4397, %v4553
        %v4710 = vmax.f32 %v4398, %v4554
        %v4711 = vmax.f32 %v4399, %v4555
        %v4712 = vmax.f32 %v4400, %v4556
        %v4713 = vmax.f32 %v4401, %v4557
        %v4714 = vmax.f32 %v4402, %v4558
        %v4715 = vmax.f32 %v4403, %v4559
        %v4716 = vmax.f32 %v4404, %v4560
        %v4717 = vmax.f32 %v4405, %v4561
        %v4718 = vmax.f32 %v4406, %v4562
        %v4719 = vmax.f32 %v4407, %v4563
        %v4720 = vmax.f32 %v4408, %v4564
        %v4721 = vmax.f32 %v4409, %v4565
        %v4722 = vmax.f32 %v4410, %v4566
        %v4723 = vmax.f32 %v4411, %v4567
        %v4724 = vmax.f32 %v4412, %v4568
        %v4725 = vmax.f32 %v4413, %v4569
        %v4726 = vmax.f32 %v4414, %v4570
        %v4727 = vmax.f32 %v4415, %v4571
        %v4728 = vmax.f32 %v4416, %v4572
        %v4729 = vmax.f32 %v4417, %v4573
        %v4730 = vmax.f32 %v4418, %v4574
        %v4731 = vmax.f32 %v4419, %v4575
        %v4732 = vmax.f32 %v4420, %v4576
        %v4733 = vmax.f32 %v4421, %v4577
        %v4734 = vmax.f32 %v4422, %v4578
        %v4735 = vmax.f32 %v4423, %v4579
        %v4736 = vmax.f32 %v4424, %v4580
        %v4737 = vmax.f32 %v4425, %v4581
        %v4738 = vmax.f32 %v4426, %v4582
        %v4739 = vmax.f32 %v4427, %v4583
        %v4740 = vmax.f32 %v4428, %v4584
        %v4741 = vmax.f32 %v4429, %v4585
        %v4742 = vmax.f32 %v4430, %v4586
        %v4743 = vmax.f32 %v4431, %v4587
        %v4744 = vmax.f32 %v4432, %v4588
        %v4745 = vmax.f32 %v4433, %v4589
        %v4746 = vmax.f32 %v4434, %v4590
        %v4747 = vmax.f32 %v4435, %v4591
        %v4748 = vmax.f32 %v4436, %v4592
        %v4749 = vmax.f32 %v4437, %v4593
        %v4750 = vmax.f32 %v4438, %v4594
        %v4751 = vmax.f32 %v4439, %v4595
        %v4752 = vmax.f32 %v4440, %v4596
        %v4753 = vmax.f32 %v4441, %v4597
        %v4754 = vmax.f32 %v4442, %v4598
        %v4755 = vmax.f32 %v4443, %v4599
        %v4756 = vmax.f32 %v4444, %v4600
        %v4757 = vmax.f32 %v4445, %v4601
        %v4758 = vmax.f32 %v4446, %v4602
        %v4759 = vmax.f32 %v4447, %v4603
        %v4760 = vmax.f32 %v4448, %v4604
        %v4761 = vmax.f32 %v4449, %v4605
        %v4762 = vmax.f32 %v4450, %v4606
        %v4763 = vmax.f32 %v4451, %v4607
        %v4764 = vmax.f32 %v4452, %v4608
        %v4765 = vmax.f32 %v4453, %v4609
        %v4766 = vmax.f32 %v4454, %v4610
        %v4767 = vmax.f32 %v4455, %v4611
        %v4768 = vmax.f32 %v4456, %v4612
        %v4769 = vmax.f32 %v4457, %v4613
        %v4770 = vmax.f32 %v4458, %v4614
        %v4771 = vmax.f32 %v4459, %v4615
        %v4772 = vmax.f32 %v4460, %v4616
        %v4773 = vmax.f32 %v4461, %v4617
        %v4774 = vmax.f32 %v4462, %v4618
        %v4775 = vmax.f32 %v4463, %v4619
        %v4776 = vmax.f32 %v4464, %v4620
        %v4777 = vmax.f32 %v4465, %v4621
        %v4778 = vmax.f32 %v4466, %v4622
        %v4779 = vmax.f32 %v4467, %v4623
        %v4780 = vmax.f32 %v4468, %v4624
        %v4781 = vmax.f32 %v4469, %v4625
        %v4782 = vmax.f32 %v4470, %v4626
        %v4783 = vmax.f32 %v4471, %v4627
        %v4784 = vmax.f32 %v4472, %v4628
        %v4785 = vmax.f32 %v4473, %v4629
        %v4786 = vmax.f32 %v4474, %v4630
        %v4787 = vmax.f32 %v4475, %v4631
        %v4788 = vmax.f32 %v4476, %v4632
        %v4789 = vmax.f32 %v4477, %v4633
        %v4790 = vmax.f32 %v4478, %v4634
        %v4791 = vmax.f32 %v4479, %v4635
        %v4792 = vmax.f32 %v4480, %v4636
        %v4793 = vmax.f32 %v4481, %v4637
        %v4794 = vmax.f32 %v4482, %v4638
        %v4795 = vmax.f32 %v4483, %v4639
        %v4796 = vmax.f32 %v4484, %v4640
        %v4797 = vmax.f32 %v4485, %v4641
        %v4798 = vmax.f32 %v4486, %v4642
        %v4799 = vmax.f32 %v4487, %v4643
        %v4800 = vmax.f32 %v4488, %v4644
        %v4801 = vmax.f32 %v4489, %v4645
        %v4802 = vmax.f32 %v4490, %v4646
        %v4803 = vmax.f32 %v4491, %v4647
        %v4804 = vmax.f32 %v4492, %v4648
        %v4805 = vmax.f32 %v4493, %v4649
        %v4806 = vmax.f32 %v4494, %v4650
        %v4807 = vmax.f32 %v4495, %v4651
        %v4808 = vmax.f32 %v4496, %v4652
        %v4809 = vmax.f32 %v4497, %v4653
        %v4810 = vmax.f32 %v4498, %v4654
        %v4811 = vpack.c.bf16 %v4657, %v4655
        %v4812 = vpack.c.bf16 %v4658, %v4656
        %v4813 = vpack.c.bf16 %v4661, %v4659
        %v4814 = vpack.c.bf16 %v4662, %v4660
        %v4815 = vpack.c.bf16 %v4665, %v4663
        %v4816 = vpack.c.bf16 %v4666, %v4664
        %v4817 = vpack.c.bf16 %v4669, %v4667
        %v4818 = vpack.c.bf16 %v4670, %v4668
        %v4819 = vpack.c.bf16 %v4673, %v4671
        %v4820 = vpack.c.bf16 %v4674, %v4672
        %v4821 = vpack.c.bf16 %v4677, %v4675
        %v4822 = vpack.c.bf16 %v4678, %v4676
        %v4823 = vpack.c.bf16 %v4681, %v4679
        %v4824 = vpack.c.bf16 %v4682, %v4680
        %v4825 = vpack.c.bf16 %v4685, %v4683
        %v4826 = vpack.c.bf16 %v4686, %v4684
        %v4827 = vpack.c.bf16 %v4689, %v4687
        %v4828 = vpack.c.bf16 %v4690, %v4688
        %v4829 = vpack.c.bf16 %v4693, %v4691
        %v4830 = vpack.c.bf16 %v4694, %v4692
        %v4831 = vpack.c.bf16 %v4697, %v4695
        %v4832 = vpack.c.bf16 %v4698, %v4696
        %v4833 = vpack.c.bf16 %v4701, %v4699
        %v4834 = vpack.c.bf16 %v4702, %v4700
        %v4835 = vpack.c.bf16 %v4705, %v4703
        %v4836 = vpack.c.bf16 %v4706, %v4704
        %v4837 = vpack.c.bf16 %v4709, %v4707
        %v4838 = vpack.c.bf16 %v4710, %v4708
        %v4839 = vpack.c.bf16 %v4713, %v4711
        %v4840 = vpack.c.bf16 %v4714, %v4712
        %v4841 = vpack.c.bf16 %v4717, %v4715
        %v4842 = vpack.c.bf16 %v4718, %v4716
        %v4843 = vpack.c.bf16 %v4721, %v4719
        %v4844 = vpack.c.bf16 %v4722, %v4720
        %v4845 = vpack.c.bf16 %v4725, %v4723
        %v4846 = vpack.c.bf16 %v4726, %v4724
        %v4847 = vpack.c.bf16 %v4729, %v4727
        %v4848 = vpack.c.bf16 %v4730, %v4728
        %v4849 = vpack.c.bf16 %v4733, %v4731
        %v4850 = vpack.c.bf16 %v4734, %v4732
        %v4851 = vpack.c.bf16 %v4737, %v4735
        %v4852 = vpack.c.bf16 %v4738, %v4736
        %v4853 = vpack.c.bf16 %v4741, %v4739
        %v4854 = vpack.c.bf16 %v4742, %v4740
        %v4855 = vpack.c.bf16 %v4745, %v4743
        %v4856 = vpack.c.bf16 %v4746, %v4744
        %v4857 = vpack.c.bf16 %v4749, %v4747
        %v4858 = vpack.c.bf16 %v4750, %v4748
        %v4859 = vpack.c.bf16 %v4753, %v4751
        %v4860 = vpack.c.bf16 %v4754, %v4752
        %v4861 = vpack.c.bf16 %v4757, %v4755
        %v4862 = vpack.c.bf16 %v4758, %v4756
        %v4863 = vpack.c.bf16 %v4761, %v4759
        %v4864 = vpack.c.bf16 %v4762, %v4760
        %v4865 = vpack.c.bf16 %v4765, %v4763
        %v4866 = vpack.c.bf16 %v4766, %v4764
        %v4867 = vpack.c.bf16 %v4769, %v4767
        %v4868 = vpack.c.bf16 %v4770, %v4768
        %v4869 = vpack.c.bf16 %v4773, %v4771
        %v4870 = vpack.c.bf16 %v4774, %v4772
        %v4871 = vpack.c.bf16 %v4777, %v4775
        %v4872 = vpack.c.bf16 %v4778, %v4776
        %v4873 = vpack.c.bf16 %v4781, %v4779
        %v4874 = vpack.c.bf16 %v4782, %v4780
        %v4875 = vpack.c.bf16 %v4785, %v4783
        %v4876 = vpack.c.bf16 %v4786, %v4784
        %v4877 = vpack.c.bf16 %v4789, %v4787
        %v4878 = vpack.c.bf16 %v4790, %v4788
        %v4879 = vpack.c.bf16 %v4793, %v4791
        %v4880 = vpack.c.bf16 %v4794, %v4792
        %v4881 = vpack.c.bf16 %v4797, %v4795
        %v4882 = vpack.c.bf16 %v4798, %v4796
        %v4883 = vpack.c.bf16 %v4801, %v4799
        %v4884 = vpack.c.bf16 %v4802, %v4800
        %v4885 = vpack.c.bf16 %v4805, %v4803
        %v4886 = vpack.c.bf16 %v4806, %v4804
        %v4887 = vpack.c.bf16 %v4809, %v4807
        %v4888 = vpack.c.bf16 %v4810, %v4808
        %v4921 = vunpack.c.l.b16 %v4193
        %v4922 = vunpack.c.h.b16 %v4193
        %v4923 = vunpack.c.l.b16 %v4194
        %v4924 = vunpack.c.h.b16 %v4194
        %v4925 = vunpack.c.l.b16 %v4195
        %v4926 = vunpack.c.h.b16 %v4195
        %v4927 = vunpack.c.l.b16 %v4196
        %v4928 = vunpack.c.h.b16 %v4196
        %v4929 = vunpack.c.l.b16 %v4197
        %v4930 = vunpack.c.h.b16 %v4197
        %v4931 = vunpack.c.l.b16 %v4198
        %v4932 = vunpack.c.h.b16 %v4198
        %v4933 = vunpack.c.l.b16 %v4199
        %v4934 = vunpack.c.h.b16 %v4199
        %v4935 = vunpack.c.l.b16 %v4200
        %v4936 = vunpack.c.h.b16 %v4200
        %v4937 = vunpack.c.l.b16 %v4201
        %v4938 = vunpack.c.h.b16 %v4201
        %v4939 = vunpack.c.l.b16 %v4202
        %v4940 = vunpack.c.h.b16 %v4202
        %v4941 = vunpack.c.l.b16 %v4203
        %v4942 = vunpack.c.h.b16 %v4203
        %v4943 = vunpack.c.l.b16 %v4204
        %v4944 = vunpack.c.h.b16 %v4204
        %v4945 = vunpack.c.l.b16 %v4205
        %v4946 = vunpack.c.h.b16 %v4205
        %v4947 = vunpack.c.l.b16 %v4206
        %v4948 = vunpack.c.h.b16 %v4206
        %v4949 = vunpack.c.l.b16 %v4207
        %v4950 = vunpack.c.h.b16 %v4207
        %v4951 = vunpack.c.l.b16 %v4208
        %v4952 = vunpack.c.h.b16 %v4208
        %v4953 = vunpack.c.l.b16 %v4209
        %v4954 = vunpack.c.h.b16 %v4209
        %v4955 = vunpack.c.l.b16 %v4210
        %v4956 = vunpack.c.h.b16 %v4210
        %v4957 = vunpack.c.l.b16 %v4211
        %v4958 = vunpack.c.h.b16 %v4211
        %v4959 = vunpack.c.l.b16 %v4212
        %v4960 = vunpack.c.h.b16 %v4212
        %v4961 = vunpack.c.l.b16 %v4213
        %v4962 = vunpack.c.h.b16 %v4213
        %v4963 = vunpack.c.l.b16 %v4214
        %v4964 = vunpack.c.h.b16 %v4214
        %v4965 = vunpack.c.l.b16 %v4215
        %v4966 = vunpack.c.h.b16 %v4215
        %v4967 = vunpack.c.l.b16 %v4216
        %v4968 = vunpack.c.h.b16 %v4216
        %v4969 = vunpack.c.l.b16 %v4217
        %v4970 = vunpack.c.h.b16 %v4217
        %v4971 = vunpack.c.l.b16 %v4218
        %v4972 = vunpack.c.h.b16 %v4218
        %v4973 = vunpack.c.l.b16 %v4219
        %v4974 = vunpack.c.h.b16 %v4219
        %v4975 = vunpack.c.l.b16 %v4220
        %v4976 = vunpack.c.h.b16 %v4220
        %v4977 = vunpack.c.l.b16 %v4221
        %v4978 = vunpack.c.h.b16 %v4221
        %v4979 = vunpack.c.l.b16 %v4222
        %v4980 = vunpack.c.h.b16 %v4222
        %v4981 = vunpack.c.l.b16 %v4223
        %v4982 = vunpack.c.h.b16 %v4223
        %v4983 = vunpack.c.l.b16 %v4224
        %v4984 = vunpack.c.h.b16 %v4224
        %v4985 = vpack.c.b16 %v4923, %v4921
        %v4986 = vpack.c.b16 %v4924, %v4922
        %v4987 = vpack.c.b16 %v4927, %v4925
        %v4988 = vpack.c.b16 %v4928, %v4926
        %v4989 = vpack.c.b16 %v4931, %v4929
        %v4990 = vpack.c.b16 %v4932, %v4930
        %v4991 = vpack.c.b16 %v4935, %v4933
        %v4992 = vpack.c.b16 %v4936, %v4934
        %v4993 = vpack.c.b16 %v4939, %v4937
        %v4994 = vpack.c.b16 %v4940, %v4938
        %v4995 = vpack.c.b16 %v4943, %v4941
        %v4996 = vpack.c.b16 %v4944, %v4942
        %v4997 = vpack.c.b16 %v4947, %v4945
        %v4998 = vpack.c.b16 %v4948, %v4946
        %v4999 = vpack.c.b16 %v4951, %v4949
        %v5000 = vpack.c.b16 %v4952, %v4950
        %v5001 = vpack.c.b16 %v4955, %v4953
        %v5002 = vpack.c.b16 %v4956, %v4954
        %v5003 = vpack.c.b16 %v4959, %v4957
        %v5004 = vpack.c.b16 %v4960, %v4958
        %v5005 = vpack.c.b16 %v4963, %v4961
        %v5006 = vpack.c.b16 %v4964, %v4962
        %v5007 = vpack.c.b16 %v4967, %v4965
        %v5008 = vpack.c.b16 %v4968, %v4966
        %v5009 = vpack.c.b16 %v4971, %v4969
        %v5010 = vpack.c.b16 %v4972, %v4970
        %v5011 = vpack.c.b16 %v4975, %v4973
        %v5012 = vpack.c.b16 %v4976, %v4974
        %v5013 = vpack.c.b16 %v4979, %v4977
        %v5014 = vpack.c.b16 %v4980, %v4978
        %v5015 = vpack.c.b16 %v4983, %v4981
        %v5016 = vpack.c.b16 %v4984, %v4982
        %5049 = vmatprep.subr.bf16.mxu0 %v5000
        %5050 = vmatpush1.bf16.msra.mxu0 %v4999
        %5051 = vmatprep.subr.bf16.mxu0 %v4998
        %5052 = vmatpush1.bf16.msra.mxu0 %v4997
        %5053 = vmatprep.subr.bf16.mxu0 %v4996
        %5054 = vmatpush1.bf16.msra.mxu0 %v4995
        %5055 = vmatprep.subr.bf16.mxu0 %v4994
        %5056 = vmatpush1.bf16.msra.mxu0 %v4993
        %5057 = vmatprep.subr.bf16.mxu0 %v4992
        %5058 = vmatpush1.bf16.msra.mxu0 %v4991
        %5059 = vmatprep.subr.bf16.mxu0 %v4990
        %5060 = vmatpush1.bf16.msra.mxu0 %v4989
        %5061 = vmatprep.subr.bf16.mxu0 %v4988
        %5062 = vmatpush1.bf16.msra.mxu0 %v4987
        %5063 = vmatprep.subr.bf16.mxu0 %v4986
        %5064 = vmatpush1.bf16.msra.mxu0 %v4985
        %5065 = vmatprep.subr.bf16.mxu0 %v5016
        %5066 = vmatpush2.bf16.msra.mxu0 %v5015
        %5067 = vmatprep.subr.bf16.mxu0 %v5014
        %5068 = vmatpush2.bf16.msra.mxu0 %v5013
        %5069 = vmatprep.subr.bf16.mxu0 %v5012
        %5070 = vmatpush2.bf16.msra.mxu0 %v5011
        %5071 = vmatprep.subr.bf16.mxu0 %v5010
        %5072 = vmatpush2.bf16.msra.mxu0 %v5009
        %5073 = vmatprep.subr.bf16.mxu0 %v5008
        %5074 = vmatpush2.bf16.msra.mxu0 %v5007
        %5075 = vmatprep.subr.bf16.mxu0 %v5006
        %5076 = vmatpush2.bf16.msra.mxu0 %v5005
        %5077 = vmatprep.subr.bf16.mxu0 %v5004
        %5078 = vmatpush2.bf16.msra.mxu0 %v5003
        %5079 = vmatprep.subr.bf16.mxu0 %v5002
        %5080 = vmatpush2.bf16.msra.mxu0 %v5001
        %5081 = vmatprep.mubr.bf16.mxu0 %v4812
        %5082 = vmatmul.mubr.bf16.gmra.mxu0 %v4811
        %v5083 = vpop.f32.mrf.mxu0
        %v5084 = vadd.f32 0.0, %v5083
        %v5085 = vpop.f32.mrf.mxu0
        %v5086 = vadd.f32 0.0, %v5085
        %v5087 = vpop.f32.mrf.mxu0
        %v5088 = vadd.f32 0.0, %v5087
        %v5089 = vpop.f32.mrf.mxu0
        %v5090 = vadd.f32 0.0, %v5089
        %5091 = vmatprep.mubr.bf16.mxu0 %v4814
        %5092 = vmatmul.mubr.bf16.gmra.mxu0 %v4813
        %v5093 = vpop.f32.mrf.mxu0
        %v5094 = vadd.f32 0.0, %v5093
        %v5095 = vpop.f32.mrf.mxu0
        %v5096 = vadd.f32 0.0, %v5095
        %v5097 = vpop.f32.mrf.mxu0
        %v5098 = vadd.f32 0.0, %v5097
        %v5099 = vpop.f32.mrf.mxu0
        %v5100 = vadd.f32 0.0, %v5099
        %5101 = vmatprep.mubr.bf16.mxu0 %v4816
        %5102 = vmatmul.mubr.bf16.gmra.mxu0 %v4815
        %v5103 = vpop.f32.mrf.mxu0
        %v5104 = vadd.f32 0.0, %v5103
        %v5105 = vpop.f32.mrf.mxu0
        %v5106 = vadd.f32 0.0, %v5105
        %v5107 = vpop.f32.mrf.mxu0
        %v5108 = vadd.f32 0.0, %v5107
        %v5109 = vpop.f32.mrf.mxu0
        %v5110 = vadd.f32 0.0, %v5109
        %5111 = vmatprep.mubr.bf16.mxu0 %v4818
        %5112 = vmatmul.mubr.bf16.gmra.mxu0 %v4817
        %v5113 = vpop.f32.mrf.mxu0
        %v5114 = vadd.f32 0.0, %v5113
        %v5115 = vpop.f32.mrf.mxu0
        %v5116 = vadd.f32 0.0, %v5115
        %v5117 = vpop.f32.mrf.mxu0
        %v5118 = vadd.f32 0.0, %v5117
        %v5119 = vpop.f32.mrf.mxu0
        %v5120 = vadd.f32 0.0, %v5119
        %5121 = vmatprep.mubr.bf16.mxu0 %v4820
        %5122 = vmatmul.mubr.bf16.gmra.mxu0 %v4819
        %v5123 = vpop.f32.mrf.mxu0
        %v5124 = vadd.f32 0.0, %v5123
        %v5125 = vpop.f32.mrf.mxu0
        %v5126 = vadd.f32 0.0, %v5125
        %v5127 = vpop.f32.mrf.mxu0
        %v5128 = vadd.f32 0.0, %v5127
        %v5129 = vpop.f32.mrf.mxu0
        %v5130 = vadd.f32 0.0, %v5129
        %5131 = vmatprep.mubr.bf16.mxu0 %v4822
        %5132 = vmatmul.mubr.bf16.gmra.mxu0 %v4821
        %v5133 = vpop.f32.mrf.mxu0
        %v5134 = vadd.f32 0.0, %v5133
        %v5135 = vpop.f32.mrf.mxu0
        %v5136 = vadd.f32 0.0, %v5135
        %v5137 = vpop.f32.mrf.mxu0
        %v5138 = vadd.f32 0.0, %v5137
        %v5139 = vpop.f32.mrf.mxu0
        %v5140 = vadd.f32 0.0, %v5139
        %5141 = vmatprep.mubr.bf16.mxu0 %v4824
        %5142 = vmatmul.mubr.bf16.gmra.mxu0 %v4823
        %v5143 = vpop.f32.mrf.mxu0
        %v5144 = vadd.f32 0.0, %v5143
        %v5145 = vpop.f32.mrf.mxu0
        %v5146 = vadd.f32 0.0, %v5145
        %v5147 = vpop.f32.mrf.mxu0
        %v5148 = vadd.f32 0.0, %v5147
        %v5149 = vpop.f32.mrf.mxu0
        %v5150 = vadd.f32 0.0, %v5149
        %5151 = vmatprep.mubr.bf16.mxu0 %v4826
        %5152 = vmatmul.mubr.bf16.gmra.mxu0 %v4825
        %v5153 = vpop.f32.mrf.mxu0
        %v5154 = vadd.f32 0.0, %v5153
        %v5155 = vpop.f32.mrf.mxu0
        %v5156 = vadd.f32 0.0, %v5155
        %v5157 = vpop.f32.mrf.mxu0
        %v5158 = vadd.f32 0.0, %v5157
        %v5159 = vpop.f32.mrf.mxu0
        %v5160 = vadd.f32 0.0, %v5159
        %5161 = vmatprep.mubr.bf16.mxu0 %v4828
        %5162 = vmatmul.mubr.bf16.gmra.mxu0 %v4827
        %v5163 = vpop.f32.mrf.mxu0
        %v5164 = vadd.f32 0.0, %v5163
        %v5165 = vpop.f32.mrf.mxu0
        %v5166 = vadd.f32 0.0, %v5165
        %v5167 = vpop.f32.mrf.mxu0
        %v5168 = vadd.f32 0.0, %v5167
        %v5169 = vpop.f32.mrf.mxu0
        %v5170 = vadd.f32 0.0, %v5169
        %5171 = vmatprep.mubr.bf16.mxu0 %v4830
        %5172 = vmatmul.mubr.bf16.gmra.mxu0 %v4829
        %v5173 = vpop.f32.mrf.mxu0
        %v5174 = vadd.f32 0.0, %v5173
        %v5175 = vpop.f32.mrf.mxu0
        %v5176 = vadd.f32 0.0, %v5175
        %v5177 = vpop.f32.mrf.mxu0
        %v5178 = vadd.f32 0.0, %v5177
        %v5179 = vpop.f32.mrf.mxu0
        %v5180 = vadd.f32 0.0, %v5179
        %5181 = vmatprep.mubr.bf16.mxu0 %v4832
        %5182 = vmatmul.mubr.bf16.gmra.mxu0 %v4831
        %v5183 = vpop.f32.mrf.mxu0
        %v5184 = vadd.f32 0.0, %v5183
        %v5185 = vpop.f32.mrf.mxu0
        %v5186 = vadd.f32 0.0, %v5185
        %v5187 = vpop.f32.mrf.mxu0
        %v5188 = vadd.f32 0.0, %v5187
        %v5189 = vpop.f32.mrf.mxu0
        %v5190 = vadd.f32 0.0, %v5189
        %5191 = vmatprep.mubr.bf16.mxu0 %v4834
        %5192 = vmatmul.mubr.bf16.gmra.mxu0 %v4833
        %v5193 = vpop.f32.mrf.mxu0
        %v5194 = vadd.f32 0.0, %v5193
        %v5195 = vpop.f32.mrf.mxu0
        %v5196 = vadd.f32 0.0, %v5195
        %v5197 = vpop.f32.mrf.mxu0
        %v5198 = vadd.f32 0.0, %v5197
        %v5199 = vpop.f32.mrf.mxu0
        %v5200 = vadd.f32 0.0, %v5199
        %5201 = vmatprep.mubr.bf16.mxu0 %v4836
        %5202 = vmatmul.mubr.bf16.gmra.mxu0 %v4835
        %v5203 = vpop.f32.mrf.mxu0
        %v5204 = vadd.f32 0.0, %v5203
        %v5205 = vpop.f32.mrf.mxu0
        %v5206 = vadd.f32 0.0, %v5205
        %v5207 = vpop.f32.mrf.mxu0
        %v5208 = vadd.f32 0.0, %v5207
        %v5209 = vpop.f32.mrf.mxu0
        %v5210 = vadd.f32 0.0, %v5209
        %5211 = vmatprep.mubr.bf16.mxu0 %v4838
        %5212 = vmatmul.mubr.bf16.gmra.mxu0 %v4837
        %v5213 = vpop.f32.mrf.mxu0
        %v5214 = vadd.f32 0.0, %v5213
        %v5215 = vpop.f32.mrf.mxu0
        %v5216 = vadd.f32 0.0, %v5215
        %v5217 = vpop.f32.mrf.mxu0
        %v5218 = vadd.f32 0.0, %v5217
        %v5219 = vpop.f32.mrf.mxu0
        %v5220 = vadd.f32 0.0, %v5219
        %5221 = vmatprep.mubr.bf16.mxu0 %v4840
        %5222 = vmatmul.mubr.bf16.gmra.mxu0 %v4839
        %v5223 = vpop.f32.mrf.mxu0
        %v5224 = vadd.f32 0.0, %v5223
        %v5225 = vpop.f32.mrf.mxu0
        %v5226 = vadd.f32 0.0, %v5225
        %v5227 = vpop.f32.mrf.mxu0
        %v5228 = vadd.f32 0.0, %v5227
        %v5229 = vpop.f32.mrf.mxu0
        %v5230 = vadd.f32 0.0, %v5229
        %5231 = vmatprep.mubr.bf16.mxu0 %v4842
        %5232 = vmatmul.mubr.bf16.gmra.mxu0 %v4841
        %v5233 = vpop.f32.mrf.mxu0
        %v5234 = vadd.f32 0.0, %v5233
        %v5235 = vpop.f32.mrf.mxu0
        %v5236 = vadd.f32 0.0, %v5235
        %v5237 = vpop.f32.mrf.mxu0
        %v5238 = vadd.f32 0.0, %v5237
        %v5239 = vpop.f32.mrf.mxu0
        %v5240 = vadd.f32 0.0, %v5239
        %5241 = vmatprep.mubr.bf16.mxu0 %v4844
        %5242 = vmatmul.mubr.bf16.gmra.mxu0 %v4843
        %v5243 = vpop.f32.mrf.mxu0
        %v5244 = vadd.f32 0.0, %v5243
        %v5245 = vpop.f32.mrf.mxu0
        %v5246 = vadd.f32 0.0, %v5245
        %v5247 = vpop.f32.mrf.mxu0
        %v5248 = vadd.f32 0.0, %v5247
        %v5249 = vpop.f32.mrf.mxu0
        %v5250 = vadd.f32 0.0, %v5249
        %5251 = vmatprep.mubr.bf16.mxu0 %v4846
        %5252 = vmatmul.mubr.bf16.gmra.mxu0 %v4845
        %v5253 = vpop.f32.mrf.mxu0
        %v5254 = vadd.f32 0.0, %v5253
        %v5255 = vpop.f32.mrf.mxu0
        %v5256 = vadd.f32 0.0, %v5255
        %v5257 = vpop.f32.mrf.mxu0
        %v5258 = vadd.f32 0.0, %v5257
        %v5259 = vpop.f32.mrf.mxu0
        %v5260 = vadd.f32 0.0, %v5259
        %5261 = vmatprep.mubr.bf16.mxu0 %v4848
        %5262 = vmatmul.mubr.bf16.gmra.mxu0 %v4847
        %v5263 = vpop.f32.mrf.mxu0
        %v5264 = vadd.f32 0.0, %v5263
        %v5265 = vpop.f32.mrf.mxu0
        %v5266 = vadd.f32 0.0, %v5265
        %v5267 = vpop.f32.mrf.mxu0
        %v5268 = vadd.f32 0.0, %v5267
        %v5269 = vpop.f32.mrf.mxu0
        %v5270 = vadd.f32 0.0, %v5269
        %5271 = vmatprep.mubr.bf16.mxu0 %v4850
        %5272 = vmatmul.mubr.bf16.gmra.mxu0 %v4849
        %v5273 = vpop.f32.mrf.mxu0
        %v5274 = vadd.f32 0.0, %v5273
        %v5275 = vpop.f32.mrf.mxu0
        %v5276 = vadd.f32 0.0, %v5275
        %v5277 = vpop.f32.mrf.mxu0
        %v5278 = vadd.f32 0.0, %v5277
        %v5279 = vpop.f32.mrf.mxu0
        %v5280 = vadd.f32 0.0, %v5279
        %5281 = vmatprep.mubr.bf16.mxu0 %v4852
        %5282 = vmatmul.mubr.bf16.gmra.mxu0 %v4851
        %v5283 = vpop.f32.mrf.mxu0
        %v5284 = vadd.f32 0.0, %v5283
        %v5285 = vpop.f32.mrf.mxu0
        %v5286 = vadd.f32 0.0, %v5285
        %v5287 = vpop.f32.mrf.mxu0
        %v5288 = vadd.f32 0.0, %v5287
        %v5289 = vpop.f32.mrf.mxu0
        %v5290 = vadd.f32 0.0, %v5289
        %5291 = vmatprep.mubr.bf16.mxu0 %v4854
        %5292 = vmatmul.mubr.bf16.gmra.mxu0 %v4853
        %v5293 = vpop.f32.mrf.mxu0
        %v5294 = vadd.f32 0.0, %v5293
        %v5295 = vpop.f32.mrf.mxu0
        %v5296 = vadd.f32 0.0, %v5295
        %v5297 = vpop.f32.mrf.mxu0
        %v5298 = vadd.f32 0.0, %v5297
        %v5299 = vpop.f32.mrf.mxu0
        %v5300 = vadd.f32 0.0, %v5299
        %5301 = vmatprep.mubr.bf16.mxu0 %v4856
        %5302 = vmatmul.mubr.bf16.gmra.mxu0 %v4855
        %v5303 = vpop.f32.mrf.mxu0
        %v5304 = vadd.f32 0.0, %v5303
        %v5305 = vpop.f32.mrf.mxu0
        %v5306 = vadd.f32 0.0, %v5305
        %v5307 = vpop.f32.mrf.mxu0
        %v5308 = vadd.f32 0.0, %v5307
        %v5309 = vpop.f32.mrf.mxu0
        %v5310 = vadd.f32 0.0, %v5309
        %5311 = vmatprep.mubr.bf16.mxu0 %v4858
        %5312 = vmatmul.mubr.bf16.gmra.mxu0 %v4857
        %v5313 = vpop.f32.mrf.mxu0
        %v5314 = vadd.f32 0.0, %v5313
        %v5315 = vpop.f32.mrf.mxu0
        %v5316 = vadd.f32 0.0, %v5315
        %v5317 = vpop.f32.mrf.mxu0
        %v5318 = vadd.f32 0.0, %v5317
        %v5319 = vpop.f32.mrf.mxu0
        %v5320 = vadd.f32 0.0, %v5319
        %5321 = vmatprep.mubr.bf16.mxu0 %v4860
        %5322 = vmatmul.mubr.bf16.gmra.mxu0 %v4859
        %v5323 = vpop.f32.mrf.mxu0
        %v5324 = vadd.f32 0.0, %v5323
        %v5325 = vpop.f32.mrf.mxu0
        %v5326 = vadd.f32 0.0, %v5325
        %v5327 = vpop.f32.mrf.mxu0
        %v5328 = vadd.f32 0.0, %v5327
        %v5329 = vpop.f32.mrf.mxu0
        %v5330 = vadd.f32 0.0, %v5329
        %5331 = vmatprep.mubr.bf16.mxu0 %v4862
        %5332 = vmatmul.mubr.bf16.gmra.mxu0 %v4861
        %v5333 = vpop.f32.mrf.mxu0
        %v5334 = vadd.f32 0.0, %v5333
        %v5335 = vpop.f32.mrf.mxu0
        %v5336 = vadd.f32 0.0, %v5335
        %v5337 = vpop.f32.mrf.mxu0
        %v5338 = vadd.f32 0.0, %v5337
        %v5339 = vpop.f32.mrf.mxu0
        %v5340 = vadd.f32 0.0, %v5339
        %5341 = vmatprep.mubr.bf16.mxu0 %v4864
        %5342 = vmatmul.mubr.bf16.gmra.mxu0 %v4863
        %v5343 = vpop.f32.mrf.mxu0
        %v5344 = vadd.f32 0.0, %v5343
        %v5345 = vpop.f32.mrf.mxu0
        %v5346 = vadd.f32 0.0, %v5345
        %v5347 = vpop.f32.mrf.mxu0
        %v5348 = vadd.f32 0.0, %v5347
        %v5349 = vpop.f32.mrf.mxu0
        %v5350 = vadd.f32 0.0, %v5349
        %5351 = vmatprep.mubr.bf16.mxu0 %v4866
        %5352 = vmatmul.mubr.bf16.gmra.mxu0 %v4865
        %v5353 = vpop.f32.mrf.mxu0
        %v5354 = vadd.f32 0.0, %v5353
        %v5355 = vpop.f32.mrf.mxu0
        %v5356 = vadd.f32 0.0, %v5355
        %v5357 = vpop.f32.mrf.mxu0
        %v5358 = vadd.f32 0.0, %v5357
        %v5359 = vpop.f32.mrf.mxu0
        %v5360 = vadd.f32 0.0, %v5359
        %5361 = vmatprep.mubr.bf16.mxu0 %v4868
        %5362 = vmatmul.mubr.bf16.gmra.mxu0 %v4867
        %v5363 = vpop.f32.mrf.mxu0
        %v5364 = vadd.f32 0.0, %v5363
        %v5365 = vpop.f32.mrf.mxu0
        %v5366 = vadd.f32 0.0, %v5365
        %v5367 = vpop.f32.mrf.mxu0
        %v5368 = vadd.f32 0.0, %v5367
        %v5369 = vpop.f32.mrf.mxu0
        %v5370 = vadd.f32 0.0, %v5369
        %5371 = vmatprep.mubr.bf16.mxu0 %v4870
        %5372 = vmatmul.mubr.bf16.gmra.mxu0 %v4869
        %v5373 = vpop.f32.mrf.mxu0
        %v5374 = vadd.f32 0.0, %v5373
        %v5375 = vpop.f32.mrf.mxu0
        %v5376 = vadd.f32 0.0, %v5375
        %v5377 = vpop.f32.mrf.mxu0
        %v5378 = vadd.f32 0.0, %v5377
        %v5379 = vpop.f32.mrf.mxu0
        %v5380 = vadd.f32 0.0, %v5379
        %5381 = vmatprep.mubr.bf16.mxu0 %v4872
        %5382 = vmatmul.mubr.bf16.gmra.mxu0 %v4871
        %v5383 = vpop.f32.mrf.mxu0
        %v5384 = vadd.f32 0.0, %v5383
        %v5385 = vpop.f32.mrf.mxu0
        %v5386 = vadd.f32 0.0, %v5385
        %v5387 = vpop.f32.mrf.mxu0
        %v5388 = vadd.f32 0.0, %v5387
        %v5389 = vpop.f32.mrf.mxu0
        %v5390 = vadd.f32 0.0, %v5389
        %5391 = vmatprep.mubr.bf16.mxu0 %v4874
        %5392 = vmatmul.mubr.bf16.gmra.mxu0 %v4873
        %v5393 = vpop.f32.mrf.mxu0
        %v5394 = vadd.f32 0.0, %v5393
        %v5395 = vpop.f32.mrf.mxu0
        %v5396 = vadd.f32 0.0, %v5395
        %v5397 = vpop.f32.mrf.mxu0
        %v5398 = vadd.f32 0.0, %v5397
        %v5399 = vpop.f32.mrf.mxu0
        %v5400 = vadd.f32 0.0, %v5399
        %5401 = vmatprep.mubr.bf16.mxu0 %v4876
        %5402 = vmatmul.mubr.bf16.gmra.mxu0 %v4875
        %v5403 = vpop.f32.mrf.mxu0
        %v5404 = vadd.f32 0.0, %v5403
        %v5405 = vpop.f32.mrf.mxu0
        %v5406 = vadd.f32 0.0, %v5405
        %v5407 = vpop.f32.mrf.mxu0
        %v5408 = vadd.f32 0.0, %v5407
        %v5409 = vpop.f32.mrf.mxu0
        %v5410 = vadd.f32 0.0, %v5409
        %5411 = vmatprep.mubr.bf16.mxu0 %v4878
        %5412 = vmatmul.mubr.bf16.gmra.mxu0 %v4877
        %v5413 = vpop.f32.mrf.mxu0
        %v5414 = vadd.f32 0.0, %v5413
        %v5415 = vpop.f32.mrf.mxu0
        %v5416 = vadd.f32 0.0, %v5415
        %v5417 = vpop.f32.mrf.mxu0
        %v5418 = vadd.f32 0.0, %v5417
        %v5419 = vpop.f32.mrf.mxu0
        %v5420 = vadd.f32 0.0, %v5419
        %5421 = vmatprep.mubr.bf16.mxu0 %v4880
        %5422 = vmatmul.mubr.bf16.gmra.mxu0 %v4879
        %v5423 = vpop.f32.mrf.mxu0
        %v5424 = vadd.f32 0.0, %v5423
        %v5425 = vpop.f32.mrf.mxu0
        %v5426 = vadd.f32 0.0, %v5425
        %v5427 = vpop.f32.mrf.mxu0
        %v5428 = vadd.f32 0.0, %v5427
        %v5429 = vpop.f32.mrf.mxu0
        %v5430 = vadd.f32 0.0, %v5429
        %5431 = vmatprep.mubr.bf16.mxu0 %v4882
        %5432 = vmatmul.mubr.bf16.gmra.mxu0 %v4881
        %v5433 = vpop.f32.mrf.mxu0
        %v5434 = vadd.f32 0.0, %v5433
        %v5435 = vpop.f32.mrf.mxu0
        %v5436 = vadd.f32 0.0, %v5435
        %v5437 = vpop.f32.mrf.mxu0
        %v5438 = vadd.f32 0.0, %v5437
        %v5439 = vpop.f32.mrf.mxu0
        %v5440 = vadd.f32 0.0, %v5439
        %5441 = vmatprep.mubr.bf16.mxu0 %v4884
        %5442 = vmatmul.mubr.bf16.gmra.mxu0 %v4883
        %v5443 = vpop.f32.mrf.mxu0
        %v5444 = vadd.f32 0.0, %v5443
        %v5445 = vpop.f32.mrf.mxu0
        %v5446 = vadd.f32 0.0, %v5445
        %v5447 = vpop.f32.mrf.mxu0
        %v5448 = vadd.f32 0.0, %v5447
        %v5449 = vpop.f32.mrf.mxu0
        %v5450 = vadd.f32 0.0, %v5449
        %5451 = vmatprep.mubr.bf16.mxu0 %v4886
        %5452 = vmatmul.mubr.bf16.gmra.mxu0 %v4885
        %v5453 = vpop.f32.mrf.mxu0
        %v5454 = vadd.f32 0.0, %v5453
        %v5455 = vpop.f32.mrf.mxu0
        %v5456 = vadd.f32 0.0, %v5455
        %v5457 = vpop.f32.mrf.mxu0
        %v5458 = vadd.f32 0.0, %v5457
        %v5459 = vpop.f32.mrf.mxu0
        %v5460 = vadd.f32 0.0, %v5459
        %5461 = vmatprep.mubr.bf16.mxu0 %v4888
        %5462 = vmatmul.mubr.bf16.gmra.mxu0 %v4887
        %v5463 = vpop.f32.mrf.mxu0
        %v5464 = vadd.f32 0.0, %v5463
        %v5465 = vpop.f32.mrf.mxu0
        %v5466 = vadd.f32 0.0, %v5465
        %v5467 = vpop.f32.mrf.mxu0
        %v5468 = vadd.f32 0.0, %v5467
        %v5469 = vpop.f32.mrf.mxu0
        %v5470 = vadd.f32 0.0, %v5469
        %5471 = vdwg.mxu0
        %v5472 = vrot.slane %v5084, 1
        %v5473 = vrot.slane %v5086, 1
        %v5474 = vrot.slane %v5088, 1
        %v5475 = vrot.slane %v5090, 1
        %v5476 = vrot.slane %v5094, 1
        %v5477 = vrot.slane %v5096, 1
        %v5478 = vrot.slane %v5098, 1
        %v5479 = vrot.slane %v5100, 1
        %v5480 = vrot.slane %v5104, 1
        %v5481 = vrot.slane %v5106, 1
        %v5482 = vrot.slane %v5108, 1
        %v5483 = vrot.slane %v5110, 1
        %v5484 = vrot.slane %v5114, 1
        %v5485 = vrot.slane %v5116, 1
        %v5486 = vrot.slane %v5118, 1
        %v5487 = vrot.slane %v5120, 1
        %v5488 = vrot.slane %v5124, 1
        %v5489 = vrot.slane %v5126, 1
        %v5490 = vrot.slane %v5128, 1
        %v5491 = vrot.slane %v5130, 1
        %v5492 = vrot.slane %v5134, 1
        %v5493 = vrot.slane %v5136, 1
        %v5494 = vrot.slane %v5138, 1
        %v5495 = vrot.slane %v5140, 1
        %v5496 = vrot.slane %v5144, 1
        %v5497 = vrot.slane %v5146, 1
        %v5498 = vrot.slane %v5148, 1
        %v5499 = vrot.slane %v5150, 1
        %v5500 = vrot.slane %v5154, 1
        %v5501 = vrot.slane %v5156, 1
        %v5502 = vrot.slane %v5158, 1
        %v5503 = vrot.slane %v5160, 1
        %v5504 = vrot.slane %v5164, 1
        %v5505 = vrot.slane %v5166, 1
        %v5506 = vrot.slane %v5168, 1
        %v5507 = vrot.slane %v5170, 1
        %v5508 = vrot.slane %v5174, 1
        %v5509 = vrot.slane %v5176, 1
        %v5510 = vrot.slane %v5178, 1
        %v5511 = vrot.slane %v5180, 1
        %v5512 = vrot.slane %v5184, 1
        %v5513 = vrot.slane %v5186, 1
        %v5514 = vrot.slane %v5188, 1
        %v5515 = vrot.slane %v5190, 1
        %v5516 = vrot.slane %v5194, 1
        %v5517 = vrot.slane %v5196, 1
        %v5518 = vrot.slane %v5198, 1
        %v5519 = vrot.slane %v5200, 1
        %v5520 = vrot.slane %v5204, 1
        %v5521 = vrot.slane %v5206, 1
        %v5522 = vrot.slane %v5208, 1
        %v5523 = vrot.slane %v5210, 1
        %v5524 = vrot.slane %v5214, 1
        %v5525 = vrot.slane %v5216, 1
        %v5526 = vrot.slane %v5218, 1
        %v5527 = vrot.slane %v5220, 1
        %v5528 = vrot.slane %v5224, 1
        %v5529 = vrot.slane %v5226, 1
        %v5530 = vrot.slane %v5228, 1
        %v5531 = vrot.slane %v5230, 1
        %v5532 = vrot.slane %v5234, 1
        %v5533 = vrot.slane %v5236, 1
        %v5534 = vrot.slane %v5238, 1
        %v5535 = vrot.slane %v5240, 1
        %v5536 = vrot.slane %v5244, 1
        %v5537 = vrot.slane %v5246, 1
        %v5538 = vrot.slane %v5248, 1
        %v5539 = vrot.slane %v5250, 1
        %v5540 = vrot.slane %v5254, 1
        %v5541 = vrot.slane %v5256, 1
        %v5542 = vrot.slane %v5258, 1
        %v5543 = vrot.slane %v5260, 1
        %v5544 = vrot.slane %v5264, 1
        %v5545 = vrot.slane %v5266, 1
        %v5546 = vrot.slane %v5268, 1
        %v5547 = vrot.slane %v5270, 1
        %v5548 = vrot.slane %v5274, 1
        %v5549 = vrot.slane %v5276, 1
        %v5550 = vrot.slane %v5278, 1
        %v5551 = vrot.slane %v5280, 1
        %v5552 = vrot.slane %v5284, 1
        %v5553 = vrot.slane %v5286, 1
        %v5554 = vrot.slane %v5288, 1
        %v5555 = vrot.slane %v5290, 1
        %v5556 = vrot.slane %v5294, 1
        %v5557 = vrot.slane %v5296, 1
        %v5558 = vrot.slane %v5298, 1
        %v5559 = vrot.slane %v5300, 1
        %v5560 = vrot.slane %v5304, 1
        %v5561 = vrot.slane %v5306, 1
        %v5562 = vrot.slane %v5308, 1
        %v5563 = vrot.slane %v5310, 1
        %v5564 = vrot.slane %v5314, 1
        %v5565 = vrot.slane %v5316, 1
        %v5566 = vrot.slane %v5318, 1
        %v5567 = vrot.slane %v5320, 1
        %v5568 = vrot.slane %v5324, 1
        %v5569 = vrot.slane %v5326, 1
        %v5570 = vrot.slane %v5328, 1
        %v5571 = vrot.slane %v5330, 1
        %v5572 = vrot.slane %v5334, 1
        %v5573 = vrot.slane %v5336, 1
        %v5574 = vrot.slane %v5338, 1
        %v5575 = vrot.slane %v5340, 1
        %v5576 = vrot.slane %v5344, 1
        %v5577 = vrot.slane %v5346, 1
        %v5578 = vrot.slane %v5348, 1
        %v5579 = vrot.slane %v5350, 1
        %v5580 = vrot.slane %v5354, 1
        %v5581 = vrot.slane %v5356, 1
        %v5582 = vrot.slane %v5358, 1
        %v5583 = vrot.slane %v5360, 1
        %v5584 = vrot.slane %v5364, 1
        %v5585 = vrot.slane %v5366, 1
        %v5586 = vrot.slane %v5368, 1
        %v5587 = vrot.slane %v5370, 1
        %v5588 = vrot.slane %v5374, 1
        %v5589 = vrot.slane %v5376, 1
        %v5590 = vrot.slane %v5378, 1
        %v5591 = vrot.slane %v5380, 1
        %v5592 = vrot.slane %v5384, 1
        %v5593 = vrot.slane %v5386, 1
        %v5594 = vrot.slane %v5388, 1
        %v5595 = vrot.slane %v5390, 1
        %v5596 = vrot.slane %v5394, 1
        %v5597 = vrot.slane %v5396, 1
        %v5598 = vrot.slane %v5398, 1
        %v5599 = vrot.slane %v5400, 1
        %v5600 = vrot.slane %v5404, 1
        %v5601 = vrot.slane %v5406, 1
        %v5602 = vrot.slane %v5408, 1
        %v5603 = vrot.slane %v5410, 1
        %v5604 = vrot.slane %v5414, 1
        %v5605 = vrot.slane %v5416, 1
        %v5606 = vrot.slane %v5418, 1
        %v5607 = vrot.slane %v5420, 1
        %v5608 = vrot.slane %v5424, 1
        %v5609 = vrot.slane %v5426, 1
        %v5610 = vrot.slane %v5428, 1
        %v5611 = vrot.slane %v5430, 1
        %v5612 = vrot.slane %v5434, 1
        %v5613 = vrot.slane %v5436, 1
        %v5614 = vrot.slane %v5438, 1
        %v5615 = vrot.slane %v5440, 1
        %v5616 = vrot.slane %v5444, 1
        %v5617 = vrot.slane %v5446, 1
        %v5618 = vrot.slane %v5448, 1
        %v5619 = vrot.slane %v5450, 1
        %v5620 = vrot.slane %v5454, 1
        %v5621 = vrot.slane %v5456, 1
        %v5622 = vrot.slane %v5458, 1
        %v5623 = vrot.slane %v5460, 1
        %v5624 = vrot.slane %v5464, 1
        %v5625 = vrot.slane %v5466, 1
        %v5626 = vrot.slane %v5468, 1
        %v5627 = vrot.slane %v5470, 1
        %v5628 = vlaneseq
        %v5629 = vshrl.u32 %v5628, 7
        %vm5630 = vcmp.lt.s32.totalorder %v5629, 7
        %v5631 = vsel %vm5630, %v5624, %v5626
        %v5632 = vsel %vm5630, %v5625, %v5627
        %v5633 = vsel %vm5630, %v5622, %v5624
        %v5634 = vsel %vm5630, %v5623, %v5625
        %v5635 = vsel %vm5630, %v5620, %v5622
        %v5636 = vsel %vm5630, %v5621, %v5623
        %v5637 = vsel %vm5630, %v5618, %v5620
        %v5638 = vsel %vm5630, %v5619, %v5621
        %v5639 = vsel %vm5630, %v5616, %v5618
        %v5640 = vsel %vm5630, %v5617, %v5619
        %v5641 = vsel %vm5630, %v5614, %v5616
        %v5642 = vsel %vm5630, %v5615, %v5617
        %v5643 = vsel %vm5630, %v5612, %v5614
        %v5644 = vsel %vm5630, %v5613, %v5615
        %v5645 = vsel %vm5630, %v5610, %v5612
        %v5646 = vsel %vm5630, %v5611, %v5613
        %v5647 = vsel %vm5630, %v5608, %v5610
        %v5648 = vsel %vm5630, %v5609, %v5611
        %v5649 = vsel %vm5630, %v5606, %v5608
        %v5650 = vsel %vm5630, %v5607, %v5609
        %v5651 = vsel %vm5630, %v5604, %v5606
        %v5652 = vsel %vm5630, %v5605, %v5607
        %v5653 = vsel %vm5630, %v5602, %v5604
        %v5654 = vsel %vm5630, %v5603, %v5605
        %v5655 = vsel %vm5630, %v5600, %v5602
        %v5656 = vsel %vm5630, %v5601, %v5603
        %v5657 = vsel %vm5630, %v5598, %v5600
        %v5658 = vsel %vm5630, %v5599, %v5601
        %v5659 = vsel %vm5630, %v5596, %v5598
        %v5660 = vsel %vm5630, %v5597, %v5599
        %v5661 = vsel %vm5630, %v5594, %v5596
        %v5662 = vsel %vm5630, %v5595, %v5597
        %v5663 = vsel %vm5630, %v5592, %v5594
        %v5664 = vsel %vm5630, %v5593, %v5595
        %v5665 = vsel %vm5630, %v5590, %v5592
        %v5666 = vsel %vm5630, %v5591, %v5593
        %v5667 = vsel %vm5630, %v5588, %v5590
        %v5668 = vsel %vm5630, %v5589, %v5591
        %v5669 = vsel %vm5630, %v5586, %v5588
        %v5670 = vsel %vm5630, %v5587, %v5589
        %v5671 = vsel %vm5630, %v5584, %v5586
        %v5672 = vsel %vm5630, %v5585, %v5587
        %v5673 = vsel %vm5630, %v5582, %v5584
        %v5674 = vsel %vm5630, %v5583, %v5585
        %v5675 = vsel %vm5630, %v5580, %v5582
        %v5676 = vsel %vm5630, %v5581, %v5583
        %v5677 = vsel %vm5630, %v5578, %v5580
        %v5678 = vsel %vm5630, %v5579, %v5581
        %v5679 = vsel %vm5630, %v5576, %v5578
        %v5680 = vsel %vm5630, %v5577, %v5579
        %v5681 = vsel %vm5630, %v5574, %v5576
        %v5682 = vsel %vm5630, %v5575, %v5577
        %v5683 = vsel %vm5630, %v5572, %v5574
        %v5684 = vsel %vm5630, %v5573, %v5575
        %v5685 = vsel %vm5630, %v5570, %v5572
        %v5686 = vsel %vm5630, %v5571, %v5573
        %v5687 = vsel %vm5630, %v5568, %v5570
        %v5688 = vsel %vm5630, %v5569, %v5571
        %v5689 = vsel %vm5630, %v5566, %v5568
        %v5690 = vsel %vm5630, %v5567, %v5569
        %v5691 = vsel %vm5630, %v5564, %v5566
        %v5692 = vsel %vm5630, %v5565, %v5567
        %v5693 = vsel %vm5630, %v5562, %v5564
        %v5694 = vsel %vm5630, %v5563, %v5565
        %v5695 = vsel %vm5630, %v5560, %v5562
        %v5696 = vsel %vm5630, %v5561, %v5563
        %v5697 = vsel %vm5630, %v5558, %v5560
        %v5698 = vsel %vm5630, %v5559, %v5561
        %v5699 = vsel %vm5630, %v5556, %v5558
        %v5700 = vsel %vm5630, %v5557, %v5559
        %v5701 = vsel %vm5630, %v5554, %v5556
        %v5702 = vsel %vm5630, %v5555, %v5557
        %v5703 = vsel %vm5630, %v5552, %v5554
        %v5704 = vsel %vm5630, %v5553, %v5555
        %v5705 = vsel %vm5630, %v5550, %v5552
        %v5706 = vsel %vm5630, %v5551, %v5553
        %v5707 = vsel %vm5630, %v5548, %v5550
        %v5708 = vsel %vm5630, %v5549, %v5551
        %v5709 = vsel %vm5630, %v5546, %v5548
        %v5710 = vsel %vm5630, %v5547, %v5549
        %v5711 = vsel %vm5630, %v5544, %v5546
        %v5712 = vsel %vm5630, %v5545, %v5547
        %v5713 = vsel %vm5630, %v5542, %v5544
        %v5714 = vsel %vm5630, %v5543, %v5545
        %v5715 = vsel %vm5630, %v5540, %v5542
        %v5716 = vsel %vm5630, %v5541, %v5543
        %v5717 = vsel %vm5630, %v5538, %v5540
        %v5718 = vsel %vm5630, %v5539, %v5541
        %v5719 = vsel %vm5630, %v5536, %v5538
        %v5720 = vsel %vm5630, %v5537, %v5539
        %v5721 = vsel %vm5630, %v5534, %v5536
        %v5722 = vsel %vm5630, %v5535, %v5537
        %v5723 = vsel %vm5630, %v5532, %v5534
        %v5724 = vsel %vm5630, %v5533, %v5535
        %v5725 = vsel %vm5630, %v5530, %v5532
        %v5726 = vsel %vm5630, %v5531, %v5533
        %v5727 = vsel %vm5630, %v5528, %v5530
        %v5728 = vsel %vm5630, %v5529, %v5531
        %v5729 = vsel %vm5630, %v5526, %v5528
        %v5730 = vsel %vm5630, %v5527, %v5529
        %v5731 = vsel %vm5630, %v5524, %v5526
        %v5732 = vsel %vm5630, %v5525, %v5527
        %v5733 = vsel %vm5630, %v5522, %v5524
        %v5734 = vsel %vm5630, %v5523, %v5525
        %v5735 = vsel %vm5630, %v5520, %v5522
        %v5736 = vsel %vm5630, %v5521, %v5523
        %v5737 = vsel %vm5630, %v5518, %v5520
        %v5738 = vsel %vm5630, %v5519, %v5521
        %v5739 = vsel %vm5630, %v5516, %v5518
        %v5740 = vsel %vm5630, %v5517, %v5519
        %v5741 = vsel %vm5630, %v5514, %v5516
        %v5742 = vsel %vm5630, %v5515, %v5517
        %v5743 = vsel %vm5630, %v5512, %v5514
        %v5744 = vsel %vm5630, %v5513, %v5515
        %v5745 = vsel %vm5630, %v5510, %v5512
        %v5746 = vsel %vm5630, %v5511, %v5513
        %v5747 = vsel %vm5630, %v5508, %v5510
        %v5748 = vsel %vm5630, %v5509, %v5511
        %v5749 = vsel %vm5630, %v5506, %v5508
        %v5750 = vsel %vm5630, %v5507, %v5509
        %v5751 = vsel %vm5630, %v5504, %v5506
        %v5752 = vsel %vm5630, %v5505, %v5507
        %v5753 = vsel %vm5630, %v5502, %v5504
        %v5754 = vsel %vm5630, %v5503, %v5505
        %v5755 = vsel %vm5630, %v5500, %v5502
        %v5756 = vsel %vm5630, %v5501, %v5503
        %v5757 = vsel %vm5630, %v5498, %v5500
        %v5758 = vsel %vm5630, %v5499, %v5501
        %v5759 = vsel %vm5630, %v5496, %v5498
        %v5760 = vsel %vm5630, %v5497, %v5499
        %v5761 = vsel %vm5630, %v5494, %v5496
        %v5762 = vsel %vm5630, %v5495, %v5497
        %v5763 = vsel %vm5630, %v5492, %v5494
        %v5764 = vsel %vm5630, %v5493, %v5495
        %v5765 = vsel %vm5630, %v5490, %v5492
        %v5766 = vsel %vm5630, %v5491, %v5493
        %v5767 = vsel %vm5630, %v5488, %v5490
        %v5768 = vsel %vm5630, %v5489, %v5491
        %v5769 = vsel %vm5630, %v5486, %v5488
        %v5770 = vsel %vm5630, %v5487, %v5489
        %v5771 = vsel %vm5630, %v5484, %v5486
        %v5772 = vsel %vm5630, %v5485, %v5487
        %v5773 = vsel %vm5630, %v5482, %v5484
        %v5774 = vsel %vm5630, %v5483, %v5485
        %v5775 = vsel %vm5630, %v5480, %v5482
        %v5776 = vsel %vm5630, %v5481, %v5483
        %v5777 = vsel %vm5630, %v5478, %v5480
        %v5778 = vsel %vm5630, %v5479, %v5481
        %v5779 = vsel %vm5630, %v5476, %v5478
        %v5780 = vsel %vm5630, %v5477, %v5479
        %v5781 = vsel %vm5630, %v5474, %v5476
        %v5782 = vsel %vm5630, %v5475, %v5477
        %v5783 = vsel %vm5630, %v5472, %v5474
        %v5784 = vsel %vm5630, %v5473, %v5475
        %v5785 = vsel %vm5630, %v5626, %v5472
        %v5786 = vsel %vm5630, %v5627, %v5473
        %v5819 = vunpack.c.l.b16 %v4161
        %v5820 = vunpack.c.h.b16 %v4161
        %v5821 = vunpack.c.l.b16 %v4162
        %v5822 = vunpack.c.h.b16 %v4162
        %v5823 = vunpack.c.l.b16 %v4163
        %v5824 = vunpack.c.h.b16 %v4163
        %v5825 = vunpack.c.l.b16 %v4164
        %v5826 = vunpack.c.h.b16 %v4164
        %v5827 = vunpack.c.l.b16 %v4165
        %v5828 = vunpack.c.h.b16 %v4165
        %v5829 = vunpack.c.l.b16 %v4166
        %v5830 = vunpack.c.h.b16 %v4166
        %v5831 = vunpack.c.l.b16 %v4167
        %v5832 = vunpack.c.h.b16 %v4167
        %v5833 = vunpack.c.l.b16 %v4168
        %v5834 = vunpack.c.h.b16 %v4168
        %v5835 = vunpack.c.l.b16 %v4169
        %v5836 = vunpack.c.h.b16 %v4169
        %v5837 = vunpack.c.l.b16 %v4170
        %v5838 = vunpack.c.h.b16 %v4170
        %v5839 = vunpack.c.l.b16 %v4171
        %v5840 = vunpack.c.h.b16 %v4171
        %v5841 = vunpack.c.l.b16 %v4172
        %v5842 = vunpack.c.h.b16 %v4172
        %v5843 = vunpack.c.l.b16 %v4173
        %v5844 = vunpack.c.h.b16 %v4173
        %v5845 = vunpack.c.l.b16 %v4174
        %v5846 = vunpack.c.h.b16 %v4174
        %v5847 = vunpack.c.l.b16 %v4175
        %v5848 = vunpack.c.h.b16 %v4175
        %v5849 = vunpack.c.l.b16 %v4176
        %v5850 = vunpack.c.h.b16 %v4176
        %v5851 = vunpack.c.l.b16 %v4177
        %v5852 = vunpack.c.h.b16 %v4177
        %v5853 = vunpack.c.l.b16 %v4178
        %v5854 = vunpack.c.h.b16 %v4178
        %v5855 = vunpack.c.l.b16 %v4179
        %v5856 = vunpack.c.h.b16 %v4179
        %v5857 = vunpack.c.l.b16 %v4180
        %v5858 = vunpack.c.h.b16 %v4180
        %v5859 = vunpack.c.l.b16 %v4181
        %v5860 = vunpack.c.h.b16 %v4181
        %v5861 = vunpack.c.l.b16 %v4182
        %v5862 = vunpack.c.h.b16 %v4182
        %v5863 = vunpack.c.l.b16 %v4183
        %v5864 = vunpack.c.h.b16 %v4183
        %v5865 = vunpack.c.l.b16 %v4184
        %v5866 = vunpack.c.h.b16 %v4184
        %v5867 = vunpack.c.l.b16 %v4185
        %v5868 = vunpack.c.h.b16 %v4185
        %v5869 = vunpack.c.l.b16 %v4186
        %v5870 = vunpack.c.h.b16 %v4186
        %v5871 = vunpack.c.l.b16 %v4187
        %v5872 = vunpack.c.h.b16 %v4187
        %v5873 = vunpack.c.l.b16 %v4188
        %v5874 = vunpack.c.h.b16 %v4188
        %v5875 = vunpack.c.l.b16 %v4189
        %v5876 = vunpack.c.h.b16 %v4189
        %v5877 = vunpack.c.l.b16 %v4190
        %v5878 = vunpack.c.h.b16 %v4190
        %v5879 = vunpack.c.l.b16 %v4191
        %v5880 = vunpack.c.h.b16 %v4191
        %v5881 = vunpack.c.l.b16 %v4192
        %v5882 = vunpack.c.h.b16 %v4192
        %v5883 = vpack.c.b16 %v5821, %v5819
        %v5884 = vpack.c.b16 %v5822, %v5820
        %v5885 = vpack.c.b16 %v5825, %v5823
        %v5886 = vpack.c.b16 %v5826, %v5824
        %v5887 = vpack.c.b16 %v5829, %v5827
        %v5888 = vpack.c.b16 %v5830, %v5828
        %v5889 = vpack.c.b16 %v5833, %v5831
        %v5890 = vpack.c.b16 %v5834, %v5832
        %v5891 = vpack.c.b16 %v5837, %v5835
        %v5892 = vpack.c.b16 %v5838, %v5836
        %v5893 = vpack.c.b16 %v5841, %v5839
        %v5894 = vpack.c.b16 %v5842, %v5840
        %v5895 = vpack.c.b16 %v5845, %v5843
        %v5896 = vpack.c.b16 %v5846, %v5844
        %v5897 = vpack.c.b16 %v5849, %v5847
        %v5898 = vpack.c.b16 %v5850, %v5848
        %v5899 = vpack.c.b16 %v5853, %v5851
        %v5900 = vpack.c.b16 %v5854, %v5852
        %v5901 = vpack.c.b16 %v5857, %v5855
        %v5902 = vpack.c.b16 %v5858, %v5856
        %v5903 = vpack.c.b16 %v5861, %v5859
        %v5904 = vpack.c.b16 %v5862, %v5860
        %v5905 = vpack.c.b16 %v5865, %v5863
        %v5906 = vpack.c.b16 %v5866, %v5864
        %v5907 = vpack.c.b16 %v5869, %v5867
        %v5908 = vpack.c.b16 %v5870, %v5868
        %v5909 = vpack.c.b16 %v5873, %v5871
        %v5910 = vpack.c.b16 %v5874, %v5872
        %v5911 = vpack.c.b16 %v5877, %v5875
        %v5912 = vpack.c.b16 %v5878, %v5876
        %v5913 = vpack.c.b16 %v5881, %v5879
        %v5914 = vpack.c.b16 %v5882, %v5880
        %5947 = vmatprep.subr.bf16.mxu0 %v5898
        %5948 = vmatpush1.bf16.msra.mxu0 %v5897
        %5949 = vmatprep.subr.bf16.mxu0 %v5896
        %5950 = vmatpush1.bf16.msra.mxu0 %v5895
        %5951 = vmatprep.subr.bf16.mxu0 %v5894
        %5952 = vmatpush1.bf16.msra.mxu0 %v5893
        %5953 = vmatprep.subr.bf16.mxu0 %v5892
        %5954 = vmatpush1.bf16.msra.mxu0 %v5891
        %5955 = vmatprep.subr.bf16.mxu0 %v5890
        %5956 = vmatpush1.bf16.msra.mxu0 %v5889
        %5957 = vmatprep.subr.bf16.mxu0 %v5888
        %5958 = vmatpush1.bf16.msra.mxu0 %v5887
        %5959 = vmatprep.subr.bf16.mxu0 %v5886
        %5960 = vmatpush1.bf16.msra.mxu0 %v5885
        %5961 = vmatprep.subr.bf16.mxu0 %v5884
        %5962 = vmatpush1.bf16.msra.mxu0 %v5883
        %5963 = vmatprep.subr.bf16.mxu0 %v5914
        %5964 = vmatpush2.bf16.msra.mxu0 %v5913
        %5965 = vmatprep.subr.bf16.mxu0 %v5912
        %5966 = vmatpush2.bf16.msra.mxu0 %v5911
        %5967 = vmatprep.subr.bf16.mxu0 %v5910
        %5968 = vmatpush2.bf16.msra.mxu0 %v5909
        %5969 = vmatprep.subr.bf16.mxu0 %v5908
        %5970 = vmatpush2.bf16.msra.mxu0 %v5907
        %5971 = vmatprep.subr.bf16.mxu0 %v5906
        %5972 = vmatpush2.bf16.msra.mxu0 %v5905
        %5973 = vmatprep.subr.bf16.mxu0 %v5904
        %5974 = vmatpush2.bf16.msra.mxu0 %v5903
        %5975 = vmatprep.subr.bf16.mxu0 %v5902
        %5976 = vmatpush2.bf16.msra.mxu0 %v5901
        %5977 = vmatprep.subr.bf16.mxu0 %v5900
        %5978 = vmatpush2.bf16.msra.mxu0 %v5899
        %5979 = vmatprep.mubr.bf16.mxu0 %v4812
        %5980 = vmatmul.mubr.bf16.gmra.mxu0 %v4811
        %v5981 = vpop.f32.mrf.mxu0
        %v5982 = vadd.f32 %v5783, %v5981
        %v5983 = vpop.f32.mrf.mxu0
        %v5984 = vadd.f32 %v5784, %v5983
        %v5985 = vpop.f32.mrf.mxu0
        %v5986 = vadd.f32 %v5781, %v5985
        %v5987 = vpop.f32.mrf.mxu0
        %v5988 = vadd.f32 %v5782, %v5987
        %5989 = vmatprep.mubr.bf16.mxu0 %v4814
        %5990 = vmatmul.mubr.bf16.gmra.mxu0 %v4813
        %v5991 = vpop.f32.mrf.mxu0
        %v5992 = vadd.f32 %v5779, %v5991
        %v5993 = vpop.f32.mrf.mxu0
        %v5994 = vadd.f32 %v5780, %v5993
        %v5995 = vpop.f32.mrf.mxu0
        %v5996 = vadd.f32 %v5777, %v5995
        %v5997 = vpop.f32.mrf.mxu0
        %v5998 = vadd.f32 %v5778, %v5997
        %5999 = vmatprep.mubr.bf16.mxu0 %v4816
        %6000 = vmatmul.mubr.bf16.gmra.mxu0 %v4815
        %v6001 = vpop.f32.mrf.mxu0
        %v6002 = vadd.f32 %v5775, %v6001
        %v6003 = vpop.f32.mrf.mxu0
        %v6004 = vadd.f32 %v5776, %v6003
        %v6005 = vpop.f32.mrf.mxu0
        %v6006 = vadd.f32 %v5773, %v6005
        %v6007 = vpop.f32.mrf.mxu0
        %v6008 = vadd.f32 %v5774, %v6007
        %6009 = vmatprep.mubr.bf16.mxu0 %v4818
        %6010 = vmatmul.mubr.bf16.gmra.mxu0 %v4817
        %v6011 = vpop.f32.mrf.mxu0
        %v6012 = vadd.f32 %v5771, %v6011
        %v6013 = vpop.f32.mrf.mxu0
        %v6014 = vadd.f32 %v5772, %v6013
        %v6015 = vpop.f32.mrf.mxu0
        %v6016 = vadd.f32 %v5769, %v6015
        %v6017 = vpop.f32.mrf.mxu0
        %v6018 = vadd.f32 %v5770, %v6017
        %6019 = vmatprep.mubr.bf16.mxu0 %v4820
        %6020 = vmatmul.mubr.bf16.gmra.mxu0 %v4819
        %v6021 = vpop.f32.mrf.mxu0
        %v6022 = vadd.f32 %v5767, %v6021
        %v6023 = vpop.f32.mrf.mxu0
        %v6024 = vadd.f32 %v5768, %v6023
        %v6025 = vpop.f32.mrf.mxu0
        %v6026 = vadd.f32 %v5765, %v6025
        %v6027 = vpop.f32.mrf.mxu0
        %v6028 = vadd.f32 %v5766, %v6027
        %6029 = vmatprep.mubr.bf16.mxu0 %v4822
        %6030 = vmatmul.mubr.bf16.gmra.mxu0 %v4821
        %v6031 = vpop.f32.mrf.mxu0
        %v6032 = vadd.f32 %v5763, %v6031
        %v6033 = vpop.f32.mrf.mxu0
        %v6034 = vadd.f32 %v5764, %v6033
        %v6035 = vpop.f32.mrf.mxu0
        %v6036 = vadd.f32 %v5761, %v6035
        %v6037 = vpop.f32.mrf.mxu0
        %v6038 = vadd.f32 %v5762, %v6037
        %6039 = vmatprep.mubr.bf16.mxu0 %v4824
        %6040 = vmatmul.mubr.bf16.gmra.mxu0 %v4823
        %v6041 = vpop.f32.mrf.mxu0
        %v6042 = vadd.f32 %v5759, %v6041
        %v6043 = vpop.f32.mrf.mxu0
        %v6044 = vadd.f32 %v5760, %v6043
        %v6045 = vpop.f32.mrf.mxu0
        %v6046 = vadd.f32 %v5757, %v6045
        %v6047 = vpop.f32.mrf.mxu0
        %v6048 = vadd.f32 %v5758, %v6047
        %6049 = vmatprep.mubr.bf16.mxu0 %v4826
        %6050 = vmatmul.mubr.bf16.gmra.mxu0 %v4825
        %v6051 = vpop.f32.mrf.mxu0
        %v6052 = vadd.f32 %v5755, %v6051
        %v6053 = vpop.f32.mrf.mxu0
        %v6054 = vadd.f32 %v5756, %v6053
        %v6055 = vpop.f32.mrf.mxu0
        %v6056 = vadd.f32 %v5753, %v6055
        %v6057 = vpop.f32.mrf.mxu0
        %v6058 = vadd.f32 %v5754, %v6057
        %6059 = vmatprep.mubr.bf16.mxu0 %v4828
        %6060 = vmatmul.mubr.bf16.gmra.mxu0 %v4827
        %v6061 = vpop.f32.mrf.mxu0
        %v6062 = vadd.f32 %v5751, %v6061
        %v6063 = vpop.f32.mrf.mxu0
        %v6064 = vadd.f32 %v5752, %v6063
        %v6065 = vpop.f32.mrf.mxu0
        %v6066 = vadd.f32 %v5749, %v6065
        %v6067 = vpop.f32.mrf.mxu0
        %v6068 = vadd.f32 %v5750, %v6067
        %6069 = vmatprep.mubr.bf16.mxu0 %v4830
        %6070 = vmatmul.mubr.bf16.gmra.mxu0 %v4829
        %v6071 = vpop.f32.mrf.mxu0
        %v6072 = vadd.f32 %v5747, %v6071
        %v6073 = vpop.f32.mrf.mxu0
        %v6074 = vadd.f32 %v5748, %v6073
        %v6075 = vpop.f32.mrf.mxu0
        %v6076 = vadd.f32 %v5745, %v6075
        %v6077 = vpop.f32.mrf.mxu0
        %v6078 = vadd.f32 %v5746, %v6077
        %6079 = vmatprep.mubr.bf16.mxu0 %v4832
        %6080 = vmatmul.mubr.bf16.gmra.mxu0 %v4831
        %v6081 = vpop.f32.mrf.mxu0
        %v6082 = vadd.f32 %v5743, %v6081
        %v6083 = vpop.f32.mrf.mxu0
        %v6084 = vadd.f32 %v5744, %v6083
        %v6085 = vpop.f32.mrf.mxu0
        %v6086 = vadd.f32 %v5741, %v6085
        %v6087 = vpop.f32.mrf.mxu0
        %v6088 = vadd.f32 %v5742, %v6087
        %6089 = vmatprep.mubr.bf16.mxu0 %v4834
        %6090 = vmatmul.mubr.bf16.gmra.mxu0 %v4833
        %v6091 = vpop.f32.mrf.mxu0
        %v6092 = vadd.f32 %v5739, %v6091
        %v6093 = vpop.f32.mrf.mxu0
        %v6094 = vadd.f32 %v5740, %v6093
        %v6095 = vpop.f32.mrf.mxu0
        %v6096 = vadd.f32 %v5737, %v6095
        %v6097 = vpop.f32.mrf.mxu0
        %v6098 = vadd.f32 %v5738, %v6097
        %6099 = vmatprep.mubr.bf16.mxu0 %v4836
        %6100 = vmatmul.mubr.bf16.gmra.mxu0 %v4835
        %v6101 = vpop.f32.mrf.mxu0
        %v6102 = vadd.f32 %v5735, %v6101
        %v6103 = vpop.f32.mrf.mxu0
        %v6104 = vadd.f32 %v5736, %v6103
        %v6105 = vpop.f32.mrf.mxu0
        %v6106 = vadd.f32 %v5733, %v6105
        %v6107 = vpop.f32.mrf.mxu0
        %v6108 = vadd.f32 %v5734, %v6107
        %6109 = vmatprep.mubr.bf16.mxu0 %v4838
        %6110 = vmatmul.mubr.bf16.gmra.mxu0 %v4837
        %v6111 = vpop.f32.mrf.mxu0
        %v6112 = vadd.f32 %v5731, %v6111
        %v6113 = vpop.f32.mrf.mxu0
        %v6114 = vadd.f32 %v5732, %v6113
        %v6115 = vpop.f32.mrf.mxu0
        %v6116 = vadd.f32 %v5729, %v6115
        %v6117 = vpop.f32.mrf.mxu0
        %v6118 = vadd.f32 %v5730, %v6117
        %6119 = vmatprep.mubr.bf16.mxu0 %v4840
        %6120 = vmatmul.mubr.bf16.gmra.mxu0 %v4839
        %v6121 = vpop.f32.mrf.mxu0
        %v6122 = vadd.f32 %v5727, %v6121
        %v6123 = vpop.f32.mrf.mxu0
        %v6124 = vadd.f32 %v5728, %v6123
        %v6125 = vpop.f32.mrf.mxu0
        %v6126 = vadd.f32 %v5725, %v6125
        %v6127 = vpop.f32.mrf.mxu0
        %v6128 = vadd.f32 %v5726, %v6127
        %6129 = vmatprep.mubr.bf16.mxu0 %v4842
        %6130 = vmatmul.mubr.bf16.gmra.mxu0 %v4841
        %v6131 = vpop.f32.mrf.mxu0
        %v6132 = vadd.f32 %v5723, %v6131
        %v6133 = vpop.f32.mrf.mxu0
        %v6134 = vadd.f32 %v5724, %v6133
        %v6135 = vpop.f32.mrf.mxu0
        %v6136 = vadd.f32 %v5721, %v6135
        %v6137 = vpop.f32.mrf.mxu0
        %v6138 = vadd.f32 %v5722, %v6137
        %6139 = vmatprep.mubr.bf16.mxu0 %v4844
        %6140 = vmatmul.mubr.bf16.gmra.mxu0 %v4843
        %v6141 = vpop.f32.mrf.mxu0
        %v6142 = vadd.f32 %v5719, %v6141
        %v6143 = vpop.f32.mrf.mxu0
        %v6144 = vadd.f32 %v5720, %v6143
        %v6145 = vpop.f32.mrf.mxu0
        %v6146 = vadd.f32 %v5717, %v6145
        %v6147 = vpop.f32.mrf.mxu0
        %v6148 = vadd.f32 %v5718, %v6147
        %6149 = vmatprep.mubr.bf16.mxu0 %v4846
        %6150 = vmatmul.mubr.bf16.gmra.mxu0 %v4845
        %v6151 = vpop.f32.mrf.mxu0
        %v6152 = vadd.f32 %v5715, %v6151
        %v6153 = vpop.f32.mrf.mxu0
        %v6154 = vadd.f32 %v5716, %v6153
        %v6155 = vpop.f32.mrf.mxu0
        %v6156 = vadd.f32 %v5713, %v6155
        %v6157 = vpop.f32.mrf.mxu0
        %v6158 = vadd.f32 %v5714, %v6157
        %6159 = vmatprep.mubr.bf16.mxu0 %v4848
        %6160 = vmatmul.mubr.bf16.gmra.mxu0 %v4847
        %v6161 = vpop.f32.mrf.mxu0
        %v6162 = vadd.f32 %v5711, %v6161
        %v6163 = vpop.f32.mrf.mxu0
        %v6164 = vadd.f32 %v5712, %v6163
        %v6165 = vpop.f32.mrf.mxu0
        %v6166 = vadd.f32 %v5709, %v6165
        %v6167 = vpop.f32.mrf.mxu0
        %v6168 = vadd.f32 %v5710, %v6167
        %6169 = vmatprep.mubr.bf16.mxu0 %v4850
        %6170 = vmatmul.mubr.bf16.gmra.mxu0 %v4849
        %v6171 = vpop.f32.mrf.mxu0
        %v6172 = vadd.f32 %v5707, %v6171
        %v6173 = vpop.f32.mrf.mxu0
        %v6174 = vadd.f32 %v5708, %v6173
        %v6175 = vpop.f32.mrf.mxu0
        %v6176 = vadd.f32 %v5705, %v6175
        %v6177 = vpop.f32.mrf.mxu0
        %v6178 = vadd.f32 %v5706, %v6177
        %6179 = vmatprep.mubr.bf16.mxu0 %v4852
        %6180 = vmatmul.mubr.bf16.gmra.mxu0 %v4851
        %v6181 = vpop.f32.mrf.mxu0
        %v6182 = vadd.f32 %v5703, %v6181
        %v6183 = vpop.f32.mrf.mxu0
        %v6184 = vadd.f32 %v5704, %v6183
        %v6185 = vpop.f32.mrf.mxu0
        %v6186 = vadd.f32 %v5701, %v6185
        %v6187 = vpop.f32.mrf.mxu0
        %v6188 = vadd.f32 %v5702, %v6187
        %6189 = vmatprep.mubr.bf16.mxu0 %v4854
        %6190 = vmatmul.mubr.bf16.gmra.mxu0 %v4853
        %v6191 = vpop.f32.mrf.mxu0
        %v6192 = vadd.f32 %v5699, %v6191
        %v6193 = vpop.f32.mrf.mxu0
        %v6194 = vadd.f32 %v5700, %v6193
        %v6195 = vpop.f32.mrf.mxu0
        %v6196 = vadd.f32 %v5697, %v6195
        %v6197 = vpop.f32.mrf.mxu0
        %v6198 = vadd.f32 %v5698, %v6197
        %6199 = vmatprep.mubr.bf16.mxu0 %v4856
        %6200 = vmatmul.mubr.bf16.gmra.mxu0 %v4855
        %v6201 = vpop.f32.mrf.mxu0
        %v6202 = vadd.f32 %v5695, %v6201
        %v6203 = vpop.f32.mrf.mxu0
        %v6204 = vadd.f32 %v5696, %v6203
        %v6205 = vpop.f32.mrf.mxu0
        %v6206 = vadd.f32 %v5693, %v6205
        %v6207 = vpop.f32.mrf.mxu0
        %v6208 = vadd.f32 %v5694, %v6207
        %6209 = vmatprep.mubr.bf16.mxu0 %v4858
        %6210 = vmatmul.mubr.bf16.gmra.mxu0 %v4857
        %v6211 = vpop.f32.mrf.mxu0
        %v6212 = vadd.f32 %v5691, %v6211
        %v6213 = vpop.f32.mrf.mxu0
        %v6214 = vadd.f32 %v5692, %v6213
        %v6215 = vpop.f32.mrf.mxu0
        %v6216 = vadd.f32 %v5689, %v6215
        %v6217 = vpop.f32.mrf.mxu0
        %v6218 = vadd.f32 %v5690, %v6217
        %6219 = vmatprep.mubr.bf16.mxu0 %v4860
        %6220 = vmatmul.mubr.bf16.gmra.mxu0 %v4859
        %v6221 = vpop.f32.mrf.mxu0
        %v6222 = vadd.f32 %v5687, %v6221
        %v6223 = vpop.f32.mrf.mxu0
        %v6224 = vadd.f32 %v5688, %v6223
        %v6225 = vpop.f32.mrf.mxu0
        %v6226 = vadd.f32 %v5685, %v6225
        %v6227 = vpop.f32.mrf.mxu0
        %v6228 = vadd.f32 %v5686, %v6227
        %6229 = vmatprep.mubr.bf16.mxu0 %v4862
        %6230 = vmatmul.mubr.bf16.gmra.mxu0 %v4861
        %v6231 = vpop.f32.mrf.mxu0
        %v6232 = vadd.f32 %v5683, %v6231
        %v6233 = vpop.f32.mrf.mxu0
        %v6234 = vadd.f32 %v5684, %v6233
        %v6235 = vpop.f32.mrf.mxu0
        %v6236 = vadd.f32 %v5681, %v6235
        %v6237 = vpop.f32.mrf.mxu0
        %v6238 = vadd.f32 %v5682, %v6237
        %6239 = vmatprep.mubr.bf16.mxu0 %v4864
        %6240 = vmatmul.mubr.bf16.gmra.mxu0 %v4863
        %v6241 = vpop.f32.mrf.mxu0
        %v6242 = vadd.f32 %v5679, %v6241
        %v6243 = vpop.f32.mrf.mxu0
        %v6244 = vadd.f32 %v5680, %v6243
        %v6245 = vpop.f32.mrf.mxu0
        %v6246 = vadd.f32 %v5677, %v6245
        %v6247 = vpop.f32.mrf.mxu0
        %v6248 = vadd.f32 %v5678, %v6247
        %6249 = vmatprep.mubr.bf16.mxu0 %v4866
        %6250 = vmatmul.mubr.bf16.gmra.mxu0 %v4865
        %v6251 = vpop.f32.mrf.mxu0
        %v6252 = vadd.f32 %v5675, %v6251
        %v6253 = vpop.f32.mrf.mxu0
        %v6254 = vadd.f32 %v5676, %v6253
        %v6255 = vpop.f32.mrf.mxu0
        %v6256 = vadd.f32 %v5673, %v6255
        %v6257 = vpop.f32.mrf.mxu0
        %v6258 = vadd.f32 %v5674, %v6257
        %6259 = vmatprep.mubr.bf16.mxu0 %v4868
        %6260 = vmatmul.mubr.bf16.gmra.mxu0 %v4867
        %v6261 = vpop.f32.mrf.mxu0
        %v6262 = vadd.f32 %v5671, %v6261
        %v6263 = vpop.f32.mrf.mxu0
        %v6264 = vadd.f32 %v5672, %v6263
        %v6265 = vpop.f32.mrf.mxu0
        %v6266 = vadd.f32 %v5669, %v6265
        %v6267 = vpop.f32.mrf.mxu0
        %v6268 = vadd.f32 %v5670, %v6267
        %6269 = vmatprep.mubr.bf16.mxu0 %v4870
        %6270 = vmatmul.mubr.bf16.gmra.mxu0 %v4869
        %v6271 = vpop.f32.mrf.mxu0
        %v6272 = vadd.f32 %v5667, %v6271
        %v6273 = vpop.f32.mrf.mxu0
        %v6274 = vadd.f32 %v5668, %v6273
        %v6275 = vpop.f32.mrf.mxu0
        %v6276 = vadd.f32 %v5665, %v6275
        %v6277 = vpop.f32.mrf.mxu0
        %v6278 = vadd.f32 %v5666, %v6277
        %6279 = vmatprep.mubr.bf16.mxu0 %v4872
        %6280 = vmatmul.mubr.bf16.gmra.mxu0 %v4871
        %v6281 = vpop.f32.mrf.mxu0
        %v6282 = vadd.f32 %v5663, %v6281
        %v6283 = vpop.f32.mrf.mxu0
        %v6284 = vadd.f32 %v5664, %v6283
        %v6285 = vpop.f32.mrf.mxu0
        %v6286 = vadd.f32 %v5661, %v6285
        %v6287 = vpop.f32.mrf.mxu0
        %v6288 = vadd.f32 %v5662, %v6287
        %6289 = vmatprep.mubr.bf16.mxu0 %v4874
        %6290 = vmatmul.mubr.bf16.gmra.mxu0 %v4873
        %v6291 = vpop.f32.mrf.mxu0
        %v6292 = vadd.f32 %v5659, %v6291
        %v6293 = vpop.f32.mrf.mxu0
        %v6294 = vadd.f32 %v5660, %v6293
        %v6295 = vpop.f32.mrf.mxu0
        %v6296 = vadd.f32 %v5657, %v6295
        %v6297 = vpop.f32.mrf.mxu0
        %v6298 = vadd.f32 %v5658, %v6297
        %6299 = vmatprep.mubr.bf16.mxu0 %v4876
        %6300 = vmatmul.mubr.bf16.gmra.mxu0 %v4875
        %v6301 = vpop.f32.mrf.mxu0
        %v6302 = vadd.f32 %v5655, %v6301
        %v6303 = vpop.f32.mrf.mxu0
        %v6304 = vadd.f32 %v5656, %v6303
        %v6305 = vpop.f32.mrf.mxu0
        %v6306 = vadd.f32 %v5653, %v6305
        %v6307 = vpop.f32.mrf.mxu0
        %v6308 = vadd.f32 %v5654, %v6307
        %6309 = vmatprep.mubr.bf16.mxu0 %v4878
        %6310 = vmatmul.mubr.bf16.gmra.mxu0 %v4877
        %v6311 = vpop.f32.mrf.mxu0
        %v6312 = vadd.f32 %v5651, %v6311
        %v6313 = vpop.f32.mrf.mxu0
        %v6314 = vadd.f32 %v5652, %v6313
        %v6315 = vpop.f32.mrf.mxu0
        %v6316 = vadd.f32 %v5649, %v6315
        %v6317 = vpop.f32.mrf.mxu0
        %v6318 = vadd.f32 %v5650, %v6317
        %6319 = vmatprep.mubr.bf16.mxu0 %v4880
        %6320 = vmatmul.mubr.bf16.gmra.mxu0 %v4879
        %v6321 = vpop.f32.mrf.mxu0
        %v6322 = vadd.f32 %v5647, %v6321
        %v6323 = vpop.f32.mrf.mxu0
        %v6324 = vadd.f32 %v5648, %v6323
        %v6325 = vpop.f32.mrf.mxu0
        %v6326 = vadd.f32 %v5645, %v6325
        %v6327 = vpop.f32.mrf.mxu0
        %v6328 = vadd.f32 %v5646, %v6327
        %6329 = vmatprep.mubr.bf16.mxu0 %v4882
        %6330 = vmatmul.mubr.bf16.gmra.mxu0 %v4881
        %v6331 = vpop.f32.mrf.mxu0
        %v6332 = vadd.f32 %v5643, %v6331
        %v6333 = vpop.f32.mrf.mxu0
        %v6334 = vadd.f32 %v5644, %v6333
        %v6335 = vpop.f32.mrf.mxu0
        %v6336 = vadd.f32 %v5641, %v6335
        %v6337 = vpop.f32.mrf.mxu0
        %v6338 = vadd.f32 %v5642, %v6337
        %6339 = vmatprep.mubr.bf16.mxu0 %v4884
        %6340 = vmatmul.mubr.bf16.gmra.mxu0 %v4883
        %v6341 = vpop.f32.mrf.mxu0
        %v6342 = vadd.f32 %v5639, %v6341
        %v6343 = vpop.f32.mrf.mxu0
        %v6344 = vadd.f32 %v5640, %v6343
        %v6345 = vpop.f32.mrf.mxu0
        %v6346 = vadd.f32 %v5637, %v6345
        %v6347 = vpop.f32.mrf.mxu0
        %v6348 = vadd.f32 %v5638, %v6347
        %6349 = vmatprep.mubr.bf16.mxu0 %v4886
        %6350 = vmatmul.mubr.bf16.gmra.mxu0 %v4885
        %v6351 = vpop.f32.mrf.mxu0
        %v6352 = vadd.f32 %v5635, %v6351
        %v6353 = vpop.f32.mrf.mxu0
        %v6354 = vadd.f32 %v5636, %v6353
        %v6355 = vpop.f32.mrf.mxu0
        %v6356 = vadd.f32 %v5633, %v6355
        %v6357 = vpop.f32.mrf.mxu0
        %v6358 = vadd.f32 %v5634, %v6357
        %6359 = vmatprep.mubr.bf16.mxu0 %v4888
        %6360 = vmatmul.mubr.bf16.gmra.mxu0 %v4887
        %v6361 = vpop.f32.mrf.mxu0
        %v6362 = vadd.f32 %v5631, %v6361
        %v6363 = vpop.f32.mrf.mxu0
        %v6364 = vadd.f32 %v5632, %v6363
        %v6365 = vpop.f32.mrf.mxu0
        %v6366 = vadd.f32 %v5785, %v6365
        %v6367 = vpop.f32.mrf.mxu0
        %v6368 = vadd.f32 %v5786, %v6367
        %6369 = vdwg.mxu0
        %v6402 = vunpack.c.l.b16 %v4225
        %v6403 = vunpack.c.h.b16 %v4225
        %v6404 = vunpack.c.l.b16 %v4226
        %v6405 = vunpack.c.h.b16 %v4226
        %v6406 = vunpack.c.l.b16 %v4227
        %v6407 = vunpack.c.h.b16 %v4227
        %v6408 = vunpack.c.l.b16 %v4228
        %v6409 = vunpack.c.h.b16 %v4228
        %v6410 = vunpack.c.l.b16 %v4229
        %v6411 = vunpack.c.h.b16 %v4229
        %v6412 = vunpack.c.l.b16 %v4230
        %v6413 = vunpack.c.h.b16 %v4230
        %v6414 = vunpack.c.l.b16 %v4231
        %v6415 = vunpack.c.h.b16 %v4231
        %v6416 = vunpack.c.l.b16 %v4232
        %v6417 = vunpack.c.h.b16 %v4232
        %v6418 = vunpack.c.l.b16 %v4233
        %v6419 = vunpack.c.h.b16 %v4233
        %v6420 = vunpack.c.l.b16 %v4234
        %v6421 = vunpack.c.h.b16 %v4234
        %v6422 = vunpack.c.l.b16 %v4235
        %v6423 = vunpack.c.h.b16 %v4235
        %v6424 = vunpack.c.l.b16 %v4236
        %v6425 = vunpack.c.h.b16 %v4236
        %v6426 = vunpack.c.l.b16 %v4237
        %v6427 = vunpack.c.h.b16 %v4237
        %v6428 = vunpack.c.l.b16 %v4238
        %v6429 = vunpack.c.h.b16 %v4238
        %v6430 = vunpack.c.l.b16 %v4239
        %v6431 = vunpack.c.h.b16 %v4239
        %v6432 = vunpack.c.l.b16 %v4240
        %v6433 = vunpack.c.h.b16 %v4240
        %v6434 = vunpack.c.l.b16 %v4241
        %v6435 = vunpack.c.h.b16 %v4241
        %v6436 = vunpack.c.l.b16 %v4242
        %v6437 = vunpack.c.h.b16 %v4242
        %v6438 = vunpack.c.l.b16 %v4243
        %v6439 = vunpack.c.h.b16 %v4243
        %v6440 = vunpack.c.l.b16 %v4244
        %v6441 = vunpack.c.h.b16 %v4244
        %v6442 = vunpack.c.l.b16 %v4245
        %v6443 = vunpack.c.h.b16 %v4245
        %v6444 = vunpack.c.l.b16 %v4246
        %v6445 = vunpack.c.h.b16 %v4246
        %v6446 = vunpack.c.l.b16 %v4247
        %v6447 = vunpack.c.h.b16 %v4247
        %v6448 = vunpack.c.l.b16 %v4248
        %v6449 = vunpack.c.h.b16 %v4248
        %v6450 = vunpack.c.l.b16 %v4249
        %v6451 = vunpack.c.h.b16 %v4249
        %v6452 = vunpack.c.l.b16 %v4250
        %v6453 = vunpack.c.h.b16 %v4250
        %v6454 = vunpack.c.l.b16 %v4251
        %v6455 = vunpack.c.h.b16 %v4251
        %v6456 = vunpack.c.l.b16 %v4252
        %v6457 = vunpack.c.h.b16 %v4252
        %v6458 = vunpack.c.l.b16 %v4253
        %v6459 = vunpack.c.h.b16 %v4253
        %v6460 = vunpack.c.l.b16 %v4254
        %v6461 = vunpack.c.h.b16 %v4254
        %v6462 = vunpack.c.l.b16 %v4255
        %v6463 = vunpack.c.h.b16 %v4255
        %v6464 = vunpack.c.l.b16 %v4256
        %v6465 = vunpack.c.h.b16 %v4256
        %v6466 = vpack.c.b16 %v6404, %v6402
        %v6467 = vpack.c.b16 %v6405, %v6403
        %v6468 = vpack.c.b16 %v6408, %v6406
        %v6469 = vpack.c.b16 %v6409, %v6407
        %v6470 = vpack.c.b16 %v6412, %v6410
        %v6471 = vpack.c.b16 %v6413, %v6411
        %v6472 = vpack.c.b16 %v6416, %v6414
        %v6473 = vpack.c.b16 %v6417, %v6415
        %v6474 = vpack.c.b16 %v6420, %v6418
        %v6475 = vpack.c.b16 %v6421, %v6419
        %v6476 = vpack.c.b16 %v6424, %v6422
        %v6477 = vpack.c.b16 %v6425, %v6423
        %v6478 = vpack.c.b16 %v6428, %v6426
        %v6479 = vpack.c.b16 %v6429, %v6427
        %v6480 = vpack.c.b16 %v6432, %v6430
        %v6481 = vpack.c.b16 %v6433, %v6431
        %v6482 = vpack.c.b16 %v6436, %v6434
        %v6483 = vpack.c.b16 %v6437, %v6435
        %v6484 = vpack.c.b16 %v6440, %v6438
        %v6485 = vpack.c.b16 %v6441, %v6439
        %v6486 = vpack.c.b16 %v6444, %v6442
        %v6487 = vpack.c.b16 %v6445, %v6443
        %v6488 = vpack.c.b16 %v6448, %v6446
        %v6489 = vpack.c.b16 %v6449, %v6447
        %v6490 = vpack.c.b16 %v6452, %v6450
        %v6491 = vpack.c.b16 %v6453, %v6451
        %v6492 = vpack.c.b16 %v6456, %v6454
        %v6493 = vpack.c.b16 %v6457, %v6455
        %v6494 = vpack.c.b16 %v6460, %v6458
        %v6495 = vpack.c.b16 %v6461, %v6459
        %v6496 = vpack.c.b16 %v6464, %v6462
        %v6497 = vpack.c.b16 %v6465, %v6463
        %6530 = vmatprep.subr.bf16.mxu0 %v6481
        %6531 = vmatpush1.bf16.msra.mxu0 %v6480
        %6532 = vmatprep.subr.bf16.mxu0 %v6479
        %6533 = vmatpush1.bf16.msra.mxu0 %v6478
        %6534 = vmatprep.subr.bf16.mxu0 %v6477
        %6535 = vmatpush1.bf16.msra.mxu0 %v6476
        %6536 = vmatprep.subr.bf16.mxu0 %v6475
        %6537 = vmatpush1.bf16.msra.mxu0 %v6474
        %6538 = vmatprep.subr.bf16.mxu0 %v6473
        %6539 = vmatpush1.bf16.msra.mxu0 %v6472
        %6540 = vmatprep.subr.bf16.mxu0 %v6471
        %6541 = vmatpush1.bf16.msra.mxu0 %v6470
        %6542 = vmatprep.subr.bf16.mxu0 %v6469
        %6543 = vmatpush1.bf16.msra.mxu0 %v6468
        %6544 = vmatprep.subr.bf16.mxu0 %v6467
        %6545 = vmatpush1.bf16.msra.mxu0 %v6466
        %6546 = vmatprep.subr.bf16.mxu0 %v6497
        %6547 = vmatpush2.bf16.msra.mxu0 %v6496
        %6548 = vmatprep.subr.bf16.mxu0 %v6495
        %6549 = vmatpush2.bf16.msra.mxu0 %v6494
        %6550 = vmatprep.subr.bf16.mxu0 %v6493
        %6551 = vmatpush2.bf16.msra.mxu0 %v6492
        %6552 = vmatprep.subr.bf16.mxu0 %v6491
        %6553 = vmatpush2.bf16.msra.mxu0 %v6490
        %6554 = vmatprep.subr.bf16.mxu0 %v6489
        %6555 = vmatpush2.bf16.msra.mxu0 %v6488
        %6556 = vmatprep.subr.bf16.mxu0 %v6487
        %6557 = vmatpush2.bf16.msra.mxu0 %v6486
        %6558 = vmatprep.subr.bf16.mxu0 %v6485
        %6559 = vmatpush2.bf16.msra.mxu0 %v6484
        %6560 = vmatprep.subr.bf16.mxu0 %v6483
        %6561 = vmatpush2.bf16.msra.mxu0 %v6482
        %6562 = vmatprep.mubr.bf16.mxu0 %v4812
        %6563 = vmatmul.mubr.bf16.gmra.mxu0 %v4811
        %v6564 = vpop.f32.mrf.mxu0
        %v6565 = vadd.f32 0.0, %v6564
        %v6566 = vpop.f32.mrf.mxu0
        %v6567 = vadd.f32 0.0, %v6566
        %v6568 = vpop.f32.mrf.mxu0
        %v6569 = vadd.f32 0.0, %v6568
        %v6570 = vpop.f32.mrf.mxu0
        %v6571 = vadd.f32 0.0, %v6570
        %6572 = vmatprep.mubr.bf16.mxu0 %v4814
        %6573 = vmatmul.mubr.bf16.gmra.mxu0 %v4813
        %v6574 = vpop.f32.mrf.mxu0
        %v6575 = vadd.f32 0.0, %v6574
        %v6576 = vpop.f32.mrf.mxu0
        %v6577 = vadd.f32 0.0, %v6576
        %v6578 = vpop.f32.mrf.mxu0
        %v6579 = vadd.f32 0.0, %v6578
        %v6580 = vpop.f32.mrf.mxu0
        %v6581 = vadd.f32 0.0, %v6580
        %6582 = vmatprep.mubr.bf16.mxu0 %v4816
        %6583 = vmatmul.mubr.bf16.gmra.mxu0 %v4815
        %v6584 = vpop.f32.mrf.mxu0
        %v6585 = vadd.f32 0.0, %v6584
        %v6586 = vpop.f32.mrf.mxu0
        %v6587 = vadd.f32 0.0, %v6586
        %v6588 = vpop.f32.mrf.mxu0
        %v6589 = vadd.f32 0.0, %v6588
        %v6590 = vpop.f32.mrf.mxu0
        %v6591 = vadd.f32 0.0, %v6590
        %6592 = vmatprep.mubr.bf16.mxu0 %v4818
        %6593 = vmatmul.mubr.bf16.gmra.mxu0 %v4817
        %v6594 = vpop.f32.mrf.mxu0
        %v6595 = vadd.f32 0.0, %v6594
        %v6596 = vpop.f32.mrf.mxu0
        %v6597 = vadd.f32 0.0, %v6596
        %v6598 = vpop.f32.mrf.mxu0
        %v6599 = vadd.f32 0.0, %v6598
        %v6600 = vpop.f32.mrf.mxu0
        %v6601 = vadd.f32 0.0, %v6600
        %6602 = vmatprep.mubr.bf16.mxu0 %v4820
        %6603 = vmatmul.mubr.bf16.gmra.mxu0 %v4819
        %v6604 = vpop.f32.mrf.mxu0
        %v6605 = vadd.f32 0.0, %v6604
        %v6606 = vpop.f32.mrf.mxu0
        %v6607 = vadd.f32 0.0, %v6606
        %v6608 = vpop.f32.mrf.mxu0
        %v6609 = vadd.f32 0.0, %v6608
        %v6610 = vpop.f32.mrf.mxu0
        %v6611 = vadd.f32 0.0, %v6610
        %6612 = vmatprep.mubr.bf16.mxu0 %v4822
        %6613 = vmatmul.mubr.bf16.gmra.mxu0 %v4821
        %v6614 = vpop.f32.mrf.mxu0
        %v6615 = vadd.f32 0.0, %v6614
        %v6616 = vpop.f32.mrf.mxu0
        %v6617 = vadd.f32 0.0, %v6616
        %v6618 = vpop.f32.mrf.mxu0
        %v6619 = vadd.f32 0.0, %v6618
        %v6620 = vpop.f32.mrf.mxu0
        %v6621 = vadd.f32 0.0, %v6620
        %6622 = vmatprep.mubr.bf16.mxu0 %v4824
        %6623 = vmatmul.mubr.bf16.gmra.mxu0 %v4823
        %v6624 = vpop.f32.mrf.mxu0
        %v6625 = vadd.f32 0.0, %v6624
        %v6626 = vpop.f32.mrf.mxu0
        %v6627 = vadd.f32 0.0, %v6626
        %v6628 = vpop.f32.mrf.mxu0
        %v6629 = vadd.f32 0.0, %v6628
        %v6630 = vpop.f32.mrf.mxu0
        %v6631 = vadd.f32 0.0, %v6630
        %6632 = vmatprep.mubr.bf16.mxu0 %v4826
        %6633 = vmatmul.mubr.bf16.gmra.mxu0 %v4825
        %v6634 = vpop.f32.mrf.mxu0
        %v6635 = vadd.f32 0.0, %v6634
        %v6636 = vpop.f32.mrf.mxu0
        %v6637 = vadd.f32 0.0, %v6636
        %v6638 = vpop.f32.mrf.mxu0
        %v6639 = vadd.f32 0.0, %v6638
        %v6640 = vpop.f32.mrf.mxu0
        %v6641 = vadd.f32 0.0, %v6640
        %6642 = vmatprep.mubr.bf16.mxu0 %v4828
        %6643 = vmatmul.mubr.bf16.gmra.mxu0 %v4827
        %v6644 = vpop.f32.mrf.mxu0
        %v6645 = vadd.f32 0.0, %v6644
        %v6646 = vpop.f32.mrf.mxu0
        %v6647 = vadd.f32 0.0, %v6646
        %v6648 = vpop.f32.mrf.mxu0
        %v6649 = vadd.f32 0.0, %v6648
        %v6650 = vpop.f32.mrf.mxu0
        %v6651 = vadd.f32 0.0, %v6650
        %6652 = vmatprep.mubr.bf16.mxu0 %v4830
        %6653 = vmatmul.mubr.bf16.gmra.mxu0 %v4829
        %v6654 = vpop.f32.mrf.mxu0
        %v6655 = vadd.f32 0.0, %v6654
        %v6656 = vpop.f32.mrf.mxu0
        %v6657 = vadd.f32 0.0, %v6656
        %v6658 = vpop.f32.mrf.mxu0
        %v6659 = vadd.f32 0.0, %v6658
        %v6660 = vpop.f32.mrf.mxu0
        %v6661 = vadd.f32 0.0, %v6660
        %6662 = vmatprep.mubr.bf16.mxu0 %v4832
        %6663 = vmatmul.mubr.bf16.gmra.mxu0 %v4831
        %v6664 = vpop.f32.mrf.mxu0
        %v6665 = vadd.f32 0.0, %v6664
        %v6666 = vpop.f32.mrf.mxu0
        %v6667 = vadd.f32 0.0, %v6666
        %v6668 = vpop.f32.mrf.mxu0
        %v6669 = vadd.f32 0.0, %v6668
        %v6670 = vpop.f32.mrf.mxu0
        %v6671 = vadd.f32 0.0, %v6670
        %6672 = vmatprep.mubr.bf16.mxu0 %v4834
        %6673 = vmatmul.mubr.bf16.gmra.mxu0 %v4833
        %v6674 = vpop.f32.mrf.mxu0
        %v6675 = vadd.f32 0.0, %v6674
        %v6676 = vpop.f32.mrf.mxu0
        %v6677 = vadd.f32 0.0, %v6676
        %v6678 = vpop.f32.mrf.mxu0
        %v6679 = vadd.f32 0.0, %v6678
        %v6680 = vpop.f32.mrf.mxu0
        %v6681 = vadd.f32 0.0, %v6680
        %6682 = vmatprep.mubr.bf16.mxu0 %v4836
        %6683 = vmatmul.mubr.bf16.gmra.mxu0 %v4835
        %v6684 = vpop.f32.mrf.mxu0
        %v6685 = vadd.f32 0.0, %v6684
        %v6686 = vpop.f32.mrf.mxu0
        %v6687 = vadd.f32 0.0, %v6686
        %v6688 = vpop.f32.mrf.mxu0
        %v6689 = vadd.f32 0.0, %v6688
        %v6690 = vpop.f32.mrf.mxu0
        %v6691 = vadd.f32 0.0, %v6690
        %6692 = vmatprep.mubr.bf16.mxu0 %v4838
        %6693 = vmatmul.mubr.bf16.gmra.mxu0 %v4837
        %v6694 = vpop.f32.mrf.mxu0
        %v6695 = vadd.f32 0.0, %v6694
        %v6696 = vpop.f32.mrf.mxu0
        %v6697 = vadd.f32 0.0, %v6696
        %v6698 = vpop.f32.mrf.mxu0
        %v6699 = vadd.f32 0.0, %v6698
        %v6700 = vpop.f32.mrf.mxu0
        %v6701 = vadd.f32 0.0, %v6700
        %6702 = vmatprep.mubr.bf16.mxu0 %v4840
        %6703 = vmatmul.mubr.bf16.gmra.mxu0 %v4839
        %v6704 = vpop.f32.mrf.mxu0
        %v6705 = vadd.f32 0.0, %v6704
        %v6706 = vpop.f32.mrf.mxu0
        %v6707 = vadd.f32 0.0, %v6706
        %v6708 = vpop.f32.mrf.mxu0
        %v6709 = vadd.f32 0.0, %v6708
        %v6710 = vpop.f32.mrf.mxu0
        %v6711 = vadd.f32 0.0, %v6710
        %6712 = vmatprep.mubr.bf16.mxu0 %v4842
        %6713 = vmatmul.mubr.bf16.gmra.mxu0 %v4841
        %v6714 = vpop.f32.mrf.mxu0
        %v6715 = vadd.f32 0.0, %v6714
        %v6716 = vpop.f32.mrf.mxu0
        %v6717 = vadd.f32 0.0, %v6716
        %v6718 = vpop.f32.mrf.mxu0
        %v6719 = vadd.f32 0.0, %v6718
        %v6720 = vpop.f32.mrf.mxu0
        %v6721 = vadd.f32 0.0, %v6720
        %6722 = vmatprep.mubr.bf16.mxu0 %v4844
        %6723 = vmatmul.mubr.bf16.gmra.mxu0 %v4843
        %v6724 = vpop.f32.mrf.mxu0
        %v6725 = vadd.f32 0.0, %v6724
        %v6726 = vpop.f32.mrf.mxu0
        %v6727 = vadd.f32 0.0, %v6726
        %v6728 = vpop.f32.mrf.mxu0
        %v6729 = vadd.f32 0.0, %v6728
        %v6730 = vpop.f32.mrf.mxu0
        %v6731 = vadd.f32 0.0, %v6730
        %6732 = vmatprep.mubr.bf16.mxu0 %v4846
        %6733 = vmatmul.mubr.bf16.gmra.mxu0 %v4845
        %v6734 = vpop.f32.mrf.mxu0
        %v6735 = vadd.f32 0.0, %v6734
        %v6736 = vpop.f32.mrf.mxu0
        %v6737 = vadd.f32 0.0, %v6736
        %v6738 = vpop.f32.mrf.mxu0
        %v6739 = vadd.f32 0.0, %v6738
        %v6740 = vpop.f32.mrf.mxu0
        %v6741 = vadd.f32 0.0, %v6740
        %6742 = vmatprep.mubr.bf16.mxu0 %v4848
        %6743 = vmatmul.mubr.bf16.gmra.mxu0 %v4847
        %v6744 = vpop.f32.mrf.mxu0
        %v6745 = vadd.f32 0.0, %v6744
        %v6746 = vpop.f32.mrf.mxu0
        %v6747 = vadd.f32 0.0, %v6746
        %v6748 = vpop.f32.mrf.mxu0
        %v6749 = vadd.f32 0.0, %v6748
        %v6750 = vpop.f32.mrf.mxu0
        %v6751 = vadd.f32 0.0, %v6750
        %6752 = vmatprep.mubr.bf16.mxu0 %v4850
        %6753 = vmatmul.mubr.bf16.gmra.mxu0 %v4849
        %v6754 = vpop.f32.mrf.mxu0
        %v6755 = vadd.f32 0.0, %v6754
        %v6756 = vpop.f32.mrf.mxu0
        %v6757 = vadd.f32 0.0, %v6756
        %v6758 = vpop.f32.mrf.mxu0
        %v6759 = vadd.f32 0.0, %v6758
        %v6760 = vpop.f32.mrf.mxu0
        %v6761 = vadd.f32 0.0, %v6760
        %6762 = vmatprep.mubr.bf16.mxu0 %v4852
        %6763 = vmatmul.mubr.bf16.gmra.mxu0 %v4851
        %v6764 = vpop.f32.mrf.mxu0
        %v6765 = vadd.f32 0.0, %v6764
        %v6766 = vpop.f32.mrf.mxu0
        %v6767 = vadd.f32 0.0, %v6766
        %v6768 = vpop.f32.mrf.mxu0
        %v6769 = vadd.f32 0.0, %v6768
        %v6770 = vpop.f32.mrf.mxu0
        %v6771 = vadd.f32 0.0, %v6770
        %6772 = vmatprep.mubr.bf16.mxu0 %v4854
        %6773 = vmatmul.mubr.bf16.gmra.mxu0 %v4853
        %v6774 = vpop.f32.mrf.mxu0
        %v6775 = vadd.f32 0.0, %v6774
        %v6776 = vpop.f32.mrf.mxu0
        %v6777 = vadd.f32 0.0, %v6776
        %v6778 = vpop.f32.mrf.mxu0
        %v6779 = vadd.f32 0.0, %v6778
        %v6780 = vpop.f32.mrf.mxu0
        %v6781 = vadd.f32 0.0, %v6780
        %6782 = vmatprep.mubr.bf16.mxu0 %v4856
        %6783 = vmatmul.mubr.bf16.gmra.mxu0 %v4855
        %v6784 = vpop.f32.mrf.mxu0
        %v6785 = vadd.f32 0.0, %v6784
        %v6786 = vpop.f32.mrf.mxu0
        %v6787 = vadd.f32 0.0, %v6786
        %v6788 = vpop.f32.mrf.mxu0
        %v6789 = vadd.f32 0.0, %v6788
        %v6790 = vpop.f32.mrf.mxu0
        %v6791 = vadd.f32 0.0, %v6790
        %6792 = vmatprep.mubr.bf16.mxu0 %v4858
        %6793 = vmatmul.mubr.bf16.gmra.mxu0 %v4857
        %v6794 = vpop.f32.mrf.mxu0
        %v6795 = vadd.f32 0.0, %v6794
        %v6796 = vpop.f32.mrf.mxu0
        %v6797 = vadd.f32 0.0, %v6796
        %v6798 = vpop.f32.mrf.mxu0
        %v6799 = vadd.f32 0.0, %v6798
        %v6800 = vpop.f32.mrf.mxu0
        %v6801 = vadd.f32 0.0, %v6800
        %6802 = vmatprep.mubr.bf16.mxu0 %v4860
        %6803 = vmatmul.mubr.bf16.gmra.mxu0 %v4859
        %v6804 = vpop.f32.mrf.mxu0
        %v6805 = vadd.f32 0.0, %v6804
        %v6806 = vpop.f32.mrf.mxu0
        %v6807 = vadd.f32 0.0, %v6806
        %v6808 = vpop.f32.mrf.mxu0
        %v6809 = vadd.f32 0.0, %v6808
        %v6810 = vpop.f32.mrf.mxu0
        %v6811 = vadd.f32 0.0, %v6810
        %6812 = vmatprep.mubr.bf16.mxu0 %v4862
        %6813 = vmatmul.mubr.bf16.gmra.mxu0 %v4861
        %v6814 = vpop.f32.mrf.mxu0
        %v6815 = vadd.f32 0.0, %v6814
        %v6816 = vpop.f32.mrf.mxu0
        %v6817 = vadd.f32 0.0, %v6816
        %v6818 = vpop.f32.mrf.mxu0
        %v6819 = vadd.f32 0.0, %v6818
        %v6820 = vpop.f32.mrf.mxu0
        %v6821 = vadd.f32 0.0, %v6820
        %6822 = vmatprep.mubr.bf16.mxu0 %v4864
        %6823 = vmatmul.mubr.bf16.gmra.mxu0 %v4863
        %v6824 = vpop.f32.mrf.mxu0
        %v6825 = vadd.f32 0.0, %v6824
        %v6826 = vpop.f32.mrf.mxu0
        %v6827 = vadd.f32 0.0, %v6826
        %v6828 = vpop.f32.mrf.mxu0
        %v6829 = vadd.f32 0.0, %v6828
        %v6830 = vpop.f32.mrf.mxu0
        %v6831 = vadd.f32 0.0, %v6830
        %6832 = vmatprep.mubr.bf16.mxu0 %v4866
        %6833 = vmatmul.mubr.bf16.gmra.mxu0 %v4865
        %v6834 = vpop.f32.mrf.mxu0
        %v6835 = vadd.f32 0.0, %v6834
        %v6836 = vpop.f32.mrf.mxu0
        %v6837 = vadd.f32 0.0, %v6836
        %v6838 = vpop.f32.mrf.mxu0
        %v6839 = vadd.f32 0.0, %v6838
        %v6840 = vpop.f32.mrf.mxu0
        %v6841 = vadd.f32 0.0, %v6840
        %6842 = vmatprep.mubr.bf16.mxu0 %v4868
        %6843 = vmatmul.mubr.bf16.gmra.mxu0 %v4867
        %v6844 = vpop.f32.mrf.mxu0
        %v6845 = vadd.f32 0.0, %v6844
        %v6846 = vpop.f32.mrf.mxu0
        %v6847 = vadd.f32 0.0, %v6846
        %v6848 = vpop.f32.mrf.mxu0
        %v6849 = vadd.f32 0.0, %v6848
        %v6850 = vpop.f32.mrf.mxu0
        %v6851 = vadd.f32 0.0, %v6850
        %6852 = vmatprep.mubr.bf16.mxu0 %v4870
        %6853 = vmatmul.mubr.bf16.gmra.mxu0 %v4869
        %v6854 = vpop.f32.mrf.mxu0
        %v6855 = vadd.f32 0.0, %v6854
        %v6856 = vpop.f32.mrf.mxu0
        %v6857 = vadd.f32 0.0, %v6856
        %v6858 = vpop.f32.mrf.mxu0
        %v6859 = vadd.f32 0.0, %v6858
        %v6860 = vpop.f32.mrf.mxu0
        %v6861 = vadd.f32 0.0, %v6860
        %6862 = vmatprep.mubr.bf16.mxu0 %v4872
        %6863 = vmatmul.mubr.bf16.gmra.mxu0 %v4871
        %v6864 = vpop.f32.mrf.mxu0
        %v6865 = vadd.f32 0.0, %v6864
        %v6866 = vpop.f32.mrf.mxu0
        %v6867 = vadd.f32 0.0, %v6866
        %v6868 = vpop.f32.mrf.mxu0
        %v6869 = vadd.f32 0.0, %v6868
        %v6870 = vpop.f32.mrf.mxu0
        %v6871 = vadd.f32 0.0, %v6870
        %6872 = vmatprep.mubr.bf16.mxu0 %v4874
        %6873 = vmatmul.mubr.bf16.gmra.mxu0 %v4873
        %v6874 = vpop.f32.mrf.mxu0
        %v6875 = vadd.f32 0.0, %v6874
        %v6876 = vpop.f32.mrf.mxu0
        %v6877 = vadd.f32 0.0, %v6876
        %v6878 = vpop.f32.mrf.mxu0
        %v6879 = vadd.f32 0.0, %v6878
        %v6880 = vpop.f32.mrf.mxu0
        %v6881 = vadd.f32 0.0, %v6880
        %6882 = vmatprep.mubr.bf16.mxu0 %v4876
        %6883 = vmatmul.mubr.bf16.gmra.mxu0 %v4875
        %v6884 = vpop.f32.mrf.mxu0
        %v6885 = vadd.f32 0.0, %v6884
        %v6886 = vpop.f32.mrf.mxu0
        %v6887 = vadd.f32 0.0, %v6886
        %v6888 = vpop.f32.mrf.mxu0
        %v6889 = vadd.f32 0.0, %v6888
        %v6890 = vpop.f32.mrf.mxu0
        %v6891 = vadd.f32 0.0, %v6890
        %6892 = vmatprep.mubr.bf16.mxu0 %v4878
        %6893 = vmatmul.mubr.bf16.gmra.mxu0 %v4877
        %v6894 = vpop.f32.mrf.mxu0
        %v6895 = vadd.f32 0.0, %v6894
        %v6896 = vpop.f32.mrf.mxu0
        %v6897 = vadd.f32 0.0, %v6896
        %v6898 = vpop.f32.mrf.mxu0
        %v6899 = vadd.f32 0.0, %v6898
        %v6900 = vpop.f32.mrf.mxu0
        %v6901 = vadd.f32 0.0, %v6900
        %6902 = vmatprep.mubr.bf16.mxu0 %v4880
        %6903 = vmatmul.mubr.bf16.gmra.mxu0 %v4879
        %v6904 = vpop.f32.mrf.mxu0
        %v6905 = vadd.f32 0.0, %v6904
        %v6906 = vpop.f32.mrf.mxu0
        %v6907 = vadd.f32 0.0, %v6906
        %v6908 = vpop.f32.mrf.mxu0
        %v6909 = vadd.f32 0.0, %v6908
        %v6910 = vpop.f32.mrf.mxu0
        %v6911 = vadd.f32 0.0, %v6910
        %6912 = vmatprep.mubr.bf16.mxu0 %v4882
        %6913 = vmatmul.mubr.bf16.gmra.mxu0 %v4881
        %v6914 = vpop.f32.mrf.mxu0
        %v6915 = vadd.f32 0.0, %v6914
        %v6916 = vpop.f32.mrf.mxu0
        %v6917 = vadd.f32 0.0, %v6916
        %v6918 = vpop.f32.mrf.mxu0
        %v6919 = vadd.f32 0.0, %v6918
        %v6920 = vpop.f32.mrf.mxu0
        %v6921 = vadd.f32 0.0, %v6920
        %6922 = vmatprep.mubr.bf16.mxu0 %v4884
        %6923 = vmatmul.mubr.bf16.gmra.mxu0 %v4883
        %v6924 = vpop.f32.mrf.mxu0
        %v6925 = vadd.f32 0.0, %v6924
        %v6926 = vpop.f32.mrf.mxu0
        %v6927 = vadd.f32 0.0, %v6926
        %v6928 = vpop.f32.mrf.mxu0
        %v6929 = vadd.f32 0.0, %v6928
        %v6930 = vpop.f32.mrf.mxu0
        %v6931 = vadd.f32 0.0, %v6930
        %6932 = vmatprep.mubr.bf16.mxu0 %v4886
        %6933 = vmatmul.mubr.bf16.gmra.mxu0 %v4885
        %v6934 = vpop.f32.mrf.mxu0
        %v6935 = vadd.f32 0.0, %v6934
        %v6936 = vpop.f32.mrf.mxu0
        %v6937 = vadd.f32 0.0, %v6936
        %v6938 = vpop.f32.mrf.mxu0
        %v6939 = vadd.f32 0.0, %v6938
        %v6940 = vpop.f32.mrf.mxu0
        %v6941 = vadd.f32 0.0, %v6940
        %6942 = vmatprep.mubr.bf16.mxu0 %v4888
        %6943 = vmatmul.mubr.bf16.gmra.mxu0 %v4887
        %v6944 = vpop.f32.mrf.mxu0
        %v6945 = vadd.f32 0.0, %v6944
        %v6946 = vpop.f32.mrf.mxu0
        %v6947 = vadd.f32 0.0, %v6946
        %v6948 = vpop.f32.mrf.mxu0
        %v6949 = vadd.f32 0.0, %v6948
        %v6950 = vpop.f32.mrf.mxu0
        %v6951 = vadd.f32 0.0, %v6950
        %6952 = vdwg.mxu0
        %v6953 = vrot.slane %v6565, 2
        %v6954 = vrot.slane %v6567, 2
        %v6955 = vrot.slane %v6569, 2
        %v6956 = vrot.slane %v6571, 2
        %v6957 = vrot.slane %v6575, 2
        %v6958 = vrot.slane %v6577, 2
        %v6959 = vrot.slane %v6579, 2
        %v6960 = vrot.slane %v6581, 2
        %v6961 = vrot.slane %v6585, 2
        %v6962 = vrot.slane %v6587, 2
        %v6963 = vrot.slane %v6589, 2
        %v6964 = vrot.slane %v6591, 2
        %v6965 = vrot.slane %v6595, 2
        %v6966 = vrot.slane %v6597, 2
        %v6967 = vrot.slane %v6599, 2
        %v6968 = vrot.slane %v6601, 2
        %v6969 = vrot.slane %v6605, 2
        %v6970 = vrot.slane %v6607, 2
        %v6971 = vrot.slane %v6609, 2
        %v6972 = vrot.slane %v6611, 2
        %v6973 = vrot.slane %v6615, 2
        %v6974 = vrot.slane %v6617, 2
        %v6975 = vrot.slane %v6619, 2
        %v6976 = vrot.slane %v6621, 2
        %v6977 = vrot.slane %v6625, 2
        %v6978 = vrot.slane %v6627, 2
        %v6979 = vrot.slane %v6629, 2
        %v6980 = vrot.slane %v6631, 2
        %v6981 = vrot.slane %v6635, 2
        %v6982 = vrot.slane %v6637, 2
        %v6983 = vrot.slane %v6639, 2
        %v6984 = vrot.slane %v6641, 2
        %v6985 = vrot.slane %v6645, 2
        %v6986 = vrot.slane %v6647, 2
        %v6987 = vrot.slane %v6649, 2
        %v6988 = vrot.slane %v6651, 2
        %v6989 = vrot.slane %v6655, 2
        %v6990 = vrot.slane %v6657, 2
        %v6991 = vrot.slane %v6659, 2
        %v6992 = vrot.slane %v6661, 2
        %v6993 = vrot.slane %v6665, 2
        %v6994 = vrot.slane %v6667, 2
        %v6995 = vrot.slane %v6669, 2
        %v6996 = vrot.slane %v6671, 2
        %v6997 = vrot.slane %v6675, 2
        %v6998 = vrot.slane %v6677, 2
        %v6999 = vrot.slane %v6679, 2
        %v7000 = vrot.slane %v6681, 2
        %v7001 = vrot.slane %v6685, 2
        %v7002 = vrot.slane %v6687, 2
        %v7003 = vrot.slane %v6689, 2
        %v7004 = vrot.slane %v6691, 2
        %v7005 = vrot.slane %v6695, 2
        %v7006 = vrot.slane %v6697, 2
        %v7007 = vrot.slane %v6699, 2
        %v7008 = vrot.slane %v6701, 2
        %v7009 = vrot.slane %v6705, 2
        %v7010 = vrot.slane %v6707, 2
        %v7011 = vrot.slane %v6709, 2
        %v7012 = vrot.slane %v6711, 2
        %v7013 = vrot.slane %v6715, 2
        %v7014 = vrot.slane %v6717, 2
        %v7015 = vrot.slane %v6719, 2
        %v7016 = vrot.slane %v6721, 2
        %v7017 = vrot.slane %v6725, 2
        %v7018 = vrot.slane %v6727, 2
        %v7019 = vrot.slane %v6729, 2
        %v7020 = vrot.slane %v6731, 2
        %v7021 = vrot.slane %v6735, 2
        %v7022 = vrot.slane %v6737, 2
        %v7023 = vrot.slane %v6739, 2
        %v7024 = vrot.slane %v6741, 2
        %v7025 = vrot.slane %v6745, 2
        %v7026 = vrot.slane %v6747, 2
        %v7027 = vrot.slane %v6749, 2
        %v7028 = vrot.slane %v6751, 2
        %v7029 = vrot.slane %v6755, 2
        %v7030 = vrot.slane %v6757, 2
        %v7031 = vrot.slane %v6759, 2
        %v7032 = vrot.slane %v6761, 2
        %v7033 = vrot.slane %v6765, 2
        %v7034 = vrot.slane %v6767, 2
        %v7035 = vrot.slane %v6769, 2
        %v7036 = vrot.slane %v6771, 2
        %v7037 = vrot.slane %v6775, 2
        %v7038 = vrot.slane %v6777, 2
        %v7039 = vrot.slane %v6779, 2
        %v7040 = vrot.slane %v6781, 2
        %v7041 = vrot.slane %v6785, 2
        %v7042 = vrot.slane %v6787, 2
        %v7043 = vrot.slane %v6789, 2
        %v7044 = vrot.slane %v6791, 2
        %v7045 = vrot.slane %v6795, 2
        %v7046 = vrot.slane %v6797, 2
        %v7047 = vrot.slane %v6799, 2
        %v7048 = vrot.slane %v6801, 2
        %v7049 = vrot.slane %v6805, 2
        %v7050 = vrot.slane %v6807, 2
        %v7051 = vrot.slane %v6809, 2
        %v7052 = vrot.slane %v6811, 2
        %v7053 = vrot.slane %v6815, 2
        %v7054 = vrot.slane %v6817, 2
        %v7055 = vrot.slane %v6819, 2
        %v7056 = vrot.slane %v6821, 2
        %v7057 = vrot.slane %v6825, 2
        %v7058 = vrot.slane %v6827, 2
        %v7059 = vrot.slane %v6829, 2
        %v7060 = vrot.slane %v6831, 2
        %v7061 = vrot.slane %v6835, 2
        %v7062 = vrot.slane %v6837, 2
        %v7063 = vrot.slane %v6839, 2
        %v7064 = vrot.slane %v6841, 2
        %v7065 = vrot.slane %v6845, 2
        %v7066 = vrot.slane %v6847, 2
        %v7067 = vrot.slane %v6849, 2
        %v7068 = vrot.slane %v6851, 2
        %v7069 = vrot.slane %v6855, 2
        %v7070 = vrot.slane %v6857, 2
        %v7071 = vrot.slane %v6859, 2
        %v7072 = vrot.slane %v6861, 2
        %v7073 = vrot.slane %v6865, 2
        %v7074 = vrot.slane %v6867, 2
        %v7075 = vrot.slane %v6869, 2
        %v7076 = vrot.slane %v6871, 2
        %v7077 = vrot.slane %v6875, 2
        %v7078 = vrot.slane %v6877, 2
        %v7079 = vrot.slane %v6879, 2
        %v7080 = vrot.slane %v6881, 2
        %v7081 = vrot.slane %v6885, 2
        %v7082 = vrot.slane %v6887, 2
        %v7083 = vrot.slane %v6889, 2
        %v7084 = vrot.slane %v6891, 2
        %v7085 = vrot.slane %v6895, 2
        %v7086 = vrot.slane %v6897, 2
        %v7087 = vrot.slane %v6899, 2
        %v7088 = vrot.slane %v6901, 2
        %v7089 = vrot.slane %v6905, 2
        %v7090 = vrot.slane %v6907, 2
        %v7091 = vrot.slane %v6909, 2
        %v7092 = vrot.slane %v6911, 2
        %v7093 = vrot.slane %v6915, 2
        %v7094 = vrot.slane %v6917, 2
        %v7095 = vrot.slane %v6919, 2
        %v7096 = vrot.slane %v6921, 2
        %v7097 = vrot.slane %v6925, 2
        %v7098 = vrot.slane %v6927, 2
        %v7099 = vrot.slane %v6929, 2
        %v7100 = vrot.slane %v6931, 2
        %v7101 = vrot.slane %v6935, 2
        %v7102 = vrot.slane %v6937, 2
        %v7103 = vrot.slane %v6939, 2
        %v7104 = vrot.slane %v6941, 2
        %v7105 = vrot.slane %v6945, 2
        %v7106 = vrot.slane %v6947, 2
        %v7107 = vrot.slane %v6949, 2
        %v7108 = vrot.slane %v6951, 2
        %vm7109 = vcmp.lt.s32.totalorder %v5629, 6
        %v7110 = vsel %vm7109, %v7105, %v7107
        %v7111 = vsel %vm7109, %v7106, %v7108
        %v7112 = vsel %vm7109, %v7103, %v7105
        %v7113 = vsel %vm7109, %v7104, %v7106
        %v7114 = vsel %vm7109, %v7101, %v7103
        %v7115 = vsel %vm7109, %v7102, %v7104
        %v7116 = vsel %vm7109, %v7099, %v7101
        %v7117 = vsel %vm7109, %v7100, %v7102
        %v7118 = vsel %vm7109, %v7097, %v7099
        %v7119 = vsel %vm7109, %v7098, %v7100
        %v7120 = vsel %vm7109, %v7095, %v7097
        %v7121 = vsel %vm7109, %v7096, %v7098
        %v7122 = vsel %vm7109, %v7093, %v7095
        %v7123 = vsel %vm7109, %v7094, %v7096
        %v7124 = vsel %vm7109, %v7091, %v7093
        %v7125 = vsel %vm7109, %v7092, %v7094
        %v7126 = vsel %vm7109, %v7089, %v7091
        %v7127 = vsel %vm7109, %v7090, %v7092
        %v7128 = vsel %vm7109, %v7087, %v7089
        %v7129 = vsel %vm7109, %v7088, %v7090
        %v7130 = vsel %vm7109, %v7085, %v7087
        %v7131 = vsel %vm7109, %v7086, %v7088
        %v7132 = vsel %vm7109, %v7083, %v7085
        %v7133 = vsel %vm7109, %v7084, %v7086
        %v7134 = vsel %vm7109, %v7081, %v7083
        %v7135 = vsel %vm7109, %v7082, %v7084
        %v7136 = vsel %vm7109, %v7079, %v7081
        %v7137 = vsel %vm7109, %v7080, %v7082
        %v7138 = vsel %vm7109, %v7077, %v7079
        %v7139 = vsel %vm7109, %v7078, %v7080
        %v7140 = vsel %vm7109, %v7075, %v7077
        %v7141 = vsel %vm7109, %v7076, %v7078
        %v7142 = vsel %vm7109, %v7073, %v7075
        %v7143 = vsel %vm7109, %v7074, %v7076
        %v7144 = vsel %vm7109, %v7071, %v7073
        %v7145 = vsel %vm7109, %v7072, %v7074
        %v7146 = vsel %vm7109, %v7069, %v7071
        %v7147 = vsel %vm7109, %v7070, %v7072
        %v7148 = vsel %vm7109, %v7067, %v7069
        %v7149 = vsel %vm7109, %v7068, %v7070
        %v7150 = vsel %vm7109, %v7065, %v7067
        %v7151 = vsel %vm7109, %v7066, %v7068
        %v7152 = vsel %vm7109, %v7063, %v7065
        %v7153 = vsel %vm7109, %v7064, %v7066
        %v7154 = vsel %vm7109, %v7061, %v7063
        %v7155 = vsel %vm7109, %v7062, %v7064
        %v7156 = vsel %vm7109, %v7059, %v7061
        %v7157 = vsel %vm7109, %v7060, %v7062
        %v7158 = vsel %vm7109, %v7057, %v7059
        %v7159 = vsel %vm7109, %v7058, %v7060
        %v7160 = vsel %vm7109, %v7055, %v7057
        %v7161 = vsel %vm7109, %v7056, %v7058
        %v7162 = vsel %vm7109, %v7053, %v7055
        %v7163 = vsel %vm7109, %v7054, %v7056
        %v7164 = vsel %vm7109, %v7051, %v7053
        %v7165 = vsel %vm7109, %v7052, %v7054
        %v7166 = vsel %vm7109, %v7049, %v7051
        %v7167 = vsel %vm7109, %v7050, %v7052
        %v7168 = vsel %vm7109, %v7047, %v7049
        %v7169 = vsel %vm7109, %v7048, %v7050
        %v7170 = vsel %vm7109, %v7045, %v7047
        %v7171 = vsel %vm7109, %v7046, %v7048
        %v7172 = vsel %vm7109, %v7043, %v7045
        %v7173 = vsel %vm7109, %v7044, %v7046
        %v7174 = vsel %vm7109, %v7041, %v7043
        %v7175 = vsel %vm7109, %v7042, %v7044
        %v7176 = vsel %vm7109, %v7039, %v7041
        %v7177 = vsel %vm7109, %v7040, %v7042
        %v7178 = vsel %vm7109, %v7037, %v7039
        %v7179 = vsel %vm7109, %v7038, %v7040
        %v7180 = vsel %vm7109, %v7035, %v7037
        %v7181 = vsel %vm7109, %v7036, %v7038
        %v7182 = vsel %vm7109, %v7033, %v7035
        %v7183 = vsel %vm7109, %v7034, %v7036
        %v7184 = vsel %vm7109, %v7031, %v7033
        %v7185 = vsel %vm7109, %v7032, %v7034
        %v7186 = vsel %vm7109, %v7029, %v7031
        %v7187 = vsel %vm7109, %v7030, %v7032
        %v7188 = vsel %vm7109, %v7027, %v7029
        %v7189 = vsel %vm7109, %v7028, %v7030
        %v7190 = vsel %vm7109, %v7025, %v7027
        %v7191 = vsel %vm7109, %v7026, %v7028
        %v7192 = vsel %vm7109, %v7023, %v7025
        %v7193 = vsel %vm7109, %v7024, %v7026
        %v7194 = vsel %vm7109, %v7021, %v7023
        %v7195 = vsel %vm7109, %v7022, %v7024
        %v7196 = vsel %vm7109, %v7019, %v7021
        %v7197 = vsel %vm7109, %v7020, %v7022
        %v7198 = vsel %vm7109, %v7017, %v7019
        %v7199 = vsel %vm7109, %v7018, %v7020
        %v7200 = vsel %vm7109, %v7015, %v7017
        %v7201 = vsel %vm7109, %v7016, %v7018
        %v7202 = vsel %vm7109, %v7013, %v7015
        %v7203 = vsel %vm7109, %v7014, %v7016
        %v7204 = vsel %vm7109, %v7011, %v7013
        %v7205 = vsel %vm7109, %v7012, %v7014
        %v7206 = vsel %vm7109, %v7009, %v7011
        %v7207 = vsel %vm7109, %v7010, %v7012
        %v7208 = vsel %vm7109, %v7007, %v7009
        %v7209 = vsel %vm7109, %v7008, %v7010
        %v7210 = vsel %vm7109, %v7005, %v7007
        %v7211 = vsel %vm7109, %v7006, %v7008
        %v7212 = vsel %vm7109, %v7003, %v7005
        %v7213 = vsel %vm7109, %v7004, %v7006
        %v7214 = vsel %vm7109, %v7001, %v7003
        %v7215 = vsel %vm7109, %v7002, %v7004
        %v7216 = vsel %vm7109, %v6999, %v7001
        %v7217 = vsel %vm7109, %v7000, %v7002
        %v7218 = vsel %vm7109, %v6997, %v6999
        %v7219 = vsel %vm7109, %v6998, %v7000
        %v7220 = vsel %vm7109, %v6995, %v6997
        %v7221 = vsel %vm7109, %v6996, %v6998
        %v7222 = vsel %vm7109, %v6993, %v6995
        %v7223 = vsel %vm7109, %v6994, %v6996
        %v7224 = vsel %vm7109, %v6991, %v6993
        %v7225 = vsel %vm7109, %v6992, %v6994
        %v7226 = vsel %vm7109, %v6989, %v6991
        %v7227 = vsel %vm7109, %v6990, %v6992
        %v7228 = vsel %vm7109, %v6987, %v6989
        %v7229 = vsel %vm7109, %v6988, %v6990
        %v7230 = vsel %vm7109, %v6985, %v6987
        %v7231 = vsel %vm7109, %v6986, %v6988
        %v7232 = vsel %vm7109, %v6983, %v6985
        %v7233 = vsel %vm7109, %v6984, %v6986
        %v7234 = vsel %vm7109, %v6981, %v6983
        %v7235 = vsel %vm7109, %v6982, %v6984
        %v7236 = vsel %vm7109, %v6979, %v6981
        %v7237 = vsel %vm7109, %v6980, %v6982
        %v7238 = vsel %vm7109, %v6977, %v6979
        %v7239 = vsel %vm7109, %v6978, %v6980
        %v7240 = vsel %vm7109, %v6975, %v6977
        %v7241 = vsel %vm7109, %v6976, %v6978
        %v7242 = vsel %vm7109, %v6973, %v6975
        %v7243 = vsel %vm7109, %v6974, %v6976
        %v7244 = vsel %vm7109, %v6971, %v6973
        %v7245 = vsel %vm7109, %v6972, %v6974
        %v7246 = vsel %vm7109, %v6969, %v6971
        %v7247 = vsel %vm7109, %v6970, %v6972
        %v7248 = vsel %vm7109, %v6967, %v6969
        %v7249 = vsel %vm7109, %v6968, %v6970
        %v7250 = vsel %vm7109, %v6965, %v6967
        %v7251 = vsel %vm7109, %v6966, %v6968
        %v7252 = vsel %vm7109, %v6963, %v6965
        %v7253 = vsel %vm7109, %v6964, %v6966
        %v7254 = vsel %vm7109, %v6961, %v6963
        %v7255 = vsel %vm7109, %v6962, %v6964
        %v7256 = vsel %vm7109, %v6959, %v6961
        %v7257 = vsel %vm7109, %v6960, %v6962
        %v7258 = vsel %vm7109, %v6957, %v6959
        %v7259 = vsel %vm7109, %v6958, %v6960
        %v7260 = vsel %vm7109, %v6955, %v6957
        %v7261 = vsel %vm7109, %v6956, %v6958
        %v7262 = vsel %vm7109, %v6953, %v6955
        %v7263 = vsel %vm7109, %v6954, %v6956
        %v7264 = vsel %vm7109, %v7107, %v6953
        %v7265 = vsel %vm7109, %v7108, %v6954
        %v7266 = vadd.f32 %v5982, %v7262
        %v7267 = vadd.f32 %v5984, %v7263
        %v7268 = vadd.f32 %v5986, %v7260
        %v7269 = vadd.f32 %v5988, %v7261
        %v7270 = vadd.f32 %v5992, %v7258
        %v7271 = vadd.f32 %v5994, %v7259
        %v7272 = vadd.f32 %v5996, %v7256
        %v7273 = vadd.f32 %v5998, %v7257
        %v7274 = vadd.f32 %v6002, %v7254
        %v7275 = vadd.f32 %v6004, %v7255
        %v7276 = vadd.f32 %v6006, %v7252
        %v7277 = vadd.f32 %v6008, %v7253
        %v7278 = vadd.f32 %v6012, %v7250
        %v7279 = vadd.f32 %v6014, %v7251
        %v7280 = vadd.f32 %v6016, %v7248
        %v7281 = vadd.f32 %v6018, %v7249
        %v7282 = vadd.f32 %v6022, %v7246
        %v7283 = vadd.f32 %v6024, %v7247
        %v7284 = vadd.f32 %v6026, %v7244
        %v7285 = vadd.f32 %v6028, %v7245
        %v7286 = vadd.f32 %v6032, %v7242
        %v7287 = vadd.f32 %v6034, %v7243
        %v7288 = vadd.f32 %v6036, %v7240
        %v7289 = vadd.f32 %v6038, %v7241
        %v7290 = vadd.f32 %v6042, %v7238
        %v7291 = vadd.f32 %v6044, %v7239
        %v7292 = vadd.f32 %v6046, %v7236
        %v7293 = vadd.f32 %v6048, %v7237
        %v7294 = vadd.f32 %v6052, %v7234
        %v7295 = vadd.f32 %v6054, %v7235
        %v7296 = vadd.f32 %v6056, %v7232
        %v7297 = vadd.f32 %v6058, %v7233
        %v7298 = vadd.f32 %v6062, %v7230
        %v7299 = vadd.f32 %v6064, %v7231
        %v7300 = vadd.f32 %v6066, %v7228
        %v7301 = vadd.f32 %v6068, %v7229
        %v7302 = vadd.f32 %v6072, %v7226
        %v7303 = vadd.f32 %v6074, %v7227
        %v7304 = vadd.f32 %v6076, %v7224
        %v7305 = vadd.f32 %v6078, %v7225
        %v7306 = vadd.f32 %v6082, %v7222
        %v7307 = vadd.f32 %v6084, %v7223
        %v7308 = vadd.f32 %v6086, %v7220
        %v7309 = vadd.f32 %v6088, %v7221
        %v7310 = vadd.f32 %v6092, %v7218
        %v7311 = vadd.f32 %v6094, %v7219
        %v7312 = vadd.f32 %v6096, %v7216
        %v7313 = vadd.f32 %v6098, %v7217
        %v7314 = vadd.f32 %v6102, %v7214
        %v7315 = vadd.f32 %v6104, %v7215
        %v7316 = vadd.f32 %v6106, %v7212
        %v7317 = vadd.f32 %v6108, %v7213
        %v7318 = vadd.f32 %v6112, %v7210
        %v7319 = vadd.f32 %v6114, %v7211
        %v7320 = vadd.f32 %v6116, %v7208
        %v7321 = vadd.f32 %v6118, %v7209
        %v7322 = vadd.f32 %v6122, %v7206
        %v7323 = vadd.f32 %v6124, %v7207
        %v7324 = vadd.f32 %v6126, %v7204
        %v7325 = vadd.f32 %v6128, %v7205
        %v7326 = vadd.f32 %v6132, %v7202
        %v7327 = vadd.f32 %v6134, %v7203
        %v7328 = vadd.f32 %v6136, %v7200
        %v7329 = vadd.f32 %v6138, %v7201
        %v7330 = vadd.f32 %v6142, %v7198
        %v7331 = vadd.f32 %v6144, %v7199
        %v7332 = vadd.f32 %v6146, %v7196
        %v7333 = vadd.f32 %v6148, %v7197
        %v7334 = vadd.f32 %v6152, %v7194
        %v7335 = vadd.f32 %v6154, %v7195
        %v7336 = vadd.f32 %v6156, %v7192
        %v7337 = vadd.f32 %v6158, %v7193
        %v7338 = vadd.f32 %v6162, %v7190
        %v7339 = vadd.f32 %v6164, %v7191
        %v7340 = vadd.f32 %v6166, %v7188
        %v7341 = vadd.f32 %v6168, %v7189
        %v7342 = vadd.f32 %v6172, %v7186
        %v7343 = vadd.f32 %v6174, %v7187
        %v7344 = vadd.f32 %v6176, %v7184
        %v7345 = vadd.f32 %v6178, %v7185
        %v7346 = vadd.f32 %v6182, %v7182
        %v7347 = vadd.f32 %v6184, %v7183
        %v7348 = vadd.f32 %v6186, %v7180
        %v7349 = vadd.f32 %v6188, %v7181
        %v7350 = vadd.f32 %v6192, %v7178
        %v7351 = vadd.f32 %v6194, %v7179
        %v7352 = vadd.f32 %v6196, %v7176
        %v7353 = vadd.f32 %v6198, %v7177
        %v7354 = vadd.f32 %v6202, %v7174
        %v7355 = vadd.f32 %v6204, %v7175
        %v7356 = vadd.f32 %v6206, %v7172
        %v7357 = vadd.f32 %v6208, %v7173
        %v7358 = vadd.f32 %v6212, %v7170
        %v7359 = vadd.f32 %v6214, %v7171
        %v7360 = vadd.f32 %v6216, %v7168
        %v7361 = vadd.f32 %v6218, %v7169
        %v7362 = vadd.f32 %v6222, %v7166
        %v7363 = vadd.f32 %v6224, %v7167
        %v7364 = vadd.f32 %v6226, %v7164
        %v7365 = vadd.f32 %v6228, %v7165
        %v7366 = vadd.f32 %v6232, %v7162
        %v7367 = vadd.f32 %v6234, %v7163
        %v7368 = vadd.f32 %v6236, %v7160
        %v7369 = vadd.f32 %v6238, %v7161
        %v7370 = vadd.f32 %v6242, %v7158
        %v7371 = vadd.f32 %v6244, %v7159
        %v7372 = vadd.f32 %v6246, %v7156
        %v7373 = vadd.f32 %v6248, %v7157
        %v7374 = vadd.f32 %v6252, %v7154
        %v7375 = vadd.f32 %v6254, %v7155
        %v7376 = vadd.f32 %v6256, %v7152
        %v7377 = vadd.f32 %v6258, %v7153
        %v7378 = vadd.f32 %v6262, %v7150
        %v7379 = vadd.f32 %v6264, %v7151
        %v7380 = vadd.f32 %v6266, %v7148
        %v7381 = vadd.f32 %v6268, %v7149
        %v7382 = vadd.f32 %v6272, %v7146
        %v7383 = vadd.f32 %v6274, %v7147
        %v7384 = vadd.f32 %v6276, %v7144
        %v7385 = vadd.f32 %v6278, %v7145
        %v7386 = vadd.f32 %v6282, %v7142
        %v7387 = vadd.f32 %v6284, %v7143
        %v7388 = vadd.f32 %v6286, %v7140
        %v7389 = vadd.f32 %v6288, %v7141
        %v7390 = vadd.f32 %v6292, %v7138
        %v7391 = vadd.f32 %v6294, %v7139
        %v7392 = vadd.f32 %v6296, %v7136
        %v7393 = vadd.f32 %v6298, %v7137
        %v7394 = vadd.f32 %v6302, %v7134
        %v7395 = vadd.f32 %v6304, %v7135
        %v7396 = vadd.f32 %v6306, %v7132
        %v7397 = vadd.f32 %v6308, %v7133
        %v7398 = vadd.f32 %v6312, %v7130
        %v7399 = vadd.f32 %v6314, %v7131
        %v7400 = vadd.f32 %v6316, %v7128
        %v7401 = vadd.f32 %v6318, %v7129
        %v7402 = vadd.f32 %v6322, %v7126
        %v7403 = vadd.f32 %v6324, %v7127
        %v7404 = vadd.f32 %v6326, %v7124
        %v7405 = vadd.f32 %v6328, %v7125
        %v7406 = vadd.f32 %v6332, %v7122
        %v7407 = vadd.f32 %v6334, %v7123
        %v7408 = vadd.f32 %v6336, %v7120
        %v7409 = vadd.f32 %v6338, %v7121
        %v7410 = vadd.f32 %v6342, %v7118
        %v7411 = vadd.f32 %v6344, %v7119
        %v7412 = vadd.f32 %v6346, %v7116
        %v7413 = vadd.f32 %v6348, %v7117
        %v7414 = vadd.f32 %v6352, %v7114
        %v7415 = vadd.f32 %v6354, %v7115
        %v7416 = vadd.f32 %v6356, %v7112
        %v7417 = vadd.f32 %v6358, %v7113
        %v7418 = vadd.f32 %v6362, %v7110
        %v7419 = vadd.f32 %v6364, %v7111
        %v7420 = vadd.f32 %v6366, %v7264
        %v7421 = vadd.f32 %v6368, %v7265
        %v7423 = vlaneseq
        %v7424 = vshrl.u32 %v7423, 7
        %v7425 = vsub.s32 0, %v7424
        %v7426 = vrot.slane %v4127, %v7425
        %v7427 = vlaneseq
        %v7428 = vshrl.u32 %v7427, 7
        %v7429 = vsub.s32 1, %v7428
        %v7430 = vrot.slane %v4127, %v7429
        %v7433 = vadd.f32 %v7266, %v7426
        %v7434 = vadd.f32 %v7267, %v7430
        %v7435 = vadd.f32 %v7268, %v7426
        %v7436 = vadd.f32 %v7269, %v7430
        %v7437 = vadd.f32 %v7270, %v7426
        %v7438 = vadd.f32 %v7271, %v7430
        %v7439 = vadd.f32 %v7272, %v7426
        %v7440 = vadd.f32 %v7273, %v7430
        %v7441 = vadd.f32 %v7274, %v7426
        %v7442 = vadd.f32 %v7275, %v7430
        %v7443 = vadd.f32 %v7276, %v7426
        %v7444 = vadd.f32 %v7277, %v7430
        %v7445 = vadd.f32 %v7278, %v7426
        %v7446 = vadd.f32 %v7279, %v7430
        %v7447 = vadd.f32 %v7280, %v7426
        %v7448 = vadd.f32 %v7281, %v7430
        %v7449 = vadd.f32 %v7282, %v7426
        %v7450 = vadd.f32 %v7283, %v7430
        %v7451 = vadd.f32 %v7284, %v7426
        %v7452 = vadd.f32 %v7285, %v7430
        %v7453 = vadd.f32 %v7286, %v7426
        %v7454 = vadd.f32 %v7287, %v7430
        %v7455 = vadd.f32 %v7288, %v7426
        %v7456 = vadd.f32 %v7289, %v7430
        %v7457 = vadd.f32 %v7290, %v7426
        %v7458 = vadd.f32 %v7291, %v7430
        %v7459 = vadd.f32 %v7292, %v7426
        %v7460 = vadd.f32 %v7293, %v7430
        %v7461 = vadd.f32 %v7294, %v7426
        %v7462 = vadd.f32 %v7295, %v7430
        %v7463 = vadd.f32 %v7296, %v7426
        %v7464 = vadd.f32 %v7297, %v7430
        %v7465 = vadd.f32 %v7298, %v7426
        %v7466 = vadd.f32 %v7299, %v7430
        %v7467 = vadd.f32 %v7300, %v7426
        %v7468 = vadd.f32 %v7301, %v7430
        %v7469 = vadd.f32 %v7302, %v7426
        %v7470 = vadd.f32 %v7303, %v7430
        %v7471 = vadd.f32 %v7304, %v7426
        %v7472 = vadd.f32 %v7305, %v7430
        %v7473 = vadd.f32 %v7306, %v7426
        %v7474 = vadd.f32 %v7307, %v7430
        %v7475 = vadd.f32 %v7308, %v7426
        %v7476 = vadd.f32 %v7309, %v7430
        %v7477 = vadd.f32 %v7310, %v7426
        %v7478 = vadd.f32 %v7311, %v7430
        %v7479 = vadd.f32 %v7312, %v7426
        %v7480 = vadd.f32 %v7313, %v7430
        %v7481 = vadd.f32 %v7314, %v7426
        %v7482 = vadd.f32 %v7315, %v7430
        %v7483 = vadd.f32 %v7316, %v7426
        %v7484 = vadd.f32 %v7317, %v7430
        %v7485 = vadd.f32 %v7318, %v7426
        %v7486 = vadd.f32 %v7319, %v7430
        %v7487 = vadd.f32 %v7320, %v7426
        %v7488 = vadd.f32 %v7321, %v7430
        %v7489 = vadd.f32 %v7322, %v7426
        %v7490 = vadd.f32 %v7323, %v7430
        %v7491 = vadd.f32 %v7324, %v7426
        %v7492 = vadd.f32 %v7325, %v7430
        %v7493 = vadd.f32 %v7326, %v7426
        %v7494 = vadd.f32 %v7327, %v7430
        %v7495 = vadd.f32 %v7328, %v7426
        %v7496 = vadd.f32 %v7329, %v7430
        %v7497 = vadd.f32 %v7330, %v7426
        %v7498 = vadd.f32 %v7331, %v7430
        %v7499 = vadd.f32 %v7332, %v7426
        %v7500 = vadd.f32 %v7333, %v7430
        %v7501 = vadd.f32 %v7334, %v7426
        %v7502 = vadd.f32 %v7335, %v7430
        %v7503 = vadd.f32 %v7336, %v7426
        %v7504 = vadd.f32 %v7337, %v7430
        %v7505 = vadd.f32 %v7338, %v7426
        %v7506 = vadd.f32 %v7339, %v7430
        %v7507 = vadd.f32 %v7340, %v7426
        %v7508 = vadd.f32 %v7341, %v7430
        %v7509 = vadd.f32 %v7342, %v7426
        %v7510 = vadd.f32 %v7343, %v7430
        %v7511 = vadd.f32 %v7344, %v7426
        %v7512 = vadd.f32 %v7345, %v7430
        %v7513 = vadd.f32 %v7346, %v7426
        %v7514 = vadd.f32 %v7347, %v7430
        %v7515 = vadd.f32 %v7348, %v7426
        %v7516 = vadd.f32 %v7349, %v7430
        %v7517 = vadd.f32 %v7350, %v7426
        %v7518 = vadd.f32 %v7351, %v7430
        %v7519 = vadd.f32 %v7352, %v7426
        %v7520 = vadd.f32 %v7353, %v7430
        %v7521 = vadd.f32 %v7354, %v7426
        %v7522 = vadd.f32 %v7355, %v7430
        %v7523 = vadd.f32 %v7356, %v7426
        %v7524 = vadd.f32 %v7357, %v7430
        %v7525 = vadd.f32 %v7358, %v7426
        %v7526 = vadd.f32 %v7359, %v7430
        %v7527 = vadd.f32 %v7360, %v7426
        %v7528 = vadd.f32 %v7361, %v7430
        %v7529 = vadd.f32 %v7362, %v7426
        %v7530 = vadd.f32 %v7363, %v7430
        %v7531 = vadd.f32 %v7364, %v7426
        %v7532 = vadd.f32 %v7365, %v7430
        %v7533 = vadd.f32 %v7366, %v7426
        %v7534 = vadd.f32 %v7367, %v7430
        %v7535 = vadd.f32 %v7368, %v7426
        %v7536 = vadd.f32 %v7369, %v7430
        %v7537 = vadd.f32 %v7370, %v7426
        %v7538 = vadd.f32 %v7371, %v7430
        %v7539 = vadd.f32 %v7372, %v7426
        %v7540 = vadd.f32 %v7373, %v7430
        %v7541 = vadd.f32 %v7374, %v7426
        %v7542 = vadd.f32 %v7375, %v7430
        %v7543 = vadd.f32 %v7376, %v7426
        %v7544 = vadd.f32 %v7377, %v7430
        %v7545 = vadd.f32 %v7378, %v7426
        %v7546 = vadd.f32 %v7379, %v7430
        %v7547 = vadd.f32 %v7380, %v7426
        %v7548 = vadd.f32 %v7381, %v7430
        %v7549 = vadd.f32 %v7382, %v7426
        %v7550 = vadd.f32 %v7383, %v7430
        %v7551 = vadd.f32 %v7384, %v7426
        %v7552 = vadd.f32 %v7385, %v7430
        %v7553 = vadd.f32 %v7386, %v7426
        %v7554 = vadd.f32 %v7387, %v7430
        %v7555 = vadd.f32 %v7388, %v7426
        %v7556 = vadd.f32 %v7389, %v7430
        %v7557 = vadd.f32 %v7390, %v7426
        %v7558 = vadd.f32 %v7391, %v7430
        %v7559 = vadd.f32 %v7392, %v7426
        %v7560 = vadd.f32 %v7393, %v7430
        %v7561 = vadd.f32 %v7394, %v7426
        %v7562 = vadd.f32 %v7395, %v7430
        %v7563 = vadd.f32 %v7396, %v7426
        %v7564 = vadd.f32 %v7397, %v7430
        %v7565 = vadd.f32 %v7398, %v7426
        %v7566 = vadd.f32 %v7399, %v7430
        %v7567 = vadd.f32 %v7400, %v7426
        %v7568 = vadd.f32 %v7401, %v7430
        %v7569 = vadd.f32 %v7402, %v7426
        %v7570 = vadd.f32 %v7403, %v7430
        %v7571 = vadd.f32 %v7404, %v7426
        %v7572 = vadd.f32 %v7405, %v7430
        %v7573 = vadd.f32 %v7406, %v7426
        %v7574 = vadd.f32 %v7407, %v7430
        %v7575 = vadd.f32 %v7408, %v7426
        %v7576 = vadd.f32 %v7409, %v7430
        %v7577 = vadd.f32 %v7410, %v7426
        %v7578 = vadd.f32 %v7411, %v7430
        %v7579 = vadd.f32 %v7412, %v7426
        %v7580 = vadd.f32 %v7413, %v7430
        %v7581 = vadd.f32 %v7414, %v7426
        %v7582 = vadd.f32 %v7415, %v7430
        %v7583 = vadd.f32 %v7416, %v7426
        %v7584 = vadd.f32 %v7417, %v7430
        %v7585 = vadd.f32 %v7418, %v7426
        %v7586 = vadd.f32 %v7419, %v7430
        %v7587 = vadd.f32 %v7420, %v7426
        %v7588 = vadd.f32 %v7421, %v7430
        %v7589 = vmax.f32 %v7433, 0.0
        %v7590 = vmax.f32 %v7434, 0.0
        %v7591 = vmax.f32 %v7435, 0.0
        %v7592 = vmax.f32 %v7436, 0.0
        %v7593 = vmax.f32 %v7437, 0.0
        %v7594 = vmax.f32 %v7438, 0.0
        %v7595 = vmax.f32 %v7439, 0.0
        %v7596 = vmax.f32 %v7440, 0.0
        %v7597 = vmax.f32 %v7441, 0.0
        %v7598 = vmax.f32 %v7442, 0.0
        %v7599 = vmax.f32 %v7443, 0.0
        %v7600 = vmax.f32 %v7444, 0.0
        %v7601 = vmax.f32 %v7445, 0.0
        %v7602 = vmax.f32 %v7446, 0.0
        %v7603 = vmax.f32 %v7447, 0.0
        %v7604 = vmax.f32 %v7448, 0.0
        %v7605 = vmax.f32 %v7449, 0.0
        %v7606 = vmax.f32 %v7450, 0.0
        %v7607 = vmax.f32 %v7451, 0.0
        %v7608 = vmax.f32 %v7452, 0.0
        %v7609 = vmax.f32 %v7453, 0.0
        %v7610 = vmax.f32 %v7454, 0.0
        %v7611 = vmax.f32 %v7455, 0.0
        %v7612 = vmax.f32 %v7456, 0.0
        %v7613 = vmax.f32 %v7457, 0.0
        %v7614 = vmax.f32 %v7458, 0.0
        %v7615 = vmax.f32 %v7459, 0.0
        %v7616 = vmax.f32 %v7460, 0.0
        %v7617 = vmax.f32 %v7461, 0.0
        %v7618 = vmax.f32 %v7462, 0.0
        %v7619 = vmax.f32 %v7463, 0.0
        %v7620 = vmax.f32 %v7464, 0.0
        %v7621 = vmax.f32 %v7465, 0.0
        %v7622 = vmax.f32 %v7466, 0.0
        %v7623 = vmax.f32 %v7467, 0.0
        %v7624 = vmax.f32 %v7468, 0.0
        %v7625 = vmax.f32 %v7469, 0.0
        %v7626 = vmax.f32 %v7470, 0.0
        %v7627 = vmax.f32 %v7471, 0.0
        %v7628 = vmax.f32 %v7472, 0.0
        %v7629 = vmax.f32 %v7473, 0.0
        %v7630 = vmax.f32 %v7474, 0.0
        %v7631 = vmax.f32 %v7475, 0.0
        %v7632 = vmax.f32 %v7476, 0.0
        %v7633 = vmax.f32 %v7477, 0.0
        %v7634 = vmax.f32 %v7478, 0.0
        %v7635 = vmax.f32 %v7479, 0.0
        %v7636 = vmax.f32 %v7480, 0.0
        %v7637 = vmax.f32 %v7481, 0.0
        %v7638 = vmax.f32 %v7482, 0.0
        %v7639 = vmax.f32 %v7483, 0.0
        %v7640 = vmax.f32 %v7484, 0.0
        %v7641 = vmax.f32 %v7485, 0.0
        %v7642 = vmax.f32 %v7486, 0.0
        %v7643 = vmax.f32 %v7487, 0.0
        %v7644 = vmax.f32 %v7488, 0.0
        %v7645 = vmax.f32 %v7489, 0.0
        %v7646 = vmax.f32 %v7490, 0.0
        %v7647 = vmax.f32 %v7491, 0.0
        %v7648 = vmax.f32 %v7492, 0.0
        %v7649 = vmax.f32 %v7493, 0.0
        %v7650 = vmax.f32 %v7494, 0.0
        %v7651 = vmax.f32 %v7495, 0.0
        %v7652 = vmax.f32 %v7496, 0.0
        %v7653 = vmax.f32 %v7497, 0.0
        %v7654 = vmax.f32 %v7498, 0.0
        %v7655 = vmax.f32 %v7499, 0.0
        %v7656 = vmax.f32 %v7500, 0.0
        %v7657 = vmax.f32 %v7501, 0.0
        %v7658 = vmax.f32 %v7502, 0.0
        %v7659 = vmax.f32 %v7503, 0.0
        %v7660 = vmax.f32 %v7504, 0.0
        %v7661 = vmax.f32 %v7505, 0.0
        %v7662 = vmax.f32 %v7506, 0.0
        %v7663 = vmax.f32 %v7507, 0.0
        %v7664 = vmax.f32 %v7508, 0.0
        %v7665 = vmax.f32 %v7509, 0.0
        %v7666 = vmax.f32 %v7510, 0.0
        %v7667 = vmax.f32 %v7511, 0.0
        %v7668 = vmax.f32 %v7512, 0.0
        %v7669 = vmax.f32 %v7513, 0.0
        %v7670 = vmax.f32 %v7514, 0.0
        %v7671 = vmax.f32 %v7515, 0.0
        %v7672 = vmax.f32 %v7516, 0.0
        %v7673 = vmax.f32 %v7517, 0.0
        %v7674 = vmax.f32 %v7518, 0.0
        %v7675 = vmax.f32 %v7519, 0.0
        %v7676 = vmax.f32 %v7520, 0.0
        %v7677 = vmax.f32 %v7521, 0.0
        %v7678 = vmax.f32 %v7522, 0.0
        %v7679 = vmax.f32 %v7523, 0.0
        %v7680 = vmax.f32 %v7524, 0.0
        %v7681 = vmax.f32 %v7525, 0.0
        %v7682 = vmax.f32 %v7526, 0.0
        %v7683 = vmax.f32 %v7527, 0.0
        %v7684 = vmax.f32 %v7528, 0.0
        %v7685 = vmax.f32 %v7529, 0.0
        %v7686 = vmax.f32 %v7530, 0.0
        %v7687 = vmax.f32 %v7531, 0.0
        %v7688 = vmax.f32 %v7532, 0.0
        %v7689 = vmax.f32 %v7533, 0.0
        %v7690 = vmax.f32 %v7534, 0.0
        %v7691 = vmax.f32 %v7535, 0.0
        %v7692 = vmax.f32 %v7536, 0.0
        %v7693 = vmax.f32 %v7537, 0.0
        %v7694 = vmax.f32 %v7538, 0.0
        %v7695 = vmax.f32 %v7539, 0.0
        %v7696 = vmax.f32 %v7540, 0.0
        %v7697 = vmax.f32 %v7541, 0.0
        %v7698 = vmax.f32 %v7542, 0.0
        %v7699 = vmax.f32 %v7543, 0.0
        %v7700 = vmax.f32 %v7544, 0.0
        %v7701 = vmax.f32 %v7545, 0.0
        %v7702 = vmax.f32 %v7546, 0.0
        %v7703 = vmax.f32 %v7547, 0.0
        %v7704 = vmax.f32 %v7548, 0.0
        %v7705 = vmax.f32 %v7549, 0.0
        %v7706 = vmax.f32 %v7550, 0.0
        %v7707 = vmax.f32 %v7551, 0.0
        %v7708 = vmax.f32 %v7552, 0.0
        %v7709 = vmax.f32 %v7553, 0.0
        %v7710 = vmax.f32 %v7554, 0.0
        %v7711 = vmax.f32 %v7555, 0.0
        %v7712 = vmax.f32 %v7556, 0.0
        %v7713 = vmax.f32 %v7557, 0.0
        %v7714 = vmax.f32 %v7558, 0.0
        %v7715 = vmax.f32 %v7559, 0.0
        %v7716 = vmax.f32 %v7560, 0.0
        %v7717 = vmax.f32 %v7561, 0.0
        %v7718 = vmax.f32 %v7562, 0.0
        %v7719 = vmax.f32 %v7563, 0.0
        %v7720 = vmax.f32 %v7564, 0.0
        %v7721 = vmax.f32 %v7565, 0.0
        %v7722 = vmax.f32 %v7566, 0.0
        %v7723 = vmax.f32 %v7567, 0.0
        %v7724 = vmax.f32 %v7568, 0.0
        %v7725 = vmax.f32 %v7569, 0.0
        %v7726 = vmax.f32 %v7570, 0.0
        %v7727 = vmax.f32 %v7571, 0.0
        %v7728 = vmax.f32 %v7572, 0.0
        %v7729 = vmax.f32 %v7573, 0.0
        %v7730 = vmax.f32 %v7574, 0.0
        %v7731 = vmax.f32 %v7575, 0.0
        %v7732 = vmax.f32 %v7576, 0.0
        %v7733 = vmax.f32 %v7577, 0.0
        %v7734 = vmax.f32 %v7578, 0.0
        %v7735 = vmax.f32 %v7579, 0.0
        %v7736 = vmax.f32 %v7580, 0.0
        %v7737 = vmax.f32 %v7581, 0.0
        %v7738 = vmax.f32 %v7582, 0.0
        %v7739 = vmax.f32 %v7583, 0.0
        %v7740 = vmax.f32 %v7584, 0.0
        %v7741 = vmax.f32 %v7585, 0.0
        %v7742 = vmax.f32 %v7586, 0.0
        %v7743 = vmax.f32 %v7587, 0.0
        %v7744 = vmax.f32 %v7588, 0.0
        %v7745 = vrot.slane %v7589, 1
        %v7746 = vrot.slane %v7590, 1
        %v7747 = vrot.slane %v7591, 1
        %v7748 = vrot.slane %v7592, 1
        %v7749 = vrot.slane %v7593, 1
        %v7750 = vrot.slane %v7594, 1
        %v7751 = vrot.slane %v7595, 1
        %v7752 = vrot.slane %v7596, 1
        %v7753 = vrot.slane %v7597, 1
        %v7754 = vrot.slane %v7598, 1
        %v7755 = vrot.slane %v7599, 1
        %v7756 = vrot.slane %v7600, 1
        %v7757 = vrot.slane %v7601, 1
        %v7758 = vrot.slane %v7602, 1
        %v7759 = vrot.slane %v7603, 1
        %v7760 = vrot.slane %v7604, 1
        %v7761 = vrot.slane %v7605, 1
        %v7762 = vrot.slane %v7606, 1
        %v7763 = vrot.slane %v7607, 1
        %v7764 = vrot.slane %v7608, 1
        %v7765 = vrot.slane %v7609, 1
        %v7766 = vrot.slane %v7610, 1
        %v7767 = vrot.slane %v7611, 1
        %v7768 = vrot.slane %v7612, 1
        %v7769 = vrot.slane %v7613, 1
        %v7770 = vrot.slane %v7614, 1
        %v7771 = vrot.slane %v7615, 1
        %v7772 = vrot.slane %v7616, 1
        %v7773 = vrot.slane %v7617, 1
        %v7774 = vrot.slane %v7618, 1
        %v7775 = vrot.slane %v7619, 1
        %v7776 = vrot.slane %v7620, 1
        %v7777 = vrot.slane %v7621, 1
        %v7778 = vrot.slane %v7622, 1
        %v7779 = vrot.slane %v7623, 1
        %v7780 = vrot.slane %v7624, 1
        %v7781 = vrot.slane %v7625, 1
        %v7782 = vrot.slane %v7626, 1
        %v7783 = vrot.slane %v7627, 1
        %v7784 = vrot.slane %v7628, 1
        %v7785 = vrot.slane %v7629, 1
        %v7786 = vrot.slane %v7630, 1
        %v7787 = vrot.slane %v7631, 1
        %v7788 = vrot.slane %v7632, 1
        %v7789 = vrot.slane %v7633, 1
        %v7790 = vrot.slane %v7634, 1
        %v7791 = vrot.slane %v7635, 1
        %v7792 = vrot.slane %v7636, 1
        %v7793 = vrot.slane %v7637, 1
        %v7794 = vrot.slane %v7638, 1
        %v7795 = vrot.slane %v7639, 1
        %v7796 = vrot.slane %v7640, 1
        %v7797 = vrot.slane %v7641, 1
        %v7798 = vrot.slane %v7642, 1
        %v7799 = vrot.slane %v7643, 1
        %v7800 = vrot.slane %v7644, 1
        %v7801 = vrot.slane %v7645, 1
        %v7802 = vrot.slane %v7646, 1
        %v7803 = vrot.slane %v7647, 1
        %v7804 = vrot.slane %v7648, 1
        %v7805 = vrot.slane %v7649, 1
        %v7806 = vrot.slane %v7650, 1
        %v7807 = vrot.slane %v7651, 1
        %v7808 = vrot.slane %v7652, 1
        %v7809 = vrot.slane %v7653, 1
        %v7810 = vrot.slane %v7654, 1
        %v7811 = vrot.slane %v7655, 1
        %v7812 = vrot.slane %v7656, 1
        %v7813 = vrot.slane %v7657, 1
        %v7814 = vrot.slane %v7658, 1
        %v7815 = vrot.slane %v7659, 1
        %v7816 = vrot.slane %v7660, 1
        %v7817 = vrot.slane %v7661, 1
        %v7818 = vrot.slane %v7662, 1
        %v7819 = vrot.slane %v7663, 1
        %v7820 = vrot.slane %v7664, 1
        %v7821 = vrot.slane %v7665, 1
        %v7822 = vrot.slane %v7666, 1
        %v7823 = vrot.slane %v7667, 1
        %v7824 = vrot.slane %v7668, 1
        %v7825 = vrot.slane %v7669, 1
        %v7826 = vrot.slane %v7670, 1
        %v7827 = vrot.slane %v7671, 1
        %v7828 = vrot.slane %v7672, 1
        %v7829 = vrot.slane %v7673, 1
        %v7830 = vrot.slane %v7674, 1
        %v7831 = vrot.slane %v7675, 1
        %v7832 = vrot.slane %v7676, 1
        %v7833 = vrot.slane %v7677, 1
        %v7834 = vrot.slane %v7678, 1
        %v7835 = vrot.slane %v7679, 1
        %v7836 = vrot.slane %v7680, 1
        %v7837 = vrot.slane %v7681, 1
        %v7838 = vrot.slane %v7682, 1
        %v7839 = vrot.slane %v7683, 1
        %v7840 = vrot.slane %v7684, 1
        %v7841 = vrot.slane %v7685, 1
        %v7842 = vrot.slane %v7686, 1
        %v7843 = vrot.slane %v7687, 1
        %v7844 = vrot.slane %v7688, 1
        %v7845 = vrot.slane %v7689, 1
        %v7846 = vrot.slane %v7690, 1
        %v7847 = vrot.slane %v7691, 1
        %v7848 = vrot.slane %v7692, 1
        %v7849 = vrot.slane %v7693, 1
        %v7850 = vrot.slane %v7694, 1
        %v7851 = vrot.slane %v7695, 1
        %v7852 = vrot.slane %v7696, 1
        %v7853 = vrot.slane %v7697, 1
        %v7854 = vrot.slane %v7698, 1
        %v7855 = vrot.slane %v7699, 1
        %v7856 = vrot.slane %v7700, 1
        %v7857 = vrot.slane %v7701, 1
        %v7858 = vrot.slane %v7702, 1
        %v7859 = vrot.slane %v7703, 1
        %v7860 = vrot.slane %v7704, 1
        %v7861 = vrot.slane %v7705, 1
        %v7862 = vrot.slane %v7706, 1
        %v7863 = vrot.slane %v7707, 1
        %v7864 = vrot.slane %v7708, 1
        %v7865 = vrot.slane %v7709, 1
        %v7866 = vrot.slane %v7710, 1
        %v7867 = vrot.slane %v7711, 1
        %v7868 = vrot.slane %v7712, 1
        %v7869 = vrot.slane %v7713, 1
        %v7870 = vrot.slane %v7714, 1
        %v7871 = vrot.slane %v7715, 1
        %v7872 = vrot.slane %v7716, 1
        %v7873 = vrot.slane %v7717, 1
        %v7874 = vrot.slane %v7718, 1
        %v7875 = vrot.slane %v7719, 1
        %v7876 = vrot.slane %v7720, 1
        %v7877 = vrot.slane %v7721, 1
        %v7878 = vrot.slane %v7722, 1
        %v7879 = vrot.slane %v7723, 1
        %v7880 = vrot.slane %v7724, 1
        %v7881 = vrot.slane %v7725, 1
        %v7882 = vrot.slane %v7726, 1
        %v7883 = vrot.slane %v7727, 1
        %v7884 = vrot.slane %v7728, 1
        %v7885 = vrot.slane %v7729, 1
        %v7886 = vrot.slane %v7730, 1
        %v7887 = vrot.slane %v7731, 1
        %v7888 = vrot.slane %v7732, 1
        %v7889 = vrot.slane %v7733, 1
        %v7890 = vrot.slane %v7734, 1
        %v7891 = vrot.slane %v7735, 1
        %v7892 = vrot.slane %v7736, 1
        %v7893 = vrot.slane %v7737, 1
        %v7894 = vrot.slane %v7738, 1
        %v7895 = vrot.slane %v7739, 1
        %v7896 = vrot.slane %v7740, 1
        %v7897 = vrot.slane %v7741, 1
        %v7898 = vrot.slane %v7742, 1
        %v7899 = vrot.slane %v7743, 1
        %v7900 = vrot.slane %v7744, 1
        %v7901 = vsel %vm5630, %v7897, %v7899
        %v7902 = vsel %vm5630, %v7898, %v7900
        %v7903 = vsel %vm5630, %v7895, %v7897
        %v7904 = vsel %vm5630, %v7896, %v7898
        %v7905 = vsel %vm5630, %v7893, %v7895
        %v7906 = vsel %vm5630, %v7894, %v7896
        %v7907 = vsel %vm5630, %v7891, %v7893
        %v7908 = vsel %vm5630, %v7892, %v7894
        %v7909 = vsel %vm5630, %v7889, %v7891
        %v7910 = vsel %vm5630, %v7890, %v7892
        %v7911 = vsel %vm5630, %v7887, %v7889
        %v7912 = vsel %vm5630, %v7888, %v7890
        %v7913 = vsel %vm5630, %v7885, %v7887
        %v7914 = vsel %vm5630, %v7886, %v7888
        %v7915 = vsel %vm5630, %v7883, %v7885
        %v7916 = vsel %vm5630, %v7884, %v7886
        %v7917 = vsel %vm5630, %v7881, %v7883
        %v7918 = vsel %vm5630, %v7882, %v7884
        %v7919 = vsel %vm5630, %v7879, %v7881
        %v7920 = vsel %vm5630, %v7880, %v7882
        %v7921 = vsel %vm5630, %v7877, %v7879
        %v7922 = vsel %vm5630, %v7878, %v7880
        %v7923 = vsel %vm5630, %v7875, %v7877
        %v7924 = vsel %vm5630, %v7876, %v7878
        %v7925 = vsel %vm5630, %v7873, %v7875
        %v7926 = vsel %vm5630, %v7874, %v7876
        %v7927 = vsel %vm5630, %v7871, %v7873
        %v7928 = vsel %vm5630, %v7872, %v7874
        %v7929 = vsel %vm5630, %v7869, %v7871
        %v7930 = vsel %vm5630, %v7870, %v7872
        %v7931 = vsel %vm5630, %v7867, %v7869
        %v7932 = vsel %vm5630, %v7868, %v7870
        %v7933 = vsel %vm5630, %v7865, %v7867
        %v7934 = vsel %vm5630, %v7866, %v7868
        %v7935 = vsel %vm5630, %v7863, %v7865
        %v7936 = vsel %vm5630, %v7864, %v7866
        %v7937 = vsel %vm5630, %v7861, %v7863
        %v7938 = vsel %vm5630, %v7862, %v7864
        %v7939 = vsel %vm5630, %v7859, %v7861
        %v7940 = vsel %vm5630, %v7860, %v7862
        %v7941 = vsel %vm5630, %v7857, %v7859
        %v7942 = vsel %vm5630, %v7858, %v7860
        %v7943 = vsel %vm5630, %v7855, %v7857
        %v7944 = vsel %vm5630, %v7856, %v7858
        %v7945 = vsel %vm5630, %v7853, %v7855
        %v7946 = vsel %vm5630, %v7854, %v7856
        %v7947 = vsel %vm5630, %v7851, %v7853
        %v7948 = vsel %vm5630, %v7852, %v7854
        %v7949 = vsel %vm5630, %v7849, %v7851
        %v7950 = vsel %vm5630, %v7850, %v7852
        %v7951 = vsel %vm5630, %v7847, %v7849
        %v7952 = vsel %vm5630, %v7848, %v7850
        %v7953 = vsel %vm5630, %v7845, %v7847
        %v7954 = vsel %vm5630, %v7846, %v7848
        %v7955 = vsel %vm5630, %v7843, %v7845
        %v7956 = vsel %vm5630, %v7844, %v7846
        %v7957 = vsel %vm5630, %v7841, %v7843
        %v7958 = vsel %vm5630, %v7842, %v7844
        %v7959 = vsel %vm5630, %v7839, %v7841
        %v7960 = vsel %vm5630, %v7840, %v7842
        %v7961 = vsel %vm5630, %v7837, %v7839
        %v7962 = vsel %vm5630, %v7838, %v7840
        %v7963 = vsel %vm5630, %v7835, %v7837
        %v7964 = vsel %vm5630, %v7836, %v7838
        %v7965 = vsel %vm5630, %v7833, %v7835
        %v7966 = vsel %vm5630, %v7834, %v7836
        %v7967 = vsel %vm5630, %v7831, %v7833
        %v7968 = vsel %vm5630, %v7832, %v7834
        %v7969 = vsel %vm5630, %v7829, %v7831
        %v7970 = vsel %vm5630, %v7830, %v7832
        %v7971 = vsel %vm5630, %v7827, %v7829
        %v7972 = vsel %vm5630, %v7828, %v7830
        %v7973 = vsel %vm5630, %v7825, %v7827
        %v7974 = vsel %vm5630, %v7826, %v7828
        %v7975 = vsel %vm5630, %v7823, %v7825
        %v7976 = vsel %vm5630, %v7824, %v7826
        %v7977 = vsel %vm5630, %v7821, %v7823
        %v7978 = vsel %vm5630, %v7822, %v7824
        %v7979 = vsel %vm5630, %v7819, %v7821
        %v7980 = vsel %vm5630, %v7820, %v7822
        %v7981 = vsel %vm5630, %v7817, %v7819
        %v7982 = vsel %vm5630, %v7818, %v7820
        %v7983 = vsel %vm5630, %v7815, %v7817
        %v7984 = vsel %vm5630, %v7816, %v7818
        %v7985 = vsel %vm5630, %v7813, %v7815
        %v7986 = vsel %vm5630, %v7814, %v7816
        %v7987 = vsel %vm5630, %v7811, %v7813
        %v7988 = vsel %vm5630, %v7812, %v7814
        %v7989 = vsel %vm5630, %v7809, %v7811
        %v7990 = vsel %vm5630, %v7810, %v7812
        %v7991 = vsel %vm5630, %v7807, %v7809
        %v7992 = vsel %vm5630, %v7808, %v7810
        %v7993 = vsel %vm5630, %v7805, %v7807
        %v7994 = vsel %vm5630, %v7806, %v7808
        %v7995 = vsel %vm5630, %v7803, %v7805
        %v7996 = vsel %vm5630, %v7804, %v7806
        %v7997 = vsel %vm5630, %v7801, %v7803
        %v7998 = vsel %vm5630, %v7802, %v7804
        %v7999 = vsel %vm5630, %v7799, %v7801
        %v8000 = vsel %vm5630, %v7800, %v7802
        %v8001 = vsel %vm5630, %v7797, %v7799
        %v8002 = vsel %vm5630, %v7798, %v7800
        %v8003 = vsel %vm5630, %v7795, %v7797
        %v8004 = vsel %vm5630, %v7796, %v7798
        %v8005 = vsel %vm5630, %v7793, %v7795
        %v8006 = vsel %vm5630, %v7794, %v7796
        %v8007 = vsel %vm5630, %v7791, %v7793
        %v8008 = vsel %vm5630, %v7792, %v7794
        %v8009 = vsel %vm5630, %v7789, %v7791
        %v8010 = vsel %vm5630, %v7790, %v7792
        %v8011 = vsel %vm5630, %v7787, %v7789
        %v8012 = vsel %vm5630, %v7788, %v7790
        %v8013 = vsel %vm5630, %v7785, %v7787
        %v8014 = vsel %vm5630, %v7786, %v7788
        %v8015 = vsel %vm5630, %v7783, %v7785
        %v8016 = vsel %vm5630, %v7784, %v7786
        %v8017 = vsel %vm5630, %v7781, %v7783
        %v8018 = vsel %vm5630, %v7782, %v7784
        %v8019 = vsel %vm5630, %v7779, %v7781
        %v8020 = vsel %vm5630, %v7780, %v7782
        %v8021 = vsel %vm5630, %v7777, %v7779
        %v8022 = vsel %vm5630, %v7778, %v7780
        %v8023 = vsel %vm5630, %v7775, %v7777
        %v8024 = vsel %vm5630, %v7776, %v7778
        %v8025 = vsel %vm5630, %v7773, %v7775
        %v8026 = vsel %vm5630, %v7774, %v7776
        %v8027 = vsel %vm5630, %v7771, %v7773
        %v8028 = vsel %vm5630, %v7772, %v7774
        %v8029 = vsel %vm5630, %v7769, %v7771
        %v8030 = vsel %vm5630, %v7770, %v7772
        %v8031 = vsel %vm5630, %v7767, %v7769
        %v8032 = vsel %vm5630, %v7768, %v7770
        %v8033 = vsel %vm5630, %v7765, %v7767
        %v8034 = vsel %vm5630, %v7766, %v7768
        %v8035 = vsel %vm5630, %v7763, %v7765
        %v8036 = vsel %vm5630, %v7764, %v7766
        %v8037 = vsel %vm5630, %v7761, %v7763
        %v8038 = vsel %vm5630, %v7762, %v7764
        %v8039 = vsel %vm5630, %v7759, %v7761
        %v8040 = vsel %vm5630, %v7760, %v7762
        %v8041 = vsel %vm5630, %v7757, %v7759
        %v8042 = vsel %vm5630, %v7758, %v7760
        %v8043 = vsel %vm5630, %v7755, %v7757
        %v8044 = vsel %vm5630, %v7756, %v7758
        %v8045 = vsel %vm5630, %v7753, %v7755
        %v8046 = vsel %vm5630, %v7754, %v7756
        %v8047 = vsel %vm5630, %v7751, %v7753
        %v8048 = vsel %vm5630, %v7752, %v7754
        %v8049 = vsel %vm5630, %v7749, %v7751
        %v8050 = vsel %vm5630, %v7750, %v7752
        %v8051 = vsel %vm5630, %v7747, %v7749
        %v8052 = vsel %vm5630, %v7748, %v7750
        %v8053 = vsel %vm5630, %v7745, %v7747
        %v8054 = vsel %vm5630, %v7746, %v7748
        %v8055 = vsel %vm5630, %v7899, %v7745
        %v8056 = vsel %vm5630, %v7900, %v7746
        %v8057 = vmax.f32 %v7589, %v8053
        %v8058 = vmax.f32 %v7590, %v8054
        %v8059 = vmax.f32 %v7591, %v8051
        %v8060 = vmax.f32 %v7592, %v8052
        %v8061 = vmax.f32 %v7593, %v8049
        %v8062 = vmax.f32 %v7594, %v8050
        %v8063 = vmax.f32 %v7595, %v8047
        %v8064 = vmax.f32 %v7596, %v8048
        %v8065 = vmax.f32 %v7597, %v8045
        %v8066 = vmax.f32 %v7598, %v8046
        %v8067 = vmax.f32 %v7599, %v8043
        %v8068 = vmax.f32 %v7600, %v8044
        %v8069 = vmax.f32 %v7601, %v8041
        %v8070 = vmax.f32 %v7602, %v8042
        %v8071 = vmax.f32 %v7603, %v8039
        %v8072 = vmax.f32 %v7604, %v8040
        %v8073 = vmax.f32 %v7605, %v8037
        %v8074 = vmax.f32 %v7606, %v8038
        %v8075 = vmax.f32 %v7607, %v8035
        %v8076 = vmax.f32 %v7608, %v8036
        %v8077 = vmax.f32 %v7609, %v8033
        %v8078 = vmax.f32 %v7610, %v8034
        %v8079 = vmax.f32 %v7611, %v8031
        %v8080 = vmax.f32 %v7612, %v8032
        %v8081 = vmax.f32 %v7613, %v8029
        %v8082 = vmax.f32 %v7614, %v8030
        %v8083 = vmax.f32 %v7615, %v8027
        %v8084 = vmax.f32 %v7616, %v8028
        %v8085 = vmax.f32 %v7617, %v8025
        %v8086 = vmax.f32 %v7618, %v8026
        %v8087 = vmax.f32 %v7619, %v8023
        %v8088 = vmax.f32 %v7620, %v8024
        %v8089 = vmax.f32 %v7621, %v8021
        %v8090 = vmax.f32 %v7622, %v8022
        %v8091 = vmax.f32 %v7623, %v8019
        %v8092 = vmax.f32 %v7624, %v8020
        %v8093 = vmax.f32 %v7625, %v8017
        %v8094 = vmax.f32 %v7626, %v8018
        %v8095 = vmax.f32 %v7627, %v8015
        %v8096 = vmax.f32 %v7628, %v8016
        %v8097 = vmax.f32 %v7629, %v8013
        %v8098 = vmax.f32 %v7630, %v8014
        %v8099 = vmax.f32 %v7631, %v8011
        %v8100 = vmax.f32 %v7632, %v8012
        %v8101 = vmax.f32 %v7633, %v8009
        %v8102 = vmax.f32 %v7634, %v8010
        %v8103 = vmax.f32 %v7635, %v8007
        %v8104 = vmax.f32 %v7636, %v8008
        %v8105 = vmax.f32 %v7637, %v8005
        %v8106 = vmax.f32 %v7638, %v8006
        %v8107 = vmax.f32 %v7639, %v8003
        %v8108 = vmax.f32 %v7640, %v8004
        %v8109 = vmax.f32 %v7641, %v8001
        %v8110 = vmax.f32 %v7642, %v8002
        %v8111 = vmax.f32 %v7643, %v7999
        %v8112 = vmax.f32 %v7644, %v8000
        %v8113 = vmax.f32 %v7645, %v7997
        %v8114 = vmax.f32 %v7646, %v7998
        %v8115 = vmax.f32 %v7647, %v7995
        %v8116 = vmax.f32 %v7648, %v7996
        %v8117 = vmax.f32 %v7649, %v7993
        %v8118 = vmax.f32 %v7650, %v7994
        %v8119 = vmax.f32 %v7651, %v7991
        %v8120 = vmax.f32 %v7652, %v7992
        %v8121 = vmax.f32 %v7653, %v7989
        %v8122 = vmax.f32 %v7654, %v7990
        %v8123 = vmax.f32 %v7655, %v7987
        %v8124 = vmax.f32 %v7656, %v7988
        %v8125 = vmax.f32 %v7657, %v7985
        %v8126 = vmax.f32 %v7658, %v7986
        %v8127 = vmax.f32 %v7659, %v7983
        %v8128 = vmax.f32 %v7660, %v7984
        %v8129 = vmax.f32 %v7661, %v7981
        %v8130 = vmax.f32 %v7662, %v7982
        %v8131 = vmax.f32 %v7663, %v7979
        %v8132 = vmax.f32 %v7664, %v7980
        %v8133 = vmax.f32 %v7665, %v7977
        %v8134 = vmax.f32 %v7666, %v7978
        %v8135 = vmax.f32 %v7667, %v7975
        %v8136 = vmax.f32 %v7668, %v7976
        %v8137 = vmax.f32 %v7669, %v7973
        %v8138 = vmax.f32 %v7670, %v7974
        %v8139 = vmax.f32 %v7671, %v7971
        %v8140 = vmax.f32 %v7672, %v7972
        %v8141 = vmax.f32 %v7673, %v7969
        %v8142 = vmax.f32 %v7674, %v7970
        %v8143 = vmax.f32 %v7675, %v7967
        %v8144 = vmax.f32 %v7676, %v7968
        %v8145 = vmax.f32 %v7677, %v7965
        %v8146 = vmax.f32 %v7678, %v7966
        %v8147 = vmax.f32 %v7679, %v7963
        %v8148 = vmax.f32 %v7680, %v7964
        %v8149 = vmax.f32 %v7681, %v7961
        %v8150 = vmax.f32 %v7682, %v7962
        %v8151 = vmax.f32 %v7683, %v7959
        %v8152 = vmax.f32 %v7684, %v7960
        %v8153 = vmax.f32 %v7685, %v7957
        %v8154 = vmax.f32 %v7686, %v7958
        %v8155 = vmax.f32 %v7687, %v7955
        %v8156 = vmax.f32 %v7688, %v7956
        %v8157 = vmax.f32 %v7689, %v7953
        %v8158 = vmax.f32 %v7690, %v7954
        %v8159 = vmax.f32 %v7691, %v7951
        %v8160 = vmax.f32 %v7692, %v7952
        %v8161 = vmax.f32 %v7693, %v7949
        %v8162 = vmax.f32 %v7694, %v7950
        %v8163 = vmax.f32 %v7695, %v7947
        %v8164 = vmax.f32 %v7696, %v7948
        %v8165 = vmax.f32 %v7697, %v7945
        %v8166 = vmax.f32 %v7698, %v7946
        %v8167 = vmax.f32 %v7699, %v7943
        %v8168 = vmax.f32 %v7700, %v7944
        %v8169 = vmax.f32 %v7701, %v7941
        %v8170 = vmax.f32 %v7702, %v7942
        %v8171 = vmax.f32 %v7703, %v7939
        %v8172 = vmax.f32 %v7704, %v7940
        %v8173 = vmax.f32 %v7705, %v7937
        %v8174 = vmax.f32 %v7706, %v7938
        %v8175 = vmax.f32 %v7707, %v7935
        %v8176 = vmax.f32 %v7708, %v7936
        %v8177 = vmax.f32 %v7709, %v7933
        %v8178 = vmax.f32 %v7710, %v7934
        %v8179 = vmax.f32 %v7711, %v7931
        %v8180 = vmax.f32 %v7712, %v7932
        %v8181 = vmax.f32 %v7713, %v7929
        %v8182 = vmax.f32 %v7714, %v7930
        %v8183 = vmax.f32 %v7715, %v7927
        %v8184 = vmax.f32 %v7716, %v7928
        %v8185 = vmax.f32 %v7717, %v7925
        %v8186 = vmax.f32 %v7718, %v7926
        %v8187 = vmax.f32 %v7719, %v7923
        %v8188 = vmax.f32 %v7720, %v7924
        %v8189 = vmax.f32 %v7721, %v7921
        %v8190 = vmax.f32 %v7722, %v7922
        %v8191 = vmax.f32 %v7723, %v7919
        %v8192 = vmax.f32 %v7724, %v7920
        %v8193 = vmax.f32 %v7725, %v7917
        %v8194 = vmax.f32 %v7726, %v7918
        %v8195 = vmax.f32 %v7727, %v7915
        %v8196 = vmax.f32 %v7728, %v7916
        %v8197 = vmax.f32 %v7729, %v7913
        %v8198 = vmax.f32 %v7730, %v7914
        %v8199 = vmax.f32 %v7731, %v7911
        %v8200 = vmax.f32 %v7732, %v7912
        %v8201 = vmax.f32 %v7733, %v7909
        %v8202 = vmax.f32 %v7734, %v7910
        %v8203 = vmax.f32 %v7735, %v7907
        %v8204 = vmax.f32 %v7736, %v7908
        %v8205 = vmax.f32 %v7737, %v7905
        %v8206 = vmax.f32 %v7738, %v7906
        %v8207 = vmax.f32 %v7739, %v7903
        %v8208 = vmax.f32 %v7740, %v7904
        %v8209 = vmax.f32 %v7741, %v7901
        %v8210 = vmax.f32 %v7742, %v7902
        %v8211 = vmax.f32 %v7743, %v8055
        %v8212 = vmax.f32 %v7744, %v8056
        %v8213 = vrot.slane %v7589, 2
        %v8214 = vrot.slane %v7590, 2
        %v8215 = vrot.slane %v7591, 2
        %v8216 = vrot.slane %v7592, 2
        %v8217 = vrot.slane %v7593, 2
        %v8218 = vrot.slane %v7594, 2
        %v8219 = vrot.slane %v7595, 2
        %v8220 = vrot.slane %v7596, 2
        %v8221 = vrot.slane %v7597, 2
        %v8222 = vrot.slane %v7598, 2
        %v8223 = vrot.slane %v7599, 2
        %v8224 = vrot.slane %v7600, 2
        %v8225 = vrot.slane %v7601, 2
        %v8226 = vrot.slane %v7602, 2
        %v8227 = vrot.slane %v7603, 2
        %v8228 = vrot.slane %v7604, 2
        %v8229 = vrot.slane %v7605, 2
        %v8230 = vrot.slane %v7606, 2
        %v8231 = vrot.slane %v7607, 2
        %v8232 = vrot.slane %v7608, 2
        %v8233 = vrot.slane %v7609, 2
        %v8234 = vrot.slane %v7610, 2
        %v8235 = vrot.slane %v7611, 2
        %v8236 = vrot.slane %v7612, 2
        %v8237 = vrot.slane %v7613, 2
        %v8238 = vrot.slane %v7614, 2
        %v8239 = vrot.slane %v7615, 2
        %v8240 = vrot.slane %v7616, 2
        %v8241 = vrot.slane %v7617, 2
        %v8242 = vrot.slane %v7618, 2
        %v8243 = vrot.slane %v7619, 2
        %v8244 = vrot.slane %v7620, 2
        %v8245 = vrot.slane %v7621, 2
        %v8246 = vrot.slane %v7622, 2
        %v8247 = vrot.slane %v7623, 2
        %v8248 = vrot.slane %v7624, 2
        %v8249 = vrot.slane %v7625, 2
        %v8250 = vrot.slane %v7626, 2
        %v8251 = vrot.slane %v7627, 2
        %v8252 = vrot.slane %v7628, 2
        %v8253 = vrot.slane %v7629, 2
        %v8254 = vrot.slane %v7630, 2
        %v8255 = vrot.slane %v7631, 2
        %v8256 = vrot.slane %v7632, 2
        %v8257 = vrot.slane %v7633, 2
        %v8258 = vrot.slane %v7634, 2
        %v8259 = vrot.slane %v7635, 2
        %v8260 = vrot.slane %v7636, 2
        %v8261 = vrot.slane %v7637, 2
        %v8262 = vrot.slane %v7638, 2
        %v8263 = vrot.slane %v7639, 2
        %v8264 = vrot.slane %v7640, 2
        %v8265 = vrot.slane %v7641, 2
        %v8266 = vrot.slane %v7642, 2
        %v8267 = vrot.slane %v7643, 2
        %v8268 = vrot.slane %v7644, 2
        %v8269 = vrot.slane %v7645, 2
        %v8270 = vrot.slane %v7646, 2
        %v8271 = vrot.slane %v7647, 2
        %v8272 = vrot.slane %v7648, 2
        %v8273 = vrot.slane %v7649, 2
        %v8274 = vrot.slane %v7650, 2
        %v8275 = vrot.slane %v7651, 2
        %v8276 = vrot.slane %v7652, 2
        %v8277 = vrot.slane %v7653, 2
        %v8278 = vrot.slane %v7654, 2
        %v8279 = vrot.slane %v7655, 2
        %v8280 = vrot.slane %v7656, 2
        %v8281 = vrot.slane %v7657, 2
        %v8282 = vrot.slane %v7658, 2
        %v8283 = vrot.slane %v7659, 2
        %v8284 = vrot.slane %v7660, 2
        %v8285 = vrot.slane %v7661, 2
        %v8286 = vrot.slane %v7662, 2
        %v8287 = vrot.slane %v7663, 2
        %v8288 = vrot.slane %v7664, 2
        %v8289 = vrot.slane %v7665, 2
        %v8290 = vrot.slane %v7666, 2
        %v8291 = vrot.slane %v7667, 2
        %v8292 = vrot.slane %v7668, 2
        %v8293 = vrot.slane %v7669, 2
        %v8294 = vrot.slane %v7670, 2
        %v8295 = vrot.slane %v7671, 2
        %v8296 = vrot.slane %v7672, 2
        %v8297 = vrot.slane %v7673, 2
        %v8298 = vrot.slane %v7674, 2
        %v8299 = vrot.slane %v7675, 2
        %v8300 = vrot.slane %v7676, 2
        %v8301 = vrot.slane %v7677, 2
        %v8302 = vrot.slane %v7678, 2
        %v8303 = vrot.slane %v7679, 2
        %v8304 = vrot.slane %v7680, 2
        %v8305 = vrot.slane %v7681, 2
        %v8306 = vrot.slane %v7682, 2
        %v8307 = vrot.slane %v7683, 2
        %v8308 = vrot.slane %v7684, 2
        %v8309 = vrot.slane %v7685, 2
        %v8310 = vrot.slane %v7686, 2
        %v8311 = vrot.slane %v7687, 2
        %v8312 = vrot.slane %v7688, 2
        %v8313 = vrot.slane %v7689, 2
        %v8314 = vrot.slane %v7690, 2
        %v8315 = vrot.slane %v7691, 2
        %v8316 = vrot.slane %v7692, 2
        %v8317 = vrot.slane %v7693, 2
        %v8318 = vrot.slane %v7694, 2
        %v8319 = vrot.slane %v7695, 2
        %v8320 = vrot.slane %v7696, 2
        %v8321 = vrot.slane %v7697, 2
        %v8322 = vrot.slane %v7698, 2
        %v8323 = vrot.slane %v7699, 2
        %v8324 = vrot.slane %v7700, 2
        %v8325 = vrot.slane %v7701, 2
        %v8326 = vrot.slane %v7702, 2
        %v8327 = vrot.slane %v7703, 2
        %v8328 = vrot.slane %v7704, 2
        %v8329 = vrot.slane %v7705, 2
        %v8330 = vrot.slane %v7706, 2
        %v8331 = vrot.slane %v7707, 2
        %v8332 = vrot.slane %v7708, 2
        %v8333 = vrot.slane %v7709, 2
        %v8334 = vrot.slane %v7710, 2
        %v8335 = vrot.slane %v7711, 2
        %v8336 = vrot.slane %v7712, 2
        %v8337 = vrot.slane %v7713, 2
        %v8338 = vrot.slane %v7714, 2
        %v8339 = vrot.slane %v7715, 2
        %v8340 = vrot.slane %v7716, 2
        %v8341 = vrot.slane %v7717, 2
        %v8342 = vrot.slane %v7718, 2
        %v8343 = vrot.slane %v7719, 2
        %v8344 = vrot.slane %v7720, 2
        %v8345 = vrot.slane %v7721, 2
        %v8346 = vrot.slane %v7722, 2
        %v8347 = vrot.slane %v7723, 2
        %v8348 = vrot.slane %v7724, 2
        %v8349 = vrot.slane %v7725, 2
        %v8350 = vrot.slane %v7726, 2
        %v8351 = vrot.slane %v7727, 2
        %v8352 = vrot.slane %v7728, 2
        %v8353 = vrot.slane %v7729, 2
        %v8354 = vrot.slane %v7730, 2
        %v8355 = vrot.slane %v7731, 2
        %v8356 = vrot.slane %v7732, 2
        %v8357 = vrot.slane %v7733, 2
        %v8358 = vrot.slane %v7734, 2
        %v8359 = vrot.slane %v7735, 2
        %v8360 = vrot.slane %v7736, 2
        %v8361 = vrot.slane %v7737, 2
        %v8362 = vrot.slane %v7738, 2
        %v8363 = vrot.slane %v7739, 2
        %v8364 = vrot.slane %v7740, 2
        %v8365 = vrot.slane %v7741, 2
        %v8366 = vrot.slane %v7742, 2
        %v8367 = vrot.slane %v7743, 2
        %v8368 = vrot.slane %v7744, 2
        %v8369 = vsel %vm7109, %v8365, %v8367
        %v8370 = vsel %vm7109, %v8366, %v8368
        %v8371 = vsel %vm7109, %v8363, %v8365
        %v8372 = vsel %vm7109, %v8364, %v8366
        %v8373 = vsel %vm7109, %v8361, %v8363
        %v8374 = vsel %vm7109, %v8362, %v8364
        %v8375 = vsel %vm7109, %v8359, %v8361
        %v8376 = vsel %vm7109, %v8360, %v8362
        %v8377 = vsel %vm7109, %v8357, %v8359
        %v8378 = vsel %vm7109, %v8358, %v8360
        %v8379 = vsel %vm7109, %v8355, %v8357
        %v8380 = vsel %vm7109, %v8356, %v8358
        %v8381 = vsel %vm7109, %v8353, %v8355
        %v8382 = vsel %vm7109, %v8354, %v8356
        %v8383 = vsel %vm7109, %v8351, %v8353
        %v8384 = vsel %vm7109, %v8352, %v8354
        %v8385 = vsel %vm7109, %v8349, %v8351
        %v8386 = vsel %vm7109, %v8350, %v8352
        %v8387 = vsel %vm7109, %v8347, %v8349
        %v8388 = vsel %vm7109, %v8348, %v8350
        %v8389 = vsel %vm7109, %v8345, %v8347
        %v8390 = vsel %vm7109, %v8346, %v8348
        %v8391 = vsel %vm7109, %v8343, %v8345
        %v8392 = vsel %vm7109, %v8344, %v8346
        %v8393 = vsel %vm7109, %v8341, %v8343
        %v8394 = vsel %vm7109, %v8342, %v8344
        %v8395 = vsel %vm7109, %v8339, %v8341
        %v8396 = vsel %vm7109, %v8340, %v8342
        %v8397 = vsel %vm7109, %v8337, %v8339
        %v8398 = vsel %vm7109, %v8338, %v8340
        %v8399 = vsel %vm7109, %v8335, %v8337
        %v8400 = vsel %vm7109, %v8336, %v8338
        %v8401 = vsel %vm7109, %v8333, %v8335
        %v8402 = vsel %vm7109, %v8334, %v8336
        %v8403 = vsel %vm7109, %v8331, %v8333
        %v8404 = vsel %vm7109, %v8332, %v8334
        %v8405 = vsel %vm7109, %v8329, %v8331
        %v8406 = vsel %vm7109, %v8330, %v8332
        %v8407 = vsel %vm7109, %v8327, %v8329
        %v8408 = vsel %vm7109, %v8328, %v8330
        %v8409 = vsel %vm7109, %v8325, %v8327
        %v8410 = vsel %vm7109, %v8326, %v8328
        %v8411 = vsel %vm7109, %v8323, %v8325
        %v8412 = vsel %vm7109, %v8324, %v8326
        %v8413 = vsel %vm7109, %v8321, %v8323
        %v8414 = vsel %vm7109, %v8322, %v8324
        %v8415 = vsel %vm7109, %v8319, %v8321
        %v8416 = vsel %vm7109, %v8320, %v8322
        %v8417 = vsel %vm7109, %v8317, %v8319
        %v8418 = vsel %vm7109, %v8318, %v8320
        %v8419 = vsel %vm7109, %v8315, %v8317
        %v8420 = vsel %vm7109, %v8316, %v8318
        %v8421 = vsel %vm7109, %v8313, %v8315
        %v8422 = vsel %vm7109, %v8314, %v8316
        %v8423 = vsel %vm7109, %v8311, %v8313
        %v8424 = vsel %vm7109, %v8312, %v8314
        %v8425 = vsel %vm7109, %v8309, %v8311
        %v8426 = vsel %vm7109, %v8310, %v8312
        %v8427 = vsel %vm7109, %v8307, %v8309
        %v8428 = vsel %vm7109, %v8308, %v8310
        %v8429 = vsel %vm7109, %v8305, %v8307
        %v8430 = vsel %vm7109, %v8306, %v8308
        %v8431 = vsel %vm7109, %v8303, %v8305
        %v8432 = vsel %vm7109, %v8304, %v8306
        %v8433 = vsel %vm7109, %v8301, %v8303
        %v8434 = vsel %vm7109, %v8302, %v8304
        %v8435 = vsel %vm7109, %v8299, %v8301
        %v8436 = vsel %vm7109, %v8300, %v8302
        %v8437 = vsel %vm7109, %v8297, %v8299
        %v8438 = vsel %vm7109, %v8298, %v8300
        %v8439 = vsel %vm7109, %v8295, %v8297
        %v8440 = vsel %vm7109, %v8296, %v8298
        %v8441 = vsel %vm7109, %v8293, %v8295
        %v8442 = vsel %vm7109, %v8294, %v8296
        %v8443 = vsel %vm7109, %v8291, %v8293
        %v8444 = vsel %vm7109, %v8292, %v8294
        %v8445 = vsel %vm7109, %v8289, %v8291
        %v8446 = vsel %vm7109, %v8290, %v8292
        %v8447 = vsel %vm7109, %v8287, %v8289
        %v8448 = vsel %vm7109, %v8288, %v8290
        %v8449 = vsel %vm7109, %v8285, %v8287
        %v8450 = vsel %vm7109, %v8286, %v8288
        %v8451 = vsel %vm7109, %v8283, %v8285
        %v8452 = vsel %vm7109, %v8284, %v8286
        %v8453 = vsel %vm7109, %v8281, %v8283
        %v8454 = vsel %vm7109, %v8282, %v8284
        %v8455 = vsel %vm7109, %v8279, %v8281
        %v8456 = vsel %vm7109, %v8280, %v8282
        %v8457 = vsel %vm7109, %v8277, %v8279
        %v8458 = vsel %vm7109, %v8278, %v8280
        %v8459 = vsel %vm7109, %v8275, %v8277
        %v8460 = vsel %vm7109, %v8276, %v8278
        %v8461 = vsel %vm7109, %v8273, %v8275
        %v8462 = vsel %vm7109, %v8274, %v8276
        %v8463 = vsel %vm7109, %v8271, %v8273
        %v8464 = vsel %vm7109, %v8272, %v8274
        %v8465 = vsel %vm7109, %v8269, %v8271
        %v8466 = vsel %vm7109, %v8270, %v8272
        %v8467 = vsel %vm7109, %v8267, %v8269
        %v8468 = vsel %vm7109, %v8268, %v8270
        %v8469 = vsel %vm7109, %v8265, %v8267
        %v8470 = vsel %vm7109, %v8266, %v8268
        %v8471 = vsel %vm7109, %v8263, %v8265
        %v8472 = vsel %vm7109, %v8264, %v8266
        %v8473 = vsel %vm7109, %v8261, %v8263
        %v8474 = vsel %vm7109, %v8262, %v8264
        %v8475 = vsel %vm7109, %v8259, %v8261
        %v8476 = vsel %vm7109, %v8260, %v8262
        %v8477 = vsel %vm7109, %v8257, %v8259
        %v8478 = vsel %vm7109, %v8258, %v8260
        %v8479 = vsel %vm7109, %v8255, %v8257
        %v8480 = vsel %vm7109, %v8256, %v8258
        %v8481 = vsel %vm7109, %v8253, %v8255
        %v8482 = vsel %vm7109, %v8254, %v8256
        %v8483 = vsel %vm7109, %v8251, %v8253
        %v8484 = vsel %vm7109, %v8252, %v8254
        %v8485 = vsel %vm7109, %v8249, %v8251
        %v8486 = vsel %vm7109, %v8250, %v8252
        %v8487 = vsel %vm7109, %v8247, %v8249
        %v8488 = vsel %vm7109, %v8248, %v8250
        %v8489 = vsel %vm7109, %v8245, %v8247
        %v8490 = vsel %vm7109, %v8246, %v8248
        %v8491 = vsel %vm7109, %v8243, %v8245
        %v8492 = vsel %vm7109, %v8244, %v8246
        %v8493 = vsel %vm7109, %v8241, %v8243
        %v8494 = vsel %vm7109, %v8242, %v8244
        %v8495 = vsel %vm7109, %v8239, %v8241
        %v8496 = vsel %vm7109, %v8240, %v8242
        %v8497 = vsel %vm7109, %v8237, %v8239
        %v8498 = vsel %vm7109, %v8238, %v8240
        %v8499 = vsel %vm7109, %v8235, %v8237
        %v8500 = vsel %vm7109, %v8236, %v8238
        %v8501 = vsel %vm7109, %v8233, %v8235
        %v8502 = vsel %vm7109, %v8234, %v8236
        %v8503 = vsel %vm7109, %v8231, %v8233
        %v8504 = vsel %vm7109, %v8232, %v8234
        %v8505 = vsel %vm7109, %v8229, %v8231
        %v8506 = vsel %vm7109, %v8230, %v8232
        %v8507 = vsel %vm7109, %v8227, %v8229
        %v8508 = vsel %vm7109, %v8228, %v8230
        %v8509 = vsel %vm7109, %v8225, %v8227
        %v8510 = vsel %vm7109, %v8226, %v8228
        %v8511 = vsel %vm7109, %v8223, %v8225
        %v8512 = vsel %vm7109, %v8224, %v8226
        %v8513 = vsel %vm7109, %v8221, %v8223
        %v8514 = vsel %vm7109, %v8222, %v8224
        %v8515 = vsel %vm7109, %v8219, %v8221
        %v8516 = vsel %vm7109, %v8220, %v8222
        %v8517 = vsel %vm7109, %v8217, %v8219
        %v8518 = vsel %vm7109, %v8218, %v8220
        %v8519 = vsel %vm7109, %v8215, %v8217
        %v8520 = vsel %vm7109, %v8216, %v8218
        %v8521 = vsel %vm7109, %v8213, %v8215
        %v8522 = vsel %vm7109, %v8214, %v8216
        %v8523 = vsel %vm7109, %v8367, %v8213
        %v8524 = vsel %vm7109, %v8368, %v8214
        %v8525 = vmax.f32 %v8057, %v8521
        %v8526 = vmax.f32 %v8058, %v8522
        %v8527 = vmax.f32 %v8059, %v8519
        %v8528 = vmax.f32 %v8060, %v8520
        %v8529 = vmax.f32 %v8061, %v8517
        %v8530 = vmax.f32 %v8062, %v8518
        %v8531 = vmax.f32 %v8063, %v8515
        %v8532 = vmax.f32 %v8064, %v8516
        %v8533 = vmax.f32 %v8065, %v8513
        %v8534 = vmax.f32 %v8066, %v8514
        %v8535 = vmax.f32 %v8067, %v8511
        %v8536 = vmax.f32 %v8068, %v8512
        %v8537 = vmax.f32 %v8069, %v8509
        %v8538 = vmax.f32 %v8070, %v8510
        %v8539 = vmax.f32 %v8071, %v8507
        %v8540 = vmax.f32 %v8072, %v8508
        %v8541 = vmax.f32 %v8073, %v8505
        %v8542 = vmax.f32 %v8074, %v8506
        %v8543 = vmax.f32 %v8075, %v8503
        %v8544 = vmax.f32 %v8076, %v8504
        %v8545 = vmax.f32 %v8077, %v8501
        %v8546 = vmax.f32 %v8078, %v8502
        %v8547 = vmax.f32 %v8079, %v8499
        %v8548 = vmax.f32 %v8080, %v8500
        %v8549 = vmax.f32 %v8081, %v8497
        %v8550 = vmax.f32 %v8082, %v8498
        %v8551 = vmax.f32 %v8083, %v8495
        %v8552 = vmax.f32 %v8084, %v8496
        %v8553 = vmax.f32 %v8085, %v8493
        %v8554 = vmax.f32 %v8086, %v8494
        %v8555 = vmax.f32 %v8087, %v8491
        %v8556 = vmax.f32 %v8088, %v8492
        %v8557 = vmax.f32 %v8089, %v8489
        %v8558 = vmax.f32 %v8090, %v8490
        %v8559 = vmax.f32 %v8091, %v8487
        %v8560 = vmax.f32 %v8092, %v8488
        %v8561 = vmax.f32 %v8093, %v8485
        %v8562 = vmax.f32 %v8094, %v8486
        %v8563 = vmax.f32 %v8095, %v8483
        %v8564 = vmax.f32 %v8096, %v8484
        %v8565 = vmax.f32 %v8097, %v8481
        %v8566 = vmax.f32 %v8098, %v8482
        %v8567 = vmax.f32 %v8099, %v8479
        %v8568 = vmax.f32 %v8100, %v8480
        %v8569 = vmax.f32 %v8101, %v8477
        %v8570 = vmax.f32 %v8102, %v8478
        %v8571 = vmax.f32 %v8103, %v8475
        %v8572 = vmax.f32 %v8104, %v8476
        %v8573 = vmax.f32 %v8105, %v8473
        %v8574 = vmax.f32 %v8106, %v8474
        %v8575 = vmax.f32 %v8107, %v8471
        %v8576 = vmax.f32 %v8108, %v8472
        %v8577 = vmax.f32 %v8109, %v8469
        %v8578 = vmax.f32 %v8110, %v8470
        %v8579 = vmax.f32 %v8111, %v8467
        %v8580 = vmax.f32 %v8112, %v8468
        %v8581 = vmax.f32 %v8113, %v8465
        %v8582 = vmax.f32 %v8114, %v8466
        %v8583 = vmax.f32 %v8115, %v8463
        %v8584 = vmax.f32 %v8116, %v8464
        %v8585 = vmax.f32 %v8117, %v8461
        %v8586 = vmax.f32 %v8118, %v8462
        %v8587 = vmax.f32 %v8119, %v8459
        %v8588 = vmax.f32 %v8120, %v8460
        %v8589 = vmax.f32 %v8121, %v8457
        %v8590 = vmax.f32 %v8122, %v8458
        %v8591 = vmax.f32 %v8123, %v8455
        %v8592 = vmax.f32 %v8124, %v8456
        %v8593 = vmax.f32 %v8125, %v8453
        %v8594 = vmax.f32 %v8126, %v8454
        %v8595 = vmax.f32 %v8127, %v8451
        %v8596 = vmax.f32 %v8128, %v8452
        %v8597 = vmax.f32 %v8129, %v8449
        %v8598 = vmax.f32 %v8130, %v8450
        %v8599 = vmax.f32 %v8131, %v8447
        %v8600 = vmax.f32 %v8132, %v8448
        %v8601 = vmax.f32 %v8133, %v8445
        %v8602 = vmax.f32 %v8134, %v8446
        %v8603 = vmax.f32 %v8135, %v8443
        %v8604 = vmax.f32 %v8136, %v8444
        %v8605 = vmax.f32 %v8137, %v8441
        %v8606 = vmax.f32 %v8138, %v8442
        %v8607 = vmax.f32 %v8139, %v8439
        %v8608 = vmax.f32 %v8140, %v8440
        %v8609 = vmax.f32 %v8141, %v8437
        %v8610 = vmax.f32 %v8142, %v8438
        %v8611 = vmax.f32 %v8143, %v8435
        %v8612 = vmax.f32 %v8144, %v8436
        %v8613 = vmax.f32 %v8145, %v8433
        %v8614 = vmax.f32 %v8146, %v8434
        %v8615 = vmax.f32 %v8147, %v8431
        %v8616 = vmax.f32 %v8148, %v8432
        %v8617 = vmax.f32 %v8149, %v8429
        %v8618 = vmax.f32 %v8150, %v8430
        %v8619 = vmax.f32 %v8151, %v8427
        %v8620 = vmax.f32 %v8152, %v8428
        %v8621 = vmax.f32 %v8153, %v8425
        %v8622 = vmax.f32 %v8154, %v8426
        %v8623 = vmax.f32 %v8155, %v8423
        %v8624 = vmax.f32 %v8156, %v8424
        %v8625 = vmax.f32 %v8157, %v8421
        %v8626 = vmax.f32 %v8158, %v8422
        %v8627 = vmax.f32 %v8159, %v8419
        %v8628 = vmax.f32 %v8160, %v8420
        %v8629 = vmax.f32 %v8161, %v8417
        %v8630 = vmax.f32 %v8162, %v8418
        %v8631 = vmax.f32 %v8163, %v8415
        %v8632 = vmax.f32 %v8164, %v8416
        %v8633 = vmax.f32 %v8165, %v8413
        %v8634 = vmax.f32 %v8166, %v8414
        %v8635 = vmax.f32 %v8167, %v8411
        %v8636 = vmax.f32 %v8168, %v8412
        %v8637 = vmax.f32 %v8169, %v8409
        %v8638 = vmax.f32 %v8170, %v8410
        %v8639 = vmax.f32 %v8171, %v8407
        %v8640 = vmax.f32 %v8172, %v8408
        %v8641 = vmax.f32 %v8173, %v8405
        %v8642 = vmax.f32 %v8174, %v8406
        %v8643 = vmax.f32 %v8175, %v8403
        %v8644 = vmax.f32 %v8176, %v8404
        %v8645 = vmax.f32 %v8177, %v8401
        %v8646 = vmax.f32 %v8178, %v8402
        %v8647 = vmax.f32 %v8179, %v8399
        %v8648 = vmax.f32 %v8180, %v8400
        %v8649 = vmax.f32 %v8181, %v8397
        %v8650 = vmax.f32 %v8182, %v8398
        %v8651 = vmax.f32 %v8183, %v8395
        %v8652 = vmax.f32 %v8184, %v8396
        %v8653 = vmax.f32 %v8185, %v8393
        %v8654 = vmax.f32 %v8186, %v8394
        %v8655 = vmax.f32 %v8187, %v8391
        %v8656 = vmax.f32 %v8188, %v8392
        %v8657 = vmax.f32 %v8189, %v8389
        %v8658 = vmax.f32 %v8190, %v8390
        %v8659 = vmax.f32 %v8191, %v8387
        %v8660 = vmax.f32 %v8192, %v8388
        %v8661 = vmax.f32 %v8193, %v8385
        %v8662 = vmax.f32 %v8194, %v8386
        %v8663 = vmax.f32 %v8195, %v8383
        %v8664 = vmax.f32 %v8196, %v8384
        %v8665 = vmax.f32 %v8197, %v8381
        %v8666 = vmax.f32 %v8198, %v8382
        %v8667 = vmax.f32 %v8199, %v8379
        %v8668 = vmax.f32 %v8200, %v8380
        %v8669 = vmax.f32 %v8201, %v8377
        %v8670 = vmax.f32 %v8202, %v8378
        %v8671 = vmax.f32 %v8203, %v8375
        %v8672 = vmax.f32 %v8204, %v8376
        %v8673 = vmax.f32 %v8205, %v8373
        %v8674 = vmax.f32 %v8206, %v8374
        %v8675 = vmax.f32 %v8207, %v8371
        %v8676 = vmax.f32 %v8208, %v8372
        %v8677 = vmax.f32 %v8209, %v8369
        %v8678 = vmax.f32 %v8210, %v8370
        %v8679 = vmax.f32 %v8211, %v8523
        %v8680 = vmax.f32 %v8212, %v8524
        %v8681 = vrot.slane %v7589, 3
        %v8682 = vrot.slane %v7590, 3
        %v8683 = vrot.slane %v7591, 3
        %v8684 = vrot.slane %v7592, 3
        %v8685 = vrot.slane %v7593, 3
        %v8686 = vrot.slane %v7594, 3
        %v8687 = vrot.slane %v7595, 3
        %v8688 = vrot.slane %v7596, 3
        %v8689 = vrot.slane %v7597, 3
        %v8690 = vrot.slane %v7598, 3
        %v8691 = vrot.slane %v7599, 3
        %v8692 = vrot.slane %v7600, 3
        %v8693 = vrot.slane %v7601, 3
        %v8694 = vrot.slane %v7602, 3
        %v8695 = vrot.slane %v7603, 3
        %v8696 = vrot.slane %v7604, 3
        %v8697 = vrot.slane %v7605, 3
        %v8698 = vrot.slane %v7606, 3
        %v8699 = vrot.slane %v7607, 3
        %v8700 = vrot.slane %v7608, 3
        %v8701 = vrot.slane %v7609, 3
        %v8702 = vrot.slane %v7610, 3
        %v8703 = vrot.slane %v7611, 3
        %v8704 = vrot.slane %v7612, 3
        %v8705 = vrot.slane %v7613, 3
        %v8706 = vrot.slane %v7614, 3
        %v8707 = vrot.slane %v7615, 3
        %v8708 = vrot.slane %v7616, 3
        %v8709 = vrot.slane %v7617, 3
        %v8710 = vrot.slane %v7618, 3
        %v8711 = vrot.slane %v7619, 3
        %v8712 = vrot.slane %v7620, 3
        %v8713 = vrot.slane %v7621, 3
        %v8714 = vrot.slane %v7622, 3
        %v8715 = vrot.slane %v7623, 3
        %v8716 = vrot.slane %v7624, 3
        %v8717 = vrot.slane %v7625, 3
        %v8718 = vrot.slane %v7626, 3
        %v8719 = vrot.slane %v7627, 3
        %v8720 = vrot.slane %v7628, 3
        %v8721 = vrot.slane %v7629, 3
        %v8722 = vrot.slane %v7630, 3
        %v8723 = vrot.slane %v7631, 3
        %v8724 = vrot.slane %v7632, 3
        %v8725 = vrot.slane %v7633, 3
        %v8726 = vrot.slane %v7634, 3
        %v8727 = vrot.slane %v7635, 3
        %v8728 = vrot.slane %v7636, 3
        %v8729 = vrot.slane %v7637, 3
        %v8730 = vrot.slane %v7638, 3
        %v8731 = vrot.slane %v7639, 3
        %v8732 = vrot.slane %v7640, 3
        %v8733 = vrot.slane %v7641, 3
        %v8734 = vrot.slane %v7642, 3
        %v8735 = vrot.slane %v7643, 3
        %v8736 = vrot.slane %v7644, 3
        %v8737 = vrot.slane %v7645, 3
        %v8738 = vrot.slane %v7646, 3
        %v8739 = vrot.slane %v7647, 3
        %v8740 = vrot.slane %v7648, 3
        %v8741 = vrot.slane %v7649, 3
        %v8742 = vrot.slane %v7650, 3
        %v8743 = vrot.slane %v7651, 3
        %v8744 = vrot.slane %v7652, 3
        %v8745 = vrot.slane %v7653, 3
        %v8746 = vrot.slane %v7654, 3
        %v8747 = vrot.slane %v7655, 3
        %v8748 = vrot.slane %v7656, 3
        %v8749 = vrot.slane %v7657, 3
        %v8750 = vrot.slane %v7658, 3
        %v8751 = vrot.slane %v7659, 3
        %v8752 = vrot.slane %v7660, 3
        %v8753 = vrot.slane %v7661, 3
        %v8754 = vrot.slane %v7662, 3
        %v8755 = vrot.slane %v7663, 3
        %v8756 = vrot.slane %v7664, 3
        %v8757 = vrot.slane %v7665, 3
        %v8758 = vrot.slane %v7666, 3
        %v8759 = vrot.slane %v7667, 3
        %v8760 = vrot.slane %v7668, 3
        %v8761 = vrot.slane %v7669, 3
        %v8762 = vrot.slane %v7670, 3
        %v8763 = vrot.slane %v7671, 3
        %v8764 = vrot.slane %v7672, 3
        %v8765 = vrot.slane %v7673, 3
        %v8766 = vrot.slane %v7674, 3
        %v8767 = vrot.slane %v7675, 3
        %v8768 = vrot.slane %v7676, 3
        %v8769 = vrot.slane %v7677, 3
        %v8770 = vrot.slane %v7678, 3
        %v8771 = vrot.slane %v7679, 3
        %v8772 = vrot.slane %v7680, 3
        %v8773 = vrot.slane %v7681, 3
        %v8774 = vrot.slane %v7682, 3
        %v8775 = vrot.slane %v7683, 3
        %v8776 = vrot.slane %v7684, 3
        %v8777 = vrot.slane %v7685, 3
        %v8778 = vrot.slane %v7686, 3
        %v8779 = vrot.slane %v7687, 3
        %v8780 = vrot.slane %v7688, 3
        %v8781 = vrot.slane %v7689, 3
        %v8782 = vrot.slane %v7690, 3
        %v8783 = vrot.slane %v7691, 3
        %v8784 = vrot.slane %v7692, 3
        %v8785 = vrot.slane %v7693, 3
        %v8786 = vrot.slane %v7694, 3
        %v8787 = vrot.slane %v7695, 3
        %v8788 = vrot.slane %v7696, 3
        %v8789 = vrot.slane %v7697, 3
        %v8790 = vrot.slane %v7698, 3
        %v8791 = vrot.slane %v7699, 3
        %v8792 = vrot.slane %v7700, 3
        %v8793 = vrot.slane %v7701, 3
        %v8794 = vrot.slane %v7702, 3
        %v8795 = vrot.slane %v7703, 3
        %v8796 = vrot.slane %v7704, 3
        %v8797 = vrot.slane %v7705, 3
        %v8798 = vrot.slane %v7706, 3
        %v8799 = vrot.slane %v7707, 3
        %v8800 = vrot.slane %v7708, 3
        %v8801 = vrot.slane %v7709, 3
        %v8802 = vrot.slane %v7710, 3
        %v8803 = vrot.slane %v7711, 3
        %v8804 = vrot.slane %v7712, 3
        %v8805 = vrot.slane %v7713, 3
        %v8806 = vrot.slane %v7714, 3
        %v8807 = vrot.slane %v7715, 3
        %v8808 = vrot.slane %v7716, 3
        %v8809 = vrot.slane %v7717, 3
        %v8810 = vrot.slane %v7718, 3
        %v8811 = vrot.slane %v7719, 3
        %v8812 = vrot.slane %v7720, 3
        %v8813 = vrot.slane %v7721, 3
        %v8814 = vrot.slane %v7722, 3
        %v8815 = vrot.slane %v7723, 3
        %v8816 = vrot.slane %v7724, 3
        %v8817 = vrot.slane %v7725, 3
        %v8818 = vrot.slane %v7726, 3
        %v8819 = vrot.slane %v7727, 3
        %v8820 = vrot.slane %v7728, 3
        %v8821 = vrot.slane %v7729, 3
        %v8822 = vrot.slane %v7730, 3
        %v8823 = vrot.slane %v7731, 3
        %v8824 = vrot.slane %v7732, 3
        %v8825 = vrot.slane %v7733, 3
        %v8826 = vrot.slane %v7734, 3
        %v8827 = vrot.slane %v7735, 3
        %v8828 = vrot.slane %v7736, 3
        %v8829 = vrot.slane %v7737, 3
        %v8830 = vrot.slane %v7738, 3
        %v8831 = vrot.slane %v7739, 3
        %v8832 = vrot.slane %v7740, 3
        %v8833 = vrot.slane %v7741, 3
        %v8834 = vrot.slane %v7742, 3
        %v8835 = vrot.slane %v7743, 3
        %v8836 = vrot.slane %v7744, 3
        %vm8837 = vcmp.lt.s32.totalorder %v5629, 5
        %v8838 = vsel %vm8837, %v8833, %v8835
        %v8839 = vsel %vm8837, %v8834, %v8836
        %v8840 = vsel %vm8837, %v8831, %v8833
        %v8841 = vsel %vm8837, %v8832, %v8834
        %v8842 = vsel %vm8837, %v8829, %v8831
        %v8843 = vsel %vm8837, %v8830, %v8832
        %v8844 = vsel %vm8837, %v8827, %v8829
        %v8845 = vsel %vm8837, %v8828, %v8830
        %v8846 = vsel %vm8837, %v8825, %v8827
        %v8847 = vsel %vm8837, %v8826, %v8828
        %v8848 = vsel %vm8837, %v8823, %v8825
        %v8849 = vsel %vm8837, %v8824, %v8826
        %v8850 = vsel %vm8837, %v8821, %v8823
        %v8851 = vsel %vm8837, %v8822, %v8824
        %v8852 = vsel %vm8837, %v8819, %v8821
        %v8853 = vsel %vm8837, %v8820, %v8822
        %v8854 = vsel %vm8837, %v8817, %v8819
        %v8855 = vsel %vm8837, %v8818, %v8820
        %v8856 = vsel %vm8837, %v8815, %v8817
        %v8857 = vsel %vm8837, %v8816, %v8818
        %v8858 = vsel %vm8837, %v8813, %v8815
        %v8859 = vsel %vm8837, %v8814, %v8816
        %v8860 = vsel %vm8837, %v8811, %v8813
        %v8861 = vsel %vm8837, %v8812, %v8814
        %v8862 = vsel %vm8837, %v8809, %v8811
        %v8863 = vsel %vm8837, %v8810, %v8812
        %v8864 = vsel %vm8837, %v8807, %v8809
        %v8865 = vsel %vm8837, %v8808, %v8810
        %v8866 = vsel %vm8837, %v8805, %v8807
        %v8867 = vsel %vm8837, %v8806, %v8808
        %v8868 = vsel %vm8837, %v8803, %v8805
        %v8869 = vsel %vm8837, %v8804, %v8806
        %v8870 = vsel %vm8837, %v8801, %v8803
        %v8871 = vsel %vm8837, %v8802, %v8804
        %v8872 = vsel %vm8837, %v8799, %v8801
        %v8873 = vsel %vm8837, %v8800, %v8802
        %v8874 = vsel %vm8837, %v8797, %v8799
        %v8875 = vsel %vm8837, %v8798, %v8800
        %v8876 = vsel %vm8837, %v8795, %v8797
        %v8877 = vsel %vm8837, %v8796, %v8798
        %v8878 = vsel %vm8837, %v8793, %v8795
        %v8879 = vsel %vm8837, %v8794, %v8796
        %v8880 = vsel %vm8837, %v8791, %v8793
        %v8881 = vsel %vm8837, %v8792, %v8794
        %v8882 = vsel %vm8837, %v8789, %v8791
        %v8883 = vsel %vm8837, %v8790, %v8792
        %v8884 = vsel %vm8837, %v8787, %v8789
        %v8885 = vsel %vm8837, %v8788, %v8790
        %v8886 = vsel %vm8837, %v8785, %v8787
        %v8887 = vsel %vm8837, %v8786, %v8788
        %v8888 = vsel %vm8837, %v8783, %v8785
        %v8889 = vsel %vm8837, %v8784, %v8786
        %v8890 = vsel %vm8837, %v8781, %v8783
        %v8891 = vsel %vm8837, %v8782, %v8784
        %v8892 = vsel %vm8837, %v8779, %v8781
        %v8893 = vsel %vm8837, %v8780, %v8782
        %v8894 = vsel %vm8837, %v8777, %v8779
        %v8895 = vsel %vm8837, %v8778, %v8780
        %v8896 = vsel %vm8837, %v8775, %v8777
        %v8897 = vsel %vm8837, %v8776, %v8778
        %v8898 = vsel %vm8837, %v8773, %v8775
        %v8899 = vsel %vm8837, %v8774, %v8776
        %v8900 = vsel %vm8837, %v8771, %v8773
        %v8901 = vsel %vm8837, %v8772, %v8774
        %v8902 = vsel %vm8837, %v8769, %v8771
        %v8903 = vsel %vm8837, %v8770, %v8772
        %v8904 = vsel %vm8837, %v8767, %v8769
        %v8905 = vsel %vm8837, %v8768, %v8770
        %v8906 = vsel %vm8837, %v8765, %v8767
        %v8907 = vsel %vm8837, %v8766, %v8768
        %v8908 = vsel %vm8837, %v8763, %v8765
        %v8909 = vsel %vm8837, %v8764, %v8766
        %v8910 = vsel %vm8837, %v8761, %v8763
        %v8911 = vsel %vm8837, %v8762, %v8764
        %v8912 = vsel %vm8837, %v8759, %v8761
        %v8913 = vsel %vm8837, %v8760, %v8762
        %v8914 = vsel %vm8837, %v8757, %v8759
        %v8915 = vsel %vm8837, %v8758, %v8760
        %v8916 = vsel %vm8837, %v8755, %v8757
        %v8917 = vsel %vm8837, %v8756, %v8758
        %v8918 = vsel %vm8837, %v8753, %v8755
        %v8919 = vsel %vm8837, %v8754, %v8756
        %v8920 = vsel %vm8837, %v8751, %v8753
        %v8921 = vsel %vm8837, %v8752, %v8754
        %v8922 = vsel %vm8837, %v8749, %v8751
        %v8923 = vsel %vm8837, %v8750, %v8752
        %v8924 = vsel %vm8837, %v8747, %v8749
        %v8925 = vsel %vm8837, %v8748, %v8750
        %v8926 = vsel %vm8837, %v8745, %v8747
        %v8927 = vsel %vm8837, %v8746, %v8748
        %v8928 = vsel %vm8837, %v8743, %v8745
        %v8929 = vsel %vm8837, %v8744, %v8746
        %v8930 = vsel %vm8837, %v8741, %v8743
        %v8931 = vsel %vm8837, %v8742, %v8744
        %v8932 = vsel %vm8837, %v8739, %v8741
        %v8933 = vsel %vm8837, %v8740, %v8742
        %v8934 = vsel %vm8837, %v8737, %v8739
        %v8935 = vsel %vm8837, %v8738, %v8740
        %v8936 = vsel %vm8837, %v8735, %v8737
        %v8937 = vsel %vm8837, %v8736, %v8738
        %v8938 = vsel %vm8837, %v8733, %v8735
        %v8939 = vsel %vm8837, %v8734, %v8736
        %v8940 = vsel %vm8837, %v8731, %v8733
        %v8941 = vsel %vm8837, %v8732, %v8734
        %v8942 = vsel %vm8837, %v8729, %v8731
        %v8943 = vsel %vm8837, %v8730, %v8732
        %v8944 = vsel %vm8837, %v8727, %v8729
        %v8945 = vsel %vm8837, %v8728, %v8730
        %v8946 = vsel %vm8837, %v8725, %v8727
        %v8947 = vsel %vm8837, %v8726, %v8728
        %v8948 = vsel %vm8837, %v8723, %v8725
        %v8949 = vsel %vm8837, %v8724, %v8726
        %v8950 = vsel %vm8837, %v8721, %v8723
        %v8951 = vsel %vm8837, %v8722, %v8724
        %v8952 = vsel %vm8837, %v8719, %v8721
        %v8953 = vsel %vm8837, %v8720, %v8722
        %v8954 = vsel %vm8837, %v8717, %v8719
        %v8955 = vsel %vm8837, %v8718, %v8720
        %v8956 = vsel %vm8837, %v8715, %v8717
        %v8957 = vsel %vm8837, %v8716, %v8718
        %v8958 = vsel %vm8837, %v8713, %v8715
        %v8959 = vsel %vm8837, %v8714, %v8716
        %v8960 = vsel %vm8837, %v8711, %v8713
        %v8961 = vsel %vm8837, %v8712, %v8714
        %v8962 = vsel %vm8837, %v8709, %v8711
        %v8963 = vsel %vm8837, %v8710, %v8712
        %v8964 = vsel %vm8837, %v8707, %v8709
        %v8965 = vsel %vm8837, %v8708, %v8710
        %v8966 = vsel %vm8837, %v8705, %v8707
        %v8967 = vsel %vm8837, %v8706, %v8708
        %v8968 = vsel %vm8837, %v8703, %v8705
        %v8969 = vsel %vm8837, %v8704, %v8706
        %v8970 = vsel %vm8837, %v8701, %v8703
        %v8971 = vsel %vm8837, %v8702, %v8704
        %v8972 = vsel %vm8837, %v8699, %v8701
        %v8973 = vsel %vm8837, %v8700, %v8702
        %v8974 = vsel %vm8837, %v8697, %v8699
        %v8975 = vsel %vm8837, %v8698, %v8700
        %v8976 = vsel %vm8837, %v8695, %v8697
        %v8977 = vsel %vm8837, %v8696, %v8698
        %v8978 = vsel %vm8837, %v8693, %v8695
        %v8979 = vsel %vm8837, %v8694, %v8696
        %v8980 = vsel %vm8837, %v8691, %v8693
        %v8981 = vsel %vm8837, %v8692, %v8694
        %v8982 = vsel %vm8837, %v8689, %v8691
        %v8983 = vsel %vm8837, %v8690, %v8692
        %v8984 = vsel %vm8837, %v8687, %v8689
        %v8985 = vsel %vm8837, %v8688, %v8690
        %v8986 = vsel %vm8837, %v8685, %v8687
        %v8987 = vsel %vm8837, %v8686, %v8688
        %v8988 = vsel %vm8837, %v8683, %v8685
        %v8989 = vsel %vm8837, %v8684, %v8686
        %v8990 = vsel %vm8837, %v8681, %v8683
        %v8991 = vsel %vm8837, %v8682, %v8684
        %v8992 = vsel %vm8837, %v8835, %v8681
        %v8993 = vsel %vm8837, %v8836, %v8682
        %v8994 = vmax.f32 %v8525, %v8990
        %v8995 = vmax.f32 %v8526, %v8991
        %v8996 = vmax.f32 %v8527, %v8988
        %v8997 = vmax.f32 %v8528, %v8989
        %v8998 = vmax.f32 %v8529, %v8986
        %v8999 = vmax.f32 %v8530, %v8987
        %v9000 = vmax.f32 %v8531, %v8984
        %v9001 = vmax.f32 %v8532, %v8985
        %v9002 = vmax.f32 %v8533, %v8982
        %v9003 = vmax.f32 %v8534, %v8983
        %v9004 = vmax.f32 %v8535, %v8980
        %v9005 = vmax.f32 %v8536, %v8981
        %v9006 = vmax.f32 %v8537, %v8978
        %v9007 = vmax.f32 %v8538, %v8979
        %v9008 = vmax.f32 %v8539, %v8976
        %v9009 = vmax.f32 %v8540, %v8977
        %v9010 = vmax.f32 %v8541, %v8974
        %v9011 = vmax.f32 %v8542, %v8975
        %v9012 = vmax.f32 %v8543, %v8972
        %v9013 = vmax.f32 %v8544, %v8973
        %v9014 = vmax.f32 %v8545, %v8970
        %v9015 = vmax.f32 %v8546, %v8971
        %v9016 = vmax.f32 %v8547, %v8968
        %v9017 = vmax.f32 %v8548, %v8969
        %v9018 = vmax.f32 %v8549, %v8966
        %v9019 = vmax.f32 %v8550, %v8967
        %v9020 = vmax.f32 %v8551, %v8964
        %v9021 = vmax.f32 %v8552, %v8965
        %v9022 = vmax.f32 %v8553, %v8962
        %v9023 = vmax.f32 %v8554, %v8963
        %v9024 = vmax.f32 %v8555, %v8960
        %v9025 = vmax.f32 %v8556, %v8961
        %v9026 = vmax.f32 %v8557, %v8958
        %v9027 = vmax.f32 %v8558, %v8959
        %v9028 = vmax.f32 %v8559, %v8956
        %v9029 = vmax.f32 %v8560, %v8957
        %v9030 = vmax.f32 %v8561, %v8954
        %v9031 = vmax.f32 %v8562, %v8955
        %v9032 = vmax.f32 %v8563, %v8952
        %v9033 = vmax.f32 %v8564, %v8953
        %v9034 = vmax.f32 %v8565, %v8950
        %v9035 = vmax.f32 %v8566, %v8951
        %v9036 = vmax.f32 %v8567, %v8948
        %v9037 = vmax.f32 %v8568, %v8949
        %v9038 = vmax.f32 %v8569, %v8946
        %v9039 = vmax.f32 %v8570, %v8947
        %v9040 = vmax.f32 %v8571, %v8944
        %v9041 = vmax.f32 %v8572, %v8945
        %v9042 = vmax.f32 %v8573, %v8942
        %v9043 = vmax.f32 %v8574, %v8943
        %v9044 = vmax.f32 %v8575, %v8940
        %v9045 = vmax.f32 %v8576, %v8941
        %v9046 = vmax.f32 %v8577, %v8938
        %v9047 = vmax.f32 %v8578, %v8939
        %v9048 = vmax.f32 %v8579, %v8936
        %v9049 = vmax.f32 %v8580, %v8937
        %v9050 = vmax.f32 %v8581, %v8934
        %v9051 = vmax.f32 %v8582, %v8935
        %v9052 = vmax.f32 %v8583, %v8932
        %v9053 = vmax.f32 %v8584, %v8933
        %v9054 = vmax.f32 %v8585, %v8930
        %v9055 = vmax.f32 %v8586, %v8931
        %v9056 = vmax.f32 %v8587, %v8928
        %v9057 = vmax.f32 %v8588, %v8929
        %v9058 = vmax.f32 %v8589, %v8926
        %v9059 = vmax.f32 %v8590, %v8927
        %v9060 = vmax.f32 %v8591, %v8924
        %v9061 = vmax.f32 %v8592, %v8925
        %v9062 = vmax.f32 %v8593, %v8922
        %v9063 = vmax.f32 %v8594, %v8923
        %v9064 = vmax.f32 %v8595, %v8920
        %v9065 = vmax.f32 %v8596, %v8921
        %v9066 = vmax.f32 %v8597, %v8918
        %v9067 = vmax.f32 %v8598, %v8919
        %v9068 = vmax.f32 %v8599, %v8916
        %v9069 = vmax.f32 %v8600, %v8917
        %v9070 = vmax.f32 %v8601, %v8914
        %v9071 = vmax.f32 %v8602, %v8915
        %v9072 = vmax.f32 %v8603, %v8912
        %v9073 = vmax.f32 %v8604, %v8913
        %v9074 = vmax.f32 %v8605, %v8910
        %v9075 = vmax.f32 %v8606, %v8911
        %v9076 = vmax.f32 %v8607, %v8908
        %v9077 = vmax.f32 %v8608, %v8909
        %v9078 = vmax.f32 %v8609, %v8906
        %v9079 = vmax.f32 %v8610, %v8907
        %v9080 = vmax.f32 %v8611, %v8904
        %v9081 = vmax.f32 %v8612, %v8905
        %v9082 = vmax.f32 %v8613, %v8902
        %v9083 = vmax.f32 %v8614, %v8903
        %v9084 = vmax.f32 %v8615, %v8900
        %v9085 = vmax.f32 %v8616, %v8901
        %v9086 = vmax.f32 %v8617, %v8898
        %v9087 = vmax.f32 %v8618, %v8899
        %v9088 = vmax.f32 %v8619, %v8896
        %v9089 = vmax.f32 %v8620, %v8897
        %v9090 = vmax.f32 %v8621, %v8894
        %v9091 = vmax.f32 %v8622, %v8895
        %v9092 = vmax.f32 %v8623, %v8892
        %v9093 = vmax.f32 %v8624, %v8893
        %v9094 = vmax.f32 %v8625, %v8890
        %v9095 = vmax.f32 %v8626, %v8891
        %v9096 = vmax.f32 %v8627, %v8888
        %v9097 = vmax.f32 %v8628, %v8889
        %v9098 = vmax.f32 %v8629, %v8886
        %v9099 = vmax.f32 %v8630, %v8887
        %v9100 = vmax.f32 %v8631, %v8884
        %v9101 = vmax.f32 %v8632, %v8885
        %v9102 = vmax.f32 %v8633, %v8882
        %v9103 = vmax.f32 %v8634, %v8883
        %v9104 = vmax.f32 %v8635, %v8880
        %v9105 = vmax.f32 %v8636, %v8881
        %v9106 = vmax.f32 %v8637, %v8878
        %v9107 = vmax.f32 %v8638, %v8879
        %v9108 = vmax.f32 %v8639, %v8876
        %v9109 = vmax.f32 %v8640, %v8877
        %v9110 = vmax.f32 %v8641, %v8874
        %v9111 = vmax.f32 %v8642, %v8875
        %v9112 = vmax.f32 %v8643, %v8872
        %v9113 = vmax.f32 %v8644, %v8873
        %v9114 = vmax.f32 %v8645, %v8870
        %v9115 = vmax.f32 %v8646, %v8871
        %v9116 = vmax.f32 %v8647, %v8868
        %v9117 = vmax.f32 %v8648, %v8869
        %v9118 = vmax.f32 %v8649, %v8866
        %v9119 = vmax.f32 %v8650, %v8867
        %v9120 = vmax.f32 %v8651, %v8864
        %v9121 = vmax.f32 %v8652, %v8865
        %v9122 = vmax.f32 %v8653, %v8862
        %v9123 = vmax.f32 %v8654, %v8863
        %v9124 = vmax.f32 %v8655, %v8860
        %v9125 = vmax.f32 %v8656, %v8861
        %v9126 = vmax.f32 %v8657, %v8858
        %v9127 = vmax.f32 %v8658, %v8859
        %v9128 = vmax.f32 %v8659, %v8856
        %v9129 = vmax.f32 %v8660, %v8857
        %v9130 = vmax.f32 %v8661, %v8854
        %v9131 = vmax.f32 %v8662, %v8855
        %v9132 = vmax.f32 %v8663, %v8852
        %v9133 = vmax.f32 %v8664, %v8853
        %v9134 = vmax.f32 %v8665, %v8850
        %v9135 = vmax.f32 %v8666, %v8851
        %v9136 = vmax.f32 %v8667, %v8848
        %v9137 = vmax.f32 %v8668, %v8849
        %v9138 = vmax.f32 %v8669, %v8846
        %v9139 = vmax.f32 %v8670, %v8847
        %v9140 = vmax.f32 %v8671, %v8844
        %v9141 = vmax.f32 %v8672, %v8845
        %v9142 = vmax.f32 %v8673, %v8842
        %v9143 = vmax.f32 %v8674, %v8843
        %v9144 = vmax.f32 %v8675, %v8840
        %v9145 = vmax.f32 %v8676, %v8841
        %v9146 = vmax.f32 %v8677, %v8838
        %v9147 = vmax.f32 %v8678, %v8839
        %v9148 = vmax.f32 %v8679, %v8992
        %v9149 = vmax.f32 %v8680, %v8993
        %vm9150 = vcmask 916480
        %v9152 = vsel %vm9150, %v4342, 0
        %9154 = vmatprep.subr.mxu0 %v9025
        %9155 = vmatpush1.msra.mxu0 %v9024
        %9156 = vmatprep.subr.mxu0 %v9023
        %9157 = vmatpush1.msra.mxu0 %v9022
        %9158 = vmatprep.subr.mxu0 %v9021
        %9159 = vmatpush1.msra.mxu0 %v9020
        %9160 = vmatprep.subr.mxu0 %v9019
        %9161 = vmatpush1.msra.mxu0 %v9018
        %9162 = vmatprep.subr.mxu0 %v9017
        %9163 = vmatpush1.msra.mxu0 %v9016
        %9164 = vmatprep.subr.mxu0 %v9015
        %9165 = vmatpush1.msra.mxu0 %v9014
        %9166 = vmatprep.subr.mxu0 %v9013
        %9167 = vmatpush1.msra.mxu0 %v9012
        %9168 = vmatprep.subr.mxu0 %v9011
        %9169 = vmatpush1.msra.mxu0 %v9010
        %9170 = vmatprep.subr.mxu0 %v9009
        %9171 = vmatpush1.msra.mxu0 %v9008
        %9172 = vmatprep.subr.mxu0 %v9007
        %9173 = vmatpush1.msra.mxu0 %v9006
        %9174 = vmatprep.subr.mxu0 %v9005
        %9175 = vmatpush1.msra.mxu0 %v9004
        %9176 = vmatprep.subr.mxu0 %v9003
        %9177 = vmatpush1.msra.mxu0 %v9002
        %9178 = vmatprep.subr.mxu0 %v9001
        %9179 = vmatpush1.msra.mxu0 %v9000
        %9180 = vmatprep.subr.mxu0 %v8999
        %9181 = vmatpush1.msra.mxu0 %v8998
        %9182 = vmatprep.subr.mxu0 %v8997
        %9183 = vmatpush1.msra.mxu0 %v8996
        %9184 = vmatprep.subr.mxu0 %v8995
        %9185 = vmatpush1.msra.mxu0 %v8994
        %9186 = vmatprep.subr.mxu0 %v9057
        %9187 = vmatpush2.msra.mxu0 %v9056
        %9188 = vmatprep.subr.mxu0 %v9055
        %9189 = vmatpush2.msra.mxu0 %v9054
        %9190 = vmatprep.subr.mxu0 %v9053
        %9191 = vmatpush2.msra.mxu0 %v9052
        %9192 = vmatprep.subr.mxu0 %v9051
        %9193 = vmatpush2.msra.mxu0 %v9050
        %9194 = vmatprep.subr.mxu0 %v9049
        %9195 = vmatpush2.msra.mxu0 %v9048
        %9196 = vmatprep.subr.mxu0 %v9047
        %9197 = vmatpush2.msra.mxu0 %v9046
        %9198 = vmatprep.subr.mxu0 %v9045
        %9199 = vmatpush2.msra.mxu0 %v9044
        %9200 = vmatprep.subr.mxu0 %v9043
        %9201 = vmatpush2.msra.mxu0 %v9042
        %9202 = vmatprep.subr.mxu0 %v9041
        %9203 = vmatpush2.msra.mxu0 %v9040
        %9204 = vmatprep.subr.mxu0 %v9039
        %9205 = vmatpush2.msra.mxu0 %v9038
        %9206 = vmatprep.subr.mxu0 %v9037
        %9207 = vmatpush2.msra.mxu0 %v9036
        %9208 = vmatprep.subr.mxu0 %v9035
        %9209 = vmatpush2.msra.mxu0 %v9034
        %9210 = vmatprep.subr.mxu0 %v9033
        %9211 = vmatpush2.msra.mxu0 %v9032
        %9212 = vmatprep.subr.mxu0 %v9031
        %9213 = vmatpush2.msra.mxu0 %v9030
        %9214 = vmatprep.subr.mxu0 %v9029
        %9215 = vmatpush2.msra.mxu0 %v9028
        %9216 = vmatprep.subr.mxu0 %v9027
        %9217 = vmatpush2.msra.mxu0 %v9026
        %9218 = vmatprep.mubr.f32.mxu0 %v4339
        %9219 = vmatmul.mubr.f32.gmra.mxu0 %v4338
        %v9220 = vpop.f32.mrf.mxu0
        %v9221 = vadd.f32 0.0, %v9220
        %v9222 = vpop.f32.mrf.mxu0
        %v9223 = vadd.f32 0.0, %v9222
        %9224 = vdwg.mxu0
        %9225 = vmatprep.subr.mxu0 %v9089
        %9226 = vmatpush1.msra.mxu0 %v9088
        %9227 = vmatprep.subr.mxu0 %v9087
        %9228 = vmatpush1.msra.mxu0 %v9086
        %9229 = vmatprep.subr.mxu0 %v9085
        %9230 = vmatpush1.msra.mxu0 %v9084
        %9231 = vmatprep.subr.mxu0 %v9083
        %9232 = vmatpush1.msra.mxu0 %v9082
        %9233 = vmatprep.subr.mxu0 %v9081
        %9234 = vmatpush1.msra.mxu0 %v9080
        %9235 = vmatprep.subr.mxu0 %v9079
        %9236 = vmatpush1.msra.mxu0 %v9078
        %9237 = vmatprep.subr.mxu0 %v9077
        %9238 = vmatpush1.msra.mxu0 %v9076
        %9239 = vmatprep.subr.mxu0 %v9075
        %9240 = vmatpush1.msra.mxu0 %v9074
        %9241 = vmatprep.subr.mxu0 %v9073
        %9242 = vmatpush1.msra.mxu0 %v9072
        %9243 = vmatprep.subr.mxu0 %v9071
        %9244 = vmatpush1.msra.mxu0 %v9070
        %9245 = vmatprep.subr.mxu0 %v9069
        %9246 = vmatpush1.msra.mxu0 %v9068
        %9247 = vmatprep.subr.mxu0 %v9067
        %9248 = vmatpush1.msra.mxu0 %v9066
        %9249 = vmatprep.subr.mxu0 %v9065
        %9250 = vmatpush1.msra.mxu0 %v9064
        %9251 = vmatprep.subr.mxu0 %v9063
        %9252 = vmatpush1.msra.mxu0 %v9062
        %9253 = vmatprep.subr.mxu0 %v9061
        %9254 = vmatpush1.msra.mxu0 %v9060
        %9255 = vmatprep.subr.mxu0 %v9059
        %9256 = vmatpush1.msra.mxu0 %v9058
        %9257 = vmatprep.subr.mxu0 %v9121
        %9258 = vmatpush2.msra.mxu0 %v9120
        %9259 = vmatprep.subr.mxu0 %v9119
        %9260 = vmatpush2.msra.mxu0 %v9118
        %9261 = vmatprep.subr.mxu0 %v9117
        %9262 = vmatpush2.msra.mxu0 %v9116
        %9263 = vmatprep.subr.mxu0 %v9115
        %9264 = vmatpush2.msra.mxu0 %v9114
        %9265 = vmatprep.subr.mxu0 %v9113
        %9266 = vmatpush2.msra.mxu0 %v9112
        %9267 = vmatprep.subr.mxu0 %v9111
        %9268 = vmatpush2.msra.mxu0 %v9110
        %9269 = vmatprep.subr.mxu0 %v9109
        %9270 = vmatpush2.msra.mxu0 %v9108
        %9271 = vmatprep.subr.mxu0 %v9107
        %9272 = vmatpush2.msra.mxu0 %v9106
        %9273 = vmatprep.subr.mxu0 %v9105
        %9274 = vmatpush2.msra.mxu0 %v9104
        %9275 = vmatprep.subr.mxu0 %v9103
        %9276 = vmatpush2.msra.mxu0 %v9102
        %9277 = vmatprep.subr.mxu0 %v9101
        %9278 = vmatpush2.msra.mxu0 %v9100
        %9279 = vmatprep.subr.mxu0 %v9099
        %9280 = vmatpush2.msra.mxu0 %v9098
        %9281 = vmatprep.subr.mxu0 %v9097
        %9282 = vmatpush2.msra.mxu0 %v9096
        %9283 = vmatprep.subr.mxu0 %v9095
        %9284 = vmatpush2.msra.mxu0 %v9094
        %9285 = vmatprep.subr.mxu0 %v9093
        %9286 = vmatpush2.msra.mxu0 %v9092
        %9287 = vmatprep.subr.mxu0 %v9091
        %9288 = vmatpush2.msra.mxu0 %v9090
        %9289 = vmatprep.mubr.f32.mxu0 %v4341
        %9290 = vmatmul.mubr.f32.gmra.mxu0 %v4340
        %v9291 = vpop.f32.mrf.mxu0
        %v9292 = vadd.f32 %v9221, %v9291
        %v9293 = vpop.f32.mrf.mxu0
        %v9294 = vadd.f32 %v9223, %v9293
        %9295 = vdwg.mxu0
        %9296 = vmatprep.subr.mxu0 0.0
        %9297 = vmatpush1.msra.mxu0 0.0
        %9298 = vmatprep.subr.mxu0 0.0
        %9299 = vmatpush1.msra.mxu0 0.0
        %9300 = vmatprep.subr.mxu0 %v9149
        %9301 = vmatpush1.msra.mxu0 %v9148
        %9302 = vmatprep.subr.mxu0 %v9147
        %9303 = vmatpush1.msra.mxu0 %v9146
        %9304 = vmatprep.subr.mxu0 %v9145
        %9305 = vmatpush1.msra.mxu0 %v9144
        %9306 = vmatprep.subr.mxu0 %v9143
        %9307 = vmatpush1.msra.mxu0 %v9142
        %9308 = vmatprep.subr.mxu0 %v9141
        %9309 = vmatpush1.msra.mxu0 %v9140
        %9310 = vmatprep.subr.mxu0 %v9139
        %9311 = vmatpush1.msra.mxu0 %v9138
        %9312 = vmatprep.subr.mxu0 %v9137
        %9313 = vmatpush1.msra.mxu0 %v9136
        %9314 = vmatprep.subr.mxu0 %v9135
        %9315 = vmatpush1.msra.mxu0 %v9134
        %9316 = vmatprep.subr.mxu0 %v9133
        %9317 = vmatpush1.msra.mxu0 %v9132
        %9318 = vmatprep.subr.mxu0 %v9131
        %9319 = vmatpush1.msra.mxu0 %v9130
        %9320 = vmatprep.subr.mxu0 %v9129
        %9321 = vmatpush1.msra.mxu0 %v9128
        %9322 = vmatprep.subr.mxu0 %v9127
        %9323 = vmatpush1.msra.mxu0 %v9126
        %9324 = vmatprep.subr.mxu0 %v9125
        %9325 = vmatpush1.msra.mxu0 %v9124
        %9326 = vmatprep.subr.mxu0 %v9123
        %9327 = vmatpush1.msra.mxu0 %v9122
        %9328 = vmatprep.subr.mxu0 0.0
        %9329 = vmatpush2.msra.mxu0 0.0
        %9330 = vmatprep.subr.mxu0 0.0
        %9331 = vmatpush2.msra.mxu0 0.0
        %9332 = vmatprep.subr.mxu0 0.0
        %9333 = vmatpush2.msra.mxu0 0.0
        %9334 = vmatprep.subr.mxu0 0.0
        %9335 = vmatpush2.msra.mxu0 0.0
        %9336 = vmatprep.subr.mxu0 0.0
        %9337 = vmatpush2.msra.mxu0 0.0
        %9338 = vmatprep.subr.mxu0 0.0
        %9339 = vmatpush2.msra.mxu0 0.0
        %9340 = vmatprep.subr.mxu0 0.0
        %9341 = vmatpush2.msra.mxu0 0.0
        %9342 = vmatprep.subr.mxu0 0.0
        %9343 = vmatpush2.msra.mxu0 0.0
        %9344 = vmatprep.subr.mxu0 0.0
        %9345 = vmatpush2.msra.mxu0 0.0
        %9346 = vmatprep.subr.mxu0 0.0
        %9347 = vmatpush2.msra.mxu0 0.0
        %9348 = vmatprep.subr.mxu0 0.0
        %9349 = vmatpush2.msra.mxu0 0.0
        %9350 = vmatprep.subr.mxu0 0.0
        %9351 = vmatpush2.msra.mxu0 0.0
        %9352 = vmatprep.subr.mxu0 0.0
        %9353 = vmatpush2.msra.mxu0 0.0
        %9354 = vmatprep.subr.mxu0 0.0
        %9355 = vmatpush2.msra.mxu0 0.0
        %9356 = vmatprep.subr.mxu0 0.0
        %9357 = vmatpush2.msra.mxu0 0.0
        %9358 = vmatprep.subr.mxu0 0.0
        %9359 = vmatpush2.msra.mxu0 0.0
        %9360 = vmatprep.mubr.f32.mxu0 0.0
        %9361 = vmatmul.mubr.f32.gmra.mxu0 %v9152
        %v9362 = vpop.f32.mrf.mxu0
        %v9363 = vadd.f32 %v9292, %v9362
        %v9364 = vpop.f32.mrf.mxu0
        %v9365 = vadd.f32 %v9294, %v9364
        %9366 = vdwg.mxu0
        %v9367 = vpack.c.bf16 %v9363, %v9363
        %v9368 = vpack.c.bf16 %v9365, %v9365
        %v9401 = vunpack.c.l.b16 %v4128
        %v9402 = vunpack.c.l.b16 %v4129
        %v9403 = vunpack.c.l.b16 %v4130
        %v9404 = vunpack.c.l.b16 %v4131
        %v9405 = vunpack.c.l.b16 %v4132
        %v9406 = vunpack.c.l.b16 %v4133
        %v9407 = vunpack.c.l.b16 %v4134
        %v9408 = vunpack.c.l.b16 %v4135
        %v9409 = vunpack.c.l.b16 %v4136
        %v9410 = vunpack.c.l.b16 %v4137
        %v9411 = vunpack.c.l.b16 %v4138
        %v9412 = vunpack.c.l.b16 %v4139
        %v9413 = vunpack.c.l.b16 %v4140
        %v9414 = vunpack.c.l.b16 %v4141
        %v9415 = vunpack.c.l.b16 %v4142
        %v9416 = vunpack.c.l.b16 %v4143
        %v9417 = vunpack.c.l.b16 %v4144
        %v9418 = vunpack.c.l.b16 %v4145
        %v9419 = vunpack.c.l.b16 %v4146
        %v9420 = vunpack.c.l.b16 %v4147
        %v9421 = vunpack.c.l.b16 %v4148
        %v9422 = vunpack.c.l.b16 %v4149
        %v9423 = vunpack.c.l.b16 %v4150
        %v9424 = vunpack.c.l.b16 %v4151
        %v9425 = vunpack.c.l.b16 %v4152
        %v9426 = vunpack.c.l.b16 %v4153
        %v9427 = vunpack.c.l.b16 %v4154
        %v9428 = vunpack.c.l.b16 %v4155
        %v9429 = vunpack.c.l.b16 %v4156
        %v9430 = vunpack.c.l.b16 %v4157
        %v9431 = vunpack.c.l.b16 %v4158
        %v9432 = vunpack.c.l.b16 %v4159
        %v9433 = vpack.c.b16 %v9402, %v9401
        %v9434 = vpack.c.b16 %v9404, %v9403
        %v9435 = vpack.c.b16 %v9406, %v9405
        %v9436 = vpack.c.b16 %v9408, %v9407
        %v9437 = vpack.c.b16 %v9410, %v9409
        %v9438 = vpack.c.b16 %v9412, %v9411
        %v9439 = vpack.c.b16 %v9414, %v9413
        %v9440 = vpack.c.b16 %v9416, %v9415
        %v9441 = vpack.c.b16 %v9418, %v9417
        %v9442 = vpack.c.b16 %v9420, %v9419
        %v9443 = vpack.c.b16 %v9422, %v9421
        %v9444 = vpack.c.b16 %v9424, %v9423
        %v9445 = vpack.c.b16 %v9426, %v9425
        %v9446 = vpack.c.b16 %v9428, %v9427
        %v9447 = vpack.c.b16 %v9430, %v9429
        %v9448 = vpack.c.b16 %v9432, %v9431
        %9465 = vmatprep.subr.bf16.mxu0 0
        %9466 = vmatpush1.bf16.msra.mxu0 %v9440
        %9467 = vmatprep.subr.bf16.mxu0 0
        %9468 = vmatpush1.bf16.msra.mxu0 %v9439
        %9469 = vmatprep.subr.bf16.mxu0 0
        %9470 = vmatpush1.bf16.msra.mxu0 %v9438
        %9471 = vmatprep.subr.bf16.mxu0 0
        %9472 = vmatpush1.bf16.msra.mxu0 %v9437
        %9473 = vmatprep.subr.bf16.mxu0 0
        %9474 = vmatpush1.bf16.msra.mxu0 %v9436
        %9475 = vmatprep.subr.bf16.mxu0 0
        %9476 = vmatpush1.bf16.msra.mxu0 %v9435
        %9477 = vmatprep.subr.bf16.mxu0 0
        %9478 = vmatpush1.bf16.msra.mxu0 %v9434
        %9479 = vmatprep.subr.bf16.mxu0 0
        %9480 = vmatpush1.bf16.msra.mxu0 %v9433
        %9481 = vmatprep.subr.bf16.mxu0 0
        %9482 = vmatpush2.bf16.msra.mxu0 %v9448
        %9483 = vmatprep.subr.bf16.mxu0 0
        %9484 = vmatpush2.bf16.msra.mxu0 %v9447
        %9485 = vmatprep.subr.bf16.mxu0 0
        %9486 = vmatpush2.bf16.msra.mxu0 %v9446
        %9487 = vmatprep.subr.bf16.mxu0 0
        %9488 = vmatpush2.bf16.msra.mxu0 %v9445
        %9489 = vmatprep.subr.bf16.mxu0 0
        %9490 = vmatpush2.bf16.msra.mxu0 %v9444
        %9491 = vmatprep.subr.bf16.mxu0 0
        %9492 = vmatpush2.bf16.msra.mxu0 %v9443
        %9493 = vmatprep.subr.bf16.mxu0 0
        %9494 = vmatpush2.bf16.msra.mxu0 %v9442
        %9495 = vmatprep.subr.bf16.mxu0 0
        %9496 = vmatpush2.bf16.msra.mxu0 %v9441
        %9497 = vmatprep.mubr.bf16.mxu0 %v9368
        %9498 = vmatmul.mubr.bf16.gmra.mxu0 %v9367
        %v9499 = vpop.f32.mrf.mxu0
        %v9500 = vadd.f32 %v4160, %v9499
        %v9501 = vpop.f32.mrf.mxu0
        %v9502 = vpop.f32.mrf.mxu0
        %v9503 = vpop.f32.mrf.mxu0
        %9504 = vdwg.mxu0
        %9505 = vst [vmem:[%s270] sm:$0x1] %v9500
        %s9506 = sand.u32 %s181, 1
        %s9507 = scalar_lea.sflag [#allocation3], %s9506
        %s9508 = sand.u32 %s181, 1
        %s9509 = scalar_lea.vmem [#allocation2], %s9508
        // Predicated region
        $region49: #{net_forward.1} parent=47 // pred_check
          %p9510 = pneg %p191
        $region50: #{net_forward.1} parent=47 // pred_check_branch
          %9512 = sbr.rel (%p9510) target = $region52
        $region51: #{net_forward.1} parent=47 // pred_region
          %s9514 = ssub.s32 16, 16
          %9515 = vsyncadd %s9507, %s9514
          %s9516 = smul.addr %s21, 16
          %s9517 = scalar_lea.hbm %s7, %s9516
          %s9519 = sshll.u32 %s9509, 4
          %s9520 = int_to_ptr.vmem [resolvable:$true] %s9519
          %9522 = dma.vmem_to_hbm [thread:$0]  %s9520, 16, %s9517, %s9507
        $region52: #{net_forward.1} parent=47 // pred_fallthru
          _
      $region48: #{net_forward.1} parent=5 // pred_fallthru
        _
      %p9523 = scmp.le.s32.totalorder 2, %s16
      // Predicated region
      $region53: #{net_forward.1} parent=5 // pred_check
        %p9524 = pneg %p9523
      $region54: #{net_forward.1} parent=5 // pred_check_branch
        %9526 = sbr.rel (%p9524) target = $region56
      $region55: #{net_forward.1} parent=5 // pred_region
        %s9527 = ssub.s32 %s16, 2
        // Predicated region
        $region57: #{net_forward.1} parent=55 // pred_check
          %p9528 = pneg %p197
        $region58: #{net_forward.1} parent=55 // pred_check_branch
          %9530 = sbr.rel (%p9528) target = $region60
        $region59: #{net_forward.1} parent=55 // pred_region
          %s9531 = sand.u32 %s182, 1
          %s9532 = scalar_lea.sflag [#allocation3], %s9531
          %s9533 = sand.u32 %s182, 1
          %s9534 = scalar_lea.vmem [#allocation2], %s9533
          %9535 = dma.done %s9532, 16
        $region60: #{net_forward.1} parent=55 // pred_fallthru
          _
      $region56: #{net_forward.1} parent=5 // pred_fallthru
        _
    $region6: #{net_forward.1} parent=1 // loop_footer
      %s20 = sadd.s32 1, %s16
    $region7: #{net_forward.1} parent=1 // loop_footer_branch
      %15 = sbr.rel target = $region3
    $region8: #{net_forward.1} parent=1 // loop_exit
      _
    %9536 = vsyncpa [#allocation3], 1
    %s9537 = scalar_lea.sflag [#allocation3], 1
    %9538 = vsyncpa %s9537, 1

</llo_original>
